<compile_context>
chip_gen: v5e
topology: v5e:2x2
jax: 0.10.0
libtpu: 0.0.40
codegen_flags: <defaults>
</compile_context>

<pallas_src>
import jax
import jax.numpy as jnp
from jax.experimental import pallas as pl
from jax.experimental.pallas import tpu as pltpu

_EPS = 0.3
_LANE_WIDTH = 1024              # 8 sublanes * 128 lanes -> lane-dense f32 slabs
_SUBLANES = 8
_TARGET_BLOCK_BYTES = 8 << 20   # per input/output buffer on the 2-D (aligned) path
_RAGGED_BLOCK_BYTES = 1 << 20   # conservative per-buffer size for the 1-D path
_RAGGED_UNIT = 4096             # multiple of sublane*lane*packing for every dtype
_VMEM_LIMIT_BYTES = 48 << 20    # 32 MiB of pipelined buffers + headroom; <= v7x 64 MiB
_FAST_PATH_MAX_ELEMS = 1 << 18  # below this a fused XLA elementwise op is faster


def _lienet_relu_math(x_f32):
    """Exact PyTorch mask arithmetic (propagates NaN like the original module)."""
    one = lambda m: m.astype(jnp.float32)
    eps = jnp.float32(_EPS)
    r_max = one(x_f32 < eps) * eps + one(x_f32 >= eps) * x_f32
    r_positive = r_max * one(x_f32 > 0)
    r_min = one(x_f32 > -eps) * (-eps) + one(x_f32 <= -eps) * x_f32
    r_negative = r_min * one(x_f32 < 0)
    return r_positive + r_negative


def _lienet_relu_kernel(x_ref, y_ref):
    # Compute hidden under DMA (HBM is the saturating resource); f32 math.
    x = x_ref[...].astype(jnp.float32)
    y_ref[...] = _lienet_relu_math(x).astype(y_ref.dtype)


def _round_up(v, m):
    return ((v + m - 1) // m) * m


def _choose_block(total, unit, target):
    """Block length (rows or elements): multiple of `unit` (or full extent),
    at most ~`target`, and giving >=2 (preferably an even number of) grid steps
    so the "parallel" axis shards across both v7x TensorCores."""
    if total <= unit:
        return total                                  # full-extent single block
    target = max(unit, (target // unit) * unit)
    block = min(target, _round_up(pl.cdiv(total, 2), unit))
    steps = pl.cdiv(total, block)
    if steps > 1 and steps % 2 == 1:                  # avoid an idle-TC odd step
        block = _round_up(pl.cdiv(total, steps + 1), unit)
    return block


def _pallas_elementwise(x, block_shape, donate):
    grid = (pl.cdiv(x.shape[0], block_shape[0]),)
    trailing = (0,) * (len(block_shape) - 1)
    index_map = lambda i: (i,) + trailing
    return pl.pallas_call(
        _lienet_relu_kernel,
        out_shape=jax.ShapeDtypeStruct(x.shape, x.dtype),
        grid_spec=pltpu.PrefetchScalarGridSpec(
            num_scalar_prefetch=0,
            grid=grid,
            in_specs=[pl.BlockSpec(block_shape, index_map)],
            out_specs=pl.BlockSpec(block_shape, index_map),
        ),
        compiler_params=pltpu.CompilerParams(
            dimension_semantics=("parallel",),
            vmem_limit_bytes=_VMEM_LIMIT_BYTES,
        ),
        input_output_aliases=({0: 0} if donate else {}),
    )(x)


def lienet_relu(x: jax.Array, *, donate: bool = False) -> jax.Array:
    """LieNet 'Relu' forward (eps = 0.3), exact PyTorch semantics."""
    orig_shape = x.shape
    orig_dtype = x.dtype
    n = x.size
    if n == 0:
        return x
    if n < _FAST_PATH_MAX_ELEMS:
        # Kernel launch + pipeline warmup dominates tiny tensors; let XLA fuse.
        return _lienet_relu_math(x.astype(jnp.float32)).astype(orig_dtype)

    itemsize = jnp.dtype(orig_dtype).itemsize
    flat = x.reshape(-1)

    if n % _LANE_WIDTH == 0:
        # Lane-dense (rows, 1024) slabs: full-width unmasked stores, no padding.
        rows = n // _LANE_WIDTH
        sublane_unit = _SUBLANES * max(1, 4 // itemsize)   # 8 / 16 / 32 rows
        target_rows = max(sublane_unit,
                          _TARGET_BLOCK_BYTES // (_LANE_WIDTH * itemsize))
        block_rows = _choose_block(rows, sublane_unit, target_rows)
        y2d = _pallas_elementwise(flat.reshape(rows, _LANE_WIDTH),
                                  (block_rows, _LANE_WIDTH), donate)
        return y2d.reshape(orig_shape)

    # Ragged size: 1-D view; Pallas masks the partial last block. No pad/slice,
    # so there is no extra HBM round trip around the kernel.
    target_elems = max(
        _RAGGED_UNIT,
        (_RAGGED_BLOCK_BYTES // (_RAGGED_UNIT * itemsize)) * _RAGGED_UNIT)
    block_elems = _choose_block(n, _RAGGED_UNIT, target_elems)
    y = _pallas_elementwise(flat, (block_elems,), donate)
    return y.reshape(orig_shape)


def _reference(x):
    return _lienet_relu_math(x.astype(jnp.float32)).astype(x.dtype)


if __name__ == "__main__":
    key = jax.random.PRNGKey(0)
    k1, k2, k3, k4 = jax.random.split(key, 4)

    # Module-sized input (small-input fast path: fused XLA elementwise).
    x_small = jax.random.normal(k1, (2, 4, 16, 16), dtype=jnp.float32)
    # 1024-aligned input -> lane-dense 2-D Pallas path (2 grid steps).
    x_aligned = jax.random.normal(k2, (512, 1024), dtype=jnp.float32)
    # Ragged (n % 1024 != 0) input -> 1-D Pallas path with masked tail block.
    x_ragged = jax.random.normal(k3, (3, 7, 127, 129), dtype=jnp.float32)
    # bf16 input -> block rows scaled so bytes-per-step stays constant.
    x_bf16 = jax.random.normal(k4, (288, 1024), dtype=jnp.bfloat16)

    for xi in (x_small, x_aligned, x_ragged, x_bf16):
        y = jax.block_until_ready(lienet_relu(xi))
        y_ref = _reference(xi)
        assert y.shape == xi.shape and y.dtype == xi.dtype
        atol = 1e-6 if xi.dtype == jnp.float32 else 1e-2
        ok = jnp.allclose(y.astype(jnp.float32), y_ref.astype(jnp.float32),
                          atol=atol, rtol=0)
        assert bool(ok), f"mismatch vs reference for {xi.shape} {xi.dtype}"

    print("KERNEL_OK")
</pallas_src>

<mosaic_0001>
module attributes {stable_mosaic.version = 11 : i64} {
  func.func @_lienet_relu_kernel(%arg0: i32, %arg1: memref<256x1024xf32, #tpu.memory_space<vmem>>, %arg2: memref<256x1024xf32, #tpu.memory_space<vmem>>) attributes {dimension_semantics = [#tpu.dimension_semantics<parallel>], iteration_bounds = array<i64: 2>, scalar_prefetch = 0 : i64, scratch_operands = 0 : i64, tpu.core_type = #tpu.core_type<tc>, window_params = [{transform_indices = @transform_0, window_bounds = array<i64: 256, 1024>}, {transform_indices = @transform_1, window_bounds = array<i64: 256, 1024>}]} {
    %c0 = arith.constant 0 : index
    %c0_0 = arith.constant 0 : index
    %0 = vector.load %arg1[%c0, %c0_0] : memref<256x1024xf32, #tpu.memory_space<vmem>>, vector<256x1024xf32>
    %cst = arith.constant 3.000000e-01 : f32
    %1 = vector.broadcast %cst : f32 to vector<256x1024xf32>
    %2 = arith.cmpf olt, %0, %1 : vector<256x1024xf32>
    %3 = arith.extui %2 : vector<256x1024xi1> to vector<256x1024xi32>
    %4 = arith.sitofp %3 : vector<256x1024xi32> to vector<256x1024xf32>
    %cst_1 = arith.constant 3.000000e-01 : f32
    %5 = vector.broadcast %cst_1 : f32 to vector<256x1024xf32>
    %6 = arith.mulf %4, %5 : vector<256x1024xf32>
    %cst_2 = arith.constant 3.000000e-01 : f32
    %7 = vector.broadcast %cst_2 : f32 to vector<256x1024xf32>
    %8 = arith.cmpf oge, %0, %7 : vector<256x1024xf32>
    %9 = arith.extui %8 : vector<256x1024xi1> to vector<256x1024xi32>
    %10 = arith.sitofp %9 : vector<256x1024xi32> to vector<256x1024xf32>
    %11 = arith.mulf %10, %0 : vector<256x1024xf32>
    %12 = arith.addf %6, %11 : vector<256x1024xf32>
    %cst_3 = arith.constant 0.000000e+00 : f32
    %13 = vector.broadcast %cst_3 : f32 to vector<256x1024xf32>
    %14 = arith.cmpf ogt, %0, %13 : vector<256x1024xf32>
    %15 = arith.extui %14 : vector<256x1024xi1> to vector<256x1024xi32>
    %16 = arith.sitofp %15 : vector<256x1024xi32> to vector<256x1024xf32>
    %17 = arith.mulf %12, %16 : vector<256x1024xf32>
    %cst_4 = arith.constant 0.000000e+00 : f32
    %cst_5 = arith.constant 3.000000e-01 : f32
    %18 = arith.subf %cst_4, %cst_5 : f32
    %19 = vector.broadcast %18 : f32 to vector<256x1024xf32>
    %20 = arith.cmpf ogt, %0, %19 : vector<256x1024xf32>
    %21 = arith.extui %20 : vector<256x1024xi1> to vector<256x1024xi32>
    %22 = arith.sitofp %21 : vector<256x1024xi32> to vector<256x1024xf32>
    %cst_6 = arith.constant 0.000000e+00 : f32
    %cst_7 = arith.constant 3.000000e-01 : f32
    %23 = arith.subf %cst_6, %cst_7 : f32
    %24 = vector.broadcast %23 : f32 to vector<256x1024xf32>
    %25 = arith.mulf %22, %24 : vector<256x1024xf32>
    %cst_8 = arith.constant 0.000000e+00 : f32
    %cst_9 = arith.constant 3.000000e-01 : f32
    %26 = arith.subf %cst_8, %cst_9 : f32
    %27 = vector.broadcast %26 : f32 to vector<256x1024xf32>
    %28 = arith.cmpf ole, %0, %27 : vector<256x1024xf32>
    %29 = arith.extui %28 : vector<256x1024xi1> to vector<256x1024xi32>
    %30 = arith.sitofp %29 : vector<256x1024xi32> to vector<256x1024xf32>
    %31 = arith.mulf %30, %0 : vector<256x1024xf32>
    %32 = arith.addf %25, %31 : vector<256x1024xf32>
    %cst_10 = arith.constant 0.000000e+00 : f32
    %33 = vector.broadcast %cst_10 : f32 to vector<256x1024xf32>
    %34 = arith.cmpf olt, %0, %33 : vector<256x1024xf32>
    %35 = arith.extui %34 : vector<256x1024xi1> to vector<256x1024xi32>
    %36 = arith.sitofp %35 : vector<256x1024xi32> to vector<256x1024xf32>
    %37 = arith.mulf %32, %36 : vector<256x1024xf32>
    %38 = arith.addf %17, %37 : vector<256x1024xf32>
    %c0_11 = arith.constant 0 : index
    %c0_12 = arith.constant 0 : index
    %39 = vector.load %arg2[%c0_11, %c0_12] : memref<256x1024xf32, #tpu.memory_space<vmem>>, vector<256x1024xf32>
    tpu.vector_store %arg2[%c0_11, %c0_12], %38 {strides = array<i32>} : memref<256x1024xf32, #tpu.memory_space<vmem>>, vector<256x1024xf32>,
    return
  }
  func.func @transform_0(%arg0: i32) -> (i32, i32) {
    %c0_i32 = arith.constant 0 : i32
    %c0_i32_0 = arith.constant 0 : i32
    return %arg0, %c0_i32 : i32, i32
  }
  func.func @transform_1(%arg0: i32) -> (i32, i32) {
    %c0_i32 = arith.constant 0 : i32
    %c0_i32_0 = arith.constant 0 : i32
    return %arg0, %c0_i32 : i32, i32
  }
}

</mosaic_0001>

<llo_original>
// kernel: tpu_custom_call.1
$region0: #{tpu_custom_call.1}
  #allocation0 [shape = 'u32[]', space=smem, size = 0x4, offset = 0x4, fixed_abs, tag = 'smem constant byte address 0x4 - core index']
  #allocation1 [shape = 'u32[72,128]{1,0:T(1,128)}', space=vmem, size = 0x9000, scoped, tag = 'internal scratch']
  %s0 = inlined_call_operand.hbm [shape: f32[512,1024], index: 0, kind: input, shape index: {}]
  %s1 = inlined_call_operand.hbm [shape: f32[512,1024], index: 1, kind: output, shape index: {}]
  %s2 = sld [smem:[#allocation0]]
  $region41: #{tpu_custom_call.1} parent=0
    _
  %s4 = ssub.s32 1, %s2
  %s5 = scalar_select 0, %s4, %s2
  $region1: #{tpu_custom_call.1} parent=0
    #allocation2 [shape = 'u8[2097152]{0}', space=vmem, size = 0x200000, scoped, tag = 'input window, operand 0']
    #allocation3 [shape = 's32[2]{0}', space=sflag, size = 0x8, scoped, tag = 'scoped memory for tpu_custom_call.1']
    #allocation4 [shape = 's32[2]{0}', space=sflag, size = 0x8, scoped, tag = 'scoped memory for tpu_custom_call.1']
    #allocation5 [shape = 'u8[2097152]{0}', space=vmem, size = 0x200000, scoped, tag = 'output window, operand 0']
    %6 = vsyncpa [#allocation3], 0
    %s7 = scalar_lea.sflag [#allocation3], 1
    %8 = vsyncpa %s7, 0
    %9 = vsyncpa [#allocation4], 0
    %s10 = scalar_lea.sflag [#allocation4], 1
    %11 = vsyncpa %s10, 0
    loop: start=0, step=1, limit=4
    $region2: #{tpu_custom_call.1} parent=1 // loop_pre_header
      _
    $region3: #{tpu_custom_call.1} parent=1 // loop_header
      %s13 = sphi 0, %s17
      %p14 = scmp.ge.s32.totalorder %s13, 4
      %s23 = sphi 0, %s25
      %s26 = sphi 0, %s23
      %s27 = sphi 0, %s26
      %s43 = sphi 0, %s27
      %s49 = sphi 0, %s51
      %s52 = sphi 0, %s49
      %s53 = sphi 0, %s52
      %s69 = sphi 0, %s53
    $region4: #{tpu_custom_call.1} parent=1 // loop_header_branch
      %16 = sbr.rel (%p14) target = $region8
    $region5: #{tpu_custom_call.1} parent=1 // loop_body
      %s18 = ssub.s32 %s13, 1
      %s19 = ssub.s32 %s13, 2
      %s20 = sadd.s32 %s13, 1
      %s21 = ssub.s32 %s13, %s20
      %p22 = scmp.eq.s32.totalorder %s21, 0
      %s24 = sadd.s32 %s23, 1
      %s25 = scalar_select %p22, %s23, %s24
      %p28 = pneg %p22
      %p29 = scmp.eq.s32.totalorder %s13, 1
      %p30 = por %p28, %p29
      %p31 = scmp.ne.s32.totalorder %s23, %s26
      %p32 = scmp.eq.s32.totalorder %s13, 0
      %p33 = por %p31, %p32
      %p34 = scmp.ne.s32.totalorder %s23, %s26
      %p35 = scmp.eq.s32.totalorder %s18, 1
      %p36 = por %p34, %p35
      %p37 = scmp.ne.s32.totalorder %s26, %s27
      %p38 = scmp.eq.s32.totalorder %s18, 0
      %p39 = por %p37, %p38
      %p40 = scmp.ne.s32.totalorder %s26, %s27
      %p41 = scmp.eq.s32.totalorder %s19, 1
      %p42 = por %p40, %p41
      %p44 = scmp.ne.s32.totalorder %s27, %s43
      %p45 = scmp.eq.s32.totalorder %s19, 0
      %p46 = por %p44, %p45
      %s47 = ssub.s32 %s13, %s20
      %p48 = scmp.eq.s32.totalorder %s47, 0
      %s50 = sadd.s32 %s49, 1
      %s51 = scalar_select %p48, %s49, %s50
      %p54 = pneg %p48
      %p55 = scmp.eq.s32.totalorder %s13, 1
      %p56 = por %p54, %p55
      %p57 = scmp.ne.s32.totalorder %s49, %s52
      %p58 = scmp.eq.s32.totalorder %s13, 0
      %p59 = por %p57, %p58
      %p60 = scmp.ne.s32.totalorder %s49, %s52
      %p61 = scmp.eq.s32.totalorder %s18, 1
      %p62 = por %p60, %p61
      %p63 = scmp.ne.s32.totalorder %s52, %s53
      %p64 = scmp.eq.s32.totalorder %s18, 0
      %p65 = por %p63, %p64
      %p66 = scmp.ne.s32.totalorder %s52, %s53
      %p67 = scmp.eq.s32.totalorder %s19, 1
      %p68 = por %p66, %p67
      %p70 = scmp.ne.s32.totalorder %s53, %s69
      %p71 = scmp.eq.s32.totalorder %s19, 0
      %p72 = por %p70, %p71
      %p73 = scmp.le.s32.totalorder 1, %s13
      %p74 = scmp.lt.s32.totalorder %s13, 3
      %p75 = pnand %p73, %p74
      %p76 = pneg %p75
      // Predicated region
      $region9: #{tpu_custom_call.1} parent=5 // pred_check
        _
      $region10: #{tpu_custom_call.1} parent=5 // pred_check_branch
        %78 = sbr.rel (%p75) target = $region12
      $region11: #{tpu_custom_call.1} parent=5 // pred_region
        %s79 = ssub.s32 %s13, 1
      $region12: #{tpu_custom_call.1} parent=5 // pred_fallthru
        _
      %p80 = scmp.lt.s32.totalorder %s13, 2
      // Predicated region
      $region13: #{tpu_custom_call.1} parent=5 // pred_check
        %p81 = pneg %p80
      $region14: #{tpu_custom_call.1} parent=5 // pred_check_branch
        %83 = sbr.rel (%p81) target = $region16
      $region15: #{tpu_custom_call.1} parent=5 // pred_region
        // Predicated region
        $region17: #{tpu_custom_call.1} parent=15 // pred_check
          %p84 = pneg %p33
        $region18: #{tpu_custom_call.1} parent=15 // pred_check_branch
          %86 = sbr.rel (%p84) target = $region20
        $region19: #{tpu_custom_call.1} parent=15 // pred_region
          %s87 = sand.u32 %s23, 1
          %s88 = scalar_lea.sflag [#allocation3], %s87
          %s89 = sand.u32 %s23, 1
          %s90 = smul.addr %s89, 2048
          %s91 = scalar_lea.vmem [#allocation2], %s90
          %s92 = smul.u32 32, %s13
          %94 = vsyncadd %s88, 0
          %s95 = smul.addr %s92, 8
          %s96 = smul.addr %s95, 8
          %s97 = scalar_lea.hbm %s0, %s96
          %s98 = sshll.u32 %s97, 4
          %s99 = int_to_ptr.hbm [resolvable:$true] %s98
          %s100 = sshll.u32 %s91, 4
          %s101 = int_to_ptr.vmem [resolvable:$true] %s100
          %106 = dma.hbm_to_vmem [thread:$0]  %s99, 32768, %s101, %s88, 1024, 1024, 64
        $region20: #{tpu_custom_call.1} parent=15 // pred_fallthru
          _
      $region16: #{tpu_custom_call.1} parent=5 // pred_fallthru
        _
      %p107 = scmp.le.s32.totalorder 1, %s13
      %p108 = scmp.lt.s32.totalorder %s13, 3
      %p109 = pnand %p107, %p108
      %p110 = pneg %p109
      // Predicated region
      $region21: #{tpu_custom_call.1} parent=5 // pred_check
        _
      $region22: #{tpu_custom_call.1} parent=5 // pred_check_branch
        %112 = sbr.rel (%p109) target = $region24
      $region23: #{tpu_custom_call.1} parent=5 // pred_region
        %s113 = ssub.s32 %s13, 1
        %s114 = sand.u32 %s26, 1
        %s115 = scalar_lea.sflag [#allocation3], %s114
        %s116 = sand.u32 %s26, 1
        %s117 = smul.addr %s116, 2048
        %s118 = scalar_lea.vmem [#allocation2], %s117
        // Predicated region
        $region25: #{tpu_custom_call.1} parent=23 // pred_check
          %p119 = pneg %p39
        $region26: #{tpu_custom_call.1} parent=23 // pred_check_branch
          %121 = sbr.rel (%p119) target = $region28
        $region27: #{tpu_custom_call.1} parent=23 // pred_region
          %123 = dma.done %s115, 32768
        $region28: #{tpu_custom_call.1} parent=23 // pred_fallthru
          _
        %s124 = sand.u32 %s26, 1
        %s125 = scalar_lea.sflag [#allocation3], %s124
        %s126 = sand.u32 %s26, 1
        %s127 = smul.addr %s126, 2048
        %s128 = scalar_lea.vmem [#allocation2], %s127
        %p129 = pneg %p39
        %p130 = pneg %p36
        %p131 = pneg %p65
        %p132 = pneg %p62
        %s133 = sand.u32 %s52, 1
        %s134 = scalar_lea.sflag [#allocation4], %s133
        %s135 = sand.u32 %s52, 1
        %s136 = smul.addr %s135, 2048
        %s137 = scalar_lea.vmem [#allocation5], %s136
        %s138 = smul.u32 32, %s18
        %s139 = smul.u32 32, %s18
        %v140 = vld [vmem:[%s118] sm:$0xff]
        %v141 = vld [vmem:[%s118 + $0x8] sm:$0xff]
        %v142 = vld [vmem:[%s118 + $0x10] sm:$0xff]
        %v143 = vld [vmem:[%s118 + $0x18] sm:$0xff]
        %v144 = vld [vmem:[%s118 + $0x20] sm:$0xff]
        %v145 = vld [vmem:[%s118 + $0x28] sm:$0xff]
        %v146 = vld [vmem:[%s118 + $0x30] sm:$0xff]
        %v147 = vld [vmem:[%s118 + $0x38] sm:$0xff]
        %v148 = vld [vmem:[%s118 + $0x40] sm:$0xff]
        %v149 = vld [vmem:[%s118 + $0x48] sm:$0xff]
        %v150 = vld [vmem:[%s118 + $0x50] sm:$0xff]
        %v151 = vld [vmem:[%s118 + $0x58] sm:$0xff]
        %v152 = vld [vmem:[%s118 + $0x60] sm:$0xff]
        %v153 = vld [vmem:[%s118 + $0x68] sm:$0xff]
        %v154 = vld [vmem:[%s118 + $0x70] sm:$0xff]
        %v155 = vld [vmem:[%s118 + $0x78] sm:$0xff]
        %v156 = vld [vmem:[%s118 + $0x80] sm:$0xff]
        %v157 = vld [vmem:[%s118 + $0x88] sm:$0xff]
        %v158 = vld [vmem:[%s118 + $0x90] sm:$0xff]
        %v159 = vld [vmem:[%s118 + $0x98] sm:$0xff]
        %v160 = vld [vmem:[%s118 + $0xa0] sm:$0xff]
        %v161 = vld [vmem:[%s118 + $0xa8] sm:$0xff]
        %v162 = vld [vmem:[%s118 + $0xb0] sm:$0xff]
        %v163 = vld [vmem:[%s118 + $0xb8] sm:$0xff]
        %v164 = vld [vmem:[%s118 + $0xc0] sm:$0xff]
        %v165 = vld [vmem:[%s118 + $0xc8] sm:$0xff]
        %v166 = vld [vmem:[%s118 + $0xd0] sm:$0xff]
        %v167 = vld [vmem:[%s118 + $0xd8] sm:$0xff]
        %v168 = vld [vmem:[%s118 + $0xe0] sm:$0xff]
        %v169 = vld [vmem:[%s118 + $0xe8] sm:$0xff]
        %v170 = vld [vmem:[%s118 + $0xf0] sm:$0xff]
        %v171 = vld [vmem:[%s118 + $0xf8] sm:$0xff]
        %v172 = vld [vmem:[%s118 + $0x100] sm:$0xff]
        %v173 = vld [vmem:[%s118 + $0x108] sm:$0xff]
        %v174 = vld [vmem:[%s118 + $0x110] sm:$0xff]
        %v175 = vld [vmem:[%s118 + $0x118] sm:$0xff]
        %v176 = vld [vmem:[%s118 + $0x120] sm:$0xff]
        %v177 = vld [vmem:[%s118 + $0x128] sm:$0xff]
        %v178 = vld [vmem:[%s118 + $0x130] sm:$0xff]
        %v179 = vld [vmem:[%s118 + $0x138] sm:$0xff]
        %v180 = vld [vmem:[%s118 + $0x140] sm:$0xff]
        %v181 = vld [vmem:[%s118 + $0x148] sm:$0xff]
        %v182 = vld [vmem:[%s118 + $0x150] sm:$0xff]
        %v183 = vld [vmem:[%s118 + $0x158] sm:$0xff]
        %v184 = vld [vmem:[%s118 + $0x160] sm:$0xff]
        %v185 = vld [vmem:[%s118 + $0x168] sm:$0xff]
        %v186 = vld [vmem:[%s118 + $0x170] sm:$0xff]
        %v187 = vld [vmem:[%s118 + $0x178] sm:$0xff]
        %v188 = vld [vmem:[%s118 + $0x180] sm:$0xff]
        %v189 = vld [vmem:[%s118 + $0x188] sm:$0xff]
        %v190 = vld [vmem:[%s118 + $0x190] sm:$0xff]
        %v191 = vld [vmem:[%s118 + $0x198] sm:$0xff]
        %v192 = vld [vmem:[%s118 + $0x1a0] sm:$0xff]
        %v193 = vld [vmem:[%s118 + $0x1a8] sm:$0xff]
        %v194 = vld [vmem:[%s118 + $0x1b0] sm:$0xff]
        %v195 = vld [vmem:[%s118 + $0x1b8] sm:$0xff]
        %v196 = vld [vmem:[%s118 + $0x1c0] sm:$0xff]
        %v197 = vld [vmem:[%s118 + $0x1c8] sm:$0xff]
        %v198 = vld [vmem:[%s118 + $0x1d0] sm:$0xff]
        %v199 = vld [vmem:[%s118 + $0x1d8] sm:$0xff]
        %v200 = vld [vmem:[%s118 + $0x1e0] sm:$0xff]
        %v201 = vld [vmem:[%s118 + $0x1e8] sm:$0xff]
        %v202 = vld [vmem:[%s118 + $0x1f0] sm:$0xff]
        %v203 = vld [vmem:[%s118 + $0x1f8] sm:$0xff]
        %v204 = vld [vmem:[%s118 + $0x200] sm:$0xff]
        %v205 = vld [vmem:[%s118 + $0x208] sm:$0xff]
        %v206 = vld [vmem:[%s118 + $0x210] sm:$0xff]
        %v207 = vld [vmem:[%s118 + $0x218] sm:$0xff]
        %v208 = vld [vmem:[%s118 + $0x220] sm:$0xff]
        %v209 = vld [vmem:[%s118 + $0x228] sm:$0xff]
        %v210 = vld [vmem:[%s118 + $0x230] sm:$0xff]
        %v211 = vld [vmem:[%s118 + $0x238] sm:$0xff]
        %v212 = vld [vmem:[%s118 + $0x240] sm:$0xff]
        %v213 = vld [vmem:[%s118 + $0x248] sm:$0xff]
        %v214 = vld [vmem:[%s118 + $0x250] sm:$0xff]
        %v215 = vld [vmem:[%s118 + $0x258] sm:$0xff]
        %v216 = vld [vmem:[%s118 + $0x260] sm:$0xff]
        %v217 = vld [vmem:[%s118 + $0x268] sm:$0xff]
        %v218 = vld [vmem:[%s118 + $0x270] sm:$0xff]
        %v219 = vld [vmem:[%s118 + $0x278] sm:$0xff]
        %v220 = vld [vmem:[%s118 + $0x280] sm:$0xff]
        %v221 = vld [vmem:[%s118 + $0x288] sm:$0xff]
        %v222 = vld [vmem:[%s118 + $0x290] sm:$0xff]
        %v223 = vld [vmem:[%s118 + $0x298] sm:$0xff]
        %v224 = vld [vmem:[%s118 + $0x2a0] sm:$0xff]
        %v225 = vld [vmem:[%s118 + $0x2a8] sm:$0xff]
        %v226 = vld [vmem:[%s118 + $0x2b0] sm:$0xff]
        %v227 = vld [vmem:[%s118 + $0x2b8] sm:$0xff]
        %v228 = vld [vmem:[%s118 + $0x2c0] sm:$0xff]
        %v229 = vld [vmem:[%s118 + $0x2c8] sm:$0xff]
        %v230 = vld [vmem:[%s118 + $0x2d0] sm:$0xff]
        %v231 = vld [vmem:[%s118 + $0x2d8] sm:$0xff]
        %v232 = vld [vmem:[%s118 + $0x2e0] sm:$0xff]
        %v233 = vld [vmem:[%s118 + $0x2e8] sm:$0xff]
        %v234 = vld [vmem:[%s118 + $0x2f0] sm:$0xff]
        %v235 = vld [vmem:[%s118 + $0x2f8] sm:$0xff]
        %v236 = vld [vmem:[%s118 + $0x300] sm:$0xff]
        %v237 = vld [vmem:[%s118 + $0x308] sm:$0xff]
        %v238 = vld [vmem:[%s118 + $0x310] sm:$0xff]
        %v239 = vld [vmem:[%s118 + $0x318] sm:$0xff]
        %v240 = vld [vmem:[%s118 + $0x320] sm:$0xff]
        %v241 = vld [vmem:[%s118 + $0x328] sm:$0xff]
        %v242 = vld [vmem:[%s118 + $0x330] sm:$0xff]
        %v243 = vld [vmem:[%s118 + $0x338] sm:$0xff]
        %v244 = vld [vmem:[%s118 + $0x340] sm:$0xff]
        %v245 = vld [vmem:[%s118 + $0x348] sm:$0xff]
        %v246 = vld [vmem:[%s118 + $0x350] sm:$0xff]
        %v247 = vld [vmem:[%s118 + $0x358] sm:$0xff]
        %v248 = vld [vmem:[%s118 + $0x360] sm:$0xff]
        %v249 = vld [vmem:[%s118 + $0x368] sm:$0xff]
        %v250 = vld [vmem:[%s118 + $0x370] sm:$0xff]
        %v251 = vld [vmem:[%s118 + $0x378] sm:$0xff]
        %v252 = vld [vmem:[%s118 + $0x380] sm:$0xff]
        %v253 = vld [vmem:[%s118 + $0x388] sm:$0xff]
        %v254 = vld [vmem:[%s118 + $0x390] sm:$0xff]
        %v255 = vld [vmem:[%s118 + $0x398] sm:$0xff]
        %v256 = vld [vmem:[%s118 + $0x3a0] sm:$0xff]
        %v257 = vld [vmem:[%s118 + $0x3a8] sm:$0xff]
        %v258 = vld [vmem:[%s118 + $0x3b0] sm:$0xff]
        %v259 = vld [vmem:[%s118 + $0x3b8] sm:$0xff]
        %v260 = vld [vmem:[%s118 + $0x3c0] sm:$0xff]
        %v261 = vld [vmem:[%s118 + $0x3c8] sm:$0xff]
        %v262 = vld [vmem:[%s118 + $0x3d0] sm:$0xff]
        %v263 = vld [vmem:[%s118 + $0x3d8] sm:$0xff]
        %v264 = vld [vmem:[%s118 + $0x3e0] sm:$0xff]
        %v265 = vld [vmem:[%s118 + $0x3e8] sm:$0xff]
        %v266 = vld [vmem:[%s118 + $0x3f0] sm:$0xff]
        %v267 = vld [vmem:[%s118 + $0x3f8] sm:$0xff]
        %v268 = vld [vmem:[%s118 + $0x400] sm:$0xff]
        %v269 = vld [vmem:[%s118 + $0x408] sm:$0xff]
        %v270 = vld [vmem:[%s118 + $0x410] sm:$0xff]
        %v271 = vld [vmem:[%s118 + $0x418] sm:$0xff]
        %v272 = vld [vmem:[%s118 + $0x420] sm:$0xff]
        %v273 = vld [vmem:[%s118 + $0x428] sm:$0xff]
        %v274 = vld [vmem:[%s118 + $0x430] sm:$0xff]
        %v275 = vld [vmem:[%s118 + $0x438] sm:$0xff]
        %v276 = vld [vmem:[%s118 + $0x440] sm:$0xff]
        %v277 = vld [vmem:[%s118 + $0x448] sm:$0xff]
        %v278 = vld [vmem:[%s118 + $0x450] sm:$0xff]
        %v279 = vld [vmem:[%s118 + $0x458] sm:$0xff]
        %v280 = vld [vmem:[%s118 + $0x460] sm:$0xff]
        %v281 = vld [vmem:[%s118 + $0x468] sm:$0xff]
        %v282 = vld [vmem:[%s118 + $0x470] sm:$0xff]
        %v283 = vld [vmem:[%s118 + $0x478] sm:$0xff]
        %v284 = vld [vmem:[%s118 + $0x480] sm:$0xff]
        %v285 = vld [vmem:[%s118 + $0x488] sm:$0xff]
        %v286 = vld [vmem:[%s118 + $0x490] sm:$0xff]
        %v287 = vld [vmem:[%s118 + $0x498] sm:$0xff]
        %v288 = vld [vmem:[%s118 + $0x4a0] sm:$0xff]
        %v289 = vld [vmem:[%s118 + $0x4a8] sm:$0xff]
        %v290 = vld [vmem:[%s118 + $0x4b0] sm:$0xff]
        %v291 = vld [vmem:[%s118 + $0x4b8] sm:$0xff]
        %v292 = vld [vmem:[%s118 + $0x4c0] sm:$0xff]
        %v293 = vld [vmem:[%s118 + $0x4c8] sm:$0xff]
        %v294 = vld [vmem:[%s118 + $0x4d0] sm:$0xff]
        %v295 = vld [vmem:[%s118 + $0x4d8] sm:$0xff]
        %v296 = vld [vmem:[%s118 + $0x4e0] sm:$0xff]
        %v297 = vld [vmem:[%s118 + $0x4e8] sm:$0xff]
        %v298 = vld [vmem:[%s118 + $0x4f0] sm:$0xff]
        %v299 = vld [vmem:[%s118 + $0x4f8] sm:$0xff]
        %v300 = vld [vmem:[%s118 + $0x500] sm:$0xff]
        %v301 = vld [vmem:[%s118 + $0x508] sm:$0xff]
        %v302 = vld [vmem:[%s118 + $0x510] sm:$0xff]
        %v303 = vld [vmem:[%s118 + $0x518] sm:$0xff]
        %v304 = vld [vmem:[%s118 + $0x520] sm:$0xff]
        %v305 = vld [vmem:[%s118 + $0x528] sm:$0xff]
        %v306 = vld [vmem:[%s118 + $0x530] sm:$0xff]
        %v307 = vld [vmem:[%s118 + $0x538] sm:$0xff]
        %v308 = vld [vmem:[%s118 + $0x540] sm:$0xff]
        %v309 = vld [vmem:[%s118 + $0x548] sm:$0xff]
        %v310 = vld [vmem:[%s118 + $0x550] sm:$0xff]
        %v311 = vld [vmem:[%s118 + $0x558] sm:$0xff]
        %v312 = vld [vmem:[%s118 + $0x560] sm:$0xff]
        %v313 = vld [vmem:[%s118 + $0x568] sm:$0xff]
        %v314 = vld [vmem:[%s118 + $0x570] sm:$0xff]
        %v315 = vld [vmem:[%s118 + $0x578] sm:$0xff]
        %v316 = vld [vmem:[%s118 + $0x580] sm:$0xff]
        %v317 = vld [vmem:[%s118 + $0x588] sm:$0xff]
        %v318 = vld [vmem:[%s118 + $0x590] sm:$0xff]
        %v319 = vld [vmem:[%s118 + $0x598] sm:$0xff]
        %v320 = vld [vmem:[%s118 + $0x5a0] sm:$0xff]
        %v321 = vld [vmem:[%s118 + $0x5a8] sm:$0xff]
        %v322 = vld [vmem:[%s118 + $0x5b0] sm:$0xff]
        %v323 = vld [vmem:[%s118 + $0x5b8] sm:$0xff]
        %v324 = vld [vmem:[%s118 + $0x5c0] sm:$0xff]
        %v325 = vld [vmem:[%s118 + $0x5c8] sm:$0xff]
        %v326 = vld [vmem:[%s118 + $0x5d0] sm:$0xff]
        %v327 = vld [vmem:[%s118 + $0x5d8] sm:$0xff]
        %v328 = vld [vmem:[%s118 + $0x5e0] sm:$0xff]
        %v329 = vld [vmem:[%s118 + $0x5e8] sm:$0xff]
        %v330 = vld [vmem:[%s118 + $0x5f0] sm:$0xff]
        %v331 = vld [vmem:[%s118 + $0x5f8] sm:$0xff]
        %v332 = vld [vmem:[%s118 + $0x600] sm:$0xff]
        %v333 = vld [vmem:[%s118 + $0x608] sm:$0xff]
        %v334 = vld [vmem:[%s118 + $0x610] sm:$0xff]
        %v335 = vld [vmem:[%s118 + $0x618] sm:$0xff]
        %v336 = vld [vmem:[%s118 + $0x620] sm:$0xff]
        %v337 = vld [vmem:[%s118 + $0x628] sm:$0xff]
        %v338 = vld [vmem:[%s118 + $0x630] sm:$0xff]
        %v339 = vld [vmem:[%s118 + $0x638] sm:$0xff]
        %v340 = vld [vmem:[%s118 + $0x640] sm:$0xff]
        %v341 = vld [vmem:[%s118 + $0x648] sm:$0xff]
        %v342 = vld [vmem:[%s118 + $0x650] sm:$0xff]
        %v343 = vld [vmem:[%s118 + $0x658] sm:$0xff]
        %v344 = vld [vmem:[%s118 + $0x660] sm:$0xff]
        %v345 = vld [vmem:[%s118 + $0x668] sm:$0xff]
        %v346 = vld [vmem:[%s118 + $0x670] sm:$0xff]
        %v347 = vld [vmem:[%s118 + $0x678] sm:$0xff]
        %v348 = vld [vmem:[%s118 + $0x680] sm:$0xff]
        %v349 = vld [vmem:[%s118 + $0x688] sm:$0xff]
        %v350 = vld [vmem:[%s118 + $0x690] sm:$0xff]
        %v351 = vld [vmem:[%s118 + $0x698] sm:$0xff]
        %v352 = vld [vmem:[%s118 + $0x6a0] sm:$0xff]
        %v353 = vld [vmem:[%s118 + $0x6a8] sm:$0xff]
        %v354 = vld [vmem:[%s118 + $0x6b0] sm:$0xff]
        %v355 = vld [vmem:[%s118 + $0x6b8] sm:$0xff]
        %v356 = vld [vmem:[%s118 + $0x6c0] sm:$0xff]
        %v357 = vld [vmem:[%s118 + $0x6c8] sm:$0xff]
        %v358 = vld [vmem:[%s118 + $0x6d0] sm:$0xff]
        %v359 = vld [vmem:[%s118 + $0x6d8] sm:$0xff]
        %v360 = vld [vmem:[%s118 + $0x6e0] sm:$0xff]
        %v361 = vld [vmem:[%s118 + $0x6e8] sm:$0xff]
        %v362 = vld [vmem:[%s118 + $0x6f0] sm:$0xff]
        %v363 = vld [vmem:[%s118 + $0x6f8] sm:$0xff]
        %v364 = vld [vmem:[%s118 + $0x700] sm:$0xff]
        %v365 = vld [vmem:[%s118 + $0x708] sm:$0xff]
        %v366 = vld [vmem:[%s118 + $0x710] sm:$0xff]
        %v367 = vld [vmem:[%s118 + $0x718] sm:$0xff]
        %v368 = vld [vmem:[%s118 + $0x720] sm:$0xff]
        %v369 = vld [vmem:[%s118 + $0x728] sm:$0xff]
        %v370 = vld [vmem:[%s118 + $0x730] sm:$0xff]
        %v371 = vld [vmem:[%s118 + $0x738] sm:$0xff]
        %v372 = vld [vmem:[%s118 + $0x740] sm:$0xff]
        %v373 = vld [vmem:[%s118 + $0x748] sm:$0xff]
        %v374 = vld [vmem:[%s118 + $0x750] sm:$0xff]
        %v375 = vld [vmem:[%s118 + $0x758] sm:$0xff]
        %v376 = vld [vmem:[%s118 + $0x760] sm:$0xff]
        %v377 = vld [vmem:[%s118 + $0x768] sm:$0xff]
        %v378 = vld [vmem:[%s118 + $0x770] sm:$0xff]
        %v379 = vld [vmem:[%s118 + $0x778] sm:$0xff]
        %v380 = vld [vmem:[%s118 + $0x780] sm:$0xff]
        %v381 = vld [vmem:[%s118 + $0x788] sm:$0xff]
        %v382 = vld [vmem:[%s118 + $0x790] sm:$0xff]
        %v383 = vld [vmem:[%s118 + $0x798] sm:$0xff]
        %v384 = vld [vmem:[%s118 + $0x7a0] sm:$0xff]
        %v385 = vld [vmem:[%s118 + $0x7a8] sm:$0xff]
        %v386 = vld [vmem:[%s118 + $0x7b0] sm:$0xff]
        %v387 = vld [vmem:[%s118 + $0x7b8] sm:$0xff]
        %v388 = vld [vmem:[%s118 + $0x7c0] sm:$0xff]
        %v389 = vld [vmem:[%s118 + $0x7c8] sm:$0xff]
        %v390 = vld [vmem:[%s118 + $0x7d0] sm:$0xff]
        %v391 = vld [vmem:[%s118 + $0x7d8] sm:$0xff]
        %v392 = vld [vmem:[%s118 + $0x7e0] sm:$0xff]
        %v393 = vld [vmem:[%s118 + $0x7e8] sm:$0xff]
        %v394 = vld [vmem:[%s118 + $0x7f0] sm:$0xff]
        %v395 = vld [vmem:[%s118 + $0x7f8] sm:$0xff]
        %vm396 = vcmp.lt.f32.partialorder %v140, 0.3
        %vm397 = vcmp.lt.f32.partialorder %v141, 0.3
        %vm398 = vcmp.lt.f32.partialorder %v142, 0.3
        %vm399 = vcmp.lt.f32.partialorder %v143, 0.3
        %vm400 = vcmp.lt.f32.partialorder %v144, 0.3
        %vm401 = vcmp.lt.f32.partialorder %v145, 0.3
        %vm402 = vcmp.lt.f32.partialorder %v146, 0.3
        %vm403 = vcmp.lt.f32.partialorder %v147, 0.3
        %vm404 = vcmp.lt.f32.partialorder %v148, 0.3
        %vm405 = vcmp.lt.f32.partialorder %v149, 0.3
        %vm406 = vcmp.lt.f32.partialorder %v150, 0.3
        %vm407 = vcmp.lt.f32.partialorder %v151, 0.3
        %vm408 = vcmp.lt.f32.partialorder %v152, 0.3
        %vm409 = vcmp.lt.f32.partialorder %v153, 0.3
        %vm410 = vcmp.lt.f32.partialorder %v154, 0.3
        %vm411 = vcmp.lt.f32.partialorder %v155, 0.3
        %vm412 = vcmp.lt.f32.partialorder %v156, 0.3
        %vm413 = vcmp.lt.f32.partialorder %v157, 0.3
        %vm414 = vcmp.lt.f32.partialorder %v158, 0.3
        %vm415 = vcmp.lt.f32.partialorder %v159, 0.3
        %vm416 = vcmp.lt.f32.partialorder %v160, 0.3
        %vm417 = vcmp.lt.f32.partialorder %v161, 0.3
        %vm418 = vcmp.lt.f32.partialorder %v162, 0.3
        %vm419 = vcmp.lt.f32.partialorder %v163, 0.3
        %vm420 = vcmp.lt.f32.partialorder %v164, 0.3
        %vm421 = vcmp.lt.f32.partialorder %v165, 0.3
        %vm422 = vcmp.lt.f32.partialorder %v166, 0.3
        %vm423 = vcmp.lt.f32.partialorder %v167, 0.3
        %vm424 = vcmp.lt.f32.partialorder %v168, 0.3
        %vm425 = vcmp.lt.f32.partialorder %v169, 0.3
        %vm426 = vcmp.lt.f32.partialorder %v170, 0.3
        %vm427 = vcmp.lt.f32.partialorder %v171, 0.3
        %vm428 = vcmp.lt.f32.partialorder %v172, 0.3
        %vm429 = vcmp.lt.f32.partialorder %v173, 0.3
        %vm430 = vcmp.lt.f32.partialorder %v174, 0.3
        %vm431 = vcmp.lt.f32.partialorder %v175, 0.3
        %vm432 = vcmp.lt.f32.partialorder %v176, 0.3
        %vm433 = vcmp.lt.f32.partialorder %v177, 0.3
        %vm434 = vcmp.lt.f32.partialorder %v178, 0.3
        %vm435 = vcmp.lt.f32.partialorder %v179, 0.3
        %vm436 = vcmp.lt.f32.partialorder %v180, 0.3
        %vm437 = vcmp.lt.f32.partialorder %v181, 0.3
        %vm438 = vcmp.lt.f32.partialorder %v182, 0.3
        %vm439 = vcmp.lt.f32.partialorder %v183, 0.3
        %vm440 = vcmp.lt.f32.partialorder %v184, 0.3
        %vm441 = vcmp.lt.f32.partialorder %v185, 0.3
        %vm442 = vcmp.lt.f32.partialorder %v186, 0.3
        %vm443 = vcmp.lt.f32.partialorder %v187, 0.3
        %vm444 = vcmp.lt.f32.partialorder %v188, 0.3
        %vm445 = vcmp.lt.f32.partialorder %v189, 0.3
        %vm446 = vcmp.lt.f32.partialorder %v190, 0.3
        %vm447 = vcmp.lt.f32.partialorder %v191, 0.3
        %vm448 = vcmp.lt.f32.partialorder %v192, 0.3
        %vm449 = vcmp.lt.f32.partialorder %v193, 0.3
        %vm450 = vcmp.lt.f32.partialorder %v194, 0.3
        %vm451 = vcmp.lt.f32.partialorder %v195, 0.3
        %vm452 = vcmp.lt.f32.partialorder %v196, 0.3
        %vm453 = vcmp.lt.f32.partialorder %v197, 0.3
        %vm454 = vcmp.lt.f32.partialorder %v198, 0.3
        %vm455 = vcmp.lt.f32.partialorder %v199, 0.3
        %vm456 = vcmp.lt.f32.partialorder %v200, 0.3
        %vm457 = vcmp.lt.f32.partialorder %v201, 0.3
        %vm458 = vcmp.lt.f32.partialorder %v202, 0.3
        %vm459 = vcmp.lt.f32.partialorder %v203, 0.3
        %vm460 = vcmp.lt.f32.partialorder %v204, 0.3
        %vm461 = vcmp.lt.f32.partialorder %v205, 0.3
        %vm462 = vcmp.lt.f32.partialorder %v206, 0.3
        %vm463 = vcmp.lt.f32.partialorder %v207, 0.3
        %vm464 = vcmp.lt.f32.partialorder %v208, 0.3
        %vm465 = vcmp.lt.f32.partialorder %v209, 0.3
        %vm466 = vcmp.lt.f32.partialorder %v210, 0.3
        %vm467 = vcmp.lt.f32.partialorder %v211, 0.3
        %vm468 = vcmp.lt.f32.partialorder %v212, 0.3
        %vm469 = vcmp.lt.f32.partialorder %v213, 0.3
        %vm470 = vcmp.lt.f32.partialorder %v214, 0.3
        %vm471 = vcmp.lt.f32.partialorder %v215, 0.3
        %vm472 = vcmp.lt.f32.partialorder %v216, 0.3
        %vm473 = vcmp.lt.f32.partialorder %v217, 0.3
        %vm474 = vcmp.lt.f32.partialorder %v218, 0.3
        %vm475 = vcmp.lt.f32.partialorder %v219, 0.3
        %vm476 = vcmp.lt.f32.partialorder %v220, 0.3
        %vm477 = vcmp.lt.f32.partialorder %v221, 0.3
        %vm478 = vcmp.lt.f32.partialorder %v222, 0.3
        %vm479 = vcmp.lt.f32.partialorder %v223, 0.3
        %vm480 = vcmp.lt.f32.partialorder %v224, 0.3
        %vm481 = vcmp.lt.f32.partialorder %v225, 0.3
        %vm482 = vcmp.lt.f32.partialorder %v226, 0.3
        %vm483 = vcmp.lt.f32.partialorder %v227, 0.3
        %vm484 = vcmp.lt.f32.partialorder %v228, 0.3
        %vm485 = vcmp.lt.f32.partialorder %v229, 0.3
        %vm486 = vcmp.lt.f32.partialorder %v230, 0.3
        %vm487 = vcmp.lt.f32.partialorder %v231, 0.3
        %vm488 = vcmp.lt.f32.partialorder %v232, 0.3
        %vm489 = vcmp.lt.f32.partialorder %v233, 0.3
        %vm490 = vcmp.lt.f32.partialorder %v234, 0.3
        %vm491 = vcmp.lt.f32.partialorder %v235, 0.3
        %vm492 = vcmp.lt.f32.partialorder %v236, 0.3
        %vm493 = vcmp.lt.f32.partialorder %v237, 0.3
        %vm494 = vcmp.lt.f32.partialorder %v238, 0.3
        %vm495 = vcmp.lt.f32.partialorder %v239, 0.3
        %vm496 = vcmp.lt.f32.partialorder %v240, 0.3
        %vm497 = vcmp.lt.f32.partialorder %v241, 0.3
        %vm498 = vcmp.lt.f32.partialorder %v242, 0.3
        %vm499 = vcmp.lt.f32.partialorder %v243, 0.3
        %vm500 = vcmp.lt.f32.partialorder %v244, 0.3
        %vm501 = vcmp.lt.f32.partialorder %v245, 0.3
        %vm502 = vcmp.lt.f32.partialorder %v246, 0.3
        %vm503 = vcmp.lt.f32.partialorder %v247, 0.3
        %vm504 = vcmp.lt.f32.partialorder %v248, 0.3
        %vm505 = vcmp.lt.f32.partialorder %v249, 0.3
        %vm506 = vcmp.lt.f32.partialorder %v250, 0.3
        %vm507 = vcmp.lt.f32.partialorder %v251, 0.3
        %vm508 = vcmp.lt.f32.partialorder %v252, 0.3
        %vm509 = vcmp.lt.f32.partialorder %v253, 0.3
        %vm510 = vcmp.lt.f32.partialorder %v254, 0.3
        %vm511 = vcmp.lt.f32.partialorder %v255, 0.3
        %vm512 = vcmp.lt.f32.partialorder %v256, 0.3
        %vm513 = vcmp.lt.f32.partialorder %v257, 0.3
        %vm514 = vcmp.lt.f32.partialorder %v258, 0.3
        %vm515 = vcmp.lt.f32.partialorder %v259, 0.3
        %vm516 = vcmp.lt.f32.partialorder %v260, 0.3
        %vm517 = vcmp.lt.f32.partialorder %v261, 0.3
        %vm518 = vcmp.lt.f32.partialorder %v262, 0.3
        %vm519 = vcmp.lt.f32.partialorder %v263, 0.3
        %vm520 = vcmp.lt.f32.partialorder %v264, 0.3
        %vm521 = vcmp.lt.f32.partialorder %v265, 0.3
        %vm522 = vcmp.lt.f32.partialorder %v266, 0.3
        %vm523 = vcmp.lt.f32.partialorder %v267, 0.3
        %vm524 = vcmp.lt.f32.partialorder %v268, 0.3
        %vm525 = vcmp.lt.f32.partialorder %v269, 0.3
        %vm526 = vcmp.lt.f32.partialorder %v270, 0.3
        %vm527 = vcmp.lt.f32.partialorder %v271, 0.3
        %vm528 = vcmp.lt.f32.partialorder %v272, 0.3
        %vm529 = vcmp.lt.f32.partialorder %v273, 0.3
        %vm530 = vcmp.lt.f32.partialorder %v274, 0.3
        %vm531 = vcmp.lt.f32.partialorder %v275, 0.3
        %vm532 = vcmp.lt.f32.partialorder %v276, 0.3
        %vm533 = vcmp.lt.f32.partialorder %v277, 0.3
        %vm534 = vcmp.lt.f32.partialorder %v278, 0.3
        %vm535 = vcmp.lt.f32.partialorder %v279, 0.3
        %vm536 = vcmp.lt.f32.partialorder %v280, 0.3
        %vm537 = vcmp.lt.f32.partialorder %v281, 0.3
        %vm538 = vcmp.lt.f32.partialorder %v282, 0.3
        %vm539 = vcmp.lt.f32.partialorder %v283, 0.3
        %vm540 = vcmp.lt.f32.partialorder %v284, 0.3
        %vm541 = vcmp.lt.f32.partialorder %v285, 0.3
        %vm542 = vcmp.lt.f32.partialorder %v286, 0.3
        %vm543 = vcmp.lt.f32.partialorder %v287, 0.3
        %vm544 = vcmp.lt.f32.partialorder %v288, 0.3
        %vm545 = vcmp.lt.f32.partialorder %v289, 0.3
        %vm546 = vcmp.lt.f32.partialorder %v290, 0.3
        %vm547 = vcmp.lt.f32.partialorder %v291, 0.3
        %vm548 = vcmp.lt.f32.partialorder %v292, 0.3
        %vm549 = vcmp.lt.f32.partialorder %v293, 0.3
        %vm550 = vcmp.lt.f32.partialorder %v294, 0.3
        %vm551 = vcmp.lt.f32.partialorder %v295, 0.3
        %vm552 = vcmp.lt.f32.partialorder %v296, 0.3
        %vm553 = vcmp.lt.f32.partialorder %v297, 0.3
        %vm554 = vcmp.lt.f32.partialorder %v298, 0.3
        %vm555 = vcmp.lt.f32.partialorder %v299, 0.3
        %vm556 = vcmp.lt.f32.partialorder %v300, 0.3
        %vm557 = vcmp.lt.f32.partialorder %v301, 0.3
        %vm558 = vcmp.lt.f32.partialorder %v302, 0.3
        %vm559 = vcmp.lt.f32.partialorder %v303, 0.3
        %vm560 = vcmp.lt.f32.partialorder %v304, 0.3
        %vm561 = vcmp.lt.f32.partialorder %v305, 0.3
        %vm562 = vcmp.lt.f32.partialorder %v306, 0.3
        %vm563 = vcmp.lt.f32.partialorder %v307, 0.3
        %vm564 = vcmp.lt.f32.partialorder %v308, 0.3
        %vm565 = vcmp.lt.f32.partialorder %v309, 0.3
        %vm566 = vcmp.lt.f32.partialorder %v310, 0.3
        %vm567 = vcmp.lt.f32.partialorder %v311, 0.3
        %vm568 = vcmp.lt.f32.partialorder %v312, 0.3
        %vm569 = vcmp.lt.f32.partialorder %v313, 0.3
        %vm570 = vcmp.lt.f32.partialorder %v314, 0.3
        %vm571 = vcmp.lt.f32.partialorder %v315, 0.3
        %vm572 = vcmp.lt.f32.partialorder %v316, 0.3
        %vm573 = vcmp.lt.f32.partialorder %v317, 0.3
        %vm574 = vcmp.lt.f32.partialorder %v318, 0.3
        %vm575 = vcmp.lt.f32.partialorder %v319, 0.3
        %vm576 = vcmp.lt.f32.partialorder %v320, 0.3
        %vm577 = vcmp.lt.f32.partialorder %v321, 0.3
        %vm578 = vcmp.lt.f32.partialorder %v322, 0.3
        %vm579 = vcmp.lt.f32.partialorder %v323, 0.3
        %vm580 = vcmp.lt.f32.partialorder %v324, 0.3
        %vm581 = vcmp.lt.f32.partialorder %v325, 0.3
        %vm582 = vcmp.lt.f32.partialorder %v326, 0.3
        %vm583 = vcmp.lt.f32.partialorder %v327, 0.3
        %vm584 = vcmp.lt.f32.partialorder %v328, 0.3
        %vm585 = vcmp.lt.f32.partialorder %v329, 0.3
        %vm586 = vcmp.lt.f32.partialorder %v330, 0.3
        %vm587 = vcmp.lt.f32.partialorder %v331, 0.3
        %vm588 = vcmp.lt.f32.partialorder %v332, 0.3
        %vm589 = vcmp.lt.f32.partialorder %v333, 0.3
        %vm590 = vcmp.lt.f32.partialorder %v334, 0.3
        %vm591 = vcmp.lt.f32.partialorder %v335, 0.3
        %vm592 = vcmp.lt.f32.partialorder %v336, 0.3
        %vm593 = vcmp.lt.f32.partialorder %v337, 0.3
        %vm594 = vcmp.lt.f32.partialorder %v338, 0.3
        %vm595 = vcmp.lt.f32.partialorder %v339, 0.3
        %vm596 = vcmp.lt.f32.partialorder %v340, 0.3
        %vm597 = vcmp.lt.f32.partialorder %v341, 0.3
        %vm598 = vcmp.lt.f32.partialorder %v342, 0.3
        %vm599 = vcmp.lt.f32.partialorder %v343, 0.3
        %vm600 = vcmp.lt.f32.partialorder %v344, 0.3
        %vm601 = vcmp.lt.f32.partialorder %v345, 0.3
        %vm602 = vcmp.lt.f32.partialorder %v346, 0.3
        %vm603 = vcmp.lt.f32.partialorder %v347, 0.3
        %vm604 = vcmp.lt.f32.partialorder %v348, 0.3
        %vm605 = vcmp.lt.f32.partialorder %v349, 0.3
        %vm606 = vcmp.lt.f32.partialorder %v350, 0.3
        %vm607 = vcmp.lt.f32.partialorder %v351, 0.3
        %vm608 = vcmp.lt.f32.partialorder %v352, 0.3
        %vm609 = vcmp.lt.f32.partialorder %v353, 0.3
        %vm610 = vcmp.lt.f32.partialorder %v354, 0.3
        %vm611 = vcmp.lt.f32.partialorder %v355, 0.3
        %vm612 = vcmp.lt.f32.partialorder %v356, 0.3
        %vm613 = vcmp.lt.f32.partialorder %v357, 0.3
        %vm614 = vcmp.lt.f32.partialorder %v358, 0.3
        %vm615 = vcmp.lt.f32.partialorder %v359, 0.3
        %vm616 = vcmp.lt.f32.partialorder %v360, 0.3
        %vm617 = vcmp.lt.f32.partialorder %v361, 0.3
        %vm618 = vcmp.lt.f32.partialorder %v362, 0.3
        %vm619 = vcmp.lt.f32.partialorder %v363, 0.3
        %vm620 = vcmp.lt.f32.partialorder %v364, 0.3
        %vm621 = vcmp.lt.f32.partialorder %v365, 0.3
        %vm622 = vcmp.lt.f32.partialorder %v366, 0.3
        %vm623 = vcmp.lt.f32.partialorder %v367, 0.3
        %vm624 = vcmp.lt.f32.partialorder %v368, 0.3
        %vm625 = vcmp.lt.f32.partialorder %v369, 0.3
        %vm626 = vcmp.lt.f32.partialorder %v370, 0.3
        %vm627 = vcmp.lt.f32.partialorder %v371, 0.3
        %vm628 = vcmp.lt.f32.partialorder %v372, 0.3
        %vm629 = vcmp.lt.f32.partialorder %v373, 0.3
        %vm630 = vcmp.lt.f32.partialorder %v374, 0.3
        %vm631 = vcmp.lt.f32.partialorder %v375, 0.3
        %vm632 = vcmp.lt.f32.partialorder %v376, 0.3
        %vm633 = vcmp.lt.f32.partialorder %v377, 0.3
        %vm634 = vcmp.lt.f32.partialorder %v378, 0.3
        %vm635 = vcmp.lt.f32.partialorder %v379, 0.3
        %vm636 = vcmp.lt.f32.partialorder %v380, 0.3
        %vm637 = vcmp.lt.f32.partialorder %v381, 0.3
        %vm638 = vcmp.lt.f32.partialorder %v382, 0.3
        %vm639 = vcmp.lt.f32.partialorder %v383, 0.3
        %vm640 = vcmp.lt.f32.partialorder %v384, 0.3
        %vm641 = vcmp.lt.f32.partialorder %v385, 0.3
        %vm642 = vcmp.lt.f32.partialorder %v386, 0.3
        %vm643 = vcmp.lt.f32.partialorder %v387, 0.3
        %vm644 = vcmp.lt.f32.partialorder %v388, 0.3
        %vm645 = vcmp.lt.f32.partialorder %v389, 0.3
        %vm646 = vcmp.lt.f32.partialorder %v390, 0.3
        %vm647 = vcmp.lt.f32.partialorder %v391, 0.3
        %vm648 = vcmp.lt.f32.partialorder %v392, 0.3
        %vm649 = vcmp.lt.f32.partialorder %v393, 0.3
        %vm650 = vcmp.lt.f32.partialorder %v394, 0.3
        %vm651 = vcmp.lt.f32.partialorder %v395, 0.3
        %v652 = vsel %vm396, 1, 0
        %v653 = vsel %vm397, 1, 0
        %v654 = vsel %vm398, 1, 0
        %v655 = vsel %vm399, 1, 0
        %v656 = vsel %vm400, 1, 0
        %v657 = vsel %vm401, 1, 0
        %v658 = vsel %vm402, 1, 0
        %v659 = vsel %vm403, 1, 0
        %v660 = vsel %vm404, 1, 0
        %v661 = vsel %vm405, 1, 0
        %v662 = vsel %vm406, 1, 0
        %v663 = vsel %vm407, 1, 0
        %v664 = vsel %vm408, 1, 0
        %v665 = vsel %vm409, 1, 0
        %v666 = vsel %vm410, 1, 0
        %v667 = vsel %vm411, 1, 0
        %v668 = vsel %vm412, 1, 0
        %v669 = vsel %vm413, 1, 0
        %v670 = vsel %vm414, 1, 0
        %v671 = vsel %vm415, 1, 0
        %v672 = vsel %vm416, 1, 0
        %v673 = vsel %vm417, 1, 0
        %v674 = vsel %vm418, 1, 0
        %v675 = vsel %vm419, 1, 0
        %v676 = vsel %vm420, 1, 0
        %v677 = vsel %vm421, 1, 0
        %v678 = vsel %vm422, 1, 0
        %v679 = vsel %vm423, 1, 0
        %v680 = vsel %vm424, 1, 0
        %v681 = vsel %vm425, 1, 0
        %v682 = vsel %vm426, 1, 0
        %v683 = vsel %vm427, 1, 0
        %v684 = vsel %vm428, 1, 0
        %v685 = vsel %vm429, 1, 0
        %v686 = vsel %vm430, 1, 0
        %v687 = vsel %vm431, 1, 0
        %v688 = vsel %vm432, 1, 0
        %v689 = vsel %vm433, 1, 0
        %v690 = vsel %vm434, 1, 0
        %v691 = vsel %vm435, 1, 0
        %v692 = vsel %vm436, 1, 0
        %v693 = vsel %vm437, 1, 0
        %v694 = vsel %vm438, 1, 0
        %v695 = vsel %vm439, 1, 0
        %v696 = vsel %vm440, 1, 0
        %v697 = vsel %vm441, 1, 0
        %v698 = vsel %vm442, 1, 0
        %v699 = vsel %vm443, 1, 0
        %v700 = vsel %vm444, 1, 0
        %v701 = vsel %vm445, 1, 0
        %v702 = vsel %vm446, 1, 0
        %v703 = vsel %vm447, 1, 0
        %v704 = vsel %vm448, 1, 0
        %v705 = vsel %vm449, 1, 0
        %v706 = vsel %vm450, 1, 0
        %v707 = vsel %vm451, 1, 0
        %v708 = vsel %vm452, 1, 0
        %v709 = vsel %vm453, 1, 0
        %v710 = vsel %vm454, 1, 0
        %v711 = vsel %vm455, 1, 0
        %v712 = vsel %vm456, 1, 0
        %v713 = vsel %vm457, 1, 0
        %v714 = vsel %vm458, 1, 0
        %v715 = vsel %vm459, 1, 0
        %v716 = vsel %vm460, 1, 0
        %v717 = vsel %vm461, 1, 0
        %v718 = vsel %vm462, 1, 0
        %v719 = vsel %vm463, 1, 0
        %v720 = vsel %vm464, 1, 0
        %v721 = vsel %vm465, 1, 0
        %v722 = vsel %vm466, 1, 0
        %v723 = vsel %vm467, 1, 0
        %v724 = vsel %vm468, 1, 0
        %v725 = vsel %vm469, 1, 0
        %v726 = vsel %vm470, 1, 0
        %v727 = vsel %vm471, 1, 0
        %v728 = vsel %vm472, 1, 0
        %v729 = vsel %vm473, 1, 0
        %v730 = vsel %vm474, 1, 0
        %v731 = vsel %vm475, 1, 0
        %v732 = vsel %vm476, 1, 0
        %v733 = vsel %vm477, 1, 0
        %v734 = vsel %vm478, 1, 0
        %v735 = vsel %vm479, 1, 0
        %v736 = vsel %vm480, 1, 0
        %v737 = vsel %vm481, 1, 0
        %v738 = vsel %vm482, 1, 0
        %v739 = vsel %vm483, 1, 0
        %v740 = vsel %vm484, 1, 0
        %v741 = vsel %vm485, 1, 0
        %v742 = vsel %vm486, 1, 0
        %v743 = vsel %vm487, 1, 0
        %v744 = vsel %vm488, 1, 0
        %v745 = vsel %vm489, 1, 0
        %v746 = vsel %vm490, 1, 0
        %v747 = vsel %vm491, 1, 0
        %v748 = vsel %vm492, 1, 0
        %v749 = vsel %vm493, 1, 0
        %v750 = vsel %vm494, 1, 0
        %v751 = vsel %vm495, 1, 0
        %v752 = vsel %vm496, 1, 0
        %v753 = vsel %vm497, 1, 0
        %v754 = vsel %vm498, 1, 0
        %v755 = vsel %vm499, 1, 0
        %v756 = vsel %vm500, 1, 0
        %v757 = vsel %vm501, 1, 0
        %v758 = vsel %vm502, 1, 0
        %v759 = vsel %vm503, 1, 0
        %v760 = vsel %vm504, 1, 0
        %v761 = vsel %vm505, 1, 0
        %v762 = vsel %vm506, 1, 0
        %v763 = vsel %vm507, 1, 0
        %v764 = vsel %vm508, 1, 0
        %v765 = vsel %vm509, 1, 0
        %v766 = vsel %vm510, 1, 0
        %v767 = vsel %vm511, 1, 0
        %v768 = vsel %vm512, 1, 0
        %v769 = vsel %vm513, 1, 0
        %v770 = vsel %vm514, 1, 0
        %v771 = vsel %vm515, 1, 0
        %v772 = vsel %vm516, 1, 0
        %v773 = vsel %vm517, 1, 0
        %v774 = vsel %vm518, 1, 0
        %v775 = vsel %vm519, 1, 0
        %v776 = vsel %vm520, 1, 0
        %v777 = vsel %vm521, 1, 0
        %v778 = vsel %vm522, 1, 0
        %v779 = vsel %vm523, 1, 0
        %v780 = vsel %vm524, 1, 0
        %v781 = vsel %vm525, 1, 0
        %v782 = vsel %vm526, 1, 0
        %v783 = vsel %vm527, 1, 0
        %v784 = vsel %vm528, 1, 0
        %v785 = vsel %vm529, 1, 0
        %v786 = vsel %vm530, 1, 0
        %v787 = vsel %vm531, 1, 0
        %v788 = vsel %vm532, 1, 0
        %v789 = vsel %vm533, 1, 0
        %v790 = vsel %vm534, 1, 0
        %v791 = vsel %vm535, 1, 0
        %v792 = vsel %vm536, 1, 0
        %v793 = vsel %vm537, 1, 0
        %v794 = vsel %vm538, 1, 0
        %v795 = vsel %vm539, 1, 0
        %v796 = vsel %vm540, 1, 0
        %v797 = vsel %vm541, 1, 0
        %v798 = vsel %vm542, 1, 0
        %v799 = vsel %vm543, 1, 0
        %v800 = vsel %vm544, 1, 0
        %v801 = vsel %vm545, 1, 0
        %v802 = vsel %vm546, 1, 0
        %v803 = vsel %vm547, 1, 0
        %v804 = vsel %vm548, 1, 0
        %v805 = vsel %vm549, 1, 0
        %v806 = vsel %vm550, 1, 0
        %v807 = vsel %vm551, 1, 0
        %v808 = vsel %vm552, 1, 0
        %v809 = vsel %vm553, 1, 0
        %v810 = vsel %vm554, 1, 0
        %v811 = vsel %vm555, 1, 0
        %v812 = vsel %vm556, 1, 0
        %v813 = vsel %vm557, 1, 0
        %v814 = vsel %vm558, 1, 0
        %v815 = vsel %vm559, 1, 0
        %v816 = vsel %vm560, 1, 0
        %v817 = vsel %vm561, 1, 0
        %v818 = vsel %vm562, 1, 0
        %v819 = vsel %vm563, 1, 0
        %v820 = vsel %vm564, 1, 0
        %v821 = vsel %vm565, 1, 0
        %v822 = vsel %vm566, 1, 0
        %v823 = vsel %vm567, 1, 0
        %v824 = vsel %vm568, 1, 0
        %v825 = vsel %vm569, 1, 0
        %v826 = vsel %vm570, 1, 0
        %v827 = vsel %vm571, 1, 0
        %v828 = vsel %vm572, 1, 0
        %v829 = vsel %vm573, 1, 0
        %v830 = vsel %vm574, 1, 0
        %v831 = vsel %vm575, 1, 0
        %v832 = vsel %vm576, 1, 0
        %v833 = vsel %vm577, 1, 0
        %v834 = vsel %vm578, 1, 0
        %v835 = vsel %vm579, 1, 0
        %v836 = vsel %vm580, 1, 0
        %v837 = vsel %vm581, 1, 0
        %v838 = vsel %vm582, 1, 0
        %v839 = vsel %vm583, 1, 0
        %v840 = vsel %vm584, 1, 0
        %v841 = vsel %vm585, 1, 0
        %v842 = vsel %vm586, 1, 0
        %v843 = vsel %vm587, 1, 0
        %v844 = vsel %vm588, 1, 0
        %v845 = vsel %vm589, 1, 0
        %v846 = vsel %vm590, 1, 0
        %v847 = vsel %vm591, 1, 0
        %v848 = vsel %vm592, 1, 0
        %v849 = vsel %vm593, 1, 0
        %v850 = vsel %vm594, 1, 0
        %v851 = vsel %vm595, 1, 0
        %v852 = vsel %vm596, 1, 0
        %v853 = vsel %vm597, 1, 0
        %v854 = vsel %vm598, 1, 0
        %v855 = vsel %vm599, 1, 0
        %v856 = vsel %vm600, 1, 0
        %v857 = vsel %vm601, 1, 0
        %v858 = vsel %vm602, 1, 0
        %v859 = vsel %vm603, 1, 0
        %v860 = vsel %vm604, 1, 0
        %v861 = vsel %vm605, 1, 0
        %v862 = vsel %vm606, 1, 0
        %v863 = vsel %vm607, 1, 0
        %v864 = vsel %vm608, 1, 0
        %v865 = vsel %vm609, 1, 0
        %v866 = vsel %vm610, 1, 0
        %v867 = vsel %vm611, 1, 0
        %v868 = vsel %vm612, 1, 0
        %v869 = vsel %vm613, 1, 0
        %v870 = vsel %vm614, 1, 0
        %v871 = vsel %vm615, 1, 0
        %v872 = vsel %vm616, 1, 0
        %v873 = vsel %vm617, 1, 0
        %v874 = vsel %vm618, 1, 0
        %v875 = vsel %vm619, 1, 0
        %v876 = vsel %vm620, 1, 0
        %v877 = vsel %vm621, 1, 0
        %v878 = vsel %vm622, 1, 0
        %v879 = vsel %vm623, 1, 0
        %v880 = vsel %vm624, 1, 0
        %v881 = vsel %vm625, 1, 0
        %v882 = vsel %vm626, 1, 0
        %v883 = vsel %vm627, 1, 0
        %v884 = vsel %vm628, 1, 0
        %v885 = vsel %vm629, 1, 0
        %v886 = vsel %vm630, 1, 0
        %v887 = vsel %vm631, 1, 0
        %v888 = vsel %vm632, 1, 0
        %v889 = vsel %vm633, 1, 0
        %v890 = vsel %vm634, 1, 0
        %v891 = vsel %vm635, 1, 0
        %v892 = vsel %vm636, 1, 0
        %v893 = vsel %vm637, 1, 0
        %v894 = vsel %vm638, 1, 0
        %v895 = vsel %vm639, 1, 0
        %v896 = vsel %vm640, 1, 0
        %v897 = vsel %vm641, 1, 0
        %v898 = vsel %vm642, 1, 0
        %v899 = vsel %vm643, 1, 0
        %v900 = vsel %vm644, 1, 0
        %v901 = vsel %vm645, 1, 0
        %v902 = vsel %vm646, 1, 0
        %v903 = vsel %vm647, 1, 0
        %v904 = vsel %vm648, 1, 0
        %v905 = vsel %vm649, 1, 0
        %v906 = vsel %vm650, 1, 0
        %v907 = vsel %vm651, 1, 0
        %v908 = vcvt.s32.f32 %v652
        %v909 = vcvt.s32.f32 %v653
        %v910 = vcvt.s32.f32 %v654
        %v911 = vcvt.s32.f32 %v655
        %v912 = vcvt.s32.f32 %v656
        %v913 = vcvt.s32.f32 %v657
        %v914 = vcvt.s32.f32 %v658
        %v915 = vcvt.s32.f32 %v659
        %v916 = vcvt.s32.f32 %v660
        %v917 = vcvt.s32.f32 %v661
        %v918 = vcvt.s32.f32 %v662
        %v919 = vcvt.s32.f32 %v663
        %v920 = vcvt.s32.f32 %v664
        %v921 = vcvt.s32.f32 %v665
        %v922 = vcvt.s32.f32 %v666
        %v923 = vcvt.s32.f32 %v667
        %v924 = vcvt.s32.f32 %v668
        %v925 = vcvt.s32.f32 %v669
        %v926 = vcvt.s32.f32 %v670
        %v927 = vcvt.s32.f32 %v671
        %v928 = vcvt.s32.f32 %v672
        %v929 = vcvt.s32.f32 %v673
        %v930 = vcvt.s32.f32 %v674
        %v931 = vcvt.s32.f32 %v675
        %v932 = vcvt.s32.f32 %v676
        %v933 = vcvt.s32.f32 %v677
        %v934 = vcvt.s32.f32 %v678
        %v935 = vcvt.s32.f32 %v679
        %v936 = vcvt.s32.f32 %v680
        %v937 = vcvt.s32.f32 %v681
        %v938 = vcvt.s32.f32 %v682
        %v939 = vcvt.s32.f32 %v683
        %v940 = vcvt.s32.f32 %v684
        %v941 = vcvt.s32.f32 %v685
        %v942 = vcvt.s32.f32 %v686
        %v943 = vcvt.s32.f32 %v687
        %v944 = vcvt.s32.f32 %v688
        %v945 = vcvt.s32.f32 %v689
        %v946 = vcvt.s32.f32 %v690
        %v947 = vcvt.s32.f32 %v691
        %v948 = vcvt.s32.f32 %v692
        %v949 = vcvt.s32.f32 %v693
        %v950 = vcvt.s32.f32 %v694
        %v951 = vcvt.s32.f32 %v695
        %v952 = vcvt.s32.f32 %v696
        %v953 = vcvt.s32.f32 %v697
        %v954 = vcvt.s32.f32 %v698
        %v955 = vcvt.s32.f32 %v699
        %v956 = vcvt.s32.f32 %v700
        %v957 = vcvt.s32.f32 %v701
        %v958 = vcvt.s32.f32 %v702
        %v959 = vcvt.s32.f32 %v703
        %v960 = vcvt.s32.f32 %v704
        %v961 = vcvt.s32.f32 %v705
        %v962 = vcvt.s32.f32 %v706
        %v963 = vcvt.s32.f32 %v707
        %v964 = vcvt.s32.f32 %v708
        %v965 = vcvt.s32.f32 %v709
        %v966 = vcvt.s32.f32 %v710
        %v967 = vcvt.s32.f32 %v711
        %v968 = vcvt.s32.f32 %v712
        %v969 = vcvt.s32.f32 %v713
        %v970 = vcvt.s32.f32 %v714
        %v971 = vcvt.s32.f32 %v715
        %v972 = vcvt.s32.f32 %v716
        %v973 = vcvt.s32.f32 %v717
        %v974 = vcvt.s32.f32 %v718
        %v975 = vcvt.s32.f32 %v719
        %v976 = vcvt.s32.f32 %v720
        %v977 = vcvt.s32.f32 %v721
        %v978 = vcvt.s32.f32 %v722
        %v979 = vcvt.s32.f32 %v723
        %v980 = vcvt.s32.f32 %v724
        %v981 = vcvt.s32.f32 %v725
        %v982 = vcvt.s32.f32 %v726
        %v983 = vcvt.s32.f32 %v727
        %v984 = vcvt.s32.f32 %v728
        %v985 = vcvt.s32.f32 %v729
        %v986 = vcvt.s32.f32 %v730
        %v987 = vcvt.s32.f32 %v731
        %v988 = vcvt.s32.f32 %v732
        %v989 = vcvt.s32.f32 %v733
        %v990 = vcvt.s32.f32 %v734
        %v991 = vcvt.s32.f32 %v735
        %v992 = vcvt.s32.f32 %v736
        %v993 = vcvt.s32.f32 %v737
        %v994 = vcvt.s32.f32 %v738
        %v995 = vcvt.s32.f32 %v739
        %v996 = vcvt.s32.f32 %v740
        %v997 = vcvt.s32.f32 %v741
        %v998 = vcvt.s32.f32 %v742
        %v999 = vcvt.s32.f32 %v743
        %v1000 = vcvt.s32.f32 %v744
        %v1001 = vcvt.s32.f32 %v745
        %v1002 = vcvt.s32.f32 %v746
        %v1003 = vcvt.s32.f32 %v747
        %v1004 = vcvt.s32.f32 %v748
        %v1005 = vcvt.s32.f32 %v749
        %v1006 = vcvt.s32.f32 %v750
        %v1007 = vcvt.s32.f32 %v751
        %v1008 = vcvt.s32.f32 %v752
        %v1009 = vcvt.s32.f32 %v753
        %v1010 = vcvt.s32.f32 %v754
        %v1011 = vcvt.s32.f32 %v755
        %v1012 = vcvt.s32.f32 %v756
        %v1013 = vcvt.s32.f32 %v757
        %v1014 = vcvt.s32.f32 %v758
        %v1015 = vcvt.s32.f32 %v759
        %v1016 = vcvt.s32.f32 %v760
        %v1017 = vcvt.s32.f32 %v761
        %v1018 = vcvt.s32.f32 %v762
        %v1019 = vcvt.s32.f32 %v763
        %v1020 = vcvt.s32.f32 %v764
        %v1021 = vcvt.s32.f32 %v765
        %v1022 = vcvt.s32.f32 %v766
        %v1023 = vcvt.s32.f32 %v767
        %v1024 = vcvt.s32.f32 %v768
        %v1025 = vcvt.s32.f32 %v769
        %v1026 = vcvt.s32.f32 %v770
        %v1027 = vcvt.s32.f32 %v771
        %v1028 = vcvt.s32.f32 %v772
        %v1029 = vcvt.s32.f32 %v773
        %v1030 = vcvt.s32.f32 %v774
        %v1031 = vcvt.s32.f32 %v775
        %v1032 = vcvt.s32.f32 %v776
        %v1033 = vcvt.s32.f32 %v777
        %v1034 = vcvt.s32.f32 %v778
        %v1035 = vcvt.s32.f32 %v779
        %v1036 = vcvt.s32.f32 %v780
        %v1037 = vcvt.s32.f32 %v781
        %v1038 = vcvt.s32.f32 %v782
        %v1039 = vcvt.s32.f32 %v783
        %v1040 = vcvt.s32.f32 %v784
        %v1041 = vcvt.s32.f32 %v785
        %v1042 = vcvt.s32.f32 %v786
        %v1043 = vcvt.s32.f32 %v787
        %v1044 = vcvt.s32.f32 %v788
        %v1045 = vcvt.s32.f32 %v789
        %v1046 = vcvt.s32.f32 %v790
        %v1047 = vcvt.s32.f32 %v791
        %v1048 = vcvt.s32.f32 %v792
        %v1049 = vcvt.s32.f32 %v793
        %v1050 = vcvt.s32.f32 %v794
        %v1051 = vcvt.s32.f32 %v795
        %v1052 = vcvt.s32.f32 %v796
        %v1053 = vcvt.s32.f32 %v797
        %v1054 = vcvt.s32.f32 %v798
        %v1055 = vcvt.s32.f32 %v799
        %v1056 = vcvt.s32.f32 %v800
        %v1057 = vcvt.s32.f32 %v801
        %v1058 = vcvt.s32.f32 %v802
        %v1059 = vcvt.s32.f32 %v803
        %v1060 = vcvt.s32.f32 %v804
        %v1061 = vcvt.s32.f32 %v805
        %v1062 = vcvt.s32.f32 %v806
        %v1063 = vcvt.s32.f32 %v807
        %v1064 = vcvt.s32.f32 %v808
        %v1065 = vcvt.s32.f32 %v809
        %v1066 = vcvt.s32.f32 %v810
        %v1067 = vcvt.s32.f32 %v811
        %v1068 = vcvt.s32.f32 %v812
        %v1069 = vcvt.s32.f32 %v813
        %v1070 = vcvt.s32.f32 %v814
        %v1071 = vcvt.s32.f32 %v815
        %v1072 = vcvt.s32.f32 %v816
        %v1073 = vcvt.s32.f32 %v817
        %v1074 = vcvt.s32.f32 %v818
        %v1075 = vcvt.s32.f32 %v819
        %v1076 = vcvt.s32.f32 %v820
        %v1077 = vcvt.s32.f32 %v821
        %v1078 = vcvt.s32.f32 %v822
        %v1079 = vcvt.s32.f32 %v823
        %v1080 = vcvt.s32.f32 %v824
        %v1081 = vcvt.s32.f32 %v825
        %v1082 = vcvt.s32.f32 %v826
        %v1083 = vcvt.s32.f32 %v827
        %v1084 = vcvt.s32.f32 %v828
        %v1085 = vcvt.s32.f32 %v829
        %v1086 = vcvt.s32.f32 %v830
        %v1087 = vcvt.s32.f32 %v831
        %v1088 = vcvt.s32.f32 %v832
        %v1089 = vcvt.s32.f32 %v833
        %v1090 = vcvt.s32.f32 %v834
        %v1091 = vcvt.s32.f32 %v835
        %v1092 = vcvt.s32.f32 %v836
        %v1093 = vcvt.s32.f32 %v837
        %v1094 = vcvt.s32.f32 %v838
        %v1095 = vcvt.s32.f32 %v839
        %v1096 = vcvt.s32.f32 %v840
        %v1097 = vcvt.s32.f32 %v841
        %v1098 = vcvt.s32.f32 %v842
        %v1099 = vcvt.s32.f32 %v843
        %v1100 = vcvt.s32.f32 %v844
        %v1101 = vcvt.s32.f32 %v845
        %v1102 = vcvt.s32.f32 %v846
        %v1103 = vcvt.s32.f32 %v847
        %v1104 = vcvt.s32.f32 %v848
        %v1105 = vcvt.s32.f32 %v849
        %v1106 = vcvt.s32.f32 %v850
        %v1107 = vcvt.s32.f32 %v851
        %v1108 = vcvt.s32.f32 %v852
        %v1109 = vcvt.s32.f32 %v853
        %v1110 = vcvt.s32.f32 %v854
        %v1111 = vcvt.s32.f32 %v855
        %v1112 = vcvt.s32.f32 %v856
        %v1113 = vcvt.s32.f32 %v857
        %v1114 = vcvt.s32.f32 %v858
        %v1115 = vcvt.s32.f32 %v859
        %v1116 = vcvt.s32.f32 %v860
        %v1117 = vcvt.s32.f32 %v861
        %v1118 = vcvt.s32.f32 %v862
        %v1119 = vcvt.s32.f32 %v863
        %v1120 = vcvt.s32.f32 %v864
        %v1121 = vcvt.s32.f32 %v865
        %v1122 = vcvt.s32.f32 %v866
        %v1123 = vcvt.s32.f32 %v867
        %v1124 = vcvt.s32.f32 %v868
        %v1125 = vcvt.s32.f32 %v869
        %v1126 = vcvt.s32.f32 %v870
        %v1127 = vcvt.s32.f32 %v871
        %v1128 = vcvt.s32.f32 %v872
        %v1129 = vcvt.s32.f32 %v873
        %v1130 = vcvt.s32.f32 %v874
        %v1131 = vcvt.s32.f32 %v875
        %v1132 = vcvt.s32.f32 %v876
        %v1133 = vcvt.s32.f32 %v877
        %v1134 = vcvt.s32.f32 %v878
        %v1135 = vcvt.s32.f32 %v879
        %v1136 = vcvt.s32.f32 %v880
        %v1137 = vcvt.s32.f32 %v881
        %v1138 = vcvt.s32.f32 %v882
        %v1139 = vcvt.s32.f32 %v883
        %v1140 = vcvt.s32.f32 %v884
        %v1141 = vcvt.s32.f32 %v885
        %v1142 = vcvt.s32.f32 %v886
        %v1143 = vcvt.s32.f32 %v887
        %v1144 = vcvt.s32.f32 %v888
        %v1145 = vcvt.s32.f32 %v889
        %v1146 = vcvt.s32.f32 %v890
        %v1147 = vcvt.s32.f32 %v891
        %v1148 = vcvt.s32.f32 %v892
        %v1149 = vcvt.s32.f32 %v893
        %v1150 = vcvt.s32.f32 %v894
        %v1151 = vcvt.s32.f32 %v895
        %v1152 = vcvt.s32.f32 %v896
        %v1153 = vcvt.s32.f32 %v897
        %v1154 = vcvt.s32.f32 %v898
        %v1155 = vcvt.s32.f32 %v899
        %v1156 = vcvt.s32.f32 %v900
        %v1157 = vcvt.s32.f32 %v901
        %v1158 = vcvt.s32.f32 %v902
        %v1159 = vcvt.s32.f32 %v903
        %v1160 = vcvt.s32.f32 %v904
        %v1161 = vcvt.s32.f32 %v905
        %v1162 = vcvt.s32.f32 %v906
        %v1163 = vcvt.s32.f32 %v907
        %v1164 = vmul.f32 %v908, 0.3
        %v1165 = vmul.f32 %v909, 0.3
        %v1166 = vmul.f32 %v910, 0.3
        %v1167 = vmul.f32 %v911, 0.3
        %v1168 = vmul.f32 %v912, 0.3
        %v1169 = vmul.f32 %v913, 0.3
        %v1170 = vmul.f32 %v914, 0.3
        %v1171 = vmul.f32 %v915, 0.3
        %v1172 = vmul.f32 %v916, 0.3
        %v1173 = vmul.f32 %v917, 0.3
        %v1174 = vmul.f32 %v918, 0.3
        %v1175 = vmul.f32 %v919, 0.3
        %v1176 = vmul.f32 %v920, 0.3
        %v1177 = vmul.f32 %v921, 0.3
        %v1178 = vmul.f32 %v922, 0.3
        %v1179 = vmul.f32 %v923, 0.3
        %v1180 = vmul.f32 %v924, 0.3
        %v1181 = vmul.f32 %v925, 0.3
        %v1182 = vmul.f32 %v926, 0.3
        %v1183 = vmul.f32 %v927, 0.3
        %v1184 = vmul.f32 %v928, 0.3
        %v1185 = vmul.f32 %v929, 0.3
        %v1186 = vmul.f32 %v930, 0.3
        %v1187 = vmul.f32 %v931, 0.3
        %v1188 = vmul.f32 %v932, 0.3
        %v1189 = vmul.f32 %v933, 0.3
        %v1190 = vmul.f32 %v934, 0.3
        %v1191 = vmul.f32 %v935, 0.3
        %v1192 = vmul.f32 %v936, 0.3
        %v1193 = vmul.f32 %v937, 0.3
        %v1194 = vmul.f32 %v938, 0.3
        %v1195 = vmul.f32 %v939, 0.3
        %v1196 = vmul.f32 %v940, 0.3
        %v1197 = vmul.f32 %v941, 0.3
        %v1198 = vmul.f32 %v942, 0.3
        %v1199 = vmul.f32 %v943, 0.3
        %v1200 = vmul.f32 %v944, 0.3
        %v1201 = vmul.f32 %v945, 0.3
        %v1202 = vmul.f32 %v946, 0.3
        %v1203 = vmul.f32 %v947, 0.3
        %v1204 = vmul.f32 %v948, 0.3
        %v1205 = vmul.f32 %v949, 0.3
        %v1206 = vmul.f32 %v950, 0.3
        %v1207 = vmul.f32 %v951, 0.3
        %v1208 = vmul.f32 %v952, 0.3
        %v1209 = vmul.f32 %v953, 0.3
        %v1210 = vmul.f32 %v954, 0.3
        %v1211 = vmul.f32 %v955, 0.3
        %v1212 = vmul.f32 %v956, 0.3
        %v1213 = vmul.f32 %v957, 0.3
        %v1214 = vmul.f32 %v958, 0.3
        %v1215 = vmul.f32 %v959, 0.3
        %v1216 = vmul.f32 %v960, 0.3
        %v1217 = vmul.f32 %v961, 0.3
        %v1218 = vmul.f32 %v962, 0.3
        %v1219 = vmul.f32 %v963, 0.3
        %v1220 = vmul.f32 %v964, 0.3
        %v1221 = vmul.f32 %v965, 0.3
        %v1222 = vmul.f32 %v966, 0.3
        %v1223 = vmul.f32 %v967, 0.3
        %v1224 = vmul.f32 %v968, 0.3
        %v1225 = vmul.f32 %v969, 0.3
        %v1226 = vmul.f32 %v970, 0.3
        %v1227 = vmul.f32 %v971, 0.3
        %v1228 = vmul.f32 %v972, 0.3
        %v1229 = vmul.f32 %v973, 0.3
        %v1230 = vmul.f32 %v974, 0.3
        %v1231 = vmul.f32 %v975, 0.3
        %v1232 = vmul.f32 %v976, 0.3
        %v1233 = vmul.f32 %v977, 0.3
        %v1234 = vmul.f32 %v978, 0.3
        %v1235 = vmul.f32 %v979, 0.3
        %v1236 = vmul.f32 %v980, 0.3
        %v1237 = vmul.f32 %v981, 0.3
        %v1238 = vmul.f32 %v982, 0.3
        %v1239 = vmul.f32 %v983, 0.3
        %v1240 = vmul.f32 %v984, 0.3
        %v1241 = vmul.f32 %v985, 0.3
        %v1242 = vmul.f32 %v986, 0.3
        %v1243 = vmul.f32 %v987, 0.3
        %v1244 = vmul.f32 %v988, 0.3
        %v1245 = vmul.f32 %v989, 0.3
        %v1246 = vmul.f32 %v990, 0.3
        %v1247 = vmul.f32 %v991, 0.3
        %v1248 = vmul.f32 %v992, 0.3
        %v1249 = vmul.f32 %v993, 0.3
        %v1250 = vmul.f32 %v994, 0.3
        %v1251 = vmul.f32 %v995, 0.3
        %v1252 = vmul.f32 %v996, 0.3
        %v1253 = vmul.f32 %v997, 0.3
        %v1254 = vmul.f32 %v998, 0.3
        %v1255 = vmul.f32 %v999, 0.3
        %v1256 = vmul.f32 %v1000, 0.3
        %v1257 = vmul.f32 %v1001, 0.3
        %v1258 = vmul.f32 %v1002, 0.3
        %v1259 = vmul.f32 %v1003, 0.3
        %v1260 = vmul.f32 %v1004, 0.3
        %v1261 = vmul.f32 %v1005, 0.3
        %v1262 = vmul.f32 %v1006, 0.3
        %v1263 = vmul.f32 %v1007, 0.3
        %v1264 = vmul.f32 %v1008, 0.3
        %v1265 = vmul.f32 %v1009, 0.3
        %v1266 = vmul.f32 %v1010, 0.3
        %v1267 = vmul.f32 %v1011, 0.3
        %v1268 = vmul.f32 %v1012, 0.3
        %v1269 = vmul.f32 %v1013, 0.3
        %v1270 = vmul.f32 %v1014, 0.3
        %v1271 = vmul.f32 %v1015, 0.3
        %v1272 = vmul.f32 %v1016, 0.3
        %v1273 = vmul.f32 %v1017, 0.3
        %v1274 = vmul.f32 %v1018, 0.3
        %v1275 = vmul.f32 %v1019, 0.3
        %v1276 = vmul.f32 %v1020, 0.3
        %v1277 = vmul.f32 %v1021, 0.3
        %v1278 = vmul.f32 %v1022, 0.3
        %v1279 = vmul.f32 %v1023, 0.3
        %v1280 = vmul.f32 %v1024, 0.3
        %v1281 = vmul.f32 %v1025, 0.3
        %v1282 = vmul.f32 %v1026, 0.3
        %v1283 = vmul.f32 %v1027, 0.3
        %v1284 = vmul.f32 %v1028, 0.3
        %v1285 = vmul.f32 %v1029, 0.3
        %v1286 = vmul.f32 %v1030, 0.3
        %v1287 = vmul.f32 %v1031, 0.3
        %v1288 = vmul.f32 %v1032, 0.3
        %v1289 = vmul.f32 %v1033, 0.3
        %v1290 = vmul.f32 %v1034, 0.3
        %v1291 = vmul.f32 %v1035, 0.3
        %v1292 = vmul.f32 %v1036, 0.3
        %v1293 = vmul.f32 %v1037, 0.3
        %v1294 = vmul.f32 %v1038, 0.3
        %v1295 = vmul.f32 %v1039, 0.3
        %v1296 = vmul.f32 %v1040, 0.3
        %v1297 = vmul.f32 %v1041, 0.3
        %v1298 = vmul.f32 %v1042, 0.3
        %v1299 = vmul.f32 %v1043, 0.3
        %v1300 = vmul.f32 %v1044, 0.3
        %v1301 = vmul.f32 %v1045, 0.3
        %v1302 = vmul.f32 %v1046, 0.3
        %v1303 = vmul.f32 %v1047, 0.3
        %v1304 = vmul.f32 %v1048, 0.3
        %v1305 = vmul.f32 %v1049, 0.3
        %v1306 = vmul.f32 %v1050, 0.3
        %v1307 = vmul.f32 %v1051, 0.3
        %v1308 = vmul.f32 %v1052, 0.3
        %v1309 = vmul.f32 %v1053, 0.3
        %v1310 = vmul.f32 %v1054, 0.3
        %v1311 = vmul.f32 %v1055, 0.3
        %v1312 = vmul.f32 %v1056, 0.3
        %v1313 = vmul.f32 %v1057, 0.3
        %v1314 = vmul.f32 %v1058, 0.3
        %v1315 = vmul.f32 %v1059, 0.3
        %v1316 = vmul.f32 %v1060, 0.3
        %v1317 = vmul.f32 %v1061, 0.3
        %v1318 = vmul.f32 %v1062, 0.3
        %v1319 = vmul.f32 %v1063, 0.3
        %v1320 = vmul.f32 %v1064, 0.3
        %v1321 = vmul.f32 %v1065, 0.3
        %v1322 = vmul.f32 %v1066, 0.3
        %v1323 = vmul.f32 %v1067, 0.3
        %v1324 = vmul.f32 %v1068, 0.3
        %v1325 = vmul.f32 %v1069, 0.3
        %v1326 = vmul.f32 %v1070, 0.3
        %v1327 = vmul.f32 %v1071, 0.3
        %v1328 = vmul.f32 %v1072, 0.3
        %v1329 = vmul.f32 %v1073, 0.3
        %v1330 = vmul.f32 %v1074, 0.3
        %v1331 = vmul.f32 %v1075, 0.3
        %v1332 = vmul.f32 %v1076, 0.3
        %v1333 = vmul.f32 %v1077, 0.3
        %v1334 = vmul.f32 %v1078, 0.3
        %v1335 = vmul.f32 %v1079, 0.3
        %v1336 = vmul.f32 %v1080, 0.3
        %v1337 = vmul.f32 %v1081, 0.3
        %v1338 = vmul.f32 %v1082, 0.3
        %v1339 = vmul.f32 %v1083, 0.3
        %v1340 = vmul.f32 %v1084, 0.3
        %v1341 = vmul.f32 %v1085, 0.3
        %v1342 = vmul.f32 %v1086, 0.3
        %v1343 = vmul.f32 %v1087, 0.3
        %v1344 = vmul.f32 %v1088, 0.3
        %v1345 = vmul.f32 %v1089, 0.3
        %v1346 = vmul.f32 %v1090, 0.3
        %v1347 = vmul.f32 %v1091, 0.3
        %v1348 = vmul.f32 %v1092, 0.3
        %v1349 = vmul.f32 %v1093, 0.3
        %v1350 = vmul.f32 %v1094, 0.3
        %v1351 = vmul.f32 %v1095, 0.3
        %v1352 = vmul.f32 %v1096, 0.3
        %v1353 = vmul.f32 %v1097, 0.3
        %v1354 = vmul.f32 %v1098, 0.3
        %v1355 = vmul.f32 %v1099, 0.3
        %v1356 = vmul.f32 %v1100, 0.3
        %v1357 = vmul.f32 %v1101, 0.3
        %v1358 = vmul.f32 %v1102, 0.3
        %v1359 = vmul.f32 %v1103, 0.3
        %v1360 = vmul.f32 %v1104, 0.3
        %v1361 = vmul.f32 %v1105, 0.3
        %v1362 = vmul.f32 %v1106, 0.3
        %v1363 = vmul.f32 %v1107, 0.3
        %v1364 = vmul.f32 %v1108, 0.3
        %v1365 = vmul.f32 %v1109, 0.3
        %v1366 = vmul.f32 %v1110, 0.3
        %v1367 = vmul.f32 %v1111, 0.3
        %v1368 = vmul.f32 %v1112, 0.3
        %v1369 = vmul.f32 %v1113, 0.3
        %v1370 = vmul.f32 %v1114, 0.3
        %v1371 = vmul.f32 %v1115, 0.3
        %v1372 = vmul.f32 %v1116, 0.3
        %v1373 = vmul.f32 %v1117, 0.3
        %v1374 = vmul.f32 %v1118, 0.3
        %v1375 = vmul.f32 %v1119, 0.3
        %v1376 = vmul.f32 %v1120, 0.3
        %v1377 = vmul.f32 %v1121, 0.3
        %v1378 = vmul.f32 %v1122, 0.3
        %v1379 = vmul.f32 %v1123, 0.3
        %v1380 = vmul.f32 %v1124, 0.3
        %v1381 = vmul.f32 %v1125, 0.3
        %v1382 = vmul.f32 %v1126, 0.3
        %v1383 = vmul.f32 %v1127, 0.3
        %v1384 = vmul.f32 %v1128, 0.3
        %v1385 = vmul.f32 %v1129, 0.3
        %v1386 = vmul.f32 %v1130, 0.3
        %v1387 = vmul.f32 %v1131, 0.3
        %v1388 = vmul.f32 %v1132, 0.3
        %v1389 = vmul.f32 %v1133, 0.3
        %v1390 = vmul.f32 %v1134, 0.3
        %v1391 = vmul.f32 %v1135, 0.3
        %v1392 = vmul.f32 %v1136, 0.3
        %v1393 = vmul.f32 %v1137, 0.3
        %v1394 = vmul.f32 %v1138, 0.3
        %v1395 = vmul.f32 %v1139, 0.3
        %v1396 = vmul.f32 %v1140, 0.3
        %v1397 = vmul.f32 %v1141, 0.3
        %v1398 = vmul.f32 %v1142, 0.3
        %v1399 = vmul.f32 %v1143, 0.3
        %v1400 = vmul.f32 %v1144, 0.3
        %v1401 = vmul.f32 %v1145, 0.3
        %v1402 = vmul.f32 %v1146, 0.3
        %v1403 = vmul.f32 %v1147, 0.3
        %v1404 = vmul.f32 %v1148, 0.3
        %v1405 = vmul.f32 %v1149, 0.3
        %v1406 = vmul.f32 %v1150, 0.3
        %v1407 = vmul.f32 %v1151, 0.3
        %v1408 = vmul.f32 %v1152, 0.3
        %v1409 = vmul.f32 %v1153, 0.3
        %v1410 = vmul.f32 %v1154, 0.3
        %v1411 = vmul.f32 %v1155, 0.3
        %v1412 = vmul.f32 %v1156, 0.3
        %v1413 = vmul.f32 %v1157, 0.3
        %v1414 = vmul.f32 %v1158, 0.3
        %v1415 = vmul.f32 %v1159, 0.3
        %v1416 = vmul.f32 %v1160, 0.3
        %v1417 = vmul.f32 %v1161, 0.3
        %v1418 = vmul.f32 %v1162, 0.3
        %v1419 = vmul.f32 %v1163, 0.3
        %vm1420 = vcmp.ge.f32.partialorder %v140, 0.3
        %vm1421 = vcmp.ge.f32.partialorder %v141, 0.3
        %vm1422 = vcmp.ge.f32.partialorder %v142, 0.3
        %vm1423 = vcmp.ge.f32.partialorder %v143, 0.3
        %vm1424 = vcmp.ge.f32.partialorder %v144, 0.3
        %vm1425 = vcmp.ge.f32.partialorder %v145, 0.3
        %vm1426 = vcmp.ge.f32.partialorder %v146, 0.3
        %vm1427 = vcmp.ge.f32.partialorder %v147, 0.3
        %vm1428 = vcmp.ge.f32.partialorder %v148, 0.3
        %vm1429 = vcmp.ge.f32.partialorder %v149, 0.3
        %vm1430 = vcmp.ge.f32.partialorder %v150, 0.3
        %vm1431 = vcmp.ge.f32.partialorder %v151, 0.3
        %vm1432 = vcmp.ge.f32.partialorder %v152, 0.3
        %vm1433 = vcmp.ge.f32.partialorder %v153, 0.3
        %vm1434 = vcmp.ge.f32.partialorder %v154, 0.3
        %vm1435 = vcmp.ge.f32.partialorder %v155, 0.3
        %vm1436 = vcmp.ge.f32.partialorder %v156, 0.3
        %vm1437 = vcmp.ge.f32.partialorder %v157, 0.3
        %vm1438 = vcmp.ge.f32.partialorder %v158, 0.3
        %vm1439 = vcmp.ge.f32.partialorder %v159, 0.3
        %vm1440 = vcmp.ge.f32.partialorder %v160, 0.3
        %vm1441 = vcmp.ge.f32.partialorder %v161, 0.3
        %vm1442 = vcmp.ge.f32.partialorder %v162, 0.3
        %vm1443 = vcmp.ge.f32.partialorder %v163, 0.3
        %vm1444 = vcmp.ge.f32.partialorder %v164, 0.3
        %vm1445 = vcmp.ge.f32.partialorder %v165, 0.3
        %vm1446 = vcmp.ge.f32.partialorder %v166, 0.3
        %vm1447 = vcmp.ge.f32.partialorder %v167, 0.3
        %vm1448 = vcmp.ge.f32.partialorder %v168, 0.3
        %vm1449 = vcmp.ge.f32.partialorder %v169, 0.3
        %vm1450 = vcmp.ge.f32.partialorder %v170, 0.3
        %vm1451 = vcmp.ge.f32.partialorder %v171, 0.3
        %vm1452 = vcmp.ge.f32.partialorder %v172, 0.3
        %vm1453 = vcmp.ge.f32.partialorder %v173, 0.3
        %vm1454 = vcmp.ge.f32.partialorder %v174, 0.3
        %vm1455 = vcmp.ge.f32.partialorder %v175, 0.3
        %vm1456 = vcmp.ge.f32.partialorder %v176, 0.3
        %vm1457 = vcmp.ge.f32.partialorder %v177, 0.3
        %vm1458 = vcmp.ge.f32.partialorder %v178, 0.3
        %vm1459 = vcmp.ge.f32.partialorder %v179, 0.3
        %vm1460 = vcmp.ge.f32.partialorder %v180, 0.3
        %vm1461 = vcmp.ge.f32.partialorder %v181, 0.3
        %vm1462 = vcmp.ge.f32.partialorder %v182, 0.3
        %vm1463 = vcmp.ge.f32.partialorder %v183, 0.3
        %vm1464 = vcmp.ge.f32.partialorder %v184, 0.3
        %vm1465 = vcmp.ge.f32.partialorder %v185, 0.3
        %vm1466 = vcmp.ge.f32.partialorder %v186, 0.3
        %vm1467 = vcmp.ge.f32.partialorder %v187, 0.3
        %vm1468 = vcmp.ge.f32.partialorder %v188, 0.3
        %vm1469 = vcmp.ge.f32.partialorder %v189, 0.3
        %vm1470 = vcmp.ge.f32.partialorder %v190, 0.3
        %vm1471 = vcmp.ge.f32.partialorder %v191, 0.3
        %vm1472 = vcmp.ge.f32.partialorder %v192, 0.3
        %vm1473 = vcmp.ge.f32.partialorder %v193, 0.3
        %vm1474 = vcmp.ge.f32.partialorder %v194, 0.3
        %vm1475 = vcmp.ge.f32.partialorder %v195, 0.3
        %vm1476 = vcmp.ge.f32.partialorder %v196, 0.3
        %vm1477 = vcmp.ge.f32.partialorder %v197, 0.3
        %vm1478 = vcmp.ge.f32.partialorder %v198, 0.3
        %vm1479 = vcmp.ge.f32.partialorder %v199, 0.3
        %vm1480 = vcmp.ge.f32.partialorder %v200, 0.3
        %vm1481 = vcmp.ge.f32.partialorder %v201, 0.3
        %vm1482 = vcmp.ge.f32.partialorder %v202, 0.3
        %vm1483 = vcmp.ge.f32.partialorder %v203, 0.3
        %vm1484 = vcmp.ge.f32.partialorder %v204, 0.3
        %vm1485 = vcmp.ge.f32.partialorder %v205, 0.3
        %vm1486 = vcmp.ge.f32.partialorder %v206, 0.3
        %vm1487 = vcmp.ge.f32.partialorder %v207, 0.3
        %vm1488 = vcmp.ge.f32.partialorder %v208, 0.3
        %vm1489 = vcmp.ge.f32.partialorder %v209, 0.3
        %vm1490 = vcmp.ge.f32.partialorder %v210, 0.3
        %vm1491 = vcmp.ge.f32.partialorder %v211, 0.3
        %vm1492 = vcmp.ge.f32.partialorder %v212, 0.3
        %vm1493 = vcmp.ge.f32.partialorder %v213, 0.3
        %vm1494 = vcmp.ge.f32.partialorder %v214, 0.3
        %vm1495 = vcmp.ge.f32.partialorder %v215, 0.3
        %vm1496 = vcmp.ge.f32.partialorder %v216, 0.3
        %vm1497 = vcmp.ge.f32.partialorder %v217, 0.3
        %vm1498 = vcmp.ge.f32.partialorder %v218, 0.3
        %vm1499 = vcmp.ge.f32.partialorder %v219, 0.3
        %vm1500 = vcmp.ge.f32.partialorder %v220, 0.3
        %vm1501 = vcmp.ge.f32.partialorder %v221, 0.3
        %vm1502 = vcmp.ge.f32.partialorder %v222, 0.3
        %vm1503 = vcmp.ge.f32.partialorder %v223, 0.3
        %vm1504 = vcmp.ge.f32.partialorder %v224, 0.3
        %vm1505 = vcmp.ge.f32.partialorder %v225, 0.3
        %vm1506 = vcmp.ge.f32.partialorder %v226, 0.3
        %vm1507 = vcmp.ge.f32.partialorder %v227, 0.3
        %vm1508 = vcmp.ge.f32.partialorder %v228, 0.3
        %vm1509 = vcmp.ge.f32.partialorder %v229, 0.3
        %vm1510 = vcmp.ge.f32.partialorder %v230, 0.3
        %vm1511 = vcmp.ge.f32.partialorder %v231, 0.3
        %vm1512 = vcmp.ge.f32.partialorder %v232, 0.3
        %vm1513 = vcmp.ge.f32.partialorder %v233, 0.3
        %vm1514 = vcmp.ge.f32.partialorder %v234, 0.3
        %vm1515 = vcmp.ge.f32.partialorder %v235, 0.3
        %vm1516 = vcmp.ge.f32.partialorder %v236, 0.3
        %vm1517 = vcmp.ge.f32.partialorder %v237, 0.3
        %vm1518 = vcmp.ge.f32.partialorder %v238, 0.3
        %vm1519 = vcmp.ge.f32.partialorder %v239, 0.3
        %vm1520 = vcmp.ge.f32.partialorder %v240, 0.3
        %vm1521 = vcmp.ge.f32.partialorder %v241, 0.3
        %vm1522 = vcmp.ge.f32.partialorder %v242, 0.3
        %vm1523 = vcmp.ge.f32.partialorder %v243, 0.3
        %vm1524 = vcmp.ge.f32.partialorder %v244, 0.3
        %vm1525 = vcmp.ge.f32.partialorder %v245, 0.3
        %vm1526 = vcmp.ge.f32.partialorder %v246, 0.3
        %vm1527 = vcmp.ge.f32.partialorder %v247, 0.3
        %vm1528 = vcmp.ge.f32.partialorder %v248, 0.3
        %vm1529 = vcmp.ge.f32.partialorder %v249, 0.3
        %vm1530 = vcmp.ge.f32.partialorder %v250, 0.3
        %vm1531 = vcmp.ge.f32.partialorder %v251, 0.3
        %vm1532 = vcmp.ge.f32.partialorder %v252, 0.3
        %vm1533 = vcmp.ge.f32.partialorder %v253, 0.3
        %vm1534 = vcmp.ge.f32.partialorder %v254, 0.3
        %vm1535 = vcmp.ge.f32.partialorder %v255, 0.3
        %vm1536 = vcmp.ge.f32.partialorder %v256, 0.3
        %vm1537 = vcmp.ge.f32.partialorder %v257, 0.3
        %vm1538 = vcmp.ge.f32.partialorder %v258, 0.3
        %vm1539 = vcmp.ge.f32.partialorder %v259, 0.3
        %vm1540 = vcmp.ge.f32.partialorder %v260, 0.3
        %vm1541 = vcmp.ge.f32.partialorder %v261, 0.3
        %vm1542 = vcmp.ge.f32.partialorder %v262, 0.3
        %vm1543 = vcmp.ge.f32.partialorder %v263, 0.3
        %vm1544 = vcmp.ge.f32.partialorder %v264, 0.3
        %vm1545 = vcmp.ge.f32.partialorder %v265, 0.3
        %vm1546 = vcmp.ge.f32.partialorder %v266, 0.3
        %vm1547 = vcmp.ge.f32.partialorder %v267, 0.3
        %vm1548 = vcmp.ge.f32.partialorder %v268, 0.3
        %vm1549 = vcmp.ge.f32.partialorder %v269, 0.3
        %vm1550 = vcmp.ge.f32.partialorder %v270, 0.3
        %vm1551 = vcmp.ge.f32.partialorder %v271, 0.3
        %vm1552 = vcmp.ge.f32.partialorder %v272, 0.3
        %vm1553 = vcmp.ge.f32.partialorder %v273, 0.3
        %vm1554 = vcmp.ge.f32.partialorder %v274, 0.3
        %vm1555 = vcmp.ge.f32.partialorder %v275, 0.3
        %vm1556 = vcmp.ge.f32.partialorder %v276, 0.3
        %vm1557 = vcmp.ge.f32.partialorder %v277, 0.3
        %vm1558 = vcmp.ge.f32.partialorder %v278, 0.3
        %vm1559 = vcmp.ge.f32.partialorder %v279, 0.3
        %vm1560 = vcmp.ge.f32.partialorder %v280, 0.3
        %vm1561 = vcmp.ge.f32.partialorder %v281, 0.3
        %vm1562 = vcmp.ge.f32.partialorder %v282, 0.3
        %vm1563 = vcmp.ge.f32.partialorder %v283, 0.3
        %vm1564 = vcmp.ge.f32.partialorder %v284, 0.3
        %vm1565 = vcmp.ge.f32.partialorder %v285, 0.3
        %vm1566 = vcmp.ge.f32.partialorder %v286, 0.3
        %vm1567 = vcmp.ge.f32.partialorder %v287, 0.3
        %vm1568 = vcmp.ge.f32.partialorder %v288, 0.3
        %vm1569 = vcmp.ge.f32.partialorder %v289, 0.3
        %vm1570 = vcmp.ge.f32.partialorder %v290, 0.3
        %vm1571 = vcmp.ge.f32.partialorder %v291, 0.3
        %vm1572 = vcmp.ge.f32.partialorder %v292, 0.3
        %vm1573 = vcmp.ge.f32.partialorder %v293, 0.3
        %vm1574 = vcmp.ge.f32.partialorder %v294, 0.3
        %vm1575 = vcmp.ge.f32.partialorder %v295, 0.3
        %vm1576 = vcmp.ge.f32.partialorder %v296, 0.3
        %vm1577 = vcmp.ge.f32.partialorder %v297, 0.3
        %vm1578 = vcmp.ge.f32.partialorder %v298, 0.3
        %vm1579 = vcmp.ge.f32.partialorder %v299, 0.3
        %vm1580 = vcmp.ge.f32.partialorder %v300, 0.3
        %vm1581 = vcmp.ge.f32.partialorder %v301, 0.3
        %vm1582 = vcmp.ge.f32.partialorder %v302, 0.3
        %vm1583 = vcmp.ge.f32.partialorder %v303, 0.3
        %vm1584 = vcmp.ge.f32.partialorder %v304, 0.3
        %vm1585 = vcmp.ge.f32.partialorder %v305, 0.3
        %vm1586 = vcmp.ge.f32.partialorder %v306, 0.3
        %vm1587 = vcmp.ge.f32.partialorder %v307, 0.3
        %vm1588 = vcmp.ge.f32.partialorder %v308, 0.3
        %vm1589 = vcmp.ge.f32.partialorder %v309, 0.3
        %vm1590 = vcmp.ge.f32.partialorder %v310, 0.3
        %vm1591 = vcmp.ge.f32.partialorder %v311, 0.3
        %vm1592 = vcmp.ge.f32.partialorder %v312, 0.3
        %vm1593 = vcmp.ge.f32.partialorder %v313, 0.3
        %vm1594 = vcmp.ge.f32.partialorder %v314, 0.3
        %vm1595 = vcmp.ge.f32.partialorder %v315, 0.3
        %vm1596 = vcmp.ge.f32.partialorder %v316, 0.3
        %vm1597 = vcmp.ge.f32.partialorder %v317, 0.3
        %vm1598 = vcmp.ge.f32.partialorder %v318, 0.3
        %vm1599 = vcmp.ge.f32.partialorder %v319, 0.3
        %vm1600 = vcmp.ge.f32.partialorder %v320, 0.3
        %vm1601 = vcmp.ge.f32.partialorder %v321, 0.3
        %vm1602 = vcmp.ge.f32.partialorder %v322, 0.3
        %vm1603 = vcmp.ge.f32.partialorder %v323, 0.3
        %vm1604 = vcmp.ge.f32.partialorder %v324, 0.3
        %vm1605 = vcmp.ge.f32.partialorder %v325, 0.3
        %vm1606 = vcmp.ge.f32.partialorder %v326, 0.3
        %vm1607 = vcmp.ge.f32.partialorder %v327, 0.3
        %vm1608 = vcmp.ge.f32.partialorder %v328, 0.3
        %vm1609 = vcmp.ge.f32.partialorder %v329, 0.3
        %vm1610 = vcmp.ge.f32.partialorder %v330, 0.3
        %vm1611 = vcmp.ge.f32.partialorder %v331, 0.3
        %vm1612 = vcmp.ge.f32.partialorder %v332, 0.3
        %vm1613 = vcmp.ge.f32.partialorder %v333, 0.3
        %vm1614 = vcmp.ge.f32.partialorder %v334, 0.3
        %vm1615 = vcmp.ge.f32.partialorder %v335, 0.3
        %vm1616 = vcmp.ge.f32.partialorder %v336, 0.3
        %vm1617 = vcmp.ge.f32.partialorder %v337, 0.3
        %vm1618 = vcmp.ge.f32.partialorder %v338, 0.3
        %vm1619 = vcmp.ge.f32.partialorder %v339, 0.3
        %vm1620 = vcmp.ge.f32.partialorder %v340, 0.3
        %vm1621 = vcmp.ge.f32.partialorder %v341, 0.3
        %vm1622 = vcmp.ge.f32.partialorder %v342, 0.3
        %vm1623 = vcmp.ge.f32.partialorder %v343, 0.3
        %vm1624 = vcmp.ge.f32.partialorder %v344, 0.3
        %vm1625 = vcmp.ge.f32.partialorder %v345, 0.3
        %vm1626 = vcmp.ge.f32.partialorder %v346, 0.3
        %vm1627 = vcmp.ge.f32.partialorder %v347, 0.3
        %vm1628 = vcmp.ge.f32.partialorder %v348, 0.3
        %vm1629 = vcmp.ge.f32.partialorder %v349, 0.3
        %vm1630 = vcmp.ge.f32.partialorder %v350, 0.3
        %vm1631 = vcmp.ge.f32.partialorder %v351, 0.3
        %vm1632 = vcmp.ge.f32.partialorder %v352, 0.3
        %vm1633 = vcmp.ge.f32.partialorder %v353, 0.3
        %vm1634 = vcmp.ge.f32.partialorder %v354, 0.3
        %vm1635 = vcmp.ge.f32.partialorder %v355, 0.3
        %vm1636 = vcmp.ge.f32.partialorder %v356, 0.3
        %vm1637 = vcmp.ge.f32.partialorder %v357, 0.3
        %vm1638 = vcmp.ge.f32.partialorder %v358, 0.3
        %vm1639 = vcmp.ge.f32.partialorder %v359, 0.3
        %vm1640 = vcmp.ge.f32.partialorder %v360, 0.3
        %vm1641 = vcmp.ge.f32.partialorder %v361, 0.3
        %vm1642 = vcmp.ge.f32.partialorder %v362, 0.3
        %vm1643 = vcmp.ge.f32.partialorder %v363, 0.3
        %vm1644 = vcmp.ge.f32.partialorder %v364, 0.3
        %vm1645 = vcmp.ge.f32.partialorder %v365, 0.3
        %vm1646 = vcmp.ge.f32.partialorder %v366, 0.3
        %vm1647 = vcmp.ge.f32.partialorder %v367, 0.3
        %vm1648 = vcmp.ge.f32.partialorder %v368, 0.3
        %vm1649 = vcmp.ge.f32.partialorder %v369, 0.3
        %vm1650 = vcmp.ge.f32.partialorder %v370, 0.3
        %vm1651 = vcmp.ge.f32.partialorder %v371, 0.3
        %vm1652 = vcmp.ge.f32.partialorder %v372, 0.3
        %vm1653 = vcmp.ge.f32.partialorder %v373, 0.3
        %vm1654 = vcmp.ge.f32.partialorder %v374, 0.3
        %vm1655 = vcmp.ge.f32.partialorder %v375, 0.3
        %vm1656 = vcmp.ge.f32.partialorder %v376, 0.3
        %vm1657 = vcmp.ge.f32.partialorder %v377, 0.3
        %vm1658 = vcmp.ge.f32.partialorder %v378, 0.3
        %vm1659 = vcmp.ge.f32.partialorder %v379, 0.3
        %vm1660 = vcmp.ge.f32.partialorder %v380, 0.3
        %vm1661 = vcmp.ge.f32.partialorder %v381, 0.3
        %vm1662 = vcmp.ge.f32.partialorder %v382, 0.3
        %vm1663 = vcmp.ge.f32.partialorder %v383, 0.3
        %vm1664 = vcmp.ge.f32.partialorder %v384, 0.3
        %vm1665 = vcmp.ge.f32.partialorder %v385, 0.3
        %vm1666 = vcmp.ge.f32.partialorder %v386, 0.3
        %vm1667 = vcmp.ge.f32.partialorder %v387, 0.3
        %vm1668 = vcmp.ge.f32.partialorder %v388, 0.3
        %vm1669 = vcmp.ge.f32.partialorder %v389, 0.3
        %vm1670 = vcmp.ge.f32.partialorder %v390, 0.3
        %vm1671 = vcmp.ge.f32.partialorder %v391, 0.3
        %vm1672 = vcmp.ge.f32.partialorder %v392, 0.3
        %vm1673 = vcmp.ge.f32.partialorder %v393, 0.3
        %vm1674 = vcmp.ge.f32.partialorder %v394, 0.3
        %vm1675 = vcmp.ge.f32.partialorder %v395, 0.3
        %v1676 = vsel %vm1420, 1, 0
        %v1677 = vsel %vm1421, 1, 0
        %v1678 = vsel %vm1422, 1, 0
        %v1679 = vsel %vm1423, 1, 0
        %v1680 = vsel %vm1424, 1, 0
        %v1681 = vsel %vm1425, 1, 0
        %v1682 = vsel %vm1426, 1, 0
        %v1683 = vsel %vm1427, 1, 0
        %v1684 = vsel %vm1428, 1, 0
        %v1685 = vsel %vm1429, 1, 0
        %v1686 = vsel %vm1430, 1, 0
        %v1687 = vsel %vm1431, 1, 0
        %v1688 = vsel %vm1432, 1, 0
        %v1689 = vsel %vm1433, 1, 0
        %v1690 = vsel %vm1434, 1, 0
        %v1691 = vsel %vm1435, 1, 0
        %v1692 = vsel %vm1436, 1, 0
        %v1693 = vsel %vm1437, 1, 0
        %v1694 = vsel %vm1438, 1, 0
        %v1695 = vsel %vm1439, 1, 0
        %v1696 = vsel %vm1440, 1, 0
        %v1697 = vsel %vm1441, 1, 0
        %v1698 = vsel %vm1442, 1, 0
        %v1699 = vsel %vm1443, 1, 0
        %v1700 = vsel %vm1444, 1, 0
        %v1701 = vsel %vm1445, 1, 0
        %v1702 = vsel %vm1446, 1, 0
        %v1703 = vsel %vm1447, 1, 0
        %v1704 = vsel %vm1448, 1, 0
        %v1705 = vsel %vm1449, 1, 0
        %v1706 = vsel %vm1450, 1, 0
        %v1707 = vsel %vm1451, 1, 0
        %v1708 = vsel %vm1452, 1, 0
        %v1709 = vsel %vm1453, 1, 0
        %v1710 = vsel %vm1454, 1, 0
        %v1711 = vsel %vm1455, 1, 0
        %v1712 = vsel %vm1456, 1, 0
        %v1713 = vsel %vm1457, 1, 0
        %v1714 = vsel %vm1458, 1, 0
        %v1715 = vsel %vm1459, 1, 0
        %v1716 = vsel %vm1460, 1, 0
        %v1717 = vsel %vm1461, 1, 0
        %v1718 = vsel %vm1462, 1, 0
        %v1719 = vsel %vm1463, 1, 0
        %v1720 = vsel %vm1464, 1, 0
        %v1721 = vsel %vm1465, 1, 0
        %v1722 = vsel %vm1466, 1, 0
        %v1723 = vsel %vm1467, 1, 0
        %v1724 = vsel %vm1468, 1, 0
        %v1725 = vsel %vm1469, 1, 0
        %v1726 = vsel %vm1470, 1, 0
        %v1727 = vsel %vm1471, 1, 0
        %v1728 = vsel %vm1472, 1, 0
        %v1729 = vsel %vm1473, 1, 0
        %v1730 = vsel %vm1474, 1, 0
        %v1731 = vsel %vm1475, 1, 0
        %v1732 = vsel %vm1476, 1, 0
        %v1733 = vsel %vm1477, 1, 0
        %v1734 = vsel %vm1478, 1, 0
        %v1735 = vsel %vm1479, 1, 0
        %v1736 = vsel %vm1480, 1, 0
        %v1737 = vsel %vm1481, 1, 0
        %v1738 = vsel %vm1482, 1, 0
        %v1739 = vsel %vm1483, 1, 0
        %v1740 = vsel %vm1484, 1, 0
        %v1741 = vsel %vm1485, 1, 0
        %v1742 = vsel %vm1486, 1, 0
        %v1743 = vsel %vm1487, 1, 0
        %v1744 = vsel %vm1488, 1, 0
        %v1745 = vsel %vm1489, 1, 0
        %v1746 = vsel %vm1490, 1, 0
        %v1747 = vsel %vm1491, 1, 0
        %v1748 = vsel %vm1492, 1, 0
        %v1749 = vsel %vm1493, 1, 0
        %v1750 = vsel %vm1494, 1, 0
        %v1751 = vsel %vm1495, 1, 0
        %v1752 = vsel %vm1496, 1, 0
        %v1753 = vsel %vm1497, 1, 0
        %v1754 = vsel %vm1498, 1, 0
        %v1755 = vsel %vm1499, 1, 0
        %v1756 = vsel %vm1500, 1, 0
        %v1757 = vsel %vm1501, 1, 0
        %v1758 = vsel %vm1502, 1, 0
        %v1759 = vsel %vm1503, 1, 0
        %v1760 = vsel %vm1504, 1, 0
        %v1761 = vsel %vm1505, 1, 0
        %v1762 = vsel %vm1506, 1, 0
        %v1763 = vsel %vm1507, 1, 0
        %v1764 = vsel %vm1508, 1, 0
        %v1765 = vsel %vm1509, 1, 0
        %v1766 = vsel %vm1510, 1, 0
        %v1767 = vsel %vm1511, 1, 0
        %v1768 = vsel %vm1512, 1, 0
        %v1769 = vsel %vm1513, 1, 0
        %v1770 = vsel %vm1514, 1, 0
        %v1771 = vsel %vm1515, 1, 0
        %v1772 = vsel %vm1516, 1, 0
        %v1773 = vsel %vm1517, 1, 0
        %v1774 = vsel %vm1518, 1, 0
        %v1775 = vsel %vm1519, 1, 0
        %v1776 = vsel %vm1520, 1, 0
        %v1777 = vsel %vm1521, 1, 0
        %v1778 = vsel %vm1522, 1, 0
        %v1779 = vsel %vm1523, 1, 0
        %v1780 = vsel %vm1524, 1, 0
        %v1781 = vsel %vm1525, 1, 0
        %v1782 = vsel %vm1526, 1, 0
        %v1783 = vsel %vm1527, 1, 0
        %v1784 = vsel %vm1528, 1, 0
        %v1785 = vsel %vm1529, 1, 0
        %v1786 = vsel %vm1530, 1, 0
        %v1787 = vsel %vm1531, 1, 0
        %v1788 = vsel %vm1532, 1, 0
        %v1789 = vsel %vm1533, 1, 0
        %v1790 = vsel %vm1534, 1, 0
        %v1791 = vsel %vm1535, 1, 0
        %v1792 = vsel %vm1536, 1, 0
        %v1793 = vsel %vm1537, 1, 0
        %v1794 = vsel %vm1538, 1, 0
        %v1795 = vsel %vm1539, 1, 0
        %v1796 = vsel %vm1540, 1, 0
        %v1797 = vsel %vm1541, 1, 0
        %v1798 = vsel %vm1542, 1, 0
        %v1799 = vsel %vm1543, 1, 0
        %v1800 = vsel %vm1544, 1, 0
        %v1801 = vsel %vm1545, 1, 0
        %v1802 = vsel %vm1546, 1, 0
        %v1803 = vsel %vm1547, 1, 0
        %v1804 = vsel %vm1548, 1, 0
        %v1805 = vsel %vm1549, 1, 0
        %v1806 = vsel %vm1550, 1, 0
        %v1807 = vsel %vm1551, 1, 0
        %v1808 = vsel %vm1552, 1, 0
        %v1809 = vsel %vm1553, 1, 0
        %v1810 = vsel %vm1554, 1, 0
        %v1811 = vsel %vm1555, 1, 0
        %v1812 = vsel %vm1556, 1, 0
        %v1813 = vsel %vm1557, 1, 0
        %v1814 = vsel %vm1558, 1, 0
        %v1815 = vsel %vm1559, 1, 0
        %v1816 = vsel %vm1560, 1, 0
        %v1817 = vsel %vm1561, 1, 0
        %v1818 = vsel %vm1562, 1, 0
        %v1819 = vsel %vm1563, 1, 0
        %v1820 = vsel %vm1564, 1, 0
        %v1821 = vsel %vm1565, 1, 0
        %v1822 = vsel %vm1566, 1, 0
        %v1823 = vsel %vm1567, 1, 0
        %v1824 = vsel %vm1568, 1, 0
        %v1825 = vsel %vm1569, 1, 0
        %v1826 = vsel %vm1570, 1, 0
        %v1827 = vsel %vm1571, 1, 0
        %v1828 = vsel %vm1572, 1, 0
        %v1829 = vsel %vm1573, 1, 0
        %v1830 = vsel %vm1574, 1, 0
        %v1831 = vsel %vm1575, 1, 0
        %v1832 = vsel %vm1576, 1, 0
        %v1833 = vsel %vm1577, 1, 0
        %v1834 = vsel %vm1578, 1, 0
        %v1835 = vsel %vm1579, 1, 0
        %v1836 = vsel %vm1580, 1, 0
        %v1837 = vsel %vm1581, 1, 0
        %v1838 = vsel %vm1582, 1, 0
        %v1839 = vsel %vm1583, 1, 0
        %v1840 = vsel %vm1584, 1, 0
        %v1841 = vsel %vm1585, 1, 0
        %v1842 = vsel %vm1586, 1, 0
        %v1843 = vsel %vm1587, 1, 0
        %v1844 = vsel %vm1588, 1, 0
        %v1845 = vsel %vm1589, 1, 0
        %v1846 = vsel %vm1590, 1, 0
        %v1847 = vsel %vm1591, 1, 0
        %v1848 = vsel %vm1592, 1, 0
        %v1849 = vsel %vm1593, 1, 0
        %v1850 = vsel %vm1594, 1, 0
        %v1851 = vsel %vm1595, 1, 0
        %v1852 = vsel %vm1596, 1, 0
        %v1853 = vsel %vm1597, 1, 0
        %v1854 = vsel %vm1598, 1, 0
        %v1855 = vsel %vm1599, 1, 0
        %v1856 = vsel %vm1600, 1, 0
        %v1857 = vsel %vm1601, 1, 0
        %v1858 = vsel %vm1602, 1, 0
        %v1859 = vsel %vm1603, 1, 0
        %v1860 = vsel %vm1604, 1, 0
        %v1861 = vsel %vm1605, 1, 0
        %v1862 = vsel %vm1606, 1, 0
        %v1863 = vsel %vm1607, 1, 0
        %v1864 = vsel %vm1608, 1, 0
        %v1865 = vsel %vm1609, 1, 0
        %v1866 = vsel %vm1610, 1, 0
        %v1867 = vsel %vm1611, 1, 0
        %v1868 = vsel %vm1612, 1, 0
        %v1869 = vsel %vm1613, 1, 0
        %v1870 = vsel %vm1614, 1, 0
        %v1871 = vsel %vm1615, 1, 0
        %v1872 = vsel %vm1616, 1, 0
        %v1873 = vsel %vm1617, 1, 0
        %v1874 = vsel %vm1618, 1, 0
        %v1875 = vsel %vm1619, 1, 0
        %v1876 = vsel %vm1620, 1, 0
        %v1877 = vsel %vm1621, 1, 0
        %v1878 = vsel %vm1622, 1, 0
        %v1879 = vsel %vm1623, 1, 0
        %v1880 = vsel %vm1624, 1, 0
        %v1881 = vsel %vm1625, 1, 0
        %v1882 = vsel %vm1626, 1, 0
        %v1883 = vsel %vm1627, 1, 0
        %v1884 = vsel %vm1628, 1, 0
        %v1885 = vsel %vm1629, 1, 0
        %v1886 = vsel %vm1630, 1, 0
        %v1887 = vsel %vm1631, 1, 0
        %v1888 = vsel %vm1632, 1, 0
        %v1889 = vsel %vm1633, 1, 0
        %v1890 = vsel %vm1634, 1, 0
        %v1891 = vsel %vm1635, 1, 0
        %v1892 = vsel %vm1636, 1, 0
        %v1893 = vsel %vm1637, 1, 0
        %v1894 = vsel %vm1638, 1, 0
        %v1895 = vsel %vm1639, 1, 0
        %v1896 = vsel %vm1640, 1, 0
        %v1897 = vsel %vm1641, 1, 0
        %v1898 = vsel %vm1642, 1, 0
        %v1899 = vsel %vm1643, 1, 0
        %v1900 = vsel %vm1644, 1, 0
        %v1901 = vsel %vm1645, 1, 0
        %v1902 = vsel %vm1646, 1, 0
        %v1903 = vsel %vm1647, 1, 0
        %v1904 = vsel %vm1648, 1, 0
        %v1905 = vsel %vm1649, 1, 0
        %v1906 = vsel %vm1650, 1, 0
        %v1907 = vsel %vm1651, 1, 0
        %v1908 = vsel %vm1652, 1, 0
        %v1909 = vsel %vm1653, 1, 0
        %v1910 = vsel %vm1654, 1, 0
        %v1911 = vsel %vm1655, 1, 0
        %v1912 = vsel %vm1656, 1, 0
        %v1913 = vsel %vm1657, 1, 0
        %v1914 = vsel %vm1658, 1, 0
        %v1915 = vsel %vm1659, 1, 0
        %v1916 = vsel %vm1660, 1, 0
        %v1917 = vsel %vm1661, 1, 0
        %v1918 = vsel %vm1662, 1, 0
        %v1919 = vsel %vm1663, 1, 0
        %v1920 = vsel %vm1664, 1, 0
        %v1921 = vsel %vm1665, 1, 0
        %v1922 = vsel %vm1666, 1, 0
        %v1923 = vsel %vm1667, 1, 0
        %v1924 = vsel %vm1668, 1, 0
        %v1925 = vsel %vm1669, 1, 0
        %v1926 = vsel %vm1670, 1, 0
        %v1927 = vsel %vm1671, 1, 0
        %v1928 = vsel %vm1672, 1, 0
        %v1929 = vsel %vm1673, 1, 0
        %v1930 = vsel %vm1674, 1, 0
        %v1931 = vsel %vm1675, 1, 0
        %v1932 = vcvt.s32.f32 %v1676
        %v1933 = vcvt.s32.f32 %v1677
        %v1934 = vcvt.s32.f32 %v1678
        %v1935 = vcvt.s32.f32 %v1679
        %v1936 = vcvt.s32.f32 %v1680
        %v1937 = vcvt.s32.f32 %v1681
        %v1938 = vcvt.s32.f32 %v1682
        %v1939 = vcvt.s32.f32 %v1683
        %v1940 = vcvt.s32.f32 %v1684
        %v1941 = vcvt.s32.f32 %v1685
        %v1942 = vcvt.s32.f32 %v1686
        %v1943 = vcvt.s32.f32 %v1687
        %v1944 = vcvt.s32.f32 %v1688
        %v1945 = vcvt.s32.f32 %v1689
        %v1946 = vcvt.s32.f32 %v1690
        %v1947 = vcvt.s32.f32 %v1691
        %v1948 = vcvt.s32.f32 %v1692
        %v1949 = vcvt.s32.f32 %v1693
        %v1950 = vcvt.s32.f32 %v1694
        %v1951 = vcvt.s32.f32 %v1695
        %v1952 = vcvt.s32.f32 %v1696
        %v1953 = vcvt.s32.f32 %v1697
        %v1954 = vcvt.s32.f32 %v1698
        %v1955 = vcvt.s32.f32 %v1699
        %v1956 = vcvt.s32.f32 %v1700
        %v1957 = vcvt.s32.f32 %v1701
        %v1958 = vcvt.s32.f32 %v1702
        %v1959 = vcvt.s32.f32 %v1703
        %v1960 = vcvt.s32.f32 %v1704
        %v1961 = vcvt.s32.f32 %v1705
        %v1962 = vcvt.s32.f32 %v1706
        %v1963 = vcvt.s32.f32 %v1707
        %v1964 = vcvt.s32.f32 %v1708
        %v1965 = vcvt.s32.f32 %v1709
        %v1966 = vcvt.s32.f32 %v1710
        %v1967 = vcvt.s32.f32 %v1711
        %v1968 = vcvt.s32.f32 %v1712
        %v1969 = vcvt.s32.f32 %v1713
        %v1970 = vcvt.s32.f32 %v1714
        %v1971 = vcvt.s32.f32 %v1715
        %v1972 = vcvt.s32.f32 %v1716
        %v1973 = vcvt.s32.f32 %v1717
        %v1974 = vcvt.s32.f32 %v1718
        %v1975 = vcvt.s32.f32 %v1719
        %v1976 = vcvt.s32.f32 %v1720
        %v1977 = vcvt.s32.f32 %v1721
        %v1978 = vcvt.s32.f32 %v1722
        %v1979 = vcvt.s32.f32 %v1723
        %v1980 = vcvt.s32.f32 %v1724
        %v1981 = vcvt.s32.f32 %v1725
        %v1982 = vcvt.s32.f32 %v1726
        %v1983 = vcvt.s32.f32 %v1727
        %v1984 = vcvt.s32.f32 %v1728
        %v1985 = vcvt.s32.f32 %v1729
        %v1986 = vcvt.s32.f32 %v1730
        %v1987 = vcvt.s32.f32 %v1731
        %v1988 = vcvt.s32.f32 %v1732
        %v1989 = vcvt.s32.f32 %v1733
        %v1990 = vcvt.s32.f32 %v1734
        %v1991 = vcvt.s32.f32 %v1735
        %v1992 = vcvt.s32.f32 %v1736
        %v1993 = vcvt.s32.f32 %v1737
        %v1994 = vcvt.s32.f32 %v1738
        %v1995 = vcvt.s32.f32 %v1739
        %v1996 = vcvt.s32.f32 %v1740
        %v1997 = vcvt.s32.f32 %v1741
        %v1998 = vcvt.s32.f32 %v1742
        %v1999 = vcvt.s32.f32 %v1743
        %v2000 = vcvt.s32.f32 %v1744
        %v2001 = vcvt.s32.f32 %v1745
        %v2002 = vcvt.s32.f32 %v1746
        %v2003 = vcvt.s32.f32 %v1747
        %v2004 = vcvt.s32.f32 %v1748
        %v2005 = vcvt.s32.f32 %v1749
        %v2006 = vcvt.s32.f32 %v1750
        %v2007 = vcvt.s32.f32 %v1751
        %v2008 = vcvt.s32.f32 %v1752
        %v2009 = vcvt.s32.f32 %v1753
        %v2010 = vcvt.s32.f32 %v1754
        %v2011 = vcvt.s32.f32 %v1755
        %v2012 = vcvt.s32.f32 %v1756
        %v2013 = vcvt.s32.f32 %v1757
        %v2014 = vcvt.s32.f32 %v1758
        %v2015 = vcvt.s32.f32 %v1759
        %v2016 = vcvt.s32.f32 %v1760
        %v2017 = vcvt.s32.f32 %v1761
        %v2018 = vcvt.s32.f32 %v1762
        %v2019 = vcvt.s32.f32 %v1763
        %v2020 = vcvt.s32.f32 %v1764
        %v2021 = vcvt.s32.f32 %v1765
        %v2022 = vcvt.s32.f32 %v1766
        %v2023 = vcvt.s32.f32 %v1767
        %v2024 = vcvt.s32.f32 %v1768
        %v2025 = vcvt.s32.f32 %v1769
        %v2026 = vcvt.s32.f32 %v1770
        %v2027 = vcvt.s32.f32 %v1771
        %v2028 = vcvt.s32.f32 %v1772
        %v2029 = vcvt.s32.f32 %v1773
        %v2030 = vcvt.s32.f32 %v1774
        %v2031 = vcvt.s32.f32 %v1775
        %v2032 = vcvt.s32.f32 %v1776
        %v2033 = vcvt.s32.f32 %v1777
        %v2034 = vcvt.s32.f32 %v1778
        %v2035 = vcvt.s32.f32 %v1779
        %v2036 = vcvt.s32.f32 %v1780
        %v2037 = vcvt.s32.f32 %v1781
        %v2038 = vcvt.s32.f32 %v1782
        %v2039 = vcvt.s32.f32 %v1783
        %v2040 = vcvt.s32.f32 %v1784
        %v2041 = vcvt.s32.f32 %v1785
        %v2042 = vcvt.s32.f32 %v1786
        %v2043 = vcvt.s32.f32 %v1787
        %v2044 = vcvt.s32.f32 %v1788
        %v2045 = vcvt.s32.f32 %v1789
        %v2046 = vcvt.s32.f32 %v1790
        %v2047 = vcvt.s32.f32 %v1791
        %v2048 = vcvt.s32.f32 %v1792
        %v2049 = vcvt.s32.f32 %v1793
        %v2050 = vcvt.s32.f32 %v1794
        %v2051 = vcvt.s32.f32 %v1795
        %v2052 = vcvt.s32.f32 %v1796
        %v2053 = vcvt.s32.f32 %v1797
        %v2054 = vcvt.s32.f32 %v1798
        %v2055 = vcvt.s32.f32 %v1799
        %v2056 = vcvt.s32.f32 %v1800
        %v2057 = vcvt.s32.f32 %v1801
        %v2058 = vcvt.s32.f32 %v1802
        %v2059 = vcvt.s32.f32 %v1803
        %v2060 = vcvt.s32.f32 %v1804
        %v2061 = vcvt.s32.f32 %v1805
        %v2062 = vcvt.s32.f32 %v1806
        %v2063 = vcvt.s32.f32 %v1807
        %v2064 = vcvt.s32.f32 %v1808
        %v2065 = vcvt.s32.f32 %v1809
        %v2066 = vcvt.s32.f32 %v1810
        %v2067 = vcvt.s32.f32 %v1811
        %v2068 = vcvt.s32.f32 %v1812
        %v2069 = vcvt.s32.f32 %v1813
        %v2070 = vcvt.s32.f32 %v1814
        %v2071 = vcvt.s32.f32 %v1815
        %v2072 = vcvt.s32.f32 %v1816
        %v2073 = vcvt.s32.f32 %v1817
        %v2074 = vcvt.s32.f32 %v1818
        %v2075 = vcvt.s32.f32 %v1819
        %v2076 = vcvt.s32.f32 %v1820
        %v2077 = vcvt.s32.f32 %v1821
        %v2078 = vcvt.s32.f32 %v1822
        %v2079 = vcvt.s32.f32 %v1823
        %v2080 = vcvt.s32.f32 %v1824
        %v2081 = vcvt.s32.f32 %v1825
        %v2082 = vcvt.s32.f32 %v1826
        %v2083 = vcvt.s32.f32 %v1827
        %v2084 = vcvt.s32.f32 %v1828
        %v2085 = vcvt.s32.f32 %v1829
        %v2086 = vcvt.s32.f32 %v1830
        %v2087 = vcvt.s32.f32 %v1831
        %v2088 = vcvt.s32.f32 %v1832
        %v2089 = vcvt.s32.f32 %v1833
        %v2090 = vcvt.s32.f32 %v1834
        %v2091 = vcvt.s32.f32 %v1835
        %v2092 = vcvt.s32.f32 %v1836
        %v2093 = vcvt.s32.f32 %v1837
        %v2094 = vcvt.s32.f32 %v1838
        %v2095 = vcvt.s32.f32 %v1839
        %v2096 = vcvt.s32.f32 %v1840
        %v2097 = vcvt.s32.f32 %v1841
        %v2098 = vcvt.s32.f32 %v1842
        %v2099 = vcvt.s32.f32 %v1843
        %v2100 = vcvt.s32.f32 %v1844
        %v2101 = vcvt.s32.f32 %v1845
        %v2102 = vcvt.s32.f32 %v1846
        %v2103 = vcvt.s32.f32 %v1847
        %v2104 = vcvt.s32.f32 %v1848
        %v2105 = vcvt.s32.f32 %v1849
        %v2106 = vcvt.s32.f32 %v1850
        %v2107 = vcvt.s32.f32 %v1851
        %v2108 = vcvt.s32.f32 %v1852
        %v2109 = vcvt.s32.f32 %v1853
        %v2110 = vcvt.s32.f32 %v1854
        %v2111 = vcvt.s32.f32 %v1855
        %v2112 = vcvt.s32.f32 %v1856
        %v2113 = vcvt.s32.f32 %v1857
        %v2114 = vcvt.s32.f32 %v1858
        %v2115 = vcvt.s32.f32 %v1859
        %v2116 = vcvt.s32.f32 %v1860
        %v2117 = vcvt.s32.f32 %v1861
        %v2118 = vcvt.s32.f32 %v1862
        %v2119 = vcvt.s32.f32 %v1863
        %v2120 = vcvt.s32.f32 %v1864
        %v2121 = vcvt.s32.f32 %v1865
        %v2122 = vcvt.s32.f32 %v1866
        %v2123 = vcvt.s32.f32 %v1867
        %v2124 = vcvt.s32.f32 %v1868
        %v2125 = vcvt.s32.f32 %v1869
        %v2126 = vcvt.s32.f32 %v1870
        %v2127 = vcvt.s32.f32 %v1871
        %v2128 = vcvt.s32.f32 %v1872
        %v2129 = vcvt.s32.f32 %v1873
        %v2130 = vcvt.s32.f32 %v1874
        %v2131 = vcvt.s32.f32 %v1875
        %v2132 = vcvt.s32.f32 %v1876
        %v2133 = vcvt.s32.f32 %v1877
        %v2134 = vcvt.s32.f32 %v1878
        %v2135 = vcvt.s32.f32 %v1879
        %v2136 = vcvt.s32.f32 %v1880
        %v2137 = vcvt.s32.f32 %v1881
        %v2138 = vcvt.s32.f32 %v1882
        %v2139 = vcvt.s32.f32 %v1883
        %v2140 = vcvt.s32.f32 %v1884
        %v2141 = vcvt.s32.f32 %v1885
        %v2142 = vcvt.s32.f32 %v1886
        %v2143 = vcvt.s32.f32 %v1887
        %v2144 = vcvt.s32.f32 %v1888
        %v2145 = vcvt.s32.f32 %v1889
        %v2146 = vcvt.s32.f32 %v1890
        %v2147 = vcvt.s32.f32 %v1891
        %v2148 = vcvt.s32.f32 %v1892
        %v2149 = vcvt.s32.f32 %v1893
        %v2150 = vcvt.s32.f32 %v1894
        %v2151 = vcvt.s32.f32 %v1895
        %v2152 = vcvt.s32.f32 %v1896
        %v2153 = vcvt.s32.f32 %v1897
        %v2154 = vcvt.s32.f32 %v1898
        %v2155 = vcvt.s32.f32 %v1899
        %v2156 = vcvt.s32.f32 %v1900
        %v2157 = vcvt.s32.f32 %v1901
        %v2158 = vcvt.s32.f32 %v1902
        %v2159 = vcvt.s32.f32 %v1903
        %v2160 = vcvt.s32.f32 %v1904
        %v2161 = vcvt.s32.f32 %v1905
        %v2162 = vcvt.s32.f32 %v1906
        %v2163 = vcvt.s32.f32 %v1907
        %v2164 = vcvt.s32.f32 %v1908
        %v2165 = vcvt.s32.f32 %v1909
        %v2166 = vcvt.s32.f32 %v1910
        %v2167 = vcvt.s32.f32 %v1911
        %v2168 = vcvt.s32.f32 %v1912
        %v2169 = vcvt.s32.f32 %v1913
        %v2170 = vcvt.s32.f32 %v1914
        %v2171 = vcvt.s32.f32 %v1915
        %v2172 = vcvt.s32.f32 %v1916
        %v2173 = vcvt.s32.f32 %v1917
        %v2174 = vcvt.s32.f32 %v1918
        %v2175 = vcvt.s32.f32 %v1919
        %v2176 = vcvt.s32.f32 %v1920
        %v2177 = vcvt.s32.f32 %v1921
        %v2178 = vcvt.s32.f32 %v1922
        %v2179 = vcvt.s32.f32 %v1923
        %v2180 = vcvt.s32.f32 %v1924
        %v2181 = vcvt.s32.f32 %v1925
        %v2182 = vcvt.s32.f32 %v1926
        %v2183 = vcvt.s32.f32 %v1927
        %v2184 = vcvt.s32.f32 %v1928
        %v2185 = vcvt.s32.f32 %v1929
        %v2186 = vcvt.s32.f32 %v1930
        %v2187 = vcvt.s32.f32 %v1931
        %v2188 = vmul.f32 %v1932, %v140
        %v2189 = vmul.f32 %v1933, %v141
        %v2190 = vmul.f32 %v1934, %v142
        %v2191 = vmul.f32 %v1935, %v143
        %v2192 = vmul.f32 %v1936, %v144
        %v2193 = vmul.f32 %v1937, %v145
        %v2194 = vmul.f32 %v1938, %v146
        %v2195 = vmul.f32 %v1939, %v147
        %v2196 = vmul.f32 %v1940, %v148
        %v2197 = vmul.f32 %v1941, %v149
        %v2198 = vmul.f32 %v1942, %v150
        %v2199 = vmul.f32 %v1943, %v151
        %v2200 = vmul.f32 %v1944, %v152
        %v2201 = vmul.f32 %v1945, %v153
        %v2202 = vmul.f32 %v1946, %v154
        %v2203 = vmul.f32 %v1947, %v155
        %v2204 = vmul.f32 %v1948, %v156
        %v2205 = vmul.f32 %v1949, %v157
        %v2206 = vmul.f32 %v1950, %v158
        %v2207 = vmul.f32 %v1951, %v159
        %v2208 = vmul.f32 %v1952, %v160
        %v2209 = vmul.f32 %v1953, %v161
        %v2210 = vmul.f32 %v1954, %v162
        %v2211 = vmul.f32 %v1955, %v163
        %v2212 = vmul.f32 %v1956, %v164
        %v2213 = vmul.f32 %v1957, %v165
        %v2214 = vmul.f32 %v1958, %v166
        %v2215 = vmul.f32 %v1959, %v167
        %v2216 = vmul.f32 %v1960, %v168
        %v2217 = vmul.f32 %v1961, %v169
        %v2218 = vmul.f32 %v1962, %v170
        %v2219 = vmul.f32 %v1963, %v171
        %v2220 = vmul.f32 %v1964, %v172
        %v2221 = vmul.f32 %v1965, %v173
        %v2222 = vmul.f32 %v1966, %v174
        %v2223 = vmul.f32 %v1967, %v175
        %v2224 = vmul.f32 %v1968, %v176
        %v2225 = vmul.f32 %v1969, %v177
        %v2226 = vmul.f32 %v1970, %v178
        %v2227 = vmul.f32 %v1971, %v179
        %v2228 = vmul.f32 %v1972, %v180
        %v2229 = vmul.f32 %v1973, %v181
        %v2230 = vmul.f32 %v1974, %v182
        %v2231 = vmul.f32 %v1975, %v183
        %v2232 = vmul.f32 %v1976, %v184
        %v2233 = vmul.f32 %v1977, %v185
        %v2234 = vmul.f32 %v1978, %v186
        %v2235 = vmul.f32 %v1979, %v187
        %v2236 = vmul.f32 %v1980, %v188
        %v2237 = vmul.f32 %v1981, %v189
        %v2238 = vmul.f32 %v1982, %v190
        %v2239 = vmul.f32 %v1983, %v191
        %v2240 = vmul.f32 %v1984, %v192
        %v2241 = vmul.f32 %v1985, %v193
        %v2242 = vmul.f32 %v1986, %v194
        %v2243 = vmul.f32 %v1987, %v195
        %v2244 = vmul.f32 %v1988, %v196
        %v2245 = vmul.f32 %v1989, %v197
        %v2246 = vmul.f32 %v1990, %v198
        %v2247 = vmul.f32 %v1991, %v199
        %v2248 = vmul.f32 %v1992, %v200
        %v2249 = vmul.f32 %v1993, %v201
        %v2250 = vmul.f32 %v1994, %v202
        %v2251 = vmul.f32 %v1995, %v203
        %v2252 = vmul.f32 %v1996, %v204
        %v2253 = vmul.f32 %v1997, %v205
        %v2254 = vmul.f32 %v1998, %v206
        %v2255 = vmul.f32 %v1999, %v207
        %v2256 = vmul.f32 %v2000, %v208
        %v2257 = vmul.f32 %v2001, %v209
        %v2258 = vmul.f32 %v2002, %v210
        %v2259 = vmul.f32 %v2003, %v211
        %v2260 = vmul.f32 %v2004, %v212
        %v2261 = vmul.f32 %v2005, %v213
        %v2262 = vmul.f32 %v2006, %v214
        %v2263 = vmul.f32 %v2007, %v215
        %v2264 = vmul.f32 %v2008, %v216
        %v2265 = vmul.f32 %v2009, %v217
        %v2266 = vmul.f32 %v2010, %v218
        %v2267 = vmul.f32 %v2011, %v219
        %v2268 = vmul.f32 %v2012, %v220
        %v2269 = vmul.f32 %v2013, %v221
        %v2270 = vmul.f32 %v2014, %v222
        %v2271 = vmul.f32 %v2015, %v223
        %v2272 = vmul.f32 %v2016, %v224
        %v2273 = vmul.f32 %v2017, %v225
        %v2274 = vmul.f32 %v2018, %v226
        %v2275 = vmul.f32 %v2019, %v227
        %v2276 = vmul.f32 %v2020, %v228
        %v2277 = vmul.f32 %v2021, %v229
        %v2278 = vmul.f32 %v2022, %v230
        %v2279 = vmul.f32 %v2023, %v231
        %v2280 = vmul.f32 %v2024, %v232
        %v2281 = vmul.f32 %v2025, %v233
        %v2282 = vmul.f32 %v2026, %v234
        %v2283 = vmul.f32 %v2027, %v235
        %v2284 = vmul.f32 %v2028, %v236
        %v2285 = vmul.f32 %v2029, %v237
        %v2286 = vmul.f32 %v2030, %v238
        %v2287 = vmul.f32 %v2031, %v239
        %v2288 = vmul.f32 %v2032, %v240
        %v2289 = vmul.f32 %v2033, %v241
        %v2290 = vmul.f32 %v2034, %v242
        %v2291 = vmul.f32 %v2035, %v243
        %v2292 = vmul.f32 %v2036, %v244
        %v2293 = vmul.f32 %v2037, %v245
        %v2294 = vmul.f32 %v2038, %v246
        %v2295 = vmul.f32 %v2039, %v247
        %v2296 = vmul.f32 %v2040, %v248
        %v2297 = vmul.f32 %v2041, %v249
        %v2298 = vmul.f32 %v2042, %v250
        %v2299 = vmul.f32 %v2043, %v251
        %v2300 = vmul.f32 %v2044, %v252
        %v2301 = vmul.f32 %v2045, %v253
        %v2302 = vmul.f32 %v2046, %v254
        %v2303 = vmul.f32 %v2047, %v255
        %v2304 = vmul.f32 %v2048, %v256
        %v2305 = vmul.f32 %v2049, %v257
        %v2306 = vmul.f32 %v2050, %v258
        %v2307 = vmul.f32 %v2051, %v259
        %v2308 = vmul.f32 %v2052, %v260
        %v2309 = vmul.f32 %v2053, %v261
        %v2310 = vmul.f32 %v2054, %v262
        %v2311 = vmul.f32 %v2055, %v263
        %v2312 = vmul.f32 %v2056, %v264
        %v2313 = vmul.f32 %v2057, %v265
        %v2314 = vmul.f32 %v2058, %v266
        %v2315 = vmul.f32 %v2059, %v267
        %v2316 = vmul.f32 %v2060, %v268
        %v2317 = vmul.f32 %v2061, %v269
        %v2318 = vmul.f32 %v2062, %v270
        %v2319 = vmul.f32 %v2063, %v271
        %v2320 = vmul.f32 %v2064, %v272
        %v2321 = vmul.f32 %v2065, %v273
        %v2322 = vmul.f32 %v2066, %v274
        %v2323 = vmul.f32 %v2067, %v275
        %v2324 = vmul.f32 %v2068, %v276
        %v2325 = vmul.f32 %v2069, %v277
        %v2326 = vmul.f32 %v2070, %v278
        %v2327 = vmul.f32 %v2071, %v279
        %v2328 = vmul.f32 %v2072, %v280
        %v2329 = vmul.f32 %v2073, %v281
        %v2330 = vmul.f32 %v2074, %v282
        %v2331 = vmul.f32 %v2075, %v283
        %v2332 = vmul.f32 %v2076, %v284
        %v2333 = vmul.f32 %v2077, %v285
        %v2334 = vmul.f32 %v2078, %v286
        %v2335 = vmul.f32 %v2079, %v287
        %v2336 = vmul.f32 %v2080, %v288
        %v2337 = vmul.f32 %v2081, %v289
        %v2338 = vmul.f32 %v2082, %v290
        %v2339 = vmul.f32 %v2083, %v291
        %v2340 = vmul.f32 %v2084, %v292
        %v2341 = vmul.f32 %v2085, %v293
        %v2342 = vmul.f32 %v2086, %v294
        %v2343 = vmul.f32 %v2087, %v295
        %v2344 = vmul.f32 %v2088, %v296
        %v2345 = vmul.f32 %v2089, %v297
        %v2346 = vmul.f32 %v2090, %v298
        %v2347 = vmul.f32 %v2091, %v299
        %v2348 = vmul.f32 %v2092, %v300
        %v2349 = vmul.f32 %v2093, %v301
        %v2350 = vmul.f32 %v2094, %v302
        %v2351 = vmul.f32 %v2095, %v303
        %v2352 = vmul.f32 %v2096, %v304
        %v2353 = vmul.f32 %v2097, %v305
        %v2354 = vmul.f32 %v2098, %v306
        %v2355 = vmul.f32 %v2099, %v307
        %v2356 = vmul.f32 %v2100, %v308
        %v2357 = vmul.f32 %v2101, %v309
        %v2358 = vmul.f32 %v2102, %v310
        %v2359 = vmul.f32 %v2103, %v311
        %v2360 = vmul.f32 %v2104, %v312
        %v2361 = vmul.f32 %v2105, %v313
        %v2362 = vmul.f32 %v2106, %v314
        %v2363 = vmul.f32 %v2107, %v315
        %v2364 = vmul.f32 %v2108, %v316
        %v2365 = vmul.f32 %v2109, %v317
        %v2366 = vmul.f32 %v2110, %v318
        %v2367 = vmul.f32 %v2111, %v319
        %v2368 = vmul.f32 %v2112, %v320
        %v2369 = vmul.f32 %v2113, %v321
        %v2370 = vmul.f32 %v2114, %v322
        %v2371 = vmul.f32 %v2115, %v323
        %v2372 = vmul.f32 %v2116, %v324
        %v2373 = vmul.f32 %v2117, %v325
        %v2374 = vmul.f32 %v2118, %v326
        %v2375 = vmul.f32 %v2119, %v327
        %v2376 = vmul.f32 %v2120, %v328
        %v2377 = vmul.f32 %v2121, %v329
        %v2378 = vmul.f32 %v2122, %v330
        %v2379 = vmul.f32 %v2123, %v331
        %v2380 = vmul.f32 %v2124, %v332
        %v2381 = vmul.f32 %v2125, %v333
        %v2382 = vmul.f32 %v2126, %v334
        %v2383 = vmul.f32 %v2127, %v335
        %v2384 = vmul.f32 %v2128, %v336
        %v2385 = vmul.f32 %v2129, %v337
        %v2386 = vmul.f32 %v2130, %v338
        %v2387 = vmul.f32 %v2131, %v339
        %v2388 = vmul.f32 %v2132, %v340
        %v2389 = vmul.f32 %v2133, %v341
        %v2390 = vmul.f32 %v2134, %v342
        %v2391 = vmul.f32 %v2135, %v343
        %v2392 = vmul.f32 %v2136, %v344
        %v2393 = vmul.f32 %v2137, %v345
        %v2394 = vmul.f32 %v2138, %v346
        %v2395 = vmul.f32 %v2139, %v347
        %v2396 = vmul.f32 %v2140, %v348
        %v2397 = vmul.f32 %v2141, %v349
        %v2398 = vmul.f32 %v2142, %v350
        %v2399 = vmul.f32 %v2143, %v351
        %v2400 = vmul.f32 %v2144, %v352
        %v2401 = vmul.f32 %v2145, %v353
        %v2402 = vmul.f32 %v2146, %v354
        %v2403 = vmul.f32 %v2147, %v355
        %v2404 = vmul.f32 %v2148, %v356
        %v2405 = vmul.f32 %v2149, %v357
        %v2406 = vmul.f32 %v2150, %v358
        %v2407 = vmul.f32 %v2151, %v359
        %v2408 = vmul.f32 %v2152, %v360
        %v2409 = vmul.f32 %v2153, %v361
        %v2410 = vmul.f32 %v2154, %v362
        %v2411 = vmul.f32 %v2155, %v363
        %v2412 = vmul.f32 %v2156, %v364
        %v2413 = vmul.f32 %v2157, %v365
        %v2414 = vmul.f32 %v2158, %v366
        %v2415 = vmul.f32 %v2159, %v367
        %v2416 = vmul.f32 %v2160, %v368
        %v2417 = vmul.f32 %v2161, %v369
        %v2418 = vmul.f32 %v2162, %v370
        %v2419 = vmul.f32 %v2163, %v371
        %v2420 = vmul.f32 %v2164, %v372
        %v2421 = vmul.f32 %v2165, %v373
        %v2422 = vmul.f32 %v2166, %v374
        %v2423 = vmul.f32 %v2167, %v375
        %v2424 = vmul.f32 %v2168, %v376
        %v2425 = vmul.f32 %v2169, %v377
        %v2426 = vmul.f32 %v2170, %v378
        %v2427 = vmul.f32 %v2171, %v379
        %v2428 = vmul.f32 %v2172, %v380
        %v2429 = vmul.f32 %v2173, %v381
        %v2430 = vmul.f32 %v2174, %v382
        %v2431 = vmul.f32 %v2175, %v383
        %v2432 = vmul.f32 %v2176, %v384
        %v2433 = vmul.f32 %v2177, %v385
        %v2434 = vmul.f32 %v2178, %v386
        %v2435 = vmul.f32 %v2179, %v387
        %v2436 = vmul.f32 %v2180, %v388
        %v2437 = vmul.f32 %v2181, %v389
        %v2438 = vmul.f32 %v2182, %v390
        %v2439 = vmul.f32 %v2183, %v391
        %v2440 = vmul.f32 %v2184, %v392
        %v2441 = vmul.f32 %v2185, %v393
        %v2442 = vmul.f32 %v2186, %v394
        %v2443 = vmul.f32 %v2187, %v395
        %v2444 = vadd.f32 %v1164, %v2188
        %v2445 = vadd.f32 %v1165, %v2189
        %v2446 = vadd.f32 %v1166, %v2190
        %v2447 = vadd.f32 %v1167, %v2191
        %v2448 = vadd.f32 %v1168, %v2192
        %v2449 = vadd.f32 %v1169, %v2193
        %v2450 = vadd.f32 %v1170, %v2194
        %v2451 = vadd.f32 %v1171, %v2195
        %v2452 = vadd.f32 %v1172, %v2196
        %v2453 = vadd.f32 %v1173, %v2197
        %v2454 = vadd.f32 %v1174, %v2198
        %v2455 = vadd.f32 %v1175, %v2199
        %v2456 = vadd.f32 %v1176, %v2200
        %v2457 = vadd.f32 %v1177, %v2201
        %v2458 = vadd.f32 %v1178, %v2202
        %v2459 = vadd.f32 %v1179, %v2203
        %v2460 = vadd.f32 %v1180, %v2204
        %v2461 = vadd.f32 %v1181, %v2205
        %v2462 = vadd.f32 %v1182, %v2206
        %v2463 = vadd.f32 %v1183, %v2207
        %v2464 = vadd.f32 %v1184, %v2208
        %v2465 = vadd.f32 %v1185, %v2209
        %v2466 = vadd.f32 %v1186, %v2210
        %v2467 = vadd.f32 %v1187, %v2211
        %v2468 = vadd.f32 %v1188, %v2212
        %v2469 = vadd.f32 %v1189, %v2213
        %v2470 = vadd.f32 %v1190, %v2214
        %v2471 = vadd.f32 %v1191, %v2215
        %v2472 = vadd.f32 %v1192, %v2216
        %v2473 = vadd.f32 %v1193, %v2217
        %v2474 = vadd.f32 %v1194, %v2218
        %v2475 = vadd.f32 %v1195, %v2219
        %v2476 = vadd.f32 %v1196, %v2220
        %v2477 = vadd.f32 %v1197, %v2221
        %v2478 = vadd.f32 %v1198, %v2222
        %v2479 = vadd.f32 %v1199, %v2223
        %v2480 = vadd.f32 %v1200, %v2224
        %v2481 = vadd.f32 %v1201, %v2225
        %v2482 = vadd.f32 %v1202, %v2226
        %v2483 = vadd.f32 %v1203, %v2227
        %v2484 = vadd.f32 %v1204, %v2228
        %v2485 = vadd.f32 %v1205, %v2229
        %v2486 = vadd.f32 %v1206, %v2230
        %v2487 = vadd.f32 %v1207, %v2231
        %v2488 = vadd.f32 %v1208, %v2232
        %v2489 = vadd.f32 %v1209, %v2233
        %v2490 = vadd.f32 %v1210, %v2234
        %v2491 = vadd.f32 %v1211, %v2235
        %v2492 = vadd.f32 %v1212, %v2236
        %v2493 = vadd.f32 %v1213, %v2237
        %v2494 = vadd.f32 %v1214, %v2238
        %v2495 = vadd.f32 %v1215, %v2239
        %v2496 = vadd.f32 %v1216, %v2240
        %v2497 = vadd.f32 %v1217, %v2241
        %v2498 = vadd.f32 %v1218, %v2242
        %v2499 = vadd.f32 %v1219, %v2243
        %v2500 = vadd.f32 %v1220, %v2244
        %v2501 = vadd.f32 %v1221, %v2245
        %v2502 = vadd.f32 %v1222, %v2246
        %v2503 = vadd.f32 %v1223, %v2247
        %v2504 = vadd.f32 %v1224, %v2248
        %v2505 = vadd.f32 %v1225, %v2249
        %v2506 = vadd.f32 %v1226, %v2250
        %v2507 = vadd.f32 %v1227, %v2251
        %v2508 = vadd.f32 %v1228, %v2252
        %v2509 = vadd.f32 %v1229, %v2253
        %v2510 = vadd.f32 %v1230, %v2254
        %v2511 = vadd.f32 %v1231, %v2255
        %v2512 = vadd.f32 %v1232, %v2256
        %v2513 = vadd.f32 %v1233, %v2257
        %v2514 = vadd.f32 %v1234, %v2258
        %v2515 = vadd.f32 %v1235, %v2259
        %v2516 = vadd.f32 %v1236, %v2260
        %v2517 = vadd.f32 %v1237, %v2261
        %v2518 = vadd.f32 %v1238, %v2262
        %v2519 = vadd.f32 %v1239, %v2263
        %v2520 = vadd.f32 %v1240, %v2264
        %v2521 = vadd.f32 %v1241, %v2265
        %v2522 = vadd.f32 %v1242, %v2266
        %v2523 = vadd.f32 %v1243, %v2267
        %v2524 = vadd.f32 %v1244, %v2268
        %v2525 = vadd.f32 %v1245, %v2269
        %v2526 = vadd.f32 %v1246, %v2270
        %v2527 = vadd.f32 %v1247, %v2271
        %v2528 = vadd.f32 %v1248, %v2272
        %v2529 = vadd.f32 %v1249, %v2273
        %v2530 = vadd.f32 %v1250, %v2274
        %v2531 = vadd.f32 %v1251, %v2275
        %v2532 = vadd.f32 %v1252, %v2276
        %v2533 = vadd.f32 %v1253, %v2277
        %v2534 = vadd.f32 %v1254, %v2278
        %v2535 = vadd.f32 %v1255, %v2279
        %v2536 = vadd.f32 %v1256, %v2280
        %v2537 = vadd.f32 %v1257, %v2281
        %v2538 = vadd.f32 %v1258, %v2282
        %v2539 = vadd.f32 %v1259, %v2283
        %v2540 = vadd.f32 %v1260, %v2284
        %v2541 = vadd.f32 %v1261, %v2285
        %v2542 = vadd.f32 %v1262, %v2286
        %v2543 = vadd.f32 %v1263, %v2287
        %v2544 = vadd.f32 %v1264, %v2288
        %v2545 = vadd.f32 %v1265, %v2289
        %v2546 = vadd.f32 %v1266, %v2290
        %v2547 = vadd.f32 %v1267, %v2291
        %v2548 = vadd.f32 %v1268, %v2292
        %v2549 = vadd.f32 %v1269, %v2293
        %v2550 = vadd.f32 %v1270, %v2294
        %v2551 = vadd.f32 %v1271, %v2295
        %v2552 = vadd.f32 %v1272, %v2296
        %v2553 = vadd.f32 %v1273, %v2297
        %v2554 = vadd.f32 %v1274, %v2298
        %v2555 = vadd.f32 %v1275, %v2299
        %v2556 = vadd.f32 %v1276, %v2300
        %v2557 = vadd.f32 %v1277, %v2301
        %v2558 = vadd.f32 %v1278, %v2302
        %v2559 = vadd.f32 %v1279, %v2303
        %v2560 = vadd.f32 %v1280, %v2304
        %v2561 = vadd.f32 %v1281, %v2305
        %v2562 = vadd.f32 %v1282, %v2306
        %v2563 = vadd.f32 %v1283, %v2307
        %v2564 = vadd.f32 %v1284, %v2308
        %v2565 = vadd.f32 %v1285, %v2309
        %v2566 = vadd.f32 %v1286, %v2310
        %v2567 = vadd.f32 %v1287, %v2311
        %v2568 = vadd.f32 %v1288, %v2312
        %v2569 = vadd.f32 %v1289, %v2313
        %v2570 = vadd.f32 %v1290, %v2314
        %v2571 = vadd.f32 %v1291, %v2315
        %v2572 = vadd.f32 %v1292, %v2316
        %v2573 = vadd.f32 %v1293, %v2317
        %v2574 = vadd.f32 %v1294, %v2318
        %v2575 = vadd.f32 %v1295, %v2319
        %v2576 = vadd.f32 %v1296, %v2320
        %v2577 = vadd.f32 %v1297, %v2321
        %v2578 = vadd.f32 %v1298, %v2322
        %v2579 = vadd.f32 %v1299, %v2323
        %v2580 = vadd.f32 %v1300, %v2324
        %v2581 = vadd.f32 %v1301, %v2325
        %v2582 = vadd.f32 %v1302, %v2326
        %v2583 = vadd.f32 %v1303, %v2327
        %v2584 = vadd.f32 %v1304, %v2328
        %v2585 = vadd.f32 %v1305, %v2329
        %v2586 = vadd.f32 %v1306, %v2330
        %v2587 = vadd.f32 %v1307, %v2331
        %v2588 = vadd.f32 %v1308, %v2332
        %v2589 = vadd.f32 %v1309, %v2333
        %v2590 = vadd.f32 %v1310, %v2334
        %v2591 = vadd.f32 %v1311, %v2335
        %v2592 = vadd.f32 %v1312, %v2336
        %v2593 = vadd.f32 %v1313, %v2337
        %v2594 = vadd.f32 %v1314, %v2338
        %v2595 = vadd.f32 %v1315, %v2339
        %v2596 = vadd.f32 %v1316, %v2340
        %v2597 = vadd.f32 %v1317, %v2341
        %v2598 = vadd.f32 %v1318, %v2342
        %v2599 = vadd.f32 %v1319, %v2343
        %v2600 = vadd.f32 %v1320, %v2344
        %v2601 = vadd.f32 %v1321, %v2345
        %v2602 = vadd.f32 %v1322, %v2346
        %v2603 = vadd.f32 %v1323, %v2347
        %v2604 = vadd.f32 %v1324, %v2348
        %v2605 = vadd.f32 %v1325, %v2349
        %v2606 = vadd.f32 %v1326, %v2350
        %v2607 = vadd.f32 %v1327, %v2351
        %v2608 = vadd.f32 %v1328, %v2352
        %v2609 = vadd.f32 %v1329, %v2353
        %v2610 = vadd.f32 %v1330, %v2354
        %v2611 = vadd.f32 %v1331, %v2355
        %v2612 = vadd.f32 %v1332, %v2356
        %v2613 = vadd.f32 %v1333, %v2357
        %v2614 = vadd.f32 %v1334, %v2358
        %v2615 = vadd.f32 %v1335, %v2359
        %v2616 = vadd.f32 %v1336, %v2360
        %v2617 = vadd.f32 %v1337, %v2361
        %v2618 = vadd.f32 %v1338, %v2362
        %v2619 = vadd.f32 %v1339, %v2363
        %v2620 = vadd.f32 %v1340, %v2364
        %v2621 = vadd.f32 %v1341, %v2365
        %v2622 = vadd.f32 %v1342, %v2366
        %v2623 = vadd.f32 %v1343, %v2367
        %v2624 = vadd.f32 %v1344, %v2368
        %v2625 = vadd.f32 %v1345, %v2369
        %v2626 = vadd.f32 %v1346, %v2370
        %v2627 = vadd.f32 %v1347, %v2371
        %v2628 = vadd.f32 %v1348, %v2372
        %v2629 = vadd.f32 %v1349, %v2373
        %v2630 = vadd.f32 %v1350, %v2374
        %v2631 = vadd.f32 %v1351, %v2375
        %v2632 = vadd.f32 %v1352, %v2376
        %v2633 = vadd.f32 %v1353, %v2377
        %v2634 = vadd.f32 %v1354, %v2378
        %v2635 = vadd.f32 %v1355, %v2379
        %v2636 = vadd.f32 %v1356, %v2380
        %v2637 = vadd.f32 %v1357, %v2381
        %v2638 = vadd.f32 %v1358, %v2382
        %v2639 = vadd.f32 %v1359, %v2383
        %v2640 = vadd.f32 %v1360, %v2384
        %v2641 = vadd.f32 %v1361, %v2385
        %v2642 = vadd.f32 %v1362, %v2386
        %v2643 = vadd.f32 %v1363, %v2387
        %v2644 = vadd.f32 %v1364, %v2388
        %v2645 = vadd.f32 %v1365, %v2389
        %v2646 = vadd.f32 %v1366, %v2390
        %v2647 = vadd.f32 %v1367, %v2391
        %v2648 = vadd.f32 %v1368, %v2392
        %v2649 = vadd.f32 %v1369, %v2393
        %v2650 = vadd.f32 %v1370, %v2394
        %v2651 = vadd.f32 %v1371, %v2395
        %v2652 = vadd.f32 %v1372, %v2396
        %v2653 = vadd.f32 %v1373, %v2397
        %v2654 = vadd.f32 %v1374, %v2398
        %v2655 = vadd.f32 %v1375, %v2399
        %v2656 = vadd.f32 %v1376, %v2400
        %v2657 = vadd.f32 %v1377, %v2401
        %v2658 = vadd.f32 %v1378, %v2402
        %v2659 = vadd.f32 %v1379, %v2403
        %v2660 = vadd.f32 %v1380, %v2404
        %v2661 = vadd.f32 %v1381, %v2405
        %v2662 = vadd.f32 %v1382, %v2406
        %v2663 = vadd.f32 %v1383, %v2407
        %v2664 = vadd.f32 %v1384, %v2408
        %v2665 = vadd.f32 %v1385, %v2409
        %v2666 = vadd.f32 %v1386, %v2410
        %v2667 = vadd.f32 %v1387, %v2411
        %v2668 = vadd.f32 %v1388, %v2412
        %v2669 = vadd.f32 %v1389, %v2413
        %v2670 = vadd.f32 %v1390, %v2414
        %v2671 = vadd.f32 %v1391, %v2415
        %v2672 = vadd.f32 %v1392, %v2416
        %v2673 = vadd.f32 %v1393, %v2417
        %v2674 = vadd.f32 %v1394, %v2418
        %v2675 = vadd.f32 %v1395, %v2419
        %v2676 = vadd.f32 %v1396, %v2420
        %v2677 = vadd.f32 %v1397, %v2421
        %v2678 = vadd.f32 %v1398, %v2422
        %v2679 = vadd.f32 %v1399, %v2423
        %v2680 = vadd.f32 %v1400, %v2424
        %v2681 = vadd.f32 %v1401, %v2425
        %v2682 = vadd.f32 %v1402, %v2426
        %v2683 = vadd.f32 %v1403, %v2427
        %v2684 = vadd.f32 %v1404, %v2428
        %v2685 = vadd.f32 %v1405, %v2429
        %v2686 = vadd.f32 %v1406, %v2430
        %v2687 = vadd.f32 %v1407, %v2431
        %v2688 = vadd.f32 %v1408, %v2432
        %v2689 = vadd.f32 %v1409, %v2433
        %v2690 = vadd.f32 %v1410, %v2434
        %v2691 = vadd.f32 %v1411, %v2435
        %v2692 = vadd.f32 %v1412, %v2436
        %v2693 = vadd.f32 %v1413, %v2437
        %v2694 = vadd.f32 %v1414, %v2438
        %v2695 = vadd.f32 %v1415, %v2439
        %v2696 = vadd.f32 %v1416, %v2440
        %v2697 = vadd.f32 %v1417, %v2441
        %v2698 = vadd.f32 %v1418, %v2442
        %v2699 = vadd.f32 %v1419, %v2443
        %vm2700 = vcmp.gt.f32.partialorder %v140, 0.0
        %vm2701 = vcmp.gt.f32.partialorder %v141, 0.0
        %vm2702 = vcmp.gt.f32.partialorder %v142, 0.0
        %vm2703 = vcmp.gt.f32.partialorder %v143, 0.0
        %vm2704 = vcmp.gt.f32.partialorder %v144, 0.0
        %vm2705 = vcmp.gt.f32.partialorder %v145, 0.0
        %vm2706 = vcmp.gt.f32.partialorder %v146, 0.0
        %vm2707 = vcmp.gt.f32.partialorder %v147, 0.0
        %vm2708 = vcmp.gt.f32.partialorder %v148, 0.0
        %vm2709 = vcmp.gt.f32.partialorder %v149, 0.0
        %vm2710 = vcmp.gt.f32.partialorder %v150, 0.0
        %vm2711 = vcmp.gt.f32.partialorder %v151, 0.0
        %vm2712 = vcmp.gt.f32.partialorder %v152, 0.0
        %vm2713 = vcmp.gt.f32.partialorder %v153, 0.0
        %vm2714 = vcmp.gt.f32.partialorder %v154, 0.0
        %vm2715 = vcmp.gt.f32.partialorder %v155, 0.0
        %vm2716 = vcmp.gt.f32.partialorder %v156, 0.0
        %vm2717 = vcmp.gt.f32.partialorder %v157, 0.0
        %vm2718 = vcmp.gt.f32.partialorder %v158, 0.0
        %vm2719 = vcmp.gt.f32.partialorder %v159, 0.0
        %vm2720 = vcmp.gt.f32.partialorder %v160, 0.0
        %vm2721 = vcmp.gt.f32.partialorder %v161, 0.0
        %vm2722 = vcmp.gt.f32.partialorder %v162, 0.0
        %vm2723 = vcmp.gt.f32.partialorder %v163, 0.0
        %vm2724 = vcmp.gt.f32.partialorder %v164, 0.0
        %vm2725 = vcmp.gt.f32.partialorder %v165, 0.0
        %vm2726 = vcmp.gt.f32.partialorder %v166, 0.0
        %vm2727 = vcmp.gt.f32.partialorder %v167, 0.0
        %vm2728 = vcmp.gt.f32.partialorder %v168, 0.0
        %vm2729 = vcmp.gt.f32.partialorder %v169, 0.0
        %vm2730 = vcmp.gt.f32.partialorder %v170, 0.0
        %vm2731 = vcmp.gt.f32.partialorder %v171, 0.0
        %vm2732 = vcmp.gt.f32.partialorder %v172, 0.0
        %vm2733 = vcmp.gt.f32.partialorder %v173, 0.0
        %vm2734 = vcmp.gt.f32.partialorder %v174, 0.0
        %vm2735 = vcmp.gt.f32.partialorder %v175, 0.0
        %vm2736 = vcmp.gt.f32.partialorder %v176, 0.0
        %vm2737 = vcmp.gt.f32.partialorder %v177, 0.0
        %vm2738 = vcmp.gt.f32.partialorder %v178, 0.0
        %vm2739 = vcmp.gt.f32.partialorder %v179, 0.0
        %vm2740 = vcmp.gt.f32.partialorder %v180, 0.0
        %vm2741 = vcmp.gt.f32.partialorder %v181, 0.0
        %vm2742 = vcmp.gt.f32.partialorder %v182, 0.0
        %vm2743 = vcmp.gt.f32.partialorder %v183, 0.0
        %vm2744 = vcmp.gt.f32.partialorder %v184, 0.0
        %vm2745 = vcmp.gt.f32.partialorder %v185, 0.0
        %vm2746 = vcmp.gt.f32.partialorder %v186, 0.0
        %vm2747 = vcmp.gt.f32.partialorder %v187, 0.0
        %vm2748 = vcmp.gt.f32.partialorder %v188, 0.0
        %vm2749 = vcmp.gt.f32.partialorder %v189, 0.0
        %vm2750 = vcmp.gt.f32.partialorder %v190, 0.0
        %vm2751 = vcmp.gt.f32.partialorder %v191, 0.0
        %vm2752 = vcmp.gt.f32.partialorder %v192, 0.0
        %vm2753 = vcmp.gt.f32.partialorder %v193, 0.0
        %vm2754 = vcmp.gt.f32.partialorder %v194, 0.0
        %vm2755 = vcmp.gt.f32.partialorder %v195, 0.0
        %vm2756 = vcmp.gt.f32.partialorder %v196, 0.0
        %vm2757 = vcmp.gt.f32.partialorder %v197, 0.0
        %vm2758 = vcmp.gt.f32.partialorder %v198, 0.0
        %vm2759 = vcmp.gt.f32.partialorder %v199, 0.0
        %vm2760 = vcmp.gt.f32.partialorder %v200, 0.0
        %vm2761 = vcmp.gt.f32.partialorder %v201, 0.0
        %vm2762 = vcmp.gt.f32.partialorder %v202, 0.0
        %vm2763 = vcmp.gt.f32.partialorder %v203, 0.0
        %vm2764 = vcmp.gt.f32.partialorder %v204, 0.0
        %vm2765 = vcmp.gt.f32.partialorder %v205, 0.0
        %vm2766 = vcmp.gt.f32.partialorder %v206, 0.0
        %vm2767 = vcmp.gt.f32.partialorder %v207, 0.0
        %vm2768 = vcmp.gt.f32.partialorder %v208, 0.0
        %vm2769 = vcmp.gt.f32.partialorder %v209, 0.0
        %vm2770 = vcmp.gt.f32.partialorder %v210, 0.0
        %vm2771 = vcmp.gt.f32.partialorder %v211, 0.0
        %vm2772 = vcmp.gt.f32.partialorder %v212, 0.0
        %vm2773 = vcmp.gt.f32.partialorder %v213, 0.0
        %vm2774 = vcmp.gt.f32.partialorder %v214, 0.0
        %vm2775 = vcmp.gt.f32.partialorder %v215, 0.0
        %vm2776 = vcmp.gt.f32.partialorder %v216, 0.0
        %vm2777 = vcmp.gt.f32.partialorder %v217, 0.0
        %vm2778 = vcmp.gt.f32.partialorder %v218, 0.0
        %vm2779 = vcmp.gt.f32.partialorder %v219, 0.0
        %vm2780 = vcmp.gt.f32.partialorder %v220, 0.0
        %vm2781 = vcmp.gt.f32.partialorder %v221, 0.0
        %vm2782 = vcmp.gt.f32.partialorder %v222, 0.0
        %vm2783 = vcmp.gt.f32.partialorder %v223, 0.0
        %vm2784 = vcmp.gt.f32.partialorder %v224, 0.0
        %vm2785 = vcmp.gt.f32.partialorder %v225, 0.0
        %vm2786 = vcmp.gt.f32.partialorder %v226, 0.0
        %vm2787 = vcmp.gt.f32.partialorder %v227, 0.0
        %vm2788 = vcmp.gt.f32.partialorder %v228, 0.0
        %vm2789 = vcmp.gt.f32.partialorder %v229, 0.0
        %vm2790 = vcmp.gt.f32.partialorder %v230, 0.0
        %vm2791 = vcmp.gt.f32.partialorder %v231, 0.0
        %vm2792 = vcmp.gt.f32.partialorder %v232, 0.0
        %vm2793 = vcmp.gt.f32.partialorder %v233, 0.0
        %vm2794 = vcmp.gt.f32.partialorder %v234, 0.0
        %vm2795 = vcmp.gt.f32.partialorder %v235, 0.0
        %vm2796 = vcmp.gt.f32.partialorder %v236, 0.0
        %vm2797 = vcmp.gt.f32.partialorder %v237, 0.0
        %vm2798 = vcmp.gt.f32.partialorder %v238, 0.0
        %vm2799 = vcmp.gt.f32.partialorder %v239, 0.0
        %vm2800 = vcmp.gt.f32.partialorder %v240, 0.0
        %vm2801 = vcmp.gt.f32.partialorder %v241, 0.0
        %vm2802 = vcmp.gt.f32.partialorder %v242, 0.0
        %vm2803 = vcmp.gt.f32.partialorder %v243, 0.0
        %vm2804 = vcmp.gt.f32.partialorder %v244, 0.0
        %vm2805 = vcmp.gt.f32.partialorder %v245, 0.0
        %vm2806 = vcmp.gt.f32.partialorder %v246, 0.0
        %vm2807 = vcmp.gt.f32.partialorder %v247, 0.0
        %vm2808 = vcmp.gt.f32.partialorder %v248, 0.0
        %vm2809 = vcmp.gt.f32.partialorder %v249, 0.0
        %vm2810 = vcmp.gt.f32.partialorder %v250, 0.0
        %vm2811 = vcmp.gt.f32.partialorder %v251, 0.0
        %vm2812 = vcmp.gt.f32.partialorder %v252, 0.0
        %vm2813 = vcmp.gt.f32.partialorder %v253, 0.0
        %vm2814 = vcmp.gt.f32.partialorder %v254, 0.0
        %vm2815 = vcmp.gt.f32.partialorder %v255, 0.0
        %vm2816 = vcmp.gt.f32.partialorder %v256, 0.0
        %vm2817 = vcmp.gt.f32.partialorder %v257, 0.0
        %vm2818 = vcmp.gt.f32.partialorder %v258, 0.0
        %vm2819 = vcmp.gt.f32.partialorder %v259, 0.0
        %vm2820 = vcmp.gt.f32.partialorder %v260, 0.0
        %vm2821 = vcmp.gt.f32.partialorder %v261, 0.0
        %vm2822 = vcmp.gt.f32.partialorder %v262, 0.0
        %vm2823 = vcmp.gt.f32.partialorder %v263, 0.0
        %vm2824 = vcmp.gt.f32.partialorder %v264, 0.0
        %vm2825 = vcmp.gt.f32.partialorder %v265, 0.0
        %vm2826 = vcmp.gt.f32.partialorder %v266, 0.0
        %vm2827 = vcmp.gt.f32.partialorder %v267, 0.0
        %vm2828 = vcmp.gt.f32.partialorder %v268, 0.0
        %vm2829 = vcmp.gt.f32.partialorder %v269, 0.0
        %vm2830 = vcmp.gt.f32.partialorder %v270, 0.0
        %vm2831 = vcmp.gt.f32.partialorder %v271, 0.0
        %vm2832 = vcmp.gt.f32.partialorder %v272, 0.0
        %vm2833 = vcmp.gt.f32.partialorder %v273, 0.0
        %vm2834 = vcmp.gt.f32.partialorder %v274, 0.0
        %vm2835 = vcmp.gt.f32.partialorder %v275, 0.0
        %vm2836 = vcmp.gt.f32.partialorder %v276, 0.0
        %vm2837 = vcmp.gt.f32.partialorder %v277, 0.0
        %vm2838 = vcmp.gt.f32.partialorder %v278, 0.0
        %vm2839 = vcmp.gt.f32.partialorder %v279, 0.0
        %vm2840 = vcmp.gt.f32.partialorder %v280, 0.0
        %vm2841 = vcmp.gt.f32.partialorder %v281, 0.0
        %vm2842 = vcmp.gt.f32.partialorder %v282, 0.0
        %vm2843 = vcmp.gt.f32.partialorder %v283, 0.0
        %vm2844 = vcmp.gt.f32.partialorder %v284, 0.0
        %vm2845 = vcmp.gt.f32.partialorder %v285, 0.0
        %vm2846 = vcmp.gt.f32.partialorder %v286, 0.0
        %vm2847 = vcmp.gt.f32.partialorder %v287, 0.0
        %vm2848 = vcmp.gt.f32.partialorder %v288, 0.0
        %vm2849 = vcmp.gt.f32.partialorder %v289, 0.0
        %vm2850 = vcmp.gt.f32.partialorder %v290, 0.0
        %vm2851 = vcmp.gt.f32.partialorder %v291, 0.0
        %vm2852 = vcmp.gt.f32.partialorder %v292, 0.0
        %vm2853 = vcmp.gt.f32.partialorder %v293, 0.0
        %vm2854 = vcmp.gt.f32.partialorder %v294, 0.0
        %vm2855 = vcmp.gt.f32.partialorder %v295, 0.0
        %vm2856 = vcmp.gt.f32.partialorder %v296, 0.0
        %vm2857 = vcmp.gt.f32.partialorder %v297, 0.0
        %vm2858 = vcmp.gt.f32.partialorder %v298, 0.0
        %vm2859 = vcmp.gt.f32.partialorder %v299, 0.0
        %vm2860 = vcmp.gt.f32.partialorder %v300, 0.0
        %vm2861 = vcmp.gt.f32.partialorder %v301, 0.0
        %vm2862 = vcmp.gt.f32.partialorder %v302, 0.0
        %vm2863 = vcmp.gt.f32.partialorder %v303, 0.0
        %vm2864 = vcmp.gt.f32.partialorder %v304, 0.0
        %vm2865 = vcmp.gt.f32.partialorder %v305, 0.0
        %vm2866 = vcmp.gt.f32.partialorder %v306, 0.0
        %vm2867 = vcmp.gt.f32.partialorder %v307, 0.0
        %vm2868 = vcmp.gt.f32.partialorder %v308, 0.0
        %vm2869 = vcmp.gt.f32.partialorder %v309, 0.0
        %vm2870 = vcmp.gt.f32.partialorder %v310, 0.0
        %vm2871 = vcmp.gt.f32.partialorder %v311, 0.0
        %vm2872 = vcmp.gt.f32.partialorder %v312, 0.0
        %vm2873 = vcmp.gt.f32.partialorder %v313, 0.0
        %vm2874 = vcmp.gt.f32.partialorder %v314, 0.0
        %vm2875 = vcmp.gt.f32.partialorder %v315, 0.0
        %vm2876 = vcmp.gt.f32.partialorder %v316, 0.0
        %vm2877 = vcmp.gt.f32.partialorder %v317, 0.0
        %vm2878 = vcmp.gt.f32.partialorder %v318, 0.0
        %vm2879 = vcmp.gt.f32.partialorder %v319, 0.0
        %vm2880 = vcmp.gt.f32.partialorder %v320, 0.0
        %vm2881 = vcmp.gt.f32.partialorder %v321, 0.0
        %vm2882 = vcmp.gt.f32.partialorder %v322, 0.0
        %vm2883 = vcmp.gt.f32.partialorder %v323, 0.0
        %vm2884 = vcmp.gt.f32.partialorder %v324, 0.0
        %vm2885 = vcmp.gt.f32.partialorder %v325, 0.0
        %vm2886 = vcmp.gt.f32.partialorder %v326, 0.0
        %vm2887 = vcmp.gt.f32.partialorder %v327, 0.0
        %vm2888 = vcmp.gt.f32.partialorder %v328, 0.0
        %vm2889 = vcmp.gt.f32.partialorder %v329, 0.0
        %vm2890 = vcmp.gt.f32.partialorder %v330, 0.0
        %vm2891 = vcmp.gt.f32.partialorder %v331, 0.0
        %vm2892 = vcmp.gt.f32.partialorder %v332, 0.0
        %vm2893 = vcmp.gt.f32.partialorder %v333, 0.0
        %vm2894 = vcmp.gt.f32.partialorder %v334, 0.0
        %vm2895 = vcmp.gt.f32.partialorder %v335, 0.0
        %vm2896 = vcmp.gt.f32.partialorder %v336, 0.0
        %vm2897 = vcmp.gt.f32.partialorder %v337, 0.0
        %vm2898 = vcmp.gt.f32.partialorder %v338, 0.0
        %vm2899 = vcmp.gt.f32.partialorder %v339, 0.0
        %vm2900 = vcmp.gt.f32.partialorder %v340, 0.0
        %vm2901 = vcmp.gt.f32.partialorder %v341, 0.0
        %vm2902 = vcmp.gt.f32.partialorder %v342, 0.0
        %vm2903 = vcmp.gt.f32.partialorder %v343, 0.0
        %vm2904 = vcmp.gt.f32.partialorder %v344, 0.0
        %vm2905 = vcmp.gt.f32.partialorder %v345, 0.0
        %vm2906 = vcmp.gt.f32.partialorder %v346, 0.0
        %vm2907 = vcmp.gt.f32.partialorder %v347, 0.0
        %vm2908 = vcmp.gt.f32.partialorder %v348, 0.0
        %vm2909 = vcmp.gt.f32.partialorder %v349, 0.0
        %vm2910 = vcmp.gt.f32.partialorder %v350, 0.0
        %vm2911 = vcmp.gt.f32.partialorder %v351, 0.0
        %vm2912 = vcmp.gt.f32.partialorder %v352, 0.0
        %vm2913 = vcmp.gt.f32.partialorder %v353, 0.0
        %vm2914 = vcmp.gt.f32.partialorder %v354, 0.0
        %vm2915 = vcmp.gt.f32.partialorder %v355, 0.0
        %vm2916 = vcmp.gt.f32.partialorder %v356, 0.0
        %vm2917 = vcmp.gt.f32.partialorder %v357, 0.0
        %vm2918 = vcmp.gt.f32.partialorder %v358, 0.0
        %vm2919 = vcmp.gt.f32.partialorder %v359, 0.0
        %vm2920 = vcmp.gt.f32.partialorder %v360, 0.0
        %vm2921 = vcmp.gt.f32.partialorder %v361, 0.0
        %vm2922 = vcmp.gt.f32.partialorder %v362, 0.0
        %vm2923 = vcmp.gt.f32.partialorder %v363, 0.0
        %vm2924 = vcmp.gt.f32.partialorder %v364, 0.0
        %vm2925 = vcmp.gt.f32.partialorder %v365, 0.0
        %vm2926 = vcmp.gt.f32.partialorder %v366, 0.0
        %vm2927 = vcmp.gt.f32.partialorder %v367, 0.0
        %vm2928 = vcmp.gt.f32.partialorder %v368, 0.0
        %vm2929 = vcmp.gt.f32.partialorder %v369, 0.0
        %vm2930 = vcmp.gt.f32.partialorder %v370, 0.0
        %vm2931 = vcmp.gt.f32.partialorder %v371, 0.0
        %vm2932 = vcmp.gt.f32.partialorder %v372, 0.0
        %vm2933 = vcmp.gt.f32.partialorder %v373, 0.0
        %vm2934 = vcmp.gt.f32.partialorder %v374, 0.0
        %vm2935 = vcmp.gt.f32.partialorder %v375, 0.0
        %vm2936 = vcmp.gt.f32.partialorder %v376, 0.0
        %vm2937 = vcmp.gt.f32.partialorder %v377, 0.0
        %vm2938 = vcmp.gt.f32.partialorder %v378, 0.0
        %vm2939 = vcmp.gt.f32.partialorder %v379, 0.0
        %vm2940 = vcmp.gt.f32.partialorder %v380, 0.0
        %vm2941 = vcmp.gt.f32.partialorder %v381, 0.0
        %vm2942 = vcmp.gt.f32.partialorder %v382, 0.0
        %vm2943 = vcmp.gt.f32.partialorder %v383, 0.0
        %vm2944 = vcmp.gt.f32.partialorder %v384, 0.0
        %vm2945 = vcmp.gt.f32.partialorder %v385, 0.0
        %vm2946 = vcmp.gt.f32.partialorder %v386, 0.0
        %vm2947 = vcmp.gt.f32.partialorder %v387, 0.0
        %vm2948 = vcmp.gt.f32.partialorder %v388, 0.0
        %vm2949 = vcmp.gt.f32.partialorder %v389, 0.0
        %vm2950 = vcmp.gt.f32.partialorder %v390, 0.0
        %vm2951 = vcmp.gt.f32.partialorder %v391, 0.0
        %vm2952 = vcmp.gt.f32.partialorder %v392, 0.0
        %vm2953 = vcmp.gt.f32.partialorder %v393, 0.0
        %vm2954 = vcmp.gt.f32.partialorder %v394, 0.0
        %vm2955 = vcmp.gt.f32.partialorder %v395, 0.0
        %v2956 = vsel %vm2700, 1, 0
        %v2957 = vsel %vm2701, 1, 0
        %v2958 = vsel %vm2702, 1, 0
        %v2959 = vsel %vm2703, 1, 0
        %v2960 = vsel %vm2704, 1, 0
        %v2961 = vsel %vm2705, 1, 0
        %v2962 = vsel %vm2706, 1, 0
        %v2963 = vsel %vm2707, 1, 0
        %v2964 = vsel %vm2708, 1, 0
        %v2965 = vsel %vm2709, 1, 0
        %v2966 = vsel %vm2710, 1, 0
        %v2967 = vsel %vm2711, 1, 0
        %v2968 = vsel %vm2712, 1, 0
        %v2969 = vsel %vm2713, 1, 0
        %v2970 = vsel %vm2714, 1, 0
        %v2971 = vsel %vm2715, 1, 0
        %v2972 = vsel %vm2716, 1, 0
        %v2973 = vsel %vm2717, 1, 0
        %v2974 = vsel %vm2718, 1, 0
        %v2975 = vsel %vm2719, 1, 0
        %v2976 = vsel %vm2720, 1, 0
        %v2977 = vsel %vm2721, 1, 0
        %v2978 = vsel %vm2722, 1, 0
        %v2979 = vsel %vm2723, 1, 0
        %v2980 = vsel %vm2724, 1, 0
        %v2981 = vsel %vm2725, 1, 0
        %v2982 = vsel %vm2726, 1, 0
        %v2983 = vsel %vm2727, 1, 0
        %v2984 = vsel %vm2728, 1, 0
        %v2985 = vsel %vm2729, 1, 0
        %v2986 = vsel %vm2730, 1, 0
        %v2987 = vsel %vm2731, 1, 0
        %v2988 = vsel %vm2732, 1, 0
        %v2989 = vsel %vm2733, 1, 0
        %v2990 = vsel %vm2734, 1, 0
        %v2991 = vsel %vm2735, 1, 0
        %v2992 = vsel %vm2736, 1, 0
        %v2993 = vsel %vm2737, 1, 0
        %v2994 = vsel %vm2738, 1, 0
        %v2995 = vsel %vm2739, 1, 0
        %v2996 = vsel %vm2740, 1, 0
        %v2997 = vsel %vm2741, 1, 0
        %v2998 = vsel %vm2742, 1, 0
        %v2999 = vsel %vm2743, 1, 0
        %v3000 = vsel %vm2744, 1, 0
        %v3001 = vsel %vm2745, 1, 0
        %v3002 = vsel %vm2746, 1, 0
        %v3003 = vsel %vm2747, 1, 0
        %v3004 = vsel %vm2748, 1, 0
        %v3005 = vsel %vm2749, 1, 0
        %v3006 = vsel %vm2750, 1, 0
        %v3007 = vsel %vm2751, 1, 0
        %v3008 = vsel %vm2752, 1, 0
        %v3009 = vsel %vm2753, 1, 0
        %v3010 = vsel %vm2754, 1, 0
        %v3011 = vsel %vm2755, 1, 0
        %v3012 = vsel %vm2756, 1, 0
        %v3013 = vsel %vm2757, 1, 0
        %v3014 = vsel %vm2758, 1, 0
        %v3015 = vsel %vm2759, 1, 0
        %v3016 = vsel %vm2760, 1, 0
        %v3017 = vsel %vm2761, 1, 0
        %v3018 = vsel %vm2762, 1, 0
        %v3019 = vsel %vm2763, 1, 0
        %v3020 = vsel %vm2764, 1, 0
        %v3021 = vsel %vm2765, 1, 0
        %v3022 = vsel %vm2766, 1, 0
        %v3023 = vsel %vm2767, 1, 0
        %v3024 = vsel %vm2768, 1, 0
        %v3025 = vsel %vm2769, 1, 0
        %v3026 = vsel %vm2770, 1, 0
        %v3027 = vsel %vm2771, 1, 0
        %v3028 = vsel %vm2772, 1, 0
        %v3029 = vsel %vm2773, 1, 0
        %v3030 = vsel %vm2774, 1, 0
        %v3031 = vsel %vm2775, 1, 0
        %v3032 = vsel %vm2776, 1, 0
        %v3033 = vsel %vm2777, 1, 0
        %v3034 = vsel %vm2778, 1, 0
        %v3035 = vsel %vm2779, 1, 0
        %v3036 = vsel %vm2780, 1, 0
        %v3037 = vsel %vm2781, 1, 0
        %v3038 = vsel %vm2782, 1, 0
        %v3039 = vsel %vm2783, 1, 0
        %v3040 = vsel %vm2784, 1, 0
        %v3041 = vsel %vm2785, 1, 0
        %v3042 = vsel %vm2786, 1, 0
        %v3043 = vsel %vm2787, 1, 0
        %v3044 = vsel %vm2788, 1, 0
        %v3045 = vsel %vm2789, 1, 0
        %v3046 = vsel %vm2790, 1, 0
        %v3047 = vsel %vm2791, 1, 0
        %v3048 = vsel %vm2792, 1, 0
        %v3049 = vsel %vm2793, 1, 0
        %v3050 = vsel %vm2794, 1, 0
        %v3051 = vsel %vm2795, 1, 0
        %v3052 = vsel %vm2796, 1, 0
        %v3053 = vsel %vm2797, 1, 0
        %v3054 = vsel %vm2798, 1, 0
        %v3055 = vsel %vm2799, 1, 0
        %v3056 = vsel %vm2800, 1, 0
        %v3057 = vsel %vm2801, 1, 0
        %v3058 = vsel %vm2802, 1, 0
        %v3059 = vsel %vm2803, 1, 0
        %v3060 = vsel %vm2804, 1, 0
        %v3061 = vsel %vm2805, 1, 0
        %v3062 = vsel %vm2806, 1, 0
        %v3063 = vsel %vm2807, 1, 0
        %v3064 = vsel %vm2808, 1, 0
        %v3065 = vsel %vm2809, 1, 0
        %v3066 = vsel %vm2810, 1, 0
        %v3067 = vsel %vm2811, 1, 0
        %v3068 = vsel %vm2812, 1, 0
        %v3069 = vsel %vm2813, 1, 0
        %v3070 = vsel %vm2814, 1, 0
        %v3071 = vsel %vm2815, 1, 0
        %v3072 = vsel %vm2816, 1, 0
        %v3073 = vsel %vm2817, 1, 0
        %v3074 = vsel %vm2818, 1, 0
        %v3075 = vsel %vm2819, 1, 0
        %v3076 = vsel %vm2820, 1, 0
        %v3077 = vsel %vm2821, 1, 0
        %v3078 = vsel %vm2822, 1, 0
        %v3079 = vsel %vm2823, 1, 0
        %v3080 = vsel %vm2824, 1, 0
        %v3081 = vsel %vm2825, 1, 0
        %v3082 = vsel %vm2826, 1, 0
        %v3083 = vsel %vm2827, 1, 0
        %v3084 = vsel %vm2828, 1, 0
        %v3085 = vsel %vm2829, 1, 0
        %v3086 = vsel %vm2830, 1, 0
        %v3087 = vsel %vm2831, 1, 0
        %v3088 = vsel %vm2832, 1, 0
        %v3089 = vsel %vm2833, 1, 0
        %v3090 = vsel %vm2834, 1, 0
        %v3091 = vsel %vm2835, 1, 0
        %v3092 = vsel %vm2836, 1, 0
        %v3093 = vsel %vm2837, 1, 0
        %v3094 = vsel %vm2838, 1, 0
        %v3095 = vsel %vm2839, 1, 0
        %v3096 = vsel %vm2840, 1, 0
        %v3097 = vsel %vm2841, 1, 0
        %v3098 = vsel %vm2842, 1, 0
        %v3099 = vsel %vm2843, 1, 0
        %v3100 = vsel %vm2844, 1, 0
        %v3101 = vsel %vm2845, 1, 0
        %v3102 = vsel %vm2846, 1, 0
        %v3103 = vsel %vm2847, 1, 0
        %v3104 = vsel %vm2848, 1, 0
        %v3105 = vsel %vm2849, 1, 0
        %v3106 = vsel %vm2850, 1, 0
        %v3107 = vsel %vm2851, 1, 0
        %v3108 = vsel %vm2852, 1, 0
        %v3109 = vsel %vm2853, 1, 0
        %v3110 = vsel %vm2854, 1, 0
        %v3111 = vsel %vm2855, 1, 0
        %v3112 = vsel %vm2856, 1, 0
        %v3113 = vsel %vm2857, 1, 0
        %v3114 = vsel %vm2858, 1, 0
        %v3115 = vsel %vm2859, 1, 0
        %v3116 = vsel %vm2860, 1, 0
        %v3117 = vsel %vm2861, 1, 0
        %v3118 = vsel %vm2862, 1, 0
        %v3119 = vsel %vm2863, 1, 0
        %v3120 = vsel %vm2864, 1, 0
        %v3121 = vsel %vm2865, 1, 0
        %v3122 = vsel %vm2866, 1, 0
        %v3123 = vsel %vm2867, 1, 0
        %v3124 = vsel %vm2868, 1, 0
        %v3125 = vsel %vm2869, 1, 0
        %v3126 = vsel %vm2870, 1, 0
        %v3127 = vsel %vm2871, 1, 0
        %v3128 = vsel %vm2872, 1, 0
        %v3129 = vsel %vm2873, 1, 0
        %v3130 = vsel %vm2874, 1, 0
        %v3131 = vsel %vm2875, 1, 0
        %v3132 = vsel %vm2876, 1, 0
        %v3133 = vsel %vm2877, 1, 0
        %v3134 = vsel %vm2878, 1, 0
        %v3135 = vsel %vm2879, 1, 0
        %v3136 = vsel %vm2880, 1, 0
        %v3137 = vsel %vm2881, 1, 0
        %v3138 = vsel %vm2882, 1, 0
        %v3139 = vsel %vm2883, 1, 0
        %v3140 = vsel %vm2884, 1, 0
        %v3141 = vsel %vm2885, 1, 0
        %v3142 = vsel %vm2886, 1, 0
        %v3143 = vsel %vm2887, 1, 0
        %v3144 = vsel %vm2888, 1, 0
        %v3145 = vsel %vm2889, 1, 0
        %v3146 = vsel %vm2890, 1, 0
        %v3147 = vsel %vm2891, 1, 0
        %v3148 = vsel %vm2892, 1, 0
        %v3149 = vsel %vm2893, 1, 0
        %v3150 = vsel %vm2894, 1, 0
        %v3151 = vsel %vm2895, 1, 0
        %v3152 = vsel %vm2896, 1, 0
        %v3153 = vsel %vm2897, 1, 0
        %v3154 = vsel %vm2898, 1, 0
        %v3155 = vsel %vm2899, 1, 0
        %v3156 = vsel %vm2900, 1, 0
        %v3157 = vsel %vm2901, 1, 0
        %v3158 = vsel %vm2902, 1, 0
        %v3159 = vsel %vm2903, 1, 0
        %v3160 = vsel %vm2904, 1, 0
        %v3161 = vsel %vm2905, 1, 0
        %v3162 = vsel %vm2906, 1, 0
        %v3163 = vsel %vm2907, 1, 0
        %v3164 = vsel %vm2908, 1, 0
        %v3165 = vsel %vm2909, 1, 0
        %v3166 = vsel %vm2910, 1, 0
        %v3167 = vsel %vm2911, 1, 0
        %v3168 = vsel %vm2912, 1, 0
        %v3169 = vsel %vm2913, 1, 0
        %v3170 = vsel %vm2914, 1, 0
        %v3171 = vsel %vm2915, 1, 0
        %v3172 = vsel %vm2916, 1, 0
        %v3173 = vsel %vm2917, 1, 0
        %v3174 = vsel %vm2918, 1, 0
        %v3175 = vsel %vm2919, 1, 0
        %v3176 = vsel %vm2920, 1, 0
        %v3177 = vsel %vm2921, 1, 0
        %v3178 = vsel %vm2922, 1, 0
        %v3179 = vsel %vm2923, 1, 0
        %v3180 = vsel %vm2924, 1, 0
        %v3181 = vsel %vm2925, 1, 0
        %v3182 = vsel %vm2926, 1, 0
        %v3183 = vsel %vm2927, 1, 0
        %v3184 = vsel %vm2928, 1, 0
        %v3185 = vsel %vm2929, 1, 0
        %v3186 = vsel %vm2930, 1, 0
        %v3187 = vsel %vm2931, 1, 0
        %v3188 = vsel %vm2932, 1, 0
        %v3189 = vsel %vm2933, 1, 0
        %v3190 = vsel %vm2934, 1, 0
        %v3191 = vsel %vm2935, 1, 0
        %v3192 = vsel %vm2936, 1, 0
        %v3193 = vsel %vm2937, 1, 0
        %v3194 = vsel %vm2938, 1, 0
        %v3195 = vsel %vm2939, 1, 0
        %v3196 = vsel %vm2940, 1, 0
        %v3197 = vsel %vm2941, 1, 0
        %v3198 = vsel %vm2942, 1, 0
        %v3199 = vsel %vm2943, 1, 0
        %v3200 = vsel %vm2944, 1, 0
        %v3201 = vsel %vm2945, 1, 0
        %v3202 = vsel %vm2946, 1, 0
        %v3203 = vsel %vm2947, 1, 0
        %v3204 = vsel %vm2948, 1, 0
        %v3205 = vsel %vm2949, 1, 0
        %v3206 = vsel %vm2950, 1, 0
        %v3207 = vsel %vm2951, 1, 0
        %v3208 = vsel %vm2952, 1, 0
        %v3209 = vsel %vm2953, 1, 0
        %v3210 = vsel %vm2954, 1, 0
        %v3211 = vsel %vm2955, 1, 0
        %v3212 = vcvt.s32.f32 %v2956
        %v3213 = vcvt.s32.f32 %v2957
        %v3214 = vcvt.s32.f32 %v2958
        %v3215 = vcvt.s32.f32 %v2959
        %v3216 = vcvt.s32.f32 %v2960
        %v3217 = vcvt.s32.f32 %v2961
        %v3218 = vcvt.s32.f32 %v2962
        %v3219 = vcvt.s32.f32 %v2963
        %v3220 = vcvt.s32.f32 %v2964
        %v3221 = vcvt.s32.f32 %v2965
        %v3222 = vcvt.s32.f32 %v2966
        %v3223 = vcvt.s32.f32 %v2967
        %v3224 = vcvt.s32.f32 %v2968
        %v3225 = vcvt.s32.f32 %v2969
        %v3226 = vcvt.s32.f32 %v2970
        %v3227 = vcvt.s32.f32 %v2971
        %v3228 = vcvt.s32.f32 %v2972
        %v3229 = vcvt.s32.f32 %v2973
        %v3230 = vcvt.s32.f32 %v2974
        %v3231 = vcvt.s32.f32 %v2975
        %v3232 = vcvt.s32.f32 %v2976
        %v3233 = vcvt.s32.f32 %v2977
        %v3234 = vcvt.s32.f32 %v2978
        %v3235 = vcvt.s32.f32 %v2979
        %v3236 = vcvt.s32.f32 %v2980
        %v3237 = vcvt.s32.f32 %v2981
        %v3238 = vcvt.s32.f32 %v2982
        %v3239 = vcvt.s32.f32 %v2983
        %v3240 = vcvt.s32.f32 %v2984
        %v3241 = vcvt.s32.f32 %v2985
        %v3242 = vcvt.s32.f32 %v2986
        %v3243 = vcvt.s32.f32 %v2987
        %v3244 = vcvt.s32.f32 %v2988
        %v3245 = vcvt.s32.f32 %v2989
        %v3246 = vcvt.s32.f32 %v2990
        %v3247 = vcvt.s32.f32 %v2991
        %v3248 = vcvt.s32.f32 %v2992
        %v3249 = vcvt.s32.f32 %v2993
        %v3250 = vcvt.s32.f32 %v2994
        %v3251 = vcvt.s32.f32 %v2995
        %v3252 = vcvt.s32.f32 %v2996
        %v3253 = vcvt.s32.f32 %v2997
        %v3254 = vcvt.s32.f32 %v2998
        %v3255 = vcvt.s32.f32 %v2999
        %v3256 = vcvt.s32.f32 %v3000
        %v3257 = vcvt.s32.f32 %v3001
        %v3258 = vcvt.s32.f32 %v3002
        %v3259 = vcvt.s32.f32 %v3003
        %v3260 = vcvt.s32.f32 %v3004
        %v3261 = vcvt.s32.f32 %v3005
        %v3262 = vcvt.s32.f32 %v3006
        %v3263 = vcvt.s32.f32 %v3007
        %v3264 = vcvt.s32.f32 %v3008
        %v3265 = vcvt.s32.f32 %v3009
        %v3266 = vcvt.s32.f32 %v3010
        %v3267 = vcvt.s32.f32 %v3011
        %v3268 = vcvt.s32.f32 %v3012
        %v3269 = vcvt.s32.f32 %v3013
        %v3270 = vcvt.s32.f32 %v3014
        %v3271 = vcvt.s32.f32 %v3015
        %v3272 = vcvt.s32.f32 %v3016
        %v3273 = vcvt.s32.f32 %v3017
        %v3274 = vcvt.s32.f32 %v3018
        %v3275 = vcvt.s32.f32 %v3019
        %v3276 = vcvt.s32.f32 %v3020
        %v3277 = vcvt.s32.f32 %v3021
        %v3278 = vcvt.s32.f32 %v3022
        %v3279 = vcvt.s32.f32 %v3023
        %v3280 = vcvt.s32.f32 %v3024
        %v3281 = vcvt.s32.f32 %v3025
        %v3282 = vcvt.s32.f32 %v3026
        %v3283 = vcvt.s32.f32 %v3027
        %v3284 = vcvt.s32.f32 %v3028
        %v3285 = vcvt.s32.f32 %v3029
        %v3286 = vcvt.s32.f32 %v3030
        %v3287 = vcvt.s32.f32 %v3031
        %v3288 = vcvt.s32.f32 %v3032
        %v3289 = vcvt.s32.f32 %v3033
        %v3290 = vcvt.s32.f32 %v3034
        %v3291 = vcvt.s32.f32 %v3035
        %v3292 = vcvt.s32.f32 %v3036
        %v3293 = vcvt.s32.f32 %v3037
        %v3294 = vcvt.s32.f32 %v3038
        %v3295 = vcvt.s32.f32 %v3039
        %v3296 = vcvt.s32.f32 %v3040
        %v3297 = vcvt.s32.f32 %v3041
        %v3298 = vcvt.s32.f32 %v3042
        %v3299 = vcvt.s32.f32 %v3043
        %v3300 = vcvt.s32.f32 %v3044
        %v3301 = vcvt.s32.f32 %v3045
        %v3302 = vcvt.s32.f32 %v3046
        %v3303 = vcvt.s32.f32 %v3047
        %v3304 = vcvt.s32.f32 %v3048
        %v3305 = vcvt.s32.f32 %v3049
        %v3306 = vcvt.s32.f32 %v3050
        %v3307 = vcvt.s32.f32 %v3051
        %v3308 = vcvt.s32.f32 %v3052
        %v3309 = vcvt.s32.f32 %v3053
        %v3310 = vcvt.s32.f32 %v3054
        %v3311 = vcvt.s32.f32 %v3055
        %v3312 = vcvt.s32.f32 %v3056
        %v3313 = vcvt.s32.f32 %v3057
        %v3314 = vcvt.s32.f32 %v3058
        %v3315 = vcvt.s32.f32 %v3059
        %v3316 = vcvt.s32.f32 %v3060
        %v3317 = vcvt.s32.f32 %v3061
        %v3318 = vcvt.s32.f32 %v3062
        %v3319 = vcvt.s32.f32 %v3063
        %v3320 = vcvt.s32.f32 %v3064
        %v3321 = vcvt.s32.f32 %v3065
        %v3322 = vcvt.s32.f32 %v3066
        %v3323 = vcvt.s32.f32 %v3067
        %v3324 = vcvt.s32.f32 %v3068
        %v3325 = vcvt.s32.f32 %v3069
        %v3326 = vcvt.s32.f32 %v3070
        %v3327 = vcvt.s32.f32 %v3071
        %v3328 = vcvt.s32.f32 %v3072
        %v3329 = vcvt.s32.f32 %v3073
        %v3330 = vcvt.s32.f32 %v3074
        %v3331 = vcvt.s32.f32 %v3075
        %v3332 = vcvt.s32.f32 %v3076
        %v3333 = vcvt.s32.f32 %v3077
        %v3334 = vcvt.s32.f32 %v3078
        %v3335 = vcvt.s32.f32 %v3079
        %v3336 = vcvt.s32.f32 %v3080
        %v3337 = vcvt.s32.f32 %v3081
        %v3338 = vcvt.s32.f32 %v3082
        %v3339 = vcvt.s32.f32 %v3083
        %v3340 = vcvt.s32.f32 %v3084
        %v3341 = vcvt.s32.f32 %v3085
        %v3342 = vcvt.s32.f32 %v3086
        %v3343 = vcvt.s32.f32 %v3087
        %v3344 = vcvt.s32.f32 %v3088
        %v3345 = vcvt.s32.f32 %v3089
        %v3346 = vcvt.s32.f32 %v3090
        %v3347 = vcvt.s32.f32 %v3091
        %v3348 = vcvt.s32.f32 %v3092
        %v3349 = vcvt.s32.f32 %v3093
        %v3350 = vcvt.s32.f32 %v3094
        %v3351 = vcvt.s32.f32 %v3095
        %v3352 = vcvt.s32.f32 %v3096
        %v3353 = vcvt.s32.f32 %v3097
        %v3354 = vcvt.s32.f32 %v3098
        %v3355 = vcvt.s32.f32 %v3099
        %v3356 = vcvt.s32.f32 %v3100
        %v3357 = vcvt.s32.f32 %v3101
        %v3358 = vcvt.s32.f32 %v3102
        %v3359 = vcvt.s32.f32 %v3103
        %v3360 = vcvt.s32.f32 %v3104
        %v3361 = vcvt.s32.f32 %v3105
        %v3362 = vcvt.s32.f32 %v3106
        %v3363 = vcvt.s32.f32 %v3107
        %v3364 = vcvt.s32.f32 %v3108
        %v3365 = vcvt.s32.f32 %v3109
        %v3366 = vcvt.s32.f32 %v3110
        %v3367 = vcvt.s32.f32 %v3111
        %v3368 = vcvt.s32.f32 %v3112
        %v3369 = vcvt.s32.f32 %v3113
        %v3370 = vcvt.s32.f32 %v3114
        %v3371 = vcvt.s32.f32 %v3115
        %v3372 = vcvt.s32.f32 %v3116
        %v3373 = vcvt.s32.f32 %v3117
        %v3374 = vcvt.s32.f32 %v3118
        %v3375 = vcvt.s32.f32 %v3119
        %v3376 = vcvt.s32.f32 %v3120
        %v3377 = vcvt.s32.f32 %v3121
        %v3378 = vcvt.s32.f32 %v3122
        %v3379 = vcvt.s32.f32 %v3123
        %v3380 = vcvt.s32.f32 %v3124
        %v3381 = vcvt.s32.f32 %v3125
        %v3382 = vcvt.s32.f32 %v3126
        %v3383 = vcvt.s32.f32 %v3127
        %v3384 = vcvt.s32.f32 %v3128
        %v3385 = vcvt.s32.f32 %v3129
        %v3386 = vcvt.s32.f32 %v3130
        %v3387 = vcvt.s32.f32 %v3131
        %v3388 = vcvt.s32.f32 %v3132
        %v3389 = vcvt.s32.f32 %v3133
        %v3390 = vcvt.s32.f32 %v3134
        %v3391 = vcvt.s32.f32 %v3135
        %v3392 = vcvt.s32.f32 %v3136
        %v3393 = vcvt.s32.f32 %v3137
        %v3394 = vcvt.s32.f32 %v3138
        %v3395 = vcvt.s32.f32 %v3139
        %v3396 = vcvt.s32.f32 %v3140
        %v3397 = vcvt.s32.f32 %v3141
        %v3398 = vcvt.s32.f32 %v3142
        %v3399 = vcvt.s32.f32 %v3143
        %v3400 = vcvt.s32.f32 %v3144
        %v3401 = vcvt.s32.f32 %v3145
        %v3402 = vcvt.s32.f32 %v3146
        %v3403 = vcvt.s32.f32 %v3147
        %v3404 = vcvt.s32.f32 %v3148
        %v3405 = vcvt.s32.f32 %v3149
        %v3406 = vcvt.s32.f32 %v3150
        %v3407 = vcvt.s32.f32 %v3151
        %v3408 = vcvt.s32.f32 %v3152
        %v3409 = vcvt.s32.f32 %v3153
        %v3410 = vcvt.s32.f32 %v3154
        %v3411 = vcvt.s32.f32 %v3155
        %v3412 = vcvt.s32.f32 %v3156
        %v3413 = vcvt.s32.f32 %v3157
        %v3414 = vcvt.s32.f32 %v3158
        %v3415 = vcvt.s32.f32 %v3159
        %v3416 = vcvt.s32.f32 %v3160
        %v3417 = vcvt.s32.f32 %v3161
        %v3418 = vcvt.s32.f32 %v3162
        %v3419 = vcvt.s32.f32 %v3163
        %v3420 = vcvt.s32.f32 %v3164
        %v3421 = vcvt.s32.f32 %v3165
        %v3422 = vcvt.s32.f32 %v3166
        %v3423 = vcvt.s32.f32 %v3167
        %v3424 = vcvt.s32.f32 %v3168
        %v3425 = vcvt.s32.f32 %v3169
        %v3426 = vcvt.s32.f32 %v3170
        %v3427 = vcvt.s32.f32 %v3171
        %v3428 = vcvt.s32.f32 %v3172
        %v3429 = vcvt.s32.f32 %v3173
        %v3430 = vcvt.s32.f32 %v3174
        %v3431 = vcvt.s32.f32 %v3175
        %v3432 = vcvt.s32.f32 %v3176
        %v3433 = vcvt.s32.f32 %v3177
        %v3434 = vcvt.s32.f32 %v3178
        %v3435 = vcvt.s32.f32 %v3179
        %v3436 = vcvt.s32.f32 %v3180
        %v3437 = vcvt.s32.f32 %v3181
        %v3438 = vcvt.s32.f32 %v3182
        %v3439 = vcvt.s32.f32 %v3183
        %v3440 = vcvt.s32.f32 %v3184
        %v3441 = vcvt.s32.f32 %v3185
        %v3442 = vcvt.s32.f32 %v3186
        %v3443 = vcvt.s32.f32 %v3187
        %v3444 = vcvt.s32.f32 %v3188
        %v3445 = vcvt.s32.f32 %v3189
        %v3446 = vcvt.s32.f32 %v3190
        %v3447 = vcvt.s32.f32 %v3191
        %v3448 = vcvt.s32.f32 %v3192
        %v3449 = vcvt.s32.f32 %v3193
        %v3450 = vcvt.s32.f32 %v3194
        %v3451 = vcvt.s32.f32 %v3195
        %v3452 = vcvt.s32.f32 %v3196
        %v3453 = vcvt.s32.f32 %v3197
        %v3454 = vcvt.s32.f32 %v3198
        %v3455 = vcvt.s32.f32 %v3199
        %v3456 = vcvt.s32.f32 %v3200
        %v3457 = vcvt.s32.f32 %v3201
        %v3458 = vcvt.s32.f32 %v3202
        %v3459 = vcvt.s32.f32 %v3203
        %v3460 = vcvt.s32.f32 %v3204
        %v3461 = vcvt.s32.f32 %v3205
        %v3462 = vcvt.s32.f32 %v3206
        %v3463 = vcvt.s32.f32 %v3207
        %v3464 = vcvt.s32.f32 %v3208
        %v3465 = vcvt.s32.f32 %v3209
        %v3466 = vcvt.s32.f32 %v3210
        %v3467 = vcvt.s32.f32 %v3211
        %v3468 = vmul.f32 %v2444, %v3212
        %v3469 = vmul.f32 %v2445, %v3213
        %v3470 = vmul.f32 %v2446, %v3214
        %v3471 = vmul.f32 %v2447, %v3215
        %v3472 = vmul.f32 %v2448, %v3216
        %v3473 = vmul.f32 %v2449, %v3217
        %v3474 = vmul.f32 %v2450, %v3218
        %v3475 = vmul.f32 %v2451, %v3219
        %v3476 = vmul.f32 %v2452, %v3220
        %v3477 = vmul.f32 %v2453, %v3221
        %v3478 = vmul.f32 %v2454, %v3222
        %v3479 = vmul.f32 %v2455, %v3223
        %v3480 = vmul.f32 %v2456, %v3224
        %v3481 = vmul.f32 %v2457, %v3225
        %v3482 = vmul.f32 %v2458, %v3226
        %v3483 = vmul.f32 %v2459, %v3227
        %v3484 = vmul.f32 %v2460, %v3228
        %v3485 = vmul.f32 %v2461, %v3229
        %v3486 = vmul.f32 %v2462, %v3230
        %v3487 = vmul.f32 %v2463, %v3231
        %v3488 = vmul.f32 %v2464, %v3232
        %v3489 = vmul.f32 %v2465, %v3233
        %v3490 = vmul.f32 %v2466, %v3234
        %v3491 = vmul.f32 %v2467, %v3235
        %v3492 = vmul.f32 %v2468, %v3236
        %v3493 = vmul.f32 %v2469, %v3237
        %v3494 = vmul.f32 %v2470, %v3238
        %v3495 = vmul.f32 %v2471, %v3239
        %v3496 = vmul.f32 %v2472, %v3240
        %v3497 = vmul.f32 %v2473, %v3241
        %v3498 = vmul.f32 %v2474, %v3242
        %v3499 = vmul.f32 %v2475, %v3243
        %v3500 = vmul.f32 %v2476, %v3244
        %v3501 = vmul.f32 %v2477, %v3245
        %v3502 = vmul.f32 %v2478, %v3246
        %v3503 = vmul.f32 %v2479, %v3247
        %v3504 = vmul.f32 %v2480, %v3248
        %v3505 = vmul.f32 %v2481, %v3249
        %v3506 = vmul.f32 %v2482, %v3250
        %v3507 = vmul.f32 %v2483, %v3251
        %v3508 = vmul.f32 %v2484, %v3252
        %v3509 = vmul.f32 %v2485, %v3253
        %v3510 = vmul.f32 %v2486, %v3254
        %v3511 = vmul.f32 %v2487, %v3255
        %v3512 = vmul.f32 %v2488, %v3256
        %v3513 = vmul.f32 %v2489, %v3257
        %v3514 = vmul.f32 %v2490, %v3258
        %v3515 = vmul.f32 %v2491, %v3259
        %v3516 = vmul.f32 %v2492, %v3260
        %v3517 = vmul.f32 %v2493, %v3261
        %v3518 = vmul.f32 %v2494, %v3262
        %v3519 = vmul.f32 %v2495, %v3263
        %v3520 = vmul.f32 %v2496, %v3264
        %v3521 = vmul.f32 %v2497, %v3265
        %v3522 = vmul.f32 %v2498, %v3266
        %v3523 = vmul.f32 %v2499, %v3267
        %v3524 = vmul.f32 %v2500, %v3268
        %v3525 = vmul.f32 %v2501, %v3269
        %v3526 = vmul.f32 %v2502, %v3270
        %v3527 = vmul.f32 %v2503, %v3271
        %v3528 = vmul.f32 %v2504, %v3272
        %v3529 = vmul.f32 %v2505, %v3273
        %v3530 = vmul.f32 %v2506, %v3274
        %v3531 = vmul.f32 %v2507, %v3275
        %v3532 = vmul.f32 %v2508, %v3276
        %v3533 = vmul.f32 %v2509, %v3277
        %v3534 = vmul.f32 %v2510, %v3278
        %v3535 = vmul.f32 %v2511, %v3279
        %v3536 = vmul.f32 %v2512, %v3280
        %v3537 = vmul.f32 %v2513, %v3281
        %v3538 = vmul.f32 %v2514, %v3282
        %v3539 = vmul.f32 %v2515, %v3283
        %v3540 = vmul.f32 %v2516, %v3284
        %v3541 = vmul.f32 %v2517, %v3285
        %v3542 = vmul.f32 %v2518, %v3286
        %v3543 = vmul.f32 %v2519, %v3287
        %v3544 = vmul.f32 %v2520, %v3288
        %v3545 = vmul.f32 %v2521, %v3289
        %v3546 = vmul.f32 %v2522, %v3290
        %v3547 = vmul.f32 %v2523, %v3291
        %v3548 = vmul.f32 %v2524, %v3292
        %v3549 = vmul.f32 %v2525, %v3293
        %v3550 = vmul.f32 %v2526, %v3294
        %v3551 = vmul.f32 %v2527, %v3295
        %v3552 = vmul.f32 %v2528, %v3296
        %v3553 = vmul.f32 %v2529, %v3297
        %v3554 = vmul.f32 %v2530, %v3298
        %v3555 = vmul.f32 %v2531, %v3299
        %v3556 = vmul.f32 %v2532, %v3300
        %v3557 = vmul.f32 %v2533, %v3301
        %v3558 = vmul.f32 %v2534, %v3302
        %v3559 = vmul.f32 %v2535, %v3303
        %v3560 = vmul.f32 %v2536, %v3304
        %v3561 = vmul.f32 %v2537, %v3305
        %v3562 = vmul.f32 %v2538, %v3306
        %v3563 = vmul.f32 %v2539, %v3307
        %v3564 = vmul.f32 %v2540, %v3308
        %v3565 = vmul.f32 %v2541, %v3309
        %v3566 = vmul.f32 %v2542, %v3310
        %v3567 = vmul.f32 %v2543, %v3311
        %v3568 = vmul.f32 %v2544, %v3312
        %v3569 = vmul.f32 %v2545, %v3313
        %v3570 = vmul.f32 %v2546, %v3314
        %v3571 = vmul.f32 %v2547, %v3315
        %v3572 = vmul.f32 %v2548, %v3316
        %v3573 = vmul.f32 %v2549, %v3317
        %v3574 = vmul.f32 %v2550, %v3318
        %v3575 = vmul.f32 %v2551, %v3319
        %v3576 = vmul.f32 %v2552, %v3320
        %v3577 = vmul.f32 %v2553, %v3321
        %v3578 = vmul.f32 %v2554, %v3322
        %v3579 = vmul.f32 %v2555, %v3323
        %v3580 = vmul.f32 %v2556, %v3324
        %v3581 = vmul.f32 %v2557, %v3325
        %v3582 = vmul.f32 %v2558, %v3326
        %v3583 = vmul.f32 %v2559, %v3327
        %v3584 = vmul.f32 %v2560, %v3328
        %v3585 = vmul.f32 %v2561, %v3329
        %v3586 = vmul.f32 %v2562, %v3330
        %v3587 = vmul.f32 %v2563, %v3331
        %v3588 = vmul.f32 %v2564, %v3332
        %v3589 = vmul.f32 %v2565, %v3333
        %v3590 = vmul.f32 %v2566, %v3334
        %v3591 = vmul.f32 %v2567, %v3335
        %v3592 = vmul.f32 %v2568, %v3336
        %v3593 = vmul.f32 %v2569, %v3337
        %v3594 = vmul.f32 %v2570, %v3338
        %v3595 = vmul.f32 %v2571, %v3339
        %v3596 = vmul.f32 %v2572, %v3340
        %v3597 = vmul.f32 %v2573, %v3341
        %v3598 = vmul.f32 %v2574, %v3342
        %v3599 = vmul.f32 %v2575, %v3343
        %v3600 = vmul.f32 %v2576, %v3344
        %v3601 = vmul.f32 %v2577, %v3345
        %v3602 = vmul.f32 %v2578, %v3346
        %v3603 = vmul.f32 %v2579, %v3347
        %v3604 = vmul.f32 %v2580, %v3348
        %v3605 = vmul.f32 %v2581, %v3349
        %v3606 = vmul.f32 %v2582, %v3350
        %v3607 = vmul.f32 %v2583, %v3351
        %v3608 = vmul.f32 %v2584, %v3352
        %v3609 = vmul.f32 %v2585, %v3353
        %v3610 = vmul.f32 %v2586, %v3354
        %v3611 = vmul.f32 %v2587, %v3355
        %v3612 = vmul.f32 %v2588, %v3356
        %v3613 = vmul.f32 %v2589, %v3357
        %v3614 = vmul.f32 %v2590, %v3358
        %v3615 = vmul.f32 %v2591, %v3359
        %v3616 = vmul.f32 %v2592, %v3360
        %v3617 = vmul.f32 %v2593, %v3361
        %v3618 = vmul.f32 %v2594, %v3362
        %v3619 = vmul.f32 %v2595, %v3363
        %v3620 = vmul.f32 %v2596, %v3364
        %v3621 = vmul.f32 %v2597, %v3365
        %v3622 = vmul.f32 %v2598, %v3366
        %v3623 = vmul.f32 %v2599, %v3367
        %v3624 = vmul.f32 %v2600, %v3368
        %v3625 = vmul.f32 %v2601, %v3369
        %v3626 = vmul.f32 %v2602, %v3370
        %v3627 = vmul.f32 %v2603, %v3371
        %v3628 = vmul.f32 %v2604, %v3372
        %v3629 = vmul.f32 %v2605, %v3373
        %v3630 = vmul.f32 %v2606, %v3374
        %v3631 = vmul.f32 %v2607, %v3375
        %v3632 = vmul.f32 %v2608, %v3376
        %v3633 = vmul.f32 %v2609, %v3377
        %v3634 = vmul.f32 %v2610, %v3378
        %v3635 = vmul.f32 %v2611, %v3379
        %v3636 = vmul.f32 %v2612, %v3380
        %v3637 = vmul.f32 %v2613, %v3381
        %v3638 = vmul.f32 %v2614, %v3382
        %v3639 = vmul.f32 %v2615, %v3383
        %v3640 = vmul.f32 %v2616, %v3384
        %v3641 = vmul.f32 %v2617, %v3385
        %v3642 = vmul.f32 %v2618, %v3386
        %v3643 = vmul.f32 %v2619, %v3387
        %v3644 = vmul.f32 %v2620, %v3388
        %v3645 = vmul.f32 %v2621, %v3389
        %v3646 = vmul.f32 %v2622, %v3390
        %v3647 = vmul.f32 %v2623, %v3391
        %v3648 = vmul.f32 %v2624, %v3392
        %v3649 = vmul.f32 %v2625, %v3393
        %v3650 = vmul.f32 %v2626, %v3394
        %v3651 = vmul.f32 %v2627, %v3395
        %v3652 = vmul.f32 %v2628, %v3396
        %v3653 = vmul.f32 %v2629, %v3397
        %v3654 = vmul.f32 %v2630, %v3398
        %v3655 = vmul.f32 %v2631, %v3399
        %v3656 = vmul.f32 %v2632, %v3400
        %v3657 = vmul.f32 %v2633, %v3401
        %v3658 = vmul.f32 %v2634, %v3402
        %v3659 = vmul.f32 %v2635, %v3403
        %v3660 = vmul.f32 %v2636, %v3404
        %v3661 = vmul.f32 %v2637, %v3405
        %v3662 = vmul.f32 %v2638, %v3406
        %v3663 = vmul.f32 %v2639, %v3407
        %v3664 = vmul.f32 %v2640, %v3408
        %v3665 = vmul.f32 %v2641, %v3409
        %v3666 = vmul.f32 %v2642, %v3410
        %v3667 = vmul.f32 %v2643, %v3411
        %v3668 = vmul.f32 %v2644, %v3412
        %v3669 = vmul.f32 %v2645, %v3413
        %v3670 = vmul.f32 %v2646, %v3414
        %v3671 = vmul.f32 %v2647, %v3415
        %v3672 = vmul.f32 %v2648, %v3416
        %v3673 = vmul.f32 %v2649, %v3417
        %v3674 = vmul.f32 %v2650, %v3418
        %v3675 = vmul.f32 %v2651, %v3419
        %v3676 = vmul.f32 %v2652, %v3420
        %v3677 = vmul.f32 %v2653, %v3421
        %v3678 = vmul.f32 %v2654, %v3422
        %v3679 = vmul.f32 %v2655, %v3423
        %v3680 = vmul.f32 %v2656, %v3424
        %v3681 = vmul.f32 %v2657, %v3425
        %v3682 = vmul.f32 %v2658, %v3426
        %v3683 = vmul.f32 %v2659, %v3427
        %v3684 = vmul.f32 %v2660, %v3428
        %v3685 = vmul.f32 %v2661, %v3429
        %v3686 = vmul.f32 %v2662, %v3430
        %v3687 = vmul.f32 %v2663, %v3431
        %v3688 = vmul.f32 %v2664, %v3432
        %v3689 = vmul.f32 %v2665, %v3433
        %v3690 = vmul.f32 %v2666, %v3434
        %v3691 = vmul.f32 %v2667, %v3435
        %v3692 = vmul.f32 %v2668, %v3436
        %v3693 = vmul.f32 %v2669, %v3437
        %v3694 = vmul.f32 %v2670, %v3438
        %v3695 = vmul.f32 %v2671, %v3439
        %v3696 = vmul.f32 %v2672, %v3440
        %v3697 = vmul.f32 %v2673, %v3441
        %v3698 = vmul.f32 %v2674, %v3442
        %v3699 = vmul.f32 %v2675, %v3443
        %v3700 = vmul.f32 %v2676, %v3444
        %v3701 = vmul.f32 %v2677, %v3445
        %v3702 = vmul.f32 %v2678, %v3446
        %v3703 = vmul.f32 %v2679, %v3447
        %v3704 = vmul.f32 %v2680, %v3448
        %v3705 = vmul.f32 %v2681, %v3449
        %v3706 = vmul.f32 %v2682, %v3450
        %v3707 = vmul.f32 %v2683, %v3451
        %v3708 = vmul.f32 %v2684, %v3452
        %v3709 = vmul.f32 %v2685, %v3453
        %v3710 = vmul.f32 %v2686, %v3454
        %v3711 = vmul.f32 %v2687, %v3455
        %v3712 = vmul.f32 %v2688, %v3456
        %v3713 = vmul.f32 %v2689, %v3457
        %v3714 = vmul.f32 %v2690, %v3458
        %v3715 = vmul.f32 %v2691, %v3459
        %v3716 = vmul.f32 %v2692, %v3460
        %v3717 = vmul.f32 %v2693, %v3461
        %v3718 = vmul.f32 %v2694, %v3462
        %v3719 = vmul.f32 %v2695, %v3463
        %v3720 = vmul.f32 %v2696, %v3464
        %v3721 = vmul.f32 %v2697, %v3465
        %v3722 = vmul.f32 %v2698, %v3466
        %v3723 = vmul.f32 %v2699, %v3467
        %vm3724 = vcmp.gt.f32.partialorder %v140, -0.3
        %vm3725 = vcmp.gt.f32.partialorder %v141, -0.3
        %vm3726 = vcmp.gt.f32.partialorder %v142, -0.3
        %vm3727 = vcmp.gt.f32.partialorder %v143, -0.3
        %vm3728 = vcmp.gt.f32.partialorder %v144, -0.3
        %vm3729 = vcmp.gt.f32.partialorder %v145, -0.3
        %vm3730 = vcmp.gt.f32.partialorder %v146, -0.3
        %vm3731 = vcmp.gt.f32.partialorder %v147, -0.3
        %vm3732 = vcmp.gt.f32.partialorder %v148, -0.3
        %vm3733 = vcmp.gt.f32.partialorder %v149, -0.3
        %vm3734 = vcmp.gt.f32.partialorder %v150, -0.3
        %vm3735 = vcmp.gt.f32.partialorder %v151, -0.3
        %vm3736 = vcmp.gt.f32.partialorder %v152, -0.3
        %vm3737 = vcmp.gt.f32.partialorder %v153, -0.3
        %vm3738 = vcmp.gt.f32.partialorder %v154, -0.3
        %vm3739 = vcmp.gt.f32.partialorder %v155, -0.3
        %vm3740 = vcmp.gt.f32.partialorder %v156, -0.3
        %vm3741 = vcmp.gt.f32.partialorder %v157, -0.3
        %vm3742 = vcmp.gt.f32.partialorder %v158, -0.3
        %vm3743 = vcmp.gt.f32.partialorder %v159, -0.3
        %vm3744 = vcmp.gt.f32.partialorder %v160, -0.3
        %vm3745 = vcmp.gt.f32.partialorder %v161, -0.3
        %vm3746 = vcmp.gt.f32.partialorder %v162, -0.3
        %vm3747 = vcmp.gt.f32.partialorder %v163, -0.3
        %vm3748 = vcmp.gt.f32.partialorder %v164, -0.3
        %vm3749 = vcmp.gt.f32.partialorder %v165, -0.3
        %vm3750 = vcmp.gt.f32.partialorder %v166, -0.3
        %vm3751 = vcmp.gt.f32.partialorder %v167, -0.3
        %vm3752 = vcmp.gt.f32.partialorder %v168, -0.3
        %vm3753 = vcmp.gt.f32.partialorder %v169, -0.3
        %vm3754 = vcmp.gt.f32.partialorder %v170, -0.3
        %vm3755 = vcmp.gt.f32.partialorder %v171, -0.3
        %vm3756 = vcmp.gt.f32.partialorder %v172, -0.3
        %vm3757 = vcmp.gt.f32.partialorder %v173, -0.3
        %vm3758 = vcmp.gt.f32.partialorder %v174, -0.3
        %vm3759 = vcmp.gt.f32.partialorder %v175, -0.3
        %vm3760 = vcmp.gt.f32.partialorder %v176, -0.3
        %vm3761 = vcmp.gt.f32.partialorder %v177, -0.3
        %vm3762 = vcmp.gt.f32.partialorder %v178, -0.3
        %vm3763 = vcmp.gt.f32.partialorder %v179, -0.3
        %vm3764 = vcmp.gt.f32.partialorder %v180, -0.3
        %vm3765 = vcmp.gt.f32.partialorder %v181, -0.3
        %vm3766 = vcmp.gt.f32.partialorder %v182, -0.3
        %vm3767 = vcmp.gt.f32.partialorder %v183, -0.3
        %vm3768 = vcmp.gt.f32.partialorder %v184, -0.3
        %vm3769 = vcmp.gt.f32.partialorder %v185, -0.3
        %vm3770 = vcmp.gt.f32.partialorder %v186, -0.3
        %vm3771 = vcmp.gt.f32.partialorder %v187, -0.3
        %vm3772 = vcmp.gt.f32.partialorder %v188, -0.3
        %vm3773 = vcmp.gt.f32.partialorder %v189, -0.3
        %vm3774 = vcmp.gt.f32.partialorder %v190, -0.3
        %vm3775 = vcmp.gt.f32.partialorder %v191, -0.3
        %vm3776 = vcmp.gt.f32.partialorder %v192, -0.3
        %vm3777 = vcmp.gt.f32.partialorder %v193, -0.3
        %vm3778 = vcmp.gt.f32.partialorder %v194, -0.3
        %vm3779 = vcmp.gt.f32.partialorder %v195, -0.3
        %vm3780 = vcmp.gt.f32.partialorder %v196, -0.3
        %vm3781 = vcmp.gt.f32.partialorder %v197, -0.3
        %vm3782 = vcmp.gt.f32.partialorder %v198, -0.3
        %vm3783 = vcmp.gt.f32.partialorder %v199, -0.3
        %vm3784 = vcmp.gt.f32.partialorder %v200, -0.3
        %vm3785 = vcmp.gt.f32.partialorder %v201, -0.3
        %vm3786 = vcmp.gt.f32.partialorder %v202, -0.3
        %vm3787 = vcmp.gt.f32.partialorder %v203, -0.3
        %vm3788 = vcmp.gt.f32.partialorder %v204, -0.3
        %vm3789 = vcmp.gt.f32.partialorder %v205, -0.3
        %vm3790 = vcmp.gt.f32.partialorder %v206, -0.3
        %vm3791 = vcmp.gt.f32.partialorder %v207, -0.3
        %vm3792 = vcmp.gt.f32.partialorder %v208, -0.3
        %vm3793 = vcmp.gt.f32.partialorder %v209, -0.3
        %vm3794 = vcmp.gt.f32.partialorder %v210, -0.3
        %vm3795 = vcmp.gt.f32.partialorder %v211, -0.3
        %vm3796 = vcmp.gt.f32.partialorder %v212, -0.3
        %vm3797 = vcmp.gt.f32.partialorder %v213, -0.3
        %vm3798 = vcmp.gt.f32.partialorder %v214, -0.3
        %vm3799 = vcmp.gt.f32.partialorder %v215, -0.3
        %vm3800 = vcmp.gt.f32.partialorder %v216, -0.3
        %vm3801 = vcmp.gt.f32.partialorder %v217, -0.3
        %vm3802 = vcmp.gt.f32.partialorder %v218, -0.3
        %vm3803 = vcmp.gt.f32.partialorder %v219, -0.3
        %vm3804 = vcmp.gt.f32.partialorder %v220, -0.3
        %vm3805 = vcmp.gt.f32.partialorder %v221, -0.3
        %vm3806 = vcmp.gt.f32.partialorder %v222, -0.3
        %vm3807 = vcmp.gt.f32.partialorder %v223, -0.3
        %vm3808 = vcmp.gt.f32.partialorder %v224, -0.3
        %vm3809 = vcmp.gt.f32.partialorder %v225, -0.3
        %vm3810 = vcmp.gt.f32.partialorder %v226, -0.3
        %vm3811 = vcmp.gt.f32.partialorder %v227, -0.3
        %vm3812 = vcmp.gt.f32.partialorder %v228, -0.3
        %vm3813 = vcmp.gt.f32.partialorder %v229, -0.3
        %vm3814 = vcmp.gt.f32.partialorder %v230, -0.3
        %vm3815 = vcmp.gt.f32.partialorder %v231, -0.3
        %vm3816 = vcmp.gt.f32.partialorder %v232, -0.3
        %vm3817 = vcmp.gt.f32.partialorder %v233, -0.3
        %vm3818 = vcmp.gt.f32.partialorder %v234, -0.3
        %vm3819 = vcmp.gt.f32.partialorder %v235, -0.3
        %vm3820 = vcmp.gt.f32.partialorder %v236, -0.3
        %vm3821 = vcmp.gt.f32.partialorder %v237, -0.3
        %vm3822 = vcmp.gt.f32.partialorder %v238, -0.3
        %vm3823 = vcmp.gt.f32.partialorder %v239, -0.3
        %vm3824 = vcmp.gt.f32.partialorder %v240, -0.3
        %vm3825 = vcmp.gt.f32.partialorder %v241, -0.3
        %vm3826 = vcmp.gt.f32.partialorder %v242, -0.3
        %vm3827 = vcmp.gt.f32.partialorder %v243, -0.3
        %vm3828 = vcmp.gt.f32.partialorder %v244, -0.3
        %vm3829 = vcmp.gt.f32.partialorder %v245, -0.3
        %vm3830 = vcmp.gt.f32.partialorder %v246, -0.3
        %vm3831 = vcmp.gt.f32.partialorder %v247, -0.3
        %vm3832 = vcmp.gt.f32.partialorder %v248, -0.3
        %vm3833 = vcmp.gt.f32.partialorder %v249, -0.3
        %vm3834 = vcmp.gt.f32.partialorder %v250, -0.3
        %vm3835 = vcmp.gt.f32.partialorder %v251, -0.3
        %vm3836 = vcmp.gt.f32.partialorder %v252, -0.3
        %vm3837 = vcmp.gt.f32.partialorder %v253, -0.3
        %vm3838 = vcmp.gt.f32.partialorder %v254, -0.3
        %vm3839 = vcmp.gt.f32.partialorder %v255, -0.3
        %vm3840 = vcmp.gt.f32.partialorder %v256, -0.3
        %vm3841 = vcmp.gt.f32.partialorder %v257, -0.3
        %vm3842 = vcmp.gt.f32.partialorder %v258, -0.3
        %vm3843 = vcmp.gt.f32.partialorder %v259, -0.3
        %vm3844 = vcmp.gt.f32.partialorder %v260, -0.3
        %vm3845 = vcmp.gt.f32.partialorder %v261, -0.3
        %vm3846 = vcmp.gt.f32.partialorder %v262, -0.3
        %vm3847 = vcmp.gt.f32.partialorder %v263, -0.3
        %vm3848 = vcmp.gt.f32.partialorder %v264, -0.3
        %vm3849 = vcmp.gt.f32.partialorder %v265, -0.3
        %vm3850 = vcmp.gt.f32.partialorder %v266, -0.3
        %vm3851 = vcmp.gt.f32.partialorder %v267, -0.3
        %vm3852 = vcmp.gt.f32.partialorder %v268, -0.3
        %vm3853 = vcmp.gt.f32.partialorder %v269, -0.3
        %vm3854 = vcmp.gt.f32.partialorder %v270, -0.3
        %vm3855 = vcmp.gt.f32.partialorder %v271, -0.3
        %vm3856 = vcmp.gt.f32.partialorder %v272, -0.3
        %vm3857 = vcmp.gt.f32.partialorder %v273, -0.3
        %vm3858 = vcmp.gt.f32.partialorder %v274, -0.3
        %vm3859 = vcmp.gt.f32.partialorder %v275, -0.3
        %vm3860 = vcmp.gt.f32.partialorder %v276, -0.3
        %vm3861 = vcmp.gt.f32.partialorder %v277, -0.3
        %vm3862 = vcmp.gt.f32.partialorder %v278, -0.3
        %vm3863 = vcmp.gt.f32.partialorder %v279, -0.3
        %vm3864 = vcmp.gt.f32.partialorder %v280, -0.3
        %vm3865 = vcmp.gt.f32.partialorder %v281, -0.3
        %vm3866 = vcmp.gt.f32.partialorder %v282, -0.3
        %vm3867 = vcmp.gt.f32.partialorder %v283, -0.3
        %vm3868 = vcmp.gt.f32.partialorder %v284, -0.3
        %vm3869 = vcmp.gt.f32.partialorder %v285, -0.3
        %vm3870 = vcmp.gt.f32.partialorder %v286, -0.3
        %vm3871 = vcmp.gt.f32.partialorder %v287, -0.3
        %vm3872 = vcmp.gt.f32.partialorder %v288, -0.3
        %vm3873 = vcmp.gt.f32.partialorder %v289, -0.3
        %vm3874 = vcmp.gt.f32.partialorder %v290, -0.3
        %vm3875 = vcmp.gt.f32.partialorder %v291, -0.3
        %vm3876 = vcmp.gt.f32.partialorder %v292, -0.3
        %vm3877 = vcmp.gt.f32.partialorder %v293, -0.3
        %vm3878 = vcmp.gt.f32.partialorder %v294, -0.3
        %vm3879 = vcmp.gt.f32.partialorder %v295, -0.3
        %vm3880 = vcmp.gt.f32.partialorder %v296, -0.3
        %vm3881 = vcmp.gt.f32.partialorder %v297, -0.3
        %vm3882 = vcmp.gt.f32.partialorder %v298, -0.3
        %vm3883 = vcmp.gt.f32.partialorder %v299, -0.3
        %vm3884 = vcmp.gt.f32.partialorder %v300, -0.3
        %vm3885 = vcmp.gt.f32.partialorder %v301, -0.3
        %vm3886 = vcmp.gt.f32.partialorder %v302, -0.3
        %vm3887 = vcmp.gt.f32.partialorder %v303, -0.3
        %vm3888 = vcmp.gt.f32.partialorder %v304, -0.3
        %vm3889 = vcmp.gt.f32.partialorder %v305, -0.3
        %vm3890 = vcmp.gt.f32.partialorder %v306, -0.3
        %vm3891 = vcmp.gt.f32.partialorder %v307, -0.3
        %vm3892 = vcmp.gt.f32.partialorder %v308, -0.3
        %vm3893 = vcmp.gt.f32.partialorder %v309, -0.3
        %vm3894 = vcmp.gt.f32.partialorder %v310, -0.3
        %vm3895 = vcmp.gt.f32.partialorder %v311, -0.3
        %vm3896 = vcmp.gt.f32.partialorder %v312, -0.3
        %vm3897 = vcmp.gt.f32.partialorder %v313, -0.3
        %vm3898 = vcmp.gt.f32.partialorder %v314, -0.3
        %vm3899 = vcmp.gt.f32.partialorder %v315, -0.3
        %vm3900 = vcmp.gt.f32.partialorder %v316, -0.3
        %vm3901 = vcmp.gt.f32.partialorder %v317, -0.3
        %vm3902 = vcmp.gt.f32.partialorder %v318, -0.3
        %vm3903 = vcmp.gt.f32.partialorder %v319, -0.3
        %vm3904 = vcmp.gt.f32.partialorder %v320, -0.3
        %vm3905 = vcmp.gt.f32.partialorder %v321, -0.3
        %vm3906 = vcmp.gt.f32.partialorder %v322, -0.3
        %vm3907 = vcmp.gt.f32.partialorder %v323, -0.3
        %vm3908 = vcmp.gt.f32.partialorder %v324, -0.3
        %vm3909 = vcmp.gt.f32.partialorder %v325, -0.3
        %vm3910 = vcmp.gt.f32.partialorder %v326, -0.3
        %vm3911 = vcmp.gt.f32.partialorder %v327, -0.3
        %vm3912 = vcmp.gt.f32.partialorder %v328, -0.3
        %vm3913 = vcmp.gt.f32.partialorder %v329, -0.3
        %vm3914 = vcmp.gt.f32.partialorder %v330, -0.3
        %vm3915 = vcmp.gt.f32.partialorder %v331, -0.3
        %vm3916 = vcmp.gt.f32.partialorder %v332, -0.3
        %vm3917 = vcmp.gt.f32.partialorder %v333, -0.3
        %vm3918 = vcmp.gt.f32.partialorder %v334, -0.3
        %vm3919 = vcmp.gt.f32.partialorder %v335, -0.3
        %vm3920 = vcmp.gt.f32.partialorder %v336, -0.3
        %vm3921 = vcmp.gt.f32.partialorder %v337, -0.3
        %vm3922 = vcmp.gt.f32.partialorder %v338, -0.3
        %vm3923 = vcmp.gt.f32.partialorder %v339, -0.3
        %vm3924 = vcmp.gt.f32.partialorder %v340, -0.3
        %vm3925 = vcmp.gt.f32.partialorder %v341, -0.3
        %vm3926 = vcmp.gt.f32.partialorder %v342, -0.3
        %vm3927 = vcmp.gt.f32.partialorder %v343, -0.3
        %vm3928 = vcmp.gt.f32.partialorder %v344, -0.3
        %vm3929 = vcmp.gt.f32.partialorder %v345, -0.3
        %vm3930 = vcmp.gt.f32.partialorder %v346, -0.3
        %vm3931 = vcmp.gt.f32.partialorder %v347, -0.3
        %vm3932 = vcmp.gt.f32.partialorder %v348, -0.3
        %vm3933 = vcmp.gt.f32.partialorder %v349, -0.3
        %vm3934 = vcmp.gt.f32.partialorder %v350, -0.3
        %vm3935 = vcmp.gt.f32.partialorder %v351, -0.3
        %vm3936 = vcmp.gt.f32.partialorder %v352, -0.3
        %vm3937 = vcmp.gt.f32.partialorder %v353, -0.3
        %vm3938 = vcmp.gt.f32.partialorder %v354, -0.3
        %vm3939 = vcmp.gt.f32.partialorder %v355, -0.3
        %vm3940 = vcmp.gt.f32.partialorder %v356, -0.3
        %vm3941 = vcmp.gt.f32.partialorder %v357, -0.3
        %vm3942 = vcmp.gt.f32.partialorder %v358, -0.3
        %vm3943 = vcmp.gt.f32.partialorder %v359, -0.3
        %vm3944 = vcmp.gt.f32.partialorder %v360, -0.3
        %vm3945 = vcmp.gt.f32.partialorder %v361, -0.3
        %vm3946 = vcmp.gt.f32.partialorder %v362, -0.3
        %vm3947 = vcmp.gt.f32.partialorder %v363, -0.3
        %vm3948 = vcmp.gt.f32.partialorder %v364, -0.3
        %vm3949 = vcmp.gt.f32.partialorder %v365, -0.3
        %vm3950 = vcmp.gt.f32.partialorder %v366, -0.3
        %vm3951 = vcmp.gt.f32.partialorder %v367, -0.3
        %vm3952 = vcmp.gt.f32.partialorder %v368, -0.3
        %vm3953 = vcmp.gt.f32.partialorder %v369, -0.3
        %vm3954 = vcmp.gt.f32.partialorder %v370, -0.3
        %vm3955 = vcmp.gt.f32.partialorder %v371, -0.3
        %vm3956 = vcmp.gt.f32.partialorder %v372, -0.3
        %vm3957 = vcmp.gt.f32.partialorder %v373, -0.3
        %vm3958 = vcmp.gt.f32.partialorder %v374, -0.3
        %vm3959 = vcmp.gt.f32.partialorder %v375, -0.3
        %vm3960 = vcmp.gt.f32.partialorder %v376, -0.3
        %vm3961 = vcmp.gt.f32.partialorder %v377, -0.3
        %vm3962 = vcmp.gt.f32.partialorder %v378, -0.3
        %vm3963 = vcmp.gt.f32.partialorder %v379, -0.3
        %vm3964 = vcmp.gt.f32.partialorder %v380, -0.3
        %vm3965 = vcmp.gt.f32.partialorder %v381, -0.3
        %vm3966 = vcmp.gt.f32.partialorder %v382, -0.3
        %vm3967 = vcmp.gt.f32.partialorder %v383, -0.3
        %vm3968 = vcmp.gt.f32.partialorder %v384, -0.3
        %vm3969 = vcmp.gt.f32.partialorder %v385, -0.3
        %vm3970 = vcmp.gt.f32.partialorder %v386, -0.3
        %vm3971 = vcmp.gt.f32.partialorder %v387, -0.3
        %vm3972 = vcmp.gt.f32.partialorder %v388, -0.3
        %vm3973 = vcmp.gt.f32.partialorder %v389, -0.3
        %vm3974 = vcmp.gt.f32.partialorder %v390, -0.3
        %vm3975 = vcmp.gt.f32.partialorder %v391, -0.3
        %vm3976 = vcmp.gt.f32.partialorder %v392, -0.3
        %vm3977 = vcmp.gt.f32.partialorder %v393, -0.3
        %vm3978 = vcmp.gt.f32.partialorder %v394, -0.3
        %vm3979 = vcmp.gt.f32.partialorder %v395, -0.3
        %v3980 = vsel %vm3724, 1, 0
        %v3981 = vsel %vm3725, 1, 0
        %v3982 = vsel %vm3726, 1, 0
        %v3983 = vsel %vm3727, 1, 0
        %v3984 = vsel %vm3728, 1, 0
        %v3985 = vsel %vm3729, 1, 0
        %v3986 = vsel %vm3730, 1, 0
        %v3987 = vsel %vm3731, 1, 0
        %v3988 = vsel %vm3732, 1, 0
        %v3989 = vsel %vm3733, 1, 0
        %v3990 = vsel %vm3734, 1, 0
        %v3991 = vsel %vm3735, 1, 0
        %v3992 = vsel %vm3736, 1, 0
        %v3993 = vsel %vm3737, 1, 0
        %v3994 = vsel %vm3738, 1, 0
        %v3995 = vsel %vm3739, 1, 0
        %v3996 = vsel %vm3740, 1, 0
        %v3997 = vsel %vm3741, 1, 0
        %v3998 = vsel %vm3742, 1, 0
        %v3999 = vsel %vm3743, 1, 0
        %v4000 = vsel %vm3744, 1, 0
        %v4001 = vsel %vm3745, 1, 0
        %v4002 = vsel %vm3746, 1, 0
        %v4003 = vsel %vm3747, 1, 0
        %v4004 = vsel %vm3748, 1, 0
        %v4005 = vsel %vm3749, 1, 0
        %v4006 = vsel %vm3750, 1, 0
        %v4007 = vsel %vm3751, 1, 0
        %v4008 = vsel %vm3752, 1, 0
        %v4009 = vsel %vm3753, 1, 0
        %v4010 = vsel %vm3754, 1, 0
        %v4011 = vsel %vm3755, 1, 0
        %v4012 = vsel %vm3756, 1, 0
        %v4013 = vsel %vm3757, 1, 0
        %v4014 = vsel %vm3758, 1, 0
        %v4015 = vsel %vm3759, 1, 0
        %v4016 = vsel %vm3760, 1, 0
        %v4017 = vsel %vm3761, 1, 0
        %v4018 = vsel %vm3762, 1, 0
        %v4019 = vsel %vm3763, 1, 0
        %v4020 = vsel %vm3764, 1, 0
        %v4021 = vsel %vm3765, 1, 0
        %v4022 = vsel %vm3766, 1, 0
        %v4023 = vsel %vm3767, 1, 0
        %v4024 = vsel %vm3768, 1, 0
        %v4025 = vsel %vm3769, 1, 0
        %v4026 = vsel %vm3770, 1, 0
        %v4027 = vsel %vm3771, 1, 0
        %v4028 = vsel %vm3772, 1, 0
        %v4029 = vsel %vm3773, 1, 0
        %v4030 = vsel %vm3774, 1, 0
        %v4031 = vsel %vm3775, 1, 0
        %v4032 = vsel %vm3776, 1, 0
        %v4033 = vsel %vm3777, 1, 0
        %v4034 = vsel %vm3778, 1, 0
        %v4035 = vsel %vm3779, 1, 0
        %v4036 = vsel %vm3780, 1, 0
        %v4037 = vsel %vm3781, 1, 0
        %v4038 = vsel %vm3782, 1, 0
        %v4039 = vsel %vm3783, 1, 0
        %v4040 = vsel %vm3784, 1, 0
        %v4041 = vsel %vm3785, 1, 0
        %v4042 = vsel %vm3786, 1, 0
        %v4043 = vsel %vm3787, 1, 0
        %v4044 = vsel %vm3788, 1, 0
        %v4045 = vsel %vm3789, 1, 0
        %v4046 = vsel %vm3790, 1, 0
        %v4047 = vsel %vm3791, 1, 0
        %v4048 = vsel %vm3792, 1, 0
        %v4049 = vsel %vm3793, 1, 0
        %v4050 = vsel %vm3794, 1, 0
        %v4051 = vsel %vm3795, 1, 0
        %v4052 = vsel %vm3796, 1, 0
        %v4053 = vsel %vm3797, 1, 0
        %v4054 = vsel %vm3798, 1, 0
        %v4055 = vsel %vm3799, 1, 0
        %v4056 = vsel %vm3800, 1, 0
        %v4057 = vsel %vm3801, 1, 0
        %v4058 = vsel %vm3802, 1, 0
        %v4059 = vsel %vm3803, 1, 0
        %v4060 = vsel %vm3804, 1, 0
        %v4061 = vsel %vm3805, 1, 0
        %v4062 = vsel %vm3806, 1, 0
        %v4063 = vsel %vm3807, 1, 0
        %v4064 = vsel %vm3808, 1, 0
        %v4065 = vsel %vm3809, 1, 0
        %v4066 = vsel %vm3810, 1, 0
        %v4067 = vsel %vm3811, 1, 0
        %v4068 = vsel %vm3812, 1, 0
        %v4069 = vsel %vm3813, 1, 0
        %v4070 = vsel %vm3814, 1, 0
        %v4071 = vsel %vm3815, 1, 0
        %v4072 = vsel %vm3816, 1, 0
        %v4073 = vsel %vm3817, 1, 0
        %v4074 = vsel %vm3818, 1, 0
        %v4075 = vsel %vm3819, 1, 0
        %v4076 = vsel %vm3820, 1, 0
        %v4077 = vsel %vm3821, 1, 0
        %v4078 = vsel %vm3822, 1, 0
        %v4079 = vsel %vm3823, 1, 0
        %v4080 = vsel %vm3824, 1, 0
        %v4081 = vsel %vm3825, 1, 0
        %v4082 = vsel %vm3826, 1, 0
        %v4083 = vsel %vm3827, 1, 0
        %v4084 = vsel %vm3828, 1, 0
        %v4085 = vsel %vm3829, 1, 0
        %v4086 = vsel %vm3830, 1, 0
        %v4087 = vsel %vm3831, 1, 0
        %v4088 = vsel %vm3832, 1, 0
        %v4089 = vsel %vm3833, 1, 0
        %v4090 = vsel %vm3834, 1, 0
        %v4091 = vsel %vm3835, 1, 0
        %v4092 = vsel %vm3836, 1, 0
        %v4093 = vsel %vm3837, 1, 0
        %v4094 = vsel %vm3838, 1, 0
        %v4095 = vsel %vm3839, 1, 0
        %v4096 = vsel %vm3840, 1, 0
        %v4097 = vsel %vm3841, 1, 0
        %v4098 = vsel %vm3842, 1, 0
        %v4099 = vsel %vm3843, 1, 0
        %v4100 = vsel %vm3844, 1, 0
        %v4101 = vsel %vm3845, 1, 0
        %v4102 = vsel %vm3846, 1, 0
        %v4103 = vsel %vm3847, 1, 0
        %v4104 = vsel %vm3848, 1, 0
        %v4105 = vsel %vm3849, 1, 0
        %v4106 = vsel %vm3850, 1, 0
        %v4107 = vsel %vm3851, 1, 0
        %v4108 = vsel %vm3852, 1, 0
        %v4109 = vsel %vm3853, 1, 0
        %v4110 = vsel %vm3854, 1, 0
        %v4111 = vsel %vm3855, 1, 0
        %v4112 = vsel %vm3856, 1, 0
        %v4113 = vsel %vm3857, 1, 0
        %v4114 = vsel %vm3858, 1, 0
        %v4115 = vsel %vm3859, 1, 0
        %v4116 = vsel %vm3860, 1, 0
        %v4117 = vsel %vm3861, 1, 0
        %v4118 = vsel %vm3862, 1, 0
        %v4119 = vsel %vm3863, 1, 0
        %v4120 = vsel %vm3864, 1, 0
        %v4121 = vsel %vm3865, 1, 0
        %v4122 = vsel %vm3866, 1, 0
        %v4123 = vsel %vm3867, 1, 0
        %v4124 = vsel %vm3868, 1, 0
        %v4125 = vsel %vm3869, 1, 0
        %v4126 = vsel %vm3870, 1, 0
        %v4127 = vsel %vm3871, 1, 0
        %v4128 = vsel %vm3872, 1, 0
        %v4129 = vsel %vm3873, 1, 0
        %v4130 = vsel %vm3874, 1, 0
        %v4131 = vsel %vm3875, 1, 0
        %v4132 = vsel %vm3876, 1, 0
        %v4133 = vsel %vm3877, 1, 0
        %v4134 = vsel %vm3878, 1, 0
        %v4135 = vsel %vm3879, 1, 0
        %v4136 = vsel %vm3880, 1, 0
        %v4137 = vsel %vm3881, 1, 0
        %v4138 = vsel %vm3882, 1, 0
        %v4139 = vsel %vm3883, 1, 0
        %v4140 = vsel %vm3884, 1, 0
        %v4141 = vsel %vm3885, 1, 0
        %v4142 = vsel %vm3886, 1, 0
        %v4143 = vsel %vm3887, 1, 0
        %v4144 = vsel %vm3888, 1, 0
        %v4145 = vsel %vm3889, 1, 0
        %v4146 = vsel %vm3890, 1, 0
        %v4147 = vsel %vm3891, 1, 0
        %v4148 = vsel %vm3892, 1, 0
        %v4149 = vsel %vm3893, 1, 0
        %v4150 = vsel %vm3894, 1, 0
        %v4151 = vsel %vm3895, 1, 0
        %v4152 = vsel %vm3896, 1, 0
        %v4153 = vsel %vm3897, 1, 0
        %v4154 = vsel %vm3898, 1, 0
        %v4155 = vsel %vm3899, 1, 0
        %v4156 = vsel %vm3900, 1, 0
        %v4157 = vsel %vm3901, 1, 0
        %v4158 = vsel %vm3902, 1, 0
        %v4159 = vsel %vm3903, 1, 0
        %v4160 = vsel %vm3904, 1, 0
        %v4161 = vsel %vm3905, 1, 0
        %v4162 = vsel %vm3906, 1, 0
        %v4163 = vsel %vm3907, 1, 0
        %v4164 = vsel %vm3908, 1, 0
        %v4165 = vsel %vm3909, 1, 0
        %v4166 = vsel %vm3910, 1, 0
        %v4167 = vsel %vm3911, 1, 0
        %v4168 = vsel %vm3912, 1, 0
        %v4169 = vsel %vm3913, 1, 0
        %v4170 = vsel %vm3914, 1, 0
        %v4171 = vsel %vm3915, 1, 0
        %v4172 = vsel %vm3916, 1, 0
        %v4173 = vsel %vm3917, 1, 0
        %v4174 = vsel %vm3918, 1, 0
        %v4175 = vsel %vm3919, 1, 0
        %v4176 = vsel %vm3920, 1, 0
        %v4177 = vsel %vm3921, 1, 0
        %v4178 = vsel %vm3922, 1, 0
        %v4179 = vsel %vm3923, 1, 0
        %v4180 = vsel %vm3924, 1, 0
        %v4181 = vsel %vm3925, 1, 0
        %v4182 = vsel %vm3926, 1, 0
        %v4183 = vsel %vm3927, 1, 0
        %v4184 = vsel %vm3928, 1, 0
        %v4185 = vsel %vm3929, 1, 0
        %v4186 = vsel %vm3930, 1, 0
        %v4187 = vsel %vm3931, 1, 0
        %v4188 = vsel %vm3932, 1, 0
        %v4189 = vsel %vm3933, 1, 0
        %v4190 = vsel %vm3934, 1, 0
        %v4191 = vsel %vm3935, 1, 0
        %v4192 = vsel %vm3936, 1, 0
        %v4193 = vsel %vm3937, 1, 0
        %v4194 = vsel %vm3938, 1, 0
        %v4195 = vsel %vm3939, 1, 0
        %v4196 = vsel %vm3940, 1, 0
        %v4197 = vsel %vm3941, 1, 0
        %v4198 = vsel %vm3942, 1, 0
        %v4199 = vsel %vm3943, 1, 0
        %v4200 = vsel %vm3944, 1, 0
        %v4201 = vsel %vm3945, 1, 0
        %v4202 = vsel %vm3946, 1, 0
        %v4203 = vsel %vm3947, 1, 0
        %v4204 = vsel %vm3948, 1, 0
        %v4205 = vsel %vm3949, 1, 0
        %v4206 = vsel %vm3950, 1, 0
        %v4207 = vsel %vm3951, 1, 0
        %v4208 = vsel %vm3952, 1, 0
        %v4209 = vsel %vm3953, 1, 0
        %v4210 = vsel %vm3954, 1, 0
        %v4211 = vsel %vm3955, 1, 0
        %v4212 = vsel %vm3956, 1, 0
        %v4213 = vsel %vm3957, 1, 0
        %v4214 = vsel %vm3958, 1, 0
        %v4215 = vsel %vm3959, 1, 0
        %v4216 = vsel %vm3960, 1, 0
        %v4217 = vsel %vm3961, 1, 0
        %v4218 = vsel %vm3962, 1, 0
        %v4219 = vsel %vm3963, 1, 0
        %v4220 = vsel %vm3964, 1, 0
        %v4221 = vsel %vm3965, 1, 0
        %v4222 = vsel %vm3966, 1, 0
        %v4223 = vsel %vm3967, 1, 0
        %v4224 = vsel %vm3968, 1, 0
        %v4225 = vsel %vm3969, 1, 0
        %v4226 = vsel %vm3970, 1, 0
        %v4227 = vsel %vm3971, 1, 0
        %v4228 = vsel %vm3972, 1, 0
        %v4229 = vsel %vm3973, 1, 0
        %v4230 = vsel %vm3974, 1, 0
        %v4231 = vsel %vm3975, 1, 0
        %v4232 = vsel %vm3976, 1, 0
        %v4233 = vsel %vm3977, 1, 0
        %v4234 = vsel %vm3978, 1, 0
        %v4235 = vsel %vm3979, 1, 0
        %v4236 = vcvt.s32.f32 %v3980
        %v4237 = vcvt.s32.f32 %v3981
        %v4238 = vcvt.s32.f32 %v3982
        %v4239 = vcvt.s32.f32 %v3983
        %v4240 = vcvt.s32.f32 %v3984
        %v4241 = vcvt.s32.f32 %v3985
        %v4242 = vcvt.s32.f32 %v3986
        %v4243 = vcvt.s32.f32 %v3987
        %v4244 = vcvt.s32.f32 %v3988
        %v4245 = vcvt.s32.f32 %v3989
        %v4246 = vcvt.s32.f32 %v3990
        %v4247 = vcvt.s32.f32 %v3991
        %v4248 = vcvt.s32.f32 %v3992
        %v4249 = vcvt.s32.f32 %v3993
        %v4250 = vcvt.s32.f32 %v3994
        %v4251 = vcvt.s32.f32 %v3995
        %v4252 = vcvt.s32.f32 %v3996
        %v4253 = vcvt.s32.f32 %v3997
        %v4254 = vcvt.s32.f32 %v3998
        %v4255 = vcvt.s32.f32 %v3999
        %v4256 = vcvt.s32.f32 %v4000
        %v4257 = vcvt.s32.f32 %v4001
        %v4258 = vcvt.s32.f32 %v4002
        %v4259 = vcvt.s32.f32 %v4003
        %v4260 = vcvt.s32.f32 %v4004
        %v4261 = vcvt.s32.f32 %v4005
        %v4262 = vcvt.s32.f32 %v4006
        %v4263 = vcvt.s32.f32 %v4007
        %v4264 = vcvt.s32.f32 %v4008
        %v4265 = vcvt.s32.f32 %v4009
        %v4266 = vcvt.s32.f32 %v4010
        %v4267 = vcvt.s32.f32 %v4011
        %v4268 = vcvt.s32.f32 %v4012
        %v4269 = vcvt.s32.f32 %v4013
        %v4270 = vcvt.s32.f32 %v4014
        %v4271 = vcvt.s32.f32 %v4015
        %v4272 = vcvt.s32.f32 %v4016
        %v4273 = vcvt.s32.f32 %v4017
        %v4274 = vcvt.s32.f32 %v4018
        %v4275 = vcvt.s32.f32 %v4019
        %v4276 = vcvt.s32.f32 %v4020
        %v4277 = vcvt.s32.f32 %v4021
        %v4278 = vcvt.s32.f32 %v4022
        %v4279 = vcvt.s32.f32 %v4023
        %v4280 = vcvt.s32.f32 %v4024
        %v4281 = vcvt.s32.f32 %v4025
        %v4282 = vcvt.s32.f32 %v4026
        %v4283 = vcvt.s32.f32 %v4027
        %v4284 = vcvt.s32.f32 %v4028
        %v4285 = vcvt.s32.f32 %v4029
        %v4286 = vcvt.s32.f32 %v4030
        %v4287 = vcvt.s32.f32 %v4031
        %v4288 = vcvt.s32.f32 %v4032
        %v4289 = vcvt.s32.f32 %v4033
        %v4290 = vcvt.s32.f32 %v4034
        %v4291 = vcvt.s32.f32 %v4035
        %v4292 = vcvt.s32.f32 %v4036
        %v4293 = vcvt.s32.f32 %v4037
        %v4294 = vcvt.s32.f32 %v4038
        %v4295 = vcvt.s32.f32 %v4039
        %v4296 = vcvt.s32.f32 %v4040
        %v4297 = vcvt.s32.f32 %v4041
        %v4298 = vcvt.s32.f32 %v4042
        %v4299 = vcvt.s32.f32 %v4043
        %v4300 = vcvt.s32.f32 %v4044
        %v4301 = vcvt.s32.f32 %v4045
        %v4302 = vcvt.s32.f32 %v4046
        %v4303 = vcvt.s32.f32 %v4047
        %v4304 = vcvt.s32.f32 %v4048
        %v4305 = vcvt.s32.f32 %v4049
        %v4306 = vcvt.s32.f32 %v4050
        %v4307 = vcvt.s32.f32 %v4051
        %v4308 = vcvt.s32.f32 %v4052
        %v4309 = vcvt.s32.f32 %v4053
        %v4310 = vcvt.s32.f32 %v4054
        %v4311 = vcvt.s32.f32 %v4055
        %v4312 = vcvt.s32.f32 %v4056
        %v4313 = vcvt.s32.f32 %v4057
        %v4314 = vcvt.s32.f32 %v4058
        %v4315 = vcvt.s32.f32 %v4059
        %v4316 = vcvt.s32.f32 %v4060
        %v4317 = vcvt.s32.f32 %v4061
        %v4318 = vcvt.s32.f32 %v4062
        %v4319 = vcvt.s32.f32 %v4063
        %v4320 = vcvt.s32.f32 %v4064
        %v4321 = vcvt.s32.f32 %v4065
        %v4322 = vcvt.s32.f32 %v4066
        %v4323 = vcvt.s32.f32 %v4067
        %v4324 = vcvt.s32.f32 %v4068
        %v4325 = vcvt.s32.f32 %v4069
        %v4326 = vcvt.s32.f32 %v4070
        %v4327 = vcvt.s32.f32 %v4071
        %v4328 = vcvt.s32.f32 %v4072
        %v4329 = vcvt.s32.f32 %v4073
        %v4330 = vcvt.s32.f32 %v4074
        %v4331 = vcvt.s32.f32 %v4075
        %v4332 = vcvt.s32.f32 %v4076
        %v4333 = vcvt.s32.f32 %v4077
        %v4334 = vcvt.s32.f32 %v4078
        %v4335 = vcvt.s32.f32 %v4079
        %v4336 = vcvt.s32.f32 %v4080
        %v4337 = vcvt.s32.f32 %v4081
        %v4338 = vcvt.s32.f32 %v4082
        %v4339 = vcvt.s32.f32 %v4083
        %v4340 = vcvt.s32.f32 %v4084
        %v4341 = vcvt.s32.f32 %v4085
        %v4342 = vcvt.s32.f32 %v4086
        %v4343 = vcvt.s32.f32 %v4087
        %v4344 = vcvt.s32.f32 %v4088
        %v4345 = vcvt.s32.f32 %v4089
        %v4346 = vcvt.s32.f32 %v4090
        %v4347 = vcvt.s32.f32 %v4091
        %v4348 = vcvt.s32.f32 %v4092
        %v4349 = vcvt.s32.f32 %v4093
        %v4350 = vcvt.s32.f32 %v4094
        %v4351 = vcvt.s32.f32 %v4095
        %v4352 = vcvt.s32.f32 %v4096
        %v4353 = vcvt.s32.f32 %v4097
        %v4354 = vcvt.s32.f32 %v4098
        %v4355 = vcvt.s32.f32 %v4099
        %v4356 = vcvt.s32.f32 %v4100
        %v4357 = vcvt.s32.f32 %v4101
        %v4358 = vcvt.s32.f32 %v4102
        %v4359 = vcvt.s32.f32 %v4103
        %v4360 = vcvt.s32.f32 %v4104
        %v4361 = vcvt.s32.f32 %v4105
        %v4362 = vcvt.s32.f32 %v4106
        %v4363 = vcvt.s32.f32 %v4107
        %v4364 = vcvt.s32.f32 %v4108
        %v4365 = vcvt.s32.f32 %v4109
        %v4366 = vcvt.s32.f32 %v4110
        %v4367 = vcvt.s32.f32 %v4111
        %v4368 = vcvt.s32.f32 %v4112
        %v4369 = vcvt.s32.f32 %v4113
        %v4370 = vcvt.s32.f32 %v4114
        %v4371 = vcvt.s32.f32 %v4115
        %v4372 = vcvt.s32.f32 %v4116
        %v4373 = vcvt.s32.f32 %v4117
        %v4374 = vcvt.s32.f32 %v4118
        %v4375 = vcvt.s32.f32 %v4119
        %v4376 = vcvt.s32.f32 %v4120
        %v4377 = vcvt.s32.f32 %v4121
        %v4378 = vcvt.s32.f32 %v4122
        %v4379 = vcvt.s32.f32 %v4123
        %v4380 = vcvt.s32.f32 %v4124
        %v4381 = vcvt.s32.f32 %v4125
        %v4382 = vcvt.s32.f32 %v4126
        %v4383 = vcvt.s32.f32 %v4127
        %v4384 = vcvt.s32.f32 %v4128
        %v4385 = vcvt.s32.f32 %v4129
        %v4386 = vcvt.s32.f32 %v4130
        %v4387 = vcvt.s32.f32 %v4131
        %v4388 = vcvt.s32.f32 %v4132
        %v4389 = vcvt.s32.f32 %v4133
        %v4390 = vcvt.s32.f32 %v4134
        %v4391 = vcvt.s32.f32 %v4135
        %v4392 = vcvt.s32.f32 %v4136
        %v4393 = vcvt.s32.f32 %v4137
        %v4394 = vcvt.s32.f32 %v4138
        %v4395 = vcvt.s32.f32 %v4139
        %v4396 = vcvt.s32.f32 %v4140
        %v4397 = vcvt.s32.f32 %v4141
        %v4398 = vcvt.s32.f32 %v4142
        %v4399 = vcvt.s32.f32 %v4143
        %v4400 = vcvt.s32.f32 %v4144
        %v4401 = vcvt.s32.f32 %v4145
        %v4402 = vcvt.s32.f32 %v4146
        %v4403 = vcvt.s32.f32 %v4147
        %v4404 = vcvt.s32.f32 %v4148
        %v4405 = vcvt.s32.f32 %v4149
        %v4406 = vcvt.s32.f32 %v4150
        %v4407 = vcvt.s32.f32 %v4151
        %v4408 = vcvt.s32.f32 %v4152
        %v4409 = vcvt.s32.f32 %v4153
        %v4410 = vcvt.s32.f32 %v4154
        %v4411 = vcvt.s32.f32 %v4155
        %v4412 = vcvt.s32.f32 %v4156
        %v4413 = vcvt.s32.f32 %v4157
        %v4414 = vcvt.s32.f32 %v4158
        %v4415 = vcvt.s32.f32 %v4159
        %v4416 = vcvt.s32.f32 %v4160
        %v4417 = vcvt.s32.f32 %v4161
        %v4418 = vcvt.s32.f32 %v4162
        %v4419 = vcvt.s32.f32 %v4163
        %v4420 = vcvt.s32.f32 %v4164
        %v4421 = vcvt.s32.f32 %v4165
        %v4422 = vcvt.s32.f32 %v4166
        %v4423 = vcvt.s32.f32 %v4167
        %v4424 = vcvt.s32.f32 %v4168
        %v4425 = vcvt.s32.f32 %v4169
        %v4426 = vcvt.s32.f32 %v4170
        %v4427 = vcvt.s32.f32 %v4171
        %v4428 = vcvt.s32.f32 %v4172
        %v4429 = vcvt.s32.f32 %v4173
        %v4430 = vcvt.s32.f32 %v4174
        %v4431 = vcvt.s32.f32 %v4175
        %v4432 = vcvt.s32.f32 %v4176
        %v4433 = vcvt.s32.f32 %v4177
        %v4434 = vcvt.s32.f32 %v4178
        %v4435 = vcvt.s32.f32 %v4179
        %v4436 = vcvt.s32.f32 %v4180
        %v4437 = vcvt.s32.f32 %v4181
        %v4438 = vcvt.s32.f32 %v4182
        %v4439 = vcvt.s32.f32 %v4183
        %v4440 = vcvt.s32.f32 %v4184
        %v4441 = vcvt.s32.f32 %v4185
        %v4442 = vcvt.s32.f32 %v4186
        %v4443 = vcvt.s32.f32 %v4187
        %v4444 = vcvt.s32.f32 %v4188
        %v4445 = vcvt.s32.f32 %v4189
        %v4446 = vcvt.s32.f32 %v4190
        %v4447 = vcvt.s32.f32 %v4191
        %v4448 = vcvt.s32.f32 %v4192
        %v4449 = vcvt.s32.f32 %v4193
        %v4450 = vcvt.s32.f32 %v4194
        %v4451 = vcvt.s32.f32 %v4195
        %v4452 = vcvt.s32.f32 %v4196
        %v4453 = vcvt.s32.f32 %v4197
        %v4454 = vcvt.s32.f32 %v4198
        %v4455 = vcvt.s32.f32 %v4199
        %v4456 = vcvt.s32.f32 %v4200
        %v4457 = vcvt.s32.f32 %v4201
        %v4458 = vcvt.s32.f32 %v4202
        %v4459 = vcvt.s32.f32 %v4203
        %v4460 = vcvt.s32.f32 %v4204
        %v4461 = vcvt.s32.f32 %v4205
        %v4462 = vcvt.s32.f32 %v4206
        %v4463 = vcvt.s32.f32 %v4207
        %v4464 = vcvt.s32.f32 %v4208
        %v4465 = vcvt.s32.f32 %v4209
        %v4466 = vcvt.s32.f32 %v4210
        %v4467 = vcvt.s32.f32 %v4211
        %v4468 = vcvt.s32.f32 %v4212
        %v4469 = vcvt.s32.f32 %v4213
        %v4470 = vcvt.s32.f32 %v4214
        %v4471 = vcvt.s32.f32 %v4215
        %v4472 = vcvt.s32.f32 %v4216
        %v4473 = vcvt.s32.f32 %v4217
        %v4474 = vcvt.s32.f32 %v4218
        %v4475 = vcvt.s32.f32 %v4219
        %v4476 = vcvt.s32.f32 %v4220
        %v4477 = vcvt.s32.f32 %v4221
        %v4478 = vcvt.s32.f32 %v4222
        %v4479 = vcvt.s32.f32 %v4223
        %v4480 = vcvt.s32.f32 %v4224
        %v4481 = vcvt.s32.f32 %v4225
        %v4482 = vcvt.s32.f32 %v4226
        %v4483 = vcvt.s32.f32 %v4227
        %v4484 = vcvt.s32.f32 %v4228
        %v4485 = vcvt.s32.f32 %v4229
        %v4486 = vcvt.s32.f32 %v4230
        %v4487 = vcvt.s32.f32 %v4231
        %v4488 = vcvt.s32.f32 %v4232
        %v4489 = vcvt.s32.f32 %v4233
        %v4490 = vcvt.s32.f32 %v4234
        %v4491 = vcvt.s32.f32 %v4235
        %v4492 = vmul.f32 %v4236, -0.3
        %v4493 = vmul.f32 %v4237, -0.3
        %v4494 = vmul.f32 %v4238, -0.3
        %v4495 = vmul.f32 %v4239, -0.3
        %v4496 = vmul.f32 %v4240, -0.3
        %v4497 = vmul.f32 %v4241, -0.3
        %v4498 = vmul.f32 %v4242, -0.3
        %v4499 = vmul.f32 %v4243, -0.3
        %v4500 = vmul.f32 %v4244, -0.3
        %v4501 = vmul.f32 %v4245, -0.3
        %v4502 = vmul.f32 %v4246, -0.3
        %v4503 = vmul.f32 %v4247, -0.3
        %v4504 = vmul.f32 %v4248, -0.3
        %v4505 = vmul.f32 %v4249, -0.3
        %v4506 = vmul.f32 %v4250, -0.3
        %v4507 = vmul.f32 %v4251, -0.3
        %v4508 = vmul.f32 %v4252, -0.3
        %v4509 = vmul.f32 %v4253, -0.3
        %v4510 = vmul.f32 %v4254, -0.3
        %v4511 = vmul.f32 %v4255, -0.3
        %v4512 = vmul.f32 %v4256, -0.3
        %v4513 = vmul.f32 %v4257, -0.3
        %v4514 = vmul.f32 %v4258, -0.3
        %v4515 = vmul.f32 %v4259, -0.3
        %v4516 = vmul.f32 %v4260, -0.3
        %v4517 = vmul.f32 %v4261, -0.3
        %v4518 = vmul.f32 %v4262, -0.3
        %v4519 = vmul.f32 %v4263, -0.3
        %v4520 = vmul.f32 %v4264, -0.3
        %v4521 = vmul.f32 %v4265, -0.3
        %v4522 = vmul.f32 %v4266, -0.3
        %v4523 = vmul.f32 %v4267, -0.3
        %v4524 = vmul.f32 %v4268, -0.3
        %v4525 = vmul.f32 %v4269, -0.3
        %v4526 = vmul.f32 %v4270, -0.3
        %v4527 = vmul.f32 %v4271, -0.3
        %v4528 = vmul.f32 %v4272, -0.3
        %v4529 = vmul.f32 %v4273, -0.3
        %v4530 = vmul.f32 %v4274, -0.3
        %v4531 = vmul.f32 %v4275, -0.3
        %v4532 = vmul.f32 %v4276, -0.3
        %v4533 = vmul.f32 %v4277, -0.3
        %v4534 = vmul.f32 %v4278, -0.3
        %v4535 = vmul.f32 %v4279, -0.3
        %v4536 = vmul.f32 %v4280, -0.3
        %v4537 = vmul.f32 %v4281, -0.3
        %v4538 = vmul.f32 %v4282, -0.3
        %v4539 = vmul.f32 %v4283, -0.3
        %v4540 = vmul.f32 %v4284, -0.3
        %v4541 = vmul.f32 %v4285, -0.3
        %v4542 = vmul.f32 %v4286, -0.3
        %v4543 = vmul.f32 %v4287, -0.3
        %v4544 = vmul.f32 %v4288, -0.3
        %v4545 = vmul.f32 %v4289, -0.3
        %v4546 = vmul.f32 %v4290, -0.3
        %v4547 = vmul.f32 %v4291, -0.3
        %v4548 = vmul.f32 %v4292, -0.3
        %v4549 = vmul.f32 %v4293, -0.3
        %v4550 = vmul.f32 %v4294, -0.3
        %v4551 = vmul.f32 %v4295, -0.3
        %v4552 = vmul.f32 %v4296, -0.3
        %v4553 = vmul.f32 %v4297, -0.3
        %v4554 = vmul.f32 %v4298, -0.3
        %v4555 = vmul.f32 %v4299, -0.3
        %v4556 = vmul.f32 %v4300, -0.3
        %v4557 = vmul.f32 %v4301, -0.3
        %v4558 = vmul.f32 %v4302, -0.3
        %v4559 = vmul.f32 %v4303, -0.3
        %v4560 = vmul.f32 %v4304, -0.3
        %v4561 = vmul.f32 %v4305, -0.3
        %v4562 = vmul.f32 %v4306, -0.3
        %v4563 = vmul.f32 %v4307, -0.3
        %v4564 = vmul.f32 %v4308, -0.3
        %v4565 = vmul.f32 %v4309, -0.3
        %v4566 = vmul.f32 %v4310, -0.3
        %v4567 = vmul.f32 %v4311, -0.3
        %v4568 = vmul.f32 %v4312, -0.3
        %v4569 = vmul.f32 %v4313, -0.3
        %v4570 = vmul.f32 %v4314, -0.3
        %v4571 = vmul.f32 %v4315, -0.3
        %v4572 = vmul.f32 %v4316, -0.3
        %v4573 = vmul.f32 %v4317, -0.3
        %v4574 = vmul.f32 %v4318, -0.3
        %v4575 = vmul.f32 %v4319, -0.3
        %v4576 = vmul.f32 %v4320, -0.3
        %v4577 = vmul.f32 %v4321, -0.3
        %v4578 = vmul.f32 %v4322, -0.3
        %v4579 = vmul.f32 %v4323, -0.3
        %v4580 = vmul.f32 %v4324, -0.3
        %v4581 = vmul.f32 %v4325, -0.3
        %v4582 = vmul.f32 %v4326, -0.3
        %v4583 = vmul.f32 %v4327, -0.3
        %v4584 = vmul.f32 %v4328, -0.3
        %v4585 = vmul.f32 %v4329, -0.3
        %v4586 = vmul.f32 %v4330, -0.3
        %v4587 = vmul.f32 %v4331, -0.3
        %v4588 = vmul.f32 %v4332, -0.3
        %v4589 = vmul.f32 %v4333, -0.3
        %v4590 = vmul.f32 %v4334, -0.3
        %v4591 = vmul.f32 %v4335, -0.3
        %v4592 = vmul.f32 %v4336, -0.3
        %v4593 = vmul.f32 %v4337, -0.3
        %v4594 = vmul.f32 %v4338, -0.3
        %v4595 = vmul.f32 %v4339, -0.3
        %v4596 = vmul.f32 %v4340, -0.3
        %v4597 = vmul.f32 %v4341, -0.3
        %v4598 = vmul.f32 %v4342, -0.3
        %v4599 = vmul.f32 %v4343, -0.3
        %v4600 = vmul.f32 %v4344, -0.3
        %v4601 = vmul.f32 %v4345, -0.3
        %v4602 = vmul.f32 %v4346, -0.3
        %v4603 = vmul.f32 %v4347, -0.3
        %v4604 = vmul.f32 %v4348, -0.3
        %v4605 = vmul.f32 %v4349, -0.3
        %v4606 = vmul.f32 %v4350, -0.3
        %v4607 = vmul.f32 %v4351, -0.3
        %v4608 = vmul.f32 %v4352, -0.3
        %v4609 = vmul.f32 %v4353, -0.3
        %v4610 = vmul.f32 %v4354, -0.3
        %v4611 = vmul.f32 %v4355, -0.3
        %v4612 = vmul.f32 %v4356, -0.3
        %v4613 = vmul.f32 %v4357, -0.3
        %v4614 = vmul.f32 %v4358, -0.3
        %v4615 = vmul.f32 %v4359, -0.3
        %v4616 = vmul.f32 %v4360, -0.3
        %v4617 = vmul.f32 %v4361, -0.3
        %v4618 = vmul.f32 %v4362, -0.3
        %v4619 = vmul.f32 %v4363, -0.3
        %v4620 = vmul.f32 %v4364, -0.3
        %v4621 = vmul.f32 %v4365, -0.3
        %v4622 = vmul.f32 %v4366, -0.3
        %v4623 = vmul.f32 %v4367, -0.3
        %v4624 = vmul.f32 %v4368, -0.3
        %v4625 = vmul.f32 %v4369, -0.3
        %v4626 = vmul.f32 %v4370, -0.3
        %v4627 = vmul.f32 %v4371, -0.3
        %v4628 = vmul.f32 %v4372, -0.3
        %v4629 = vmul.f32 %v4373, -0.3
        %v4630 = vmul.f32 %v4374, -0.3
        %v4631 = vmul.f32 %v4375, -0.3
        %v4632 = vmul.f32 %v4376, -0.3
        %v4633 = vmul.f32 %v4377, -0.3
        %v4634 = vmul.f32 %v4378, -0.3
        %v4635 = vmul.f32 %v4379, -0.3
        %v4636 = vmul.f32 %v4380, -0.3
        %v4637 = vmul.f32 %v4381, -0.3
        %v4638 = vmul.f32 %v4382, -0.3
        %v4639 = vmul.f32 %v4383, -0.3
        %v4640 = vmul.f32 %v4384, -0.3
        %v4641 = vmul.f32 %v4385, -0.3
        %v4642 = vmul.f32 %v4386, -0.3
        %v4643 = vmul.f32 %v4387, -0.3
        %v4644 = vmul.f32 %v4388, -0.3
        %v4645 = vmul.f32 %v4389, -0.3
        %v4646 = vmul.f32 %v4390, -0.3
        %v4647 = vmul.f32 %v4391, -0.3
        %v4648 = vmul.f32 %v4392, -0.3
        %v4649 = vmul.f32 %v4393, -0.3
        %v4650 = vmul.f32 %v4394, -0.3
        %v4651 = vmul.f32 %v4395, -0.3
        %v4652 = vmul.f32 %v4396, -0.3
        %v4653 = vmul.f32 %v4397, -0.3
        %v4654 = vmul.f32 %v4398, -0.3
        %v4655 = vmul.f32 %v4399, -0.3
        %v4656 = vmul.f32 %v4400, -0.3
        %v4657 = vmul.f32 %v4401, -0.3
        %v4658 = vmul.f32 %v4402, -0.3
        %v4659 = vmul.f32 %v4403, -0.3
        %v4660 = vmul.f32 %v4404, -0.3
        %v4661 = vmul.f32 %v4405, -0.3
        %v4662 = vmul.f32 %v4406, -0.3
        %v4663 = vmul.f32 %v4407, -0.3
        %v4664 = vmul.f32 %v4408, -0.3
        %v4665 = vmul.f32 %v4409, -0.3
        %v4666 = vmul.f32 %v4410, -0.3
        %v4667 = vmul.f32 %v4411, -0.3
        %v4668 = vmul.f32 %v4412, -0.3
        %v4669 = vmul.f32 %v4413, -0.3
        %v4670 = vmul.f32 %v4414, -0.3
        %v4671 = vmul.f32 %v4415, -0.3
        %v4672 = vmul.f32 %v4416, -0.3
        %v4673 = vmul.f32 %v4417, -0.3
        %v4674 = vmul.f32 %v4418, -0.3
        %v4675 = vmul.f32 %v4419, -0.3
        %v4676 = vmul.f32 %v4420, -0.3
        %v4677 = vmul.f32 %v4421, -0.3
        %v4678 = vmul.f32 %v4422, -0.3
        %v4679 = vmul.f32 %v4423, -0.3
        %v4680 = vmul.f32 %v4424, -0.3
        %v4681 = vmul.f32 %v4425, -0.3
        %v4682 = vmul.f32 %v4426, -0.3
        %v4683 = vmul.f32 %v4427, -0.3
        %v4684 = vmul.f32 %v4428, -0.3
        %v4685 = vmul.f32 %v4429, -0.3
        %v4686 = vmul.f32 %v4430, -0.3
        %v4687 = vmul.f32 %v4431, -0.3
        %v4688 = vmul.f32 %v4432, -0.3
        %v4689 = vmul.f32 %v4433, -0.3
        %v4690 = vmul.f32 %v4434, -0.3
        %v4691 = vmul.f32 %v4435, -0.3
        %v4692 = vmul.f32 %v4436, -0.3
        %v4693 = vmul.f32 %v4437, -0.3
        %v4694 = vmul.f32 %v4438, -0.3
        %v4695 = vmul.f32 %v4439, -0.3
        %v4696 = vmul.f32 %v4440, -0.3
        %v4697 = vmul.f32 %v4441, -0.3
        %v4698 = vmul.f32 %v4442, -0.3
        %v4699 = vmul.f32 %v4443, -0.3
        %v4700 = vmul.f32 %v4444, -0.3
        %v4701 = vmul.f32 %v4445, -0.3
        %v4702 = vmul.f32 %v4446, -0.3
        %v4703 = vmul.f32 %v4447, -0.3
        %v4704 = vmul.f32 %v4448, -0.3
        %v4705 = vmul.f32 %v4449, -0.3
        %v4706 = vmul.f32 %v4450, -0.3
        %v4707 = vmul.f32 %v4451, -0.3
        %v4708 = vmul.f32 %v4452, -0.3
        %v4709 = vmul.f32 %v4453, -0.3
        %v4710 = vmul.f32 %v4454, -0.3
        %v4711 = vmul.f32 %v4455, -0.3
        %v4712 = vmul.f32 %v4456, -0.3
        %v4713 = vmul.f32 %v4457, -0.3
        %v4714 = vmul.f32 %v4458, -0.3
        %v4715 = vmul.f32 %v4459, -0.3
        %v4716 = vmul.f32 %v4460, -0.3
        %v4717 = vmul.f32 %v4461, -0.3
        %v4718 = vmul.f32 %v4462, -0.3
        %v4719 = vmul.f32 %v4463, -0.3
        %v4720 = vmul.f32 %v4464, -0.3
        %v4721 = vmul.f32 %v4465, -0.3
        %v4722 = vmul.f32 %v4466, -0.3
        %v4723 = vmul.f32 %v4467, -0.3
        %v4724 = vmul.f32 %v4468, -0.3
        %v4725 = vmul.f32 %v4469, -0.3
        %v4726 = vmul.f32 %v4470, -0.3
        %v4727 = vmul.f32 %v4471, -0.3
        %v4728 = vmul.f32 %v4472, -0.3
        %v4729 = vmul.f32 %v4473, -0.3
        %v4730 = vmul.f32 %v4474, -0.3
        %v4731 = vmul.f32 %v4475, -0.3
        %v4732 = vmul.f32 %v4476, -0.3
        %v4733 = vmul.f32 %v4477, -0.3
        %v4734 = vmul.f32 %v4478, -0.3
        %v4735 = vmul.f32 %v4479, -0.3
        %v4736 = vmul.f32 %v4480, -0.3
        %v4737 = vmul.f32 %v4481, -0.3
        %v4738 = vmul.f32 %v4482, -0.3
        %v4739 = vmul.f32 %v4483, -0.3
        %v4740 = vmul.f32 %v4484, -0.3
        %v4741 = vmul.f32 %v4485, -0.3
        %v4742 = vmul.f32 %v4486, -0.3
        %v4743 = vmul.f32 %v4487, -0.3
        %v4744 = vmul.f32 %v4488, -0.3
        %v4745 = vmul.f32 %v4489, -0.3
        %v4746 = vmul.f32 %v4490, -0.3
        %v4747 = vmul.f32 %v4491, -0.3
        %vm4748 = vcmp.le.f32.partialorder %v140, -0.3
        %vm4749 = vcmp.le.f32.partialorder %v141, -0.3
        %vm4750 = vcmp.le.f32.partialorder %v142, -0.3
        %vm4751 = vcmp.le.f32.partialorder %v143, -0.3
        %vm4752 = vcmp.le.f32.partialorder %v144, -0.3
        %vm4753 = vcmp.le.f32.partialorder %v145, -0.3
        %vm4754 = vcmp.le.f32.partialorder %v146, -0.3
        %vm4755 = vcmp.le.f32.partialorder %v147, -0.3
        %vm4756 = vcmp.le.f32.partialorder %v148, -0.3
        %vm4757 = vcmp.le.f32.partialorder %v149, -0.3
        %vm4758 = vcmp.le.f32.partialorder %v150, -0.3
        %vm4759 = vcmp.le.f32.partialorder %v151, -0.3
        %vm4760 = vcmp.le.f32.partialorder %v152, -0.3
        %vm4761 = vcmp.le.f32.partialorder %v153, -0.3
        %vm4762 = vcmp.le.f32.partialorder %v154, -0.3
        %vm4763 = vcmp.le.f32.partialorder %v155, -0.3
        %vm4764 = vcmp.le.f32.partialorder %v156, -0.3
        %vm4765 = vcmp.le.f32.partialorder %v157, -0.3
        %vm4766 = vcmp.le.f32.partialorder %v158, -0.3
        %vm4767 = vcmp.le.f32.partialorder %v159, -0.3
        %vm4768 = vcmp.le.f32.partialorder %v160, -0.3
        %vm4769 = vcmp.le.f32.partialorder %v161, -0.3
        %vm4770 = vcmp.le.f32.partialorder %v162, -0.3
        %vm4771 = vcmp.le.f32.partialorder %v163, -0.3
        %vm4772 = vcmp.le.f32.partialorder %v164, -0.3
        %vm4773 = vcmp.le.f32.partialorder %v165, -0.3
        %vm4774 = vcmp.le.f32.partialorder %v166, -0.3
        %vm4775 = vcmp.le.f32.partialorder %v167, -0.3
        %vm4776 = vcmp.le.f32.partialorder %v168, -0.3
        %vm4777 = vcmp.le.f32.partialorder %v169, -0.3
        %vm4778 = vcmp.le.f32.partialorder %v170, -0.3
        %vm4779 = vcmp.le.f32.partialorder %v171, -0.3
        %vm4780 = vcmp.le.f32.partialorder %v172, -0.3
        %vm4781 = vcmp.le.f32.partialorder %v173, -0.3
        %vm4782 = vcmp.le.f32.partialorder %v174, -0.3
        %vm4783 = vcmp.le.f32.partialorder %v175, -0.3
        %vm4784 = vcmp.le.f32.partialorder %v176, -0.3
        %vm4785 = vcmp.le.f32.partialorder %v177, -0.3
        %vm4786 = vcmp.le.f32.partialorder %v178, -0.3
        %vm4787 = vcmp.le.f32.partialorder %v179, -0.3
        %vm4788 = vcmp.le.f32.partialorder %v180, -0.3
        %vm4789 = vcmp.le.f32.partialorder %v181, -0.3
        %vm4790 = vcmp.le.f32.partialorder %v182, -0.3
        %vm4791 = vcmp.le.f32.partialorder %v183, -0.3
        %vm4792 = vcmp.le.f32.partialorder %v184, -0.3
        %vm4793 = vcmp.le.f32.partialorder %v185, -0.3
        %vm4794 = vcmp.le.f32.partialorder %v186, -0.3
        %vm4795 = vcmp.le.f32.partialorder %v187, -0.3
        %vm4796 = vcmp.le.f32.partialorder %v188, -0.3
        %vm4797 = vcmp.le.f32.partialorder %v189, -0.3
        %vm4798 = vcmp.le.f32.partialorder %v190, -0.3
        %vm4799 = vcmp.le.f32.partialorder %v191, -0.3
        %vm4800 = vcmp.le.f32.partialorder %v192, -0.3
        %vm4801 = vcmp.le.f32.partialorder %v193, -0.3
        %vm4802 = vcmp.le.f32.partialorder %v194, -0.3
        %vm4803 = vcmp.le.f32.partialorder %v195, -0.3
        %vm4804 = vcmp.le.f32.partialorder %v196, -0.3
        %vm4805 = vcmp.le.f32.partialorder %v197, -0.3
        %vm4806 = vcmp.le.f32.partialorder %v198, -0.3
        %vm4807 = vcmp.le.f32.partialorder %v199, -0.3
        %vm4808 = vcmp.le.f32.partialorder %v200, -0.3
        %vm4809 = vcmp.le.f32.partialorder %v201, -0.3
        %vm4810 = vcmp.le.f32.partialorder %v202, -0.3
        %vm4811 = vcmp.le.f32.partialorder %v203, -0.3
        %vm4812 = vcmp.le.f32.partialorder %v204, -0.3
        %vm4813 = vcmp.le.f32.partialorder %v205, -0.3
        %vm4814 = vcmp.le.f32.partialorder %v206, -0.3
        %vm4815 = vcmp.le.f32.partialorder %v207, -0.3
        %vm4816 = vcmp.le.f32.partialorder %v208, -0.3
        %vm4817 = vcmp.le.f32.partialorder %v209, -0.3
        %vm4818 = vcmp.le.f32.partialorder %v210, -0.3
        %vm4819 = vcmp.le.f32.partialorder %v211, -0.3
        %vm4820 = vcmp.le.f32.partialorder %v212, -0.3
        %vm4821 = vcmp.le.f32.partialorder %v213, -0.3
        %vm4822 = vcmp.le.f32.partialorder %v214, -0.3
        %vm4823 = vcmp.le.f32.partialorder %v215, -0.3
        %vm4824 = vcmp.le.f32.partialorder %v216, -0.3
        %vm4825 = vcmp.le.f32.partialorder %v217, -0.3
        %vm4826 = vcmp.le.f32.partialorder %v218, -0.3
        %vm4827 = vcmp.le.f32.partialorder %v219, -0.3
        %vm4828 = vcmp.le.f32.partialorder %v220, -0.3
        %vm4829 = vcmp.le.f32.partialorder %v221, -0.3
        %vm4830 = vcmp.le.f32.partialorder %v222, -0.3
        %vm4831 = vcmp.le.f32.partialorder %v223, -0.3
        %vm4832 = vcmp.le.f32.partialorder %v224, -0.3
        %vm4833 = vcmp.le.f32.partialorder %v225, -0.3
        %vm4834 = vcmp.le.f32.partialorder %v226, -0.3
        %vm4835 = vcmp.le.f32.partialorder %v227, -0.3
        %vm4836 = vcmp.le.f32.partialorder %v228, -0.3
        %vm4837 = vcmp.le.f32.partialorder %v229, -0.3
        %vm4838 = vcmp.le.f32.partialorder %v230, -0.3
        %vm4839 = vcmp.le.f32.partialorder %v231, -0.3
        %vm4840 = vcmp.le.f32.partialorder %v232, -0.3
        %vm4841 = vcmp.le.f32.partialorder %v233, -0.3
        %vm4842 = vcmp.le.f32.partialorder %v234, -0.3
        %vm4843 = vcmp.le.f32.partialorder %v235, -0.3
        %vm4844 = vcmp.le.f32.partialorder %v236, -0.3
        %vm4845 = vcmp.le.f32.partialorder %v237, -0.3
        %vm4846 = vcmp.le.f32.partialorder %v238, -0.3
        %vm4847 = vcmp.le.f32.partialorder %v239, -0.3
        %vm4848 = vcmp.le.f32.partialorder %v240, -0.3
        %vm4849 = vcmp.le.f32.partialorder %v241, -0.3
        %vm4850 = vcmp.le.f32.partialorder %v242, -0.3
        %vm4851 = vcmp.le.f32.partialorder %v243, -0.3
        %vm4852 = vcmp.le.f32.partialorder %v244, -0.3
        %vm4853 = vcmp.le.f32.partialorder %v245, -0.3
        %vm4854 = vcmp.le.f32.partialorder %v246, -0.3
        %vm4855 = vcmp.le.f32.partialorder %v247, -0.3
        %vm4856 = vcmp.le.f32.partialorder %v248, -0.3
        %vm4857 = vcmp.le.f32.partialorder %v249, -0.3
        %vm4858 = vcmp.le.f32.partialorder %v250, -0.3
        %vm4859 = vcmp.le.f32.partialorder %v251, -0.3
        %vm4860 = vcmp.le.f32.partialorder %v252, -0.3
        %vm4861 = vcmp.le.f32.partialorder %v253, -0.3
        %vm4862 = vcmp.le.f32.partialorder %v254, -0.3
        %vm4863 = vcmp.le.f32.partialorder %v255, -0.3
        %vm4864 = vcmp.le.f32.partialorder %v256, -0.3
        %vm4865 = vcmp.le.f32.partialorder %v257, -0.3
        %vm4866 = vcmp.le.f32.partialorder %v258, -0.3
        %vm4867 = vcmp.le.f32.partialorder %v259, -0.3
        %vm4868 = vcmp.le.f32.partialorder %v260, -0.3
        %vm4869 = vcmp.le.f32.partialorder %v261, -0.3
        %vm4870 = vcmp.le.f32.partialorder %v262, -0.3
        %vm4871 = vcmp.le.f32.partialorder %v263, -0.3
        %vm4872 = vcmp.le.f32.partialorder %v264, -0.3
        %vm4873 = vcmp.le.f32.partialorder %v265, -0.3
        %vm4874 = vcmp.le.f32.partialorder %v266, -0.3
        %vm4875 = vcmp.le.f32.partialorder %v267, -0.3
        %vm4876 = vcmp.le.f32.partialorder %v268, -0.3
        %vm4877 = vcmp.le.f32.partialorder %v269, -0.3
        %vm4878 = vcmp.le.f32.partialorder %v270, -0.3
        %vm4879 = vcmp.le.f32.partialorder %v271, -0.3
        %vm4880 = vcmp.le.f32.partialorder %v272, -0.3
        %vm4881 = vcmp.le.f32.partialorder %v273, -0.3
        %vm4882 = vcmp.le.f32.partialorder %v274, -0.3
        %vm4883 = vcmp.le.f32.partialorder %v275, -0.3
        %vm4884 = vcmp.le.f32.partialorder %v276, -0.3
        %vm4885 = vcmp.le.f32.partialorder %v277, -0.3
        %vm4886 = vcmp.le.f32.partialorder %v278, -0.3
        %vm4887 = vcmp.le.f32.partialorder %v279, -0.3
        %vm4888 = vcmp.le.f32.partialorder %v280, -0.3
        %vm4889 = vcmp.le.f32.partialorder %v281, -0.3
        %vm4890 = vcmp.le.f32.partialorder %v282, -0.3
        %vm4891 = vcmp.le.f32.partialorder %v283, -0.3
        %vm4892 = vcmp.le.f32.partialorder %v284, -0.3
        %vm4893 = vcmp.le.f32.partialorder %v285, -0.3
        %vm4894 = vcmp.le.f32.partialorder %v286, -0.3
        %vm4895 = vcmp.le.f32.partialorder %v287, -0.3
        %vm4896 = vcmp.le.f32.partialorder %v288, -0.3
        %vm4897 = vcmp.le.f32.partialorder %v289, -0.3
        %vm4898 = vcmp.le.f32.partialorder %v290, -0.3
        %vm4899 = vcmp.le.f32.partialorder %v291, -0.3
        %vm4900 = vcmp.le.f32.partialorder %v292, -0.3
        %vm4901 = vcmp.le.f32.partialorder %v293, -0.3
        %vm4902 = vcmp.le.f32.partialorder %v294, -0.3
        %vm4903 = vcmp.le.f32.partialorder %v295, -0.3
        %vm4904 = vcmp.le.f32.partialorder %v296, -0.3
        %vm4905 = vcmp.le.f32.partialorder %v297, -0.3
        %vm4906 = vcmp.le.f32.partialorder %v298, -0.3
        %vm4907 = vcmp.le.f32.partialorder %v299, -0.3
        %vm4908 = vcmp.le.f32.partialorder %v300, -0.3
        %vm4909 = vcmp.le.f32.partialorder %v301, -0.3
        %vm4910 = vcmp.le.f32.partialorder %v302, -0.3
        %vm4911 = vcmp.le.f32.partialorder %v303, -0.3
        %vm4912 = vcmp.le.f32.partialorder %v304, -0.3
        %vm4913 = vcmp.le.f32.partialorder %v305, -0.3
        %vm4914 = vcmp.le.f32.partialorder %v306, -0.3
        %vm4915 = vcmp.le.f32.partialorder %v307, -0.3
        %vm4916 = vcmp.le.f32.partialorder %v308, -0.3
        %vm4917 = vcmp.le.f32.partialorder %v309, -0.3
        %vm4918 = vcmp.le.f32.partialorder %v310, -0.3
        %vm4919 = vcmp.le.f32.partialorder %v311, -0.3
        %vm4920 = vcmp.le.f32.partialorder %v312, -0.3
        %vm4921 = vcmp.le.f32.partialorder %v313, -0.3
        %vm4922 = vcmp.le.f32.partialorder %v314, -0.3
        %vm4923 = vcmp.le.f32.partialorder %v315, -0.3
        %vm4924 = vcmp.le.f32.partialorder %v316, -0.3
        %vm4925 = vcmp.le.f32.partialorder %v317, -0.3
        %vm4926 = vcmp.le.f32.partialorder %v318, -0.3
        %vm4927 = vcmp.le.f32.partialorder %v319, -0.3
        %vm4928 = vcmp.le.f32.partialorder %v320, -0.3
        %vm4929 = vcmp.le.f32.partialorder %v321, -0.3
        %vm4930 = vcmp.le.f32.partialorder %v322, -0.3
        %vm4931 = vcmp.le.f32.partialorder %v323, -0.3
        %vm4932 = vcmp.le.f32.partialorder %v324, -0.3
        %vm4933 = vcmp.le.f32.partialorder %v325, -0.3
        %vm4934 = vcmp.le.f32.partialorder %v326, -0.3
        %vm4935 = vcmp.le.f32.partialorder %v327, -0.3
        %vm4936 = vcmp.le.f32.partialorder %v328, -0.3
        %vm4937 = vcmp.le.f32.partialorder %v329, -0.3
        %vm4938 = vcmp.le.f32.partialorder %v330, -0.3
        %vm4939 = vcmp.le.f32.partialorder %v331, -0.3
        %vm4940 = vcmp.le.f32.partialorder %v332, -0.3
        %vm4941 = vcmp.le.f32.partialorder %v333, -0.3
        %vm4942 = vcmp.le.f32.partialorder %v334, -0.3
        %vm4943 = vcmp.le.f32.partialorder %v335, -0.3
        %vm4944 = vcmp.le.f32.partialorder %v336, -0.3
        %vm4945 = vcmp.le.f32.partialorder %v337, -0.3
        %vm4946 = vcmp.le.f32.partialorder %v338, -0.3
        %vm4947 = vcmp.le.f32.partialorder %v339, -0.3
        %vm4948 = vcmp.le.f32.partialorder %v340, -0.3
        %vm4949 = vcmp.le.f32.partialorder %v341, -0.3
        %vm4950 = vcmp.le.f32.partialorder %v342, -0.3
        %vm4951 = vcmp.le.f32.partialorder %v343, -0.3
        %vm4952 = vcmp.le.f32.partialorder %v344, -0.3
        %vm4953 = vcmp.le.f32.partialorder %v345, -0.3
        %vm4954 = vcmp.le.f32.partialorder %v346, -0.3
        %vm4955 = vcmp.le.f32.partialorder %v347, -0.3
        %vm4956 = vcmp.le.f32.partialorder %v348, -0.3
        %vm4957 = vcmp.le.f32.partialorder %v349, -0.3
        %vm4958 = vcmp.le.f32.partialorder %v350, -0.3
        %vm4959 = vcmp.le.f32.partialorder %v351, -0.3
        %vm4960 = vcmp.le.f32.partialorder %v352, -0.3
        %vm4961 = vcmp.le.f32.partialorder %v353, -0.3
        %vm4962 = vcmp.le.f32.partialorder %v354, -0.3
        %vm4963 = vcmp.le.f32.partialorder %v355, -0.3
        %vm4964 = vcmp.le.f32.partialorder %v356, -0.3
        %vm4965 = vcmp.le.f32.partialorder %v357, -0.3
        %vm4966 = vcmp.le.f32.partialorder %v358, -0.3
        %vm4967 = vcmp.le.f32.partialorder %v359, -0.3
        %vm4968 = vcmp.le.f32.partialorder %v360, -0.3
        %vm4969 = vcmp.le.f32.partialorder %v361, -0.3
        %vm4970 = vcmp.le.f32.partialorder %v362, -0.3
        %vm4971 = vcmp.le.f32.partialorder %v363, -0.3
        %vm4972 = vcmp.le.f32.partialorder %v364, -0.3
        %vm4973 = vcmp.le.f32.partialorder %v365, -0.3
        %vm4974 = vcmp.le.f32.partialorder %v366, -0.3
        %vm4975 = vcmp.le.f32.partialorder %v367, -0.3
        %vm4976 = vcmp.le.f32.partialorder %v368, -0.3
        %vm4977 = vcmp.le.f32.partialorder %v369, -0.3
        %vm4978 = vcmp.le.f32.partialorder %v370, -0.3
        %vm4979 = vcmp.le.f32.partialorder %v371, -0.3
        %vm4980 = vcmp.le.f32.partialorder %v372, -0.3
        %vm4981 = vcmp.le.f32.partialorder %v373, -0.3
        %vm4982 = vcmp.le.f32.partialorder %v374, -0.3
        %vm4983 = vcmp.le.f32.partialorder %v375, -0.3
        %vm4984 = vcmp.le.f32.partialorder %v376, -0.3
        %vm4985 = vcmp.le.f32.partialorder %v377, -0.3
        %vm4986 = vcmp.le.f32.partialorder %v378, -0.3
        %vm4987 = vcmp.le.f32.partialorder %v379, -0.3
        %vm4988 = vcmp.le.f32.partialorder %v380, -0.3
        %vm4989 = vcmp.le.f32.partialorder %v381, -0.3
        %vm4990 = vcmp.le.f32.partialorder %v382, -0.3
        %vm4991 = vcmp.le.f32.partialorder %v383, -0.3
        %vm4992 = vcmp.le.f32.partialorder %v384, -0.3
        %vm4993 = vcmp.le.f32.partialorder %v385, -0.3
        %vm4994 = vcmp.le.f32.partialorder %v386, -0.3
        %vm4995 = vcmp.le.f32.partialorder %v387, -0.3
        %vm4996 = vcmp.le.f32.partialorder %v388, -0.3
        %vm4997 = vcmp.le.f32.partialorder %v389, -0.3
        %vm4998 = vcmp.le.f32.partialorder %v390, -0.3
        %vm4999 = vcmp.le.f32.partialorder %v391, -0.3
        %vm5000 = vcmp.le.f32.partialorder %v392, -0.3
        %vm5001 = vcmp.le.f32.partialorder %v393, -0.3
        %vm5002 = vcmp.le.f32.partialorder %v394, -0.3
        %vm5003 = vcmp.le.f32.partialorder %v395, -0.3
        %v5004 = vsel %vm4748, 1, 0
        %v5005 = vsel %vm4749, 1, 0
        %v5006 = vsel %vm4750, 1, 0
        %v5007 = vsel %vm4751, 1, 0
        %v5008 = vsel %vm4752, 1, 0
        %v5009 = vsel %vm4753, 1, 0
        %v5010 = vsel %vm4754, 1, 0
        %v5011 = vsel %vm4755, 1, 0
        %v5012 = vsel %vm4756, 1, 0
        %v5013 = vsel %vm4757, 1, 0
        %v5014 = vsel %vm4758, 1, 0
        %v5015 = vsel %vm4759, 1, 0
        %v5016 = vsel %vm4760, 1, 0
        %v5017 = vsel %vm4761, 1, 0
        %v5018 = vsel %vm4762, 1, 0
        %v5019 = vsel %vm4763, 1, 0
        %v5020 = vsel %vm4764, 1, 0
        %v5021 = vsel %vm4765, 1, 0
        %v5022 = vsel %vm4766, 1, 0
        %v5023 = vsel %vm4767, 1, 0
        %v5024 = vsel %vm4768, 1, 0
        %v5025 = vsel %vm4769, 1, 0
        %v5026 = vsel %vm4770, 1, 0
        %v5027 = vsel %vm4771, 1, 0
        %v5028 = vsel %vm4772, 1, 0
        %v5029 = vsel %vm4773, 1, 0
        %v5030 = vsel %vm4774, 1, 0
        %v5031 = vsel %vm4775, 1, 0
        %v5032 = vsel %vm4776, 1, 0
        %v5033 = vsel %vm4777, 1, 0
        %v5034 = vsel %vm4778, 1, 0
        %v5035 = vsel %vm4779, 1, 0
        %v5036 = vsel %vm4780, 1, 0
        %v5037 = vsel %vm4781, 1, 0
        %v5038 = vsel %vm4782, 1, 0
        %v5039 = vsel %vm4783, 1, 0
        %v5040 = vsel %vm4784, 1, 0
        %v5041 = vsel %vm4785, 1, 0
        %v5042 = vsel %vm4786, 1, 0
        %v5043 = vsel %vm4787, 1, 0
        %v5044 = vsel %vm4788, 1, 0
        %v5045 = vsel %vm4789, 1, 0
        %v5046 = vsel %vm4790, 1, 0
        %v5047 = vsel %vm4791, 1, 0
        %v5048 = vsel %vm4792, 1, 0
        %v5049 = vsel %vm4793, 1, 0
        %v5050 = vsel %vm4794, 1, 0
        %v5051 = vsel %vm4795, 1, 0
        %v5052 = vsel %vm4796, 1, 0
        %v5053 = vsel %vm4797, 1, 0
        %v5054 = vsel %vm4798, 1, 0
        %v5055 = vsel %vm4799, 1, 0
        %v5056 = vsel %vm4800, 1, 0
        %v5057 = vsel %vm4801, 1, 0
        %v5058 = vsel %vm4802, 1, 0
        %v5059 = vsel %vm4803, 1, 0
        %v5060 = vsel %vm4804, 1, 0
        %v5061 = vsel %vm4805, 1, 0
        %v5062 = vsel %vm4806, 1, 0
        %v5063 = vsel %vm4807, 1, 0
        %v5064 = vsel %vm4808, 1, 0
        %v5065 = vsel %vm4809, 1, 0
        %v5066 = vsel %vm4810, 1, 0
        %v5067 = vsel %vm4811, 1, 0
        %v5068 = vsel %vm4812, 1, 0
        %v5069 = vsel %vm4813, 1, 0
        %v5070 = vsel %vm4814, 1, 0
        %v5071 = vsel %vm4815, 1, 0
        %v5072 = vsel %vm4816, 1, 0
        %v5073 = vsel %vm4817, 1, 0
        %v5074 = vsel %vm4818, 1, 0
        %v5075 = vsel %vm4819, 1, 0
        %v5076 = vsel %vm4820, 1, 0
        %v5077 = vsel %vm4821, 1, 0
        %v5078 = vsel %vm4822, 1, 0
        %v5079 = vsel %vm4823, 1, 0
        %v5080 = vsel %vm4824, 1, 0
        %v5081 = vsel %vm4825, 1, 0
        %v5082 = vsel %vm4826, 1, 0
        %v5083 = vsel %vm4827, 1, 0
        %v5084 = vsel %vm4828, 1, 0
        %v5085 = vsel %vm4829, 1, 0
        %v5086 = vsel %vm4830, 1, 0
        %v5087 = vsel %vm4831, 1, 0
        %v5088 = vsel %vm4832, 1, 0
        %v5089 = vsel %vm4833, 1, 0
        %v5090 = vsel %vm4834, 1, 0
        %v5091 = vsel %vm4835, 1, 0
        %v5092 = vsel %vm4836, 1, 0
        %v5093 = vsel %vm4837, 1, 0
        %v5094 = vsel %vm4838, 1, 0
        %v5095 = vsel %vm4839, 1, 0
        %v5096 = vsel %vm4840, 1, 0
        %v5097 = vsel %vm4841, 1, 0
        %v5098 = vsel %vm4842, 1, 0
        %v5099 = vsel %vm4843, 1, 0
        %v5100 = vsel %vm4844, 1, 0
        %v5101 = vsel %vm4845, 1, 0
        %v5102 = vsel %vm4846, 1, 0
        %v5103 = vsel %vm4847, 1, 0
        %v5104 = vsel %vm4848, 1, 0
        %v5105 = vsel %vm4849, 1, 0
        %v5106 = vsel %vm4850, 1, 0
        %v5107 = vsel %vm4851, 1, 0
        %v5108 = vsel %vm4852, 1, 0
        %v5109 = vsel %vm4853, 1, 0
        %v5110 = vsel %vm4854, 1, 0
        %v5111 = vsel %vm4855, 1, 0
        %v5112 = vsel %vm4856, 1, 0
        %v5113 = vsel %vm4857, 1, 0
        %v5114 = vsel %vm4858, 1, 0
        %v5115 = vsel %vm4859, 1, 0
        %v5116 = vsel %vm4860, 1, 0
        %v5117 = vsel %vm4861, 1, 0
        %v5118 = vsel %vm4862, 1, 0
        %v5119 = vsel %vm4863, 1, 0
        %v5120 = vsel %vm4864, 1, 0
        %v5121 = vsel %vm4865, 1, 0
        %v5122 = vsel %vm4866, 1, 0
        %v5123 = vsel %vm4867, 1, 0
        %v5124 = vsel %vm4868, 1, 0
        %v5125 = vsel %vm4869, 1, 0
        %v5126 = vsel %vm4870, 1, 0
        %v5127 = vsel %vm4871, 1, 0
        %v5128 = vsel %vm4872, 1, 0
        %v5129 = vsel %vm4873, 1, 0
        %v5130 = vsel %vm4874, 1, 0
        %v5131 = vsel %vm4875, 1, 0
        %v5132 = vsel %vm4876, 1, 0
        %v5133 = vsel %vm4877, 1, 0
        %v5134 = vsel %vm4878, 1, 0
        %v5135 = vsel %vm4879, 1, 0
        %v5136 = vsel %vm4880, 1, 0
        %v5137 = vsel %vm4881, 1, 0
        %v5138 = vsel %vm4882, 1, 0
        %v5139 = vsel %vm4883, 1, 0
        %v5140 = vsel %vm4884, 1, 0
        %v5141 = vsel %vm4885, 1, 0
        %v5142 = vsel %vm4886, 1, 0
        %v5143 = vsel %vm4887, 1, 0
        %v5144 = vsel %vm4888, 1, 0
        %v5145 = vsel %vm4889, 1, 0
        %v5146 = vsel %vm4890, 1, 0
        %v5147 = vsel %vm4891, 1, 0
        %v5148 = vsel %vm4892, 1, 0
        %v5149 = vsel %vm4893, 1, 0
        %v5150 = vsel %vm4894, 1, 0
        %v5151 = vsel %vm4895, 1, 0
        %v5152 = vsel %vm4896, 1, 0
        %v5153 = vsel %vm4897, 1, 0
        %v5154 = vsel %vm4898, 1, 0
        %v5155 = vsel %vm4899, 1, 0
        %v5156 = vsel %vm4900, 1, 0
        %v5157 = vsel %vm4901, 1, 0
        %v5158 = vsel %vm4902, 1, 0
        %v5159 = vsel %vm4903, 1, 0
        %v5160 = vsel %vm4904, 1, 0
        %v5161 = vsel %vm4905, 1, 0
        %v5162 = vsel %vm4906, 1, 0
        %v5163 = vsel %vm4907, 1, 0
        %v5164 = vsel %vm4908, 1, 0
        %v5165 = vsel %vm4909, 1, 0
        %v5166 = vsel %vm4910, 1, 0
        %v5167 = vsel %vm4911, 1, 0
        %v5168 = vsel %vm4912, 1, 0
        %v5169 = vsel %vm4913, 1, 0
        %v5170 = vsel %vm4914, 1, 0
        %v5171 = vsel %vm4915, 1, 0
        %v5172 = vsel %vm4916, 1, 0
        %v5173 = vsel %vm4917, 1, 0
        %v5174 = vsel %vm4918, 1, 0
        %v5175 = vsel %vm4919, 1, 0
        %v5176 = vsel %vm4920, 1, 0
        %v5177 = vsel %vm4921, 1, 0
        %v5178 = vsel %vm4922, 1, 0
        %v5179 = vsel %vm4923, 1, 0
        %v5180 = vsel %vm4924, 1, 0
        %v5181 = vsel %vm4925, 1, 0
        %v5182 = vsel %vm4926, 1, 0
        %v5183 = vsel %vm4927, 1, 0
        %v5184 = vsel %vm4928, 1, 0
        %v5185 = vsel %vm4929, 1, 0
        %v5186 = vsel %vm4930, 1, 0
        %v5187 = vsel %vm4931, 1, 0
        %v5188 = vsel %vm4932, 1, 0
        %v5189 = vsel %vm4933, 1, 0
        %v5190 = vsel %vm4934, 1, 0
        %v5191 = vsel %vm4935, 1, 0
        %v5192 = vsel %vm4936, 1, 0
        %v5193 = vsel %vm4937, 1, 0
        %v5194 = vsel %vm4938, 1, 0
        %v5195 = vsel %vm4939, 1, 0
        %v5196 = vsel %vm4940, 1, 0
        %v5197 = vsel %vm4941, 1, 0
        %v5198 = vsel %vm4942, 1, 0
        %v5199 = vsel %vm4943, 1, 0
        %v5200 = vsel %vm4944, 1, 0
        %v5201 = vsel %vm4945, 1, 0
        %v5202 = vsel %vm4946, 1, 0
        %v5203 = vsel %vm4947, 1, 0
        %v5204 = vsel %vm4948, 1, 0
        %v5205 = vsel %vm4949, 1, 0
        %v5206 = vsel %vm4950, 1, 0
        %v5207 = vsel %vm4951, 1, 0
        %v5208 = vsel %vm4952, 1, 0
        %v5209 = vsel %vm4953, 1, 0
        %v5210 = vsel %vm4954, 1, 0
        %v5211 = vsel %vm4955, 1, 0
        %v5212 = vsel %vm4956, 1, 0
        %v5213 = vsel %vm4957, 1, 0
        %v5214 = vsel %vm4958, 1, 0
        %v5215 = vsel %vm4959, 1, 0
        %v5216 = vsel %vm4960, 1, 0
        %v5217 = vsel %vm4961, 1, 0
        %v5218 = vsel %vm4962, 1, 0
        %v5219 = vsel %vm4963, 1, 0
        %v5220 = vsel %vm4964, 1, 0
        %v5221 = vsel %vm4965, 1, 0
        %v5222 = vsel %vm4966, 1, 0
        %v5223 = vsel %vm4967, 1, 0
        %v5224 = vsel %vm4968, 1, 0
        %v5225 = vsel %vm4969, 1, 0
        %v5226 = vsel %vm4970, 1, 0
        %v5227 = vsel %vm4971, 1, 0
        %v5228 = vsel %vm4972, 1, 0
        %v5229 = vsel %vm4973, 1, 0
        %v5230 = vsel %vm4974, 1, 0
        %v5231 = vsel %vm4975, 1, 0
        %v5232 = vsel %vm4976, 1, 0
        %v5233 = vsel %vm4977, 1, 0
        %v5234 = vsel %vm4978, 1, 0
        %v5235 = vsel %vm4979, 1, 0
        %v5236 = vsel %vm4980, 1, 0
        %v5237 = vsel %vm4981, 1, 0
        %v5238 = vsel %vm4982, 1, 0
        %v5239 = vsel %vm4983, 1, 0
        %v5240 = vsel %vm4984, 1, 0
        %v5241 = vsel %vm4985, 1, 0
        %v5242 = vsel %vm4986, 1, 0
        %v5243 = vsel %vm4987, 1, 0
        %v5244 = vsel %vm4988, 1, 0
        %v5245 = vsel %vm4989, 1, 0
        %v5246 = vsel %vm4990, 1, 0
        %v5247 = vsel %vm4991, 1, 0
        %v5248 = vsel %vm4992, 1, 0
        %v5249 = vsel %vm4993, 1, 0
        %v5250 = vsel %vm4994, 1, 0
        %v5251 = vsel %vm4995, 1, 0
        %v5252 = vsel %vm4996, 1, 0
        %v5253 = vsel %vm4997, 1, 0
        %v5254 = vsel %vm4998, 1, 0
        %v5255 = vsel %vm4999, 1, 0
        %v5256 = vsel %vm5000, 1, 0
        %v5257 = vsel %vm5001, 1, 0
        %v5258 = vsel %vm5002, 1, 0
        %v5259 = vsel %vm5003, 1, 0
        %v5260 = vcvt.s32.f32 %v5004
        %v5261 = vcvt.s32.f32 %v5005
        %v5262 = vcvt.s32.f32 %v5006
        %v5263 = vcvt.s32.f32 %v5007
        %v5264 = vcvt.s32.f32 %v5008
        %v5265 = vcvt.s32.f32 %v5009
        %v5266 = vcvt.s32.f32 %v5010
        %v5267 = vcvt.s32.f32 %v5011
        %v5268 = vcvt.s32.f32 %v5012
        %v5269 = vcvt.s32.f32 %v5013
        %v5270 = vcvt.s32.f32 %v5014
        %v5271 = vcvt.s32.f32 %v5015
        %v5272 = vcvt.s32.f32 %v5016
        %v5273 = vcvt.s32.f32 %v5017
        %v5274 = vcvt.s32.f32 %v5018
        %v5275 = vcvt.s32.f32 %v5019
        %v5276 = vcvt.s32.f32 %v5020
        %v5277 = vcvt.s32.f32 %v5021
        %v5278 = vcvt.s32.f32 %v5022
        %v5279 = vcvt.s32.f32 %v5023
        %v5280 = vcvt.s32.f32 %v5024
        %v5281 = vcvt.s32.f32 %v5025
        %v5282 = vcvt.s32.f32 %v5026
        %v5283 = vcvt.s32.f32 %v5027
        %v5284 = vcvt.s32.f32 %v5028
        %v5285 = vcvt.s32.f32 %v5029
        %v5286 = vcvt.s32.f32 %v5030
        %v5287 = vcvt.s32.f32 %v5031
        %v5288 = vcvt.s32.f32 %v5032
        %v5289 = vcvt.s32.f32 %v5033
        %v5290 = vcvt.s32.f32 %v5034
        %v5291 = vcvt.s32.f32 %v5035
        %v5292 = vcvt.s32.f32 %v5036
        %v5293 = vcvt.s32.f32 %v5037
        %v5294 = vcvt.s32.f32 %v5038
        %v5295 = vcvt.s32.f32 %v5039
        %v5296 = vcvt.s32.f32 %v5040
        %v5297 = vcvt.s32.f32 %v5041
        %v5298 = vcvt.s32.f32 %v5042
        %v5299 = vcvt.s32.f32 %v5043
        %v5300 = vcvt.s32.f32 %v5044
        %v5301 = vcvt.s32.f32 %v5045
        %v5302 = vcvt.s32.f32 %v5046
        %v5303 = vcvt.s32.f32 %v5047
        %v5304 = vcvt.s32.f32 %v5048
        %v5305 = vcvt.s32.f32 %v5049
        %v5306 = vcvt.s32.f32 %v5050
        %v5307 = vcvt.s32.f32 %v5051
        %v5308 = vcvt.s32.f32 %v5052
        %v5309 = vcvt.s32.f32 %v5053
        %v5310 = vcvt.s32.f32 %v5054
        %v5311 = vcvt.s32.f32 %v5055
        %v5312 = vcvt.s32.f32 %v5056
        %v5313 = vcvt.s32.f32 %v5057
        %v5314 = vcvt.s32.f32 %v5058
        %v5315 = vcvt.s32.f32 %v5059
        %v5316 = vcvt.s32.f32 %v5060
        %v5317 = vcvt.s32.f32 %v5061
        %v5318 = vcvt.s32.f32 %v5062
        %v5319 = vcvt.s32.f32 %v5063
        %v5320 = vcvt.s32.f32 %v5064
        %v5321 = vcvt.s32.f32 %v5065
        %v5322 = vcvt.s32.f32 %v5066
        %v5323 = vcvt.s32.f32 %v5067
        %v5324 = vcvt.s32.f32 %v5068
        %v5325 = vcvt.s32.f32 %v5069
        %v5326 = vcvt.s32.f32 %v5070
        %v5327 = vcvt.s32.f32 %v5071
        %v5328 = vcvt.s32.f32 %v5072
        %v5329 = vcvt.s32.f32 %v5073
        %v5330 = vcvt.s32.f32 %v5074
        %v5331 = vcvt.s32.f32 %v5075
        %v5332 = vcvt.s32.f32 %v5076
        %v5333 = vcvt.s32.f32 %v5077
        %v5334 = vcvt.s32.f32 %v5078
        %v5335 = vcvt.s32.f32 %v5079
        %v5336 = vcvt.s32.f32 %v5080
        %v5337 = vcvt.s32.f32 %v5081
        %v5338 = vcvt.s32.f32 %v5082
        %v5339 = vcvt.s32.f32 %v5083
        %v5340 = vcvt.s32.f32 %v5084
        %v5341 = vcvt.s32.f32 %v5085
        %v5342 = vcvt.s32.f32 %v5086
        %v5343 = vcvt.s32.f32 %v5087
        %v5344 = vcvt.s32.f32 %v5088
        %v5345 = vcvt.s32.f32 %v5089
        %v5346 = vcvt.s32.f32 %v5090
        %v5347 = vcvt.s32.f32 %v5091
        %v5348 = vcvt.s32.f32 %v5092
        %v5349 = vcvt.s32.f32 %v5093
        %v5350 = vcvt.s32.f32 %v5094
        %v5351 = vcvt.s32.f32 %v5095
        %v5352 = vcvt.s32.f32 %v5096
        %v5353 = vcvt.s32.f32 %v5097
        %v5354 = vcvt.s32.f32 %v5098
        %v5355 = vcvt.s32.f32 %v5099
        %v5356 = vcvt.s32.f32 %v5100
        %v5357 = vcvt.s32.f32 %v5101
        %v5358 = vcvt.s32.f32 %v5102
        %v5359 = vcvt.s32.f32 %v5103
        %v5360 = vcvt.s32.f32 %v5104
        %v5361 = vcvt.s32.f32 %v5105
        %v5362 = vcvt.s32.f32 %v5106
        %v5363 = vcvt.s32.f32 %v5107
        %v5364 = vcvt.s32.f32 %v5108
        %v5365 = vcvt.s32.f32 %v5109
        %v5366 = vcvt.s32.f32 %v5110
        %v5367 = vcvt.s32.f32 %v5111
        %v5368 = vcvt.s32.f32 %v5112
        %v5369 = vcvt.s32.f32 %v5113
        %v5370 = vcvt.s32.f32 %v5114
        %v5371 = vcvt.s32.f32 %v5115
        %v5372 = vcvt.s32.f32 %v5116
        %v5373 = vcvt.s32.f32 %v5117
        %v5374 = vcvt.s32.f32 %v5118
        %v5375 = vcvt.s32.f32 %v5119
        %v5376 = vcvt.s32.f32 %v5120
        %v5377 = vcvt.s32.f32 %v5121
        %v5378 = vcvt.s32.f32 %v5122
        %v5379 = vcvt.s32.f32 %v5123
        %v5380 = vcvt.s32.f32 %v5124
        %v5381 = vcvt.s32.f32 %v5125
        %v5382 = vcvt.s32.f32 %v5126
        %v5383 = vcvt.s32.f32 %v5127
        %v5384 = vcvt.s32.f32 %v5128
        %v5385 = vcvt.s32.f32 %v5129
        %v5386 = vcvt.s32.f32 %v5130
        %v5387 = vcvt.s32.f32 %v5131
        %v5388 = vcvt.s32.f32 %v5132
        %v5389 = vcvt.s32.f32 %v5133
        %v5390 = vcvt.s32.f32 %v5134
        %v5391 = vcvt.s32.f32 %v5135
        %v5392 = vcvt.s32.f32 %v5136
        %v5393 = vcvt.s32.f32 %v5137
        %v5394 = vcvt.s32.f32 %v5138
        %v5395 = vcvt.s32.f32 %v5139
        %v5396 = vcvt.s32.f32 %v5140
        %v5397 = vcvt.s32.f32 %v5141
        %v5398 = vcvt.s32.f32 %v5142
        %v5399 = vcvt.s32.f32 %v5143
        %v5400 = vcvt.s32.f32 %v5144
        %v5401 = vcvt.s32.f32 %v5145
        %v5402 = vcvt.s32.f32 %v5146
        %v5403 = vcvt.s32.f32 %v5147
        %v5404 = vcvt.s32.f32 %v5148
        %v5405 = vcvt.s32.f32 %v5149
        %v5406 = vcvt.s32.f32 %v5150
        %v5407 = vcvt.s32.f32 %v5151
        %v5408 = vcvt.s32.f32 %v5152
        %v5409 = vcvt.s32.f32 %v5153
        %v5410 = vcvt.s32.f32 %v5154
        %v5411 = vcvt.s32.f32 %v5155
        %v5412 = vcvt.s32.f32 %v5156
        %v5413 = vcvt.s32.f32 %v5157
        %v5414 = vcvt.s32.f32 %v5158
        %v5415 = vcvt.s32.f32 %v5159
        %v5416 = vcvt.s32.f32 %v5160
        %v5417 = vcvt.s32.f32 %v5161
        %v5418 = vcvt.s32.f32 %v5162
        %v5419 = vcvt.s32.f32 %v5163
        %v5420 = vcvt.s32.f32 %v5164
        %v5421 = vcvt.s32.f32 %v5165
        %v5422 = vcvt.s32.f32 %v5166
        %v5423 = vcvt.s32.f32 %v5167
        %v5424 = vcvt.s32.f32 %v5168
        %v5425 = vcvt.s32.f32 %v5169
        %v5426 = vcvt.s32.f32 %v5170
        %v5427 = vcvt.s32.f32 %v5171
        %v5428 = vcvt.s32.f32 %v5172
        %v5429 = vcvt.s32.f32 %v5173
        %v5430 = vcvt.s32.f32 %v5174
        %v5431 = vcvt.s32.f32 %v5175
        %v5432 = vcvt.s32.f32 %v5176
        %v5433 = vcvt.s32.f32 %v5177
        %v5434 = vcvt.s32.f32 %v5178
        %v5435 = vcvt.s32.f32 %v5179
        %v5436 = vcvt.s32.f32 %v5180
        %v5437 = vcvt.s32.f32 %v5181
        %v5438 = vcvt.s32.f32 %v5182
        %v5439 = vcvt.s32.f32 %v5183
        %v5440 = vcvt.s32.f32 %v5184
        %v5441 = vcvt.s32.f32 %v5185
        %v5442 = vcvt.s32.f32 %v5186
        %v5443 = vcvt.s32.f32 %v5187
        %v5444 = vcvt.s32.f32 %v5188
        %v5445 = vcvt.s32.f32 %v5189
        %v5446 = vcvt.s32.f32 %v5190
        %v5447 = vcvt.s32.f32 %v5191
        %v5448 = vcvt.s32.f32 %v5192
        %v5449 = vcvt.s32.f32 %v5193
        %v5450 = vcvt.s32.f32 %v5194
        %v5451 = vcvt.s32.f32 %v5195
        %v5452 = vcvt.s32.f32 %v5196
        %v5453 = vcvt.s32.f32 %v5197
        %v5454 = vcvt.s32.f32 %v5198
        %v5455 = vcvt.s32.f32 %v5199
        %v5456 = vcvt.s32.f32 %v5200
        %v5457 = vcvt.s32.f32 %v5201
        %v5458 = vcvt.s32.f32 %v5202
        %v5459 = vcvt.s32.f32 %v5203
        %v5460 = vcvt.s32.f32 %v5204
        %v5461 = vcvt.s32.f32 %v5205
        %v5462 = vcvt.s32.f32 %v5206
        %v5463 = vcvt.s32.f32 %v5207
        %v5464 = vcvt.s32.f32 %v5208
        %v5465 = vcvt.s32.f32 %v5209
        %v5466 = vcvt.s32.f32 %v5210
        %v5467 = vcvt.s32.f32 %v5211
        %v5468 = vcvt.s32.f32 %v5212
        %v5469 = vcvt.s32.f32 %v5213
        %v5470 = vcvt.s32.f32 %v5214
        %v5471 = vcvt.s32.f32 %v5215
        %v5472 = vcvt.s32.f32 %v5216
        %v5473 = vcvt.s32.f32 %v5217
        %v5474 = vcvt.s32.f32 %v5218
        %v5475 = vcvt.s32.f32 %v5219
        %v5476 = vcvt.s32.f32 %v5220
        %v5477 = vcvt.s32.f32 %v5221
        %v5478 = vcvt.s32.f32 %v5222
        %v5479 = vcvt.s32.f32 %v5223
        %v5480 = vcvt.s32.f32 %v5224
        %v5481 = vcvt.s32.f32 %v5225
        %v5482 = vcvt.s32.f32 %v5226
        %v5483 = vcvt.s32.f32 %v5227
        %v5484 = vcvt.s32.f32 %v5228
        %v5485 = vcvt.s32.f32 %v5229
        %v5486 = vcvt.s32.f32 %v5230
        %v5487 = vcvt.s32.f32 %v5231
        %v5488 = vcvt.s32.f32 %v5232
        %v5489 = vcvt.s32.f32 %v5233
        %v5490 = vcvt.s32.f32 %v5234
        %v5491 = vcvt.s32.f32 %v5235
        %v5492 = vcvt.s32.f32 %v5236
        %v5493 = vcvt.s32.f32 %v5237
        %v5494 = vcvt.s32.f32 %v5238
        %v5495 = vcvt.s32.f32 %v5239
        %v5496 = vcvt.s32.f32 %v5240
        %v5497 = vcvt.s32.f32 %v5241
        %v5498 = vcvt.s32.f32 %v5242
        %v5499 = vcvt.s32.f32 %v5243
        %v5500 = vcvt.s32.f32 %v5244
        %v5501 = vcvt.s32.f32 %v5245
        %v5502 = vcvt.s32.f32 %v5246
        %v5503 = vcvt.s32.f32 %v5247
        %v5504 = vcvt.s32.f32 %v5248
        %v5505 = vcvt.s32.f32 %v5249
        %v5506 = vcvt.s32.f32 %v5250
        %v5507 = vcvt.s32.f32 %v5251
        %v5508 = vcvt.s32.f32 %v5252
        %v5509 = vcvt.s32.f32 %v5253
        %v5510 = vcvt.s32.f32 %v5254
        %v5511 = vcvt.s32.f32 %v5255
        %v5512 = vcvt.s32.f32 %v5256
        %v5513 = vcvt.s32.f32 %v5257
        %v5514 = vcvt.s32.f32 %v5258
        %v5515 = vcvt.s32.f32 %v5259
        %v5516 = vmul.f32 %v5260, %v140
        %v5517 = vmul.f32 %v5261, %v141
        %v5518 = vmul.f32 %v5262, %v142
        %v5519 = vmul.f32 %v5263, %v143
        %v5520 = vmul.f32 %v5264, %v144
        %v5521 = vmul.f32 %v5265, %v145
        %v5522 = vmul.f32 %v5266, %v146
        %v5523 = vmul.f32 %v5267, %v147
        %v5524 = vmul.f32 %v5268, %v148
        %v5525 = vmul.f32 %v5269, %v149
        %v5526 = vmul.f32 %v5270, %v150
        %v5527 = vmul.f32 %v5271, %v151
        %v5528 = vmul.f32 %v5272, %v152
        %v5529 = vmul.f32 %v5273, %v153
        %v5530 = vmul.f32 %v5274, %v154
        %v5531 = vmul.f32 %v5275, %v155
        %v5532 = vmul.f32 %v5276, %v156
        %v5533 = vmul.f32 %v5277, %v157
        %v5534 = vmul.f32 %v5278, %v158
        %v5535 = vmul.f32 %v5279, %v159
        %v5536 = vmul.f32 %v5280, %v160
        %v5537 = vmul.f32 %v5281, %v161
        %v5538 = vmul.f32 %v5282, %v162
        %v5539 = vmul.f32 %v5283, %v163
        %v5540 = vmul.f32 %v5284, %v164
        %v5541 = vmul.f32 %v5285, %v165
        %v5542 = vmul.f32 %v5286, %v166
        %v5543 = vmul.f32 %v5287, %v167
        %v5544 = vmul.f32 %v5288, %v168
        %v5545 = vmul.f32 %v5289, %v169
        %v5546 = vmul.f32 %v5290, %v170
        %v5547 = vmul.f32 %v5291, %v171
        %v5548 = vmul.f32 %v5292, %v172
        %v5549 = vmul.f32 %v5293, %v173
        %v5550 = vmul.f32 %v5294, %v174
        %v5551 = vmul.f32 %v5295, %v175
        %v5552 = vmul.f32 %v5296, %v176
        %v5553 = vmul.f32 %v5297, %v177
        %v5554 = vmul.f32 %v5298, %v178
        %v5555 = vmul.f32 %v5299, %v179
        %v5556 = vmul.f32 %v5300, %v180
        %v5557 = vmul.f32 %v5301, %v181
        %v5558 = vmul.f32 %v5302, %v182
        %v5559 = vmul.f32 %v5303, %v183
        %v5560 = vmul.f32 %v5304, %v184
        %v5561 = vmul.f32 %v5305, %v185
        %v5562 = vmul.f32 %v5306, %v186
        %v5563 = vmul.f32 %v5307, %v187
        %v5564 = vmul.f32 %v5308, %v188
        %v5565 = vmul.f32 %v5309, %v189
        %v5566 = vmul.f32 %v5310, %v190
        %v5567 = vmul.f32 %v5311, %v191
        %v5568 = vmul.f32 %v5312, %v192
        %v5569 = vmul.f32 %v5313, %v193
        %v5570 = vmul.f32 %v5314, %v194
        %v5571 = vmul.f32 %v5315, %v195
        %v5572 = vmul.f32 %v5316, %v196
        %v5573 = vmul.f32 %v5317, %v197
        %v5574 = vmul.f32 %v5318, %v198
        %v5575 = vmul.f32 %v5319, %v199
        %v5576 = vmul.f32 %v5320, %v200
        %v5577 = vmul.f32 %v5321, %v201
        %v5578 = vmul.f32 %v5322, %v202
        %v5579 = vmul.f32 %v5323, %v203
        %v5580 = vmul.f32 %v5324, %v204
        %v5581 = vmul.f32 %v5325, %v205
        %v5582 = vmul.f32 %v5326, %v206
        %v5583 = vmul.f32 %v5327, %v207
        %v5584 = vmul.f32 %v5328, %v208
        %v5585 = vmul.f32 %v5329, %v209
        %v5586 = vmul.f32 %v5330, %v210
        %v5587 = vmul.f32 %v5331, %v211
        %v5588 = vmul.f32 %v5332, %v212
        %v5589 = vmul.f32 %v5333, %v213
        %v5590 = vmul.f32 %v5334, %v214
        %v5591 = vmul.f32 %v5335, %v215
        %v5592 = vmul.f32 %v5336, %v216
        %v5593 = vmul.f32 %v5337, %v217
        %v5594 = vmul.f32 %v5338, %v218
        %v5595 = vmul.f32 %v5339, %v219
        %v5596 = vmul.f32 %v5340, %v220
        %v5597 = vmul.f32 %v5341, %v221
        %v5598 = vmul.f32 %v5342, %v222
        %v5599 = vmul.f32 %v5343, %v223
        %v5600 = vmul.f32 %v5344, %v224
        %v5601 = vmul.f32 %v5345, %v225
        %v5602 = vmul.f32 %v5346, %v226
        %v5603 = vmul.f32 %v5347, %v227
        %v5604 = vmul.f32 %v5348, %v228
        %v5605 = vmul.f32 %v5349, %v229
        %v5606 = vmul.f32 %v5350, %v230
        %v5607 = vmul.f32 %v5351, %v231
        %v5608 = vmul.f32 %v5352, %v232
        %v5609 = vmul.f32 %v5353, %v233
        %v5610 = vmul.f32 %v5354, %v234
        %v5611 = vmul.f32 %v5355, %v235
        %v5612 = vmul.f32 %v5356, %v236
        %v5613 = vmul.f32 %v5357, %v237
        %v5614 = vmul.f32 %v5358, %v238
        %v5615 = vmul.f32 %v5359, %v239
        %v5616 = vmul.f32 %v5360, %v240
        %v5617 = vmul.f32 %v5361, %v241
        %v5618 = vmul.f32 %v5362, %v242
        %v5619 = vmul.f32 %v5363, %v243
        %v5620 = vmul.f32 %v5364, %v244
        %v5621 = vmul.f32 %v5365, %v245
        %v5622 = vmul.f32 %v5366, %v246
        %v5623 = vmul.f32 %v5367, %v247
        %v5624 = vmul.f32 %v5368, %v248
        %v5625 = vmul.f32 %v5369, %v249
        %v5626 = vmul.f32 %v5370, %v250
        %v5627 = vmul.f32 %v5371, %v251
        %v5628 = vmul.f32 %v5372, %v252
        %v5629 = vmul.f32 %v5373, %v253
        %v5630 = vmul.f32 %v5374, %v254
        %v5631 = vmul.f32 %v5375, %v255
        %v5632 = vmul.f32 %v5376, %v256
        %v5633 = vmul.f32 %v5377, %v257
        %v5634 = vmul.f32 %v5378, %v258
        %v5635 = vmul.f32 %v5379, %v259
        %v5636 = vmul.f32 %v5380, %v260
        %v5637 = vmul.f32 %v5381, %v261
        %v5638 = vmul.f32 %v5382, %v262
        %v5639 = vmul.f32 %v5383, %v263
        %v5640 = vmul.f32 %v5384, %v264
        %v5641 = vmul.f32 %v5385, %v265
        %v5642 = vmul.f32 %v5386, %v266
        %v5643 = vmul.f32 %v5387, %v267
        %v5644 = vmul.f32 %v5388, %v268
        %v5645 = vmul.f32 %v5389, %v269
        %v5646 = vmul.f32 %v5390, %v270
        %v5647 = vmul.f32 %v5391, %v271
        %v5648 = vmul.f32 %v5392, %v272
        %v5649 = vmul.f32 %v5393, %v273
        %v5650 = vmul.f32 %v5394, %v274
        %v5651 = vmul.f32 %v5395, %v275
        %v5652 = vmul.f32 %v5396, %v276
        %v5653 = vmul.f32 %v5397, %v277
        %v5654 = vmul.f32 %v5398, %v278
        %v5655 = vmul.f32 %v5399, %v279
        %v5656 = vmul.f32 %v5400, %v280
        %v5657 = vmul.f32 %v5401, %v281
        %v5658 = vmul.f32 %v5402, %v282
        %v5659 = vmul.f32 %v5403, %v283
        %v5660 = vmul.f32 %v5404, %v284
        %v5661 = vmul.f32 %v5405, %v285
        %v5662 = vmul.f32 %v5406, %v286
        %v5663 = vmul.f32 %v5407, %v287
        %v5664 = vmul.f32 %v5408, %v288
        %v5665 = vmul.f32 %v5409, %v289
        %v5666 = vmul.f32 %v5410, %v290
        %v5667 = vmul.f32 %v5411, %v291
        %v5668 = vmul.f32 %v5412, %v292
        %v5669 = vmul.f32 %v5413, %v293
        %v5670 = vmul.f32 %v5414, %v294
        %v5671 = vmul.f32 %v5415, %v295
        %v5672 = vmul.f32 %v5416, %v296
        %v5673 = vmul.f32 %v5417, %v297
        %v5674 = vmul.f32 %v5418, %v298
        %v5675 = vmul.f32 %v5419, %v299
        %v5676 = vmul.f32 %v5420, %v300
        %v5677 = vmul.f32 %v5421, %v301
        %v5678 = vmul.f32 %v5422, %v302
        %v5679 = vmul.f32 %v5423, %v303
        %v5680 = vmul.f32 %v5424, %v304
        %v5681 = vmul.f32 %v5425, %v305
        %v5682 = vmul.f32 %v5426, %v306
        %v5683 = vmul.f32 %v5427, %v307
        %v5684 = vmul.f32 %v5428, %v308
        %v5685 = vmul.f32 %v5429, %v309
        %v5686 = vmul.f32 %v5430, %v310
        %v5687 = vmul.f32 %v5431, %v311
        %v5688 = vmul.f32 %v5432, %v312
        %v5689 = vmul.f32 %v5433, %v313
        %v5690 = vmul.f32 %v5434, %v314
        %v5691 = vmul.f32 %v5435, %v315
        %v5692 = vmul.f32 %v5436, %v316
        %v5693 = vmul.f32 %v5437, %v317
        %v5694 = vmul.f32 %v5438, %v318
        %v5695 = vmul.f32 %v5439, %v319
        %v5696 = vmul.f32 %v5440, %v320
        %v5697 = vmul.f32 %v5441, %v321
        %v5698 = vmul.f32 %v5442, %v322
        %v5699 = vmul.f32 %v5443, %v323
        %v5700 = vmul.f32 %v5444, %v324
        %v5701 = vmul.f32 %v5445, %v325
        %v5702 = vmul.f32 %v5446, %v326
        %v5703 = vmul.f32 %v5447, %v327
        %v5704 = vmul.f32 %v5448, %v328
        %v5705 = vmul.f32 %v5449, %v329
        %v5706 = vmul.f32 %v5450, %v330
        %v5707 = vmul.f32 %v5451, %v331
        %v5708 = vmul.f32 %v5452, %v332
        %v5709 = vmul.f32 %v5453, %v333
        %v5710 = vmul.f32 %v5454, %v334
        %v5711 = vmul.f32 %v5455, %v335
        %v5712 = vmul.f32 %v5456, %v336
        %v5713 = vmul.f32 %v5457, %v337
        %v5714 = vmul.f32 %v5458, %v338
        %v5715 = vmul.f32 %v5459, %v339
        %v5716 = vmul.f32 %v5460, %v340
        %v5717 = vmul.f32 %v5461, %v341
        %v5718 = vmul.f32 %v5462, %v342
        %v5719 = vmul.f32 %v5463, %v343
        %v5720 = vmul.f32 %v5464, %v344
        %v5721 = vmul.f32 %v5465, %v345
        %v5722 = vmul.f32 %v5466, %v346
        %v5723 = vmul.f32 %v5467, %v347
        %v5724 = vmul.f32 %v5468, %v348
        %v5725 = vmul.f32 %v5469, %v349
        %v5726 = vmul.f32 %v5470, %v350
        %v5727 = vmul.f32 %v5471, %v351
        %v5728 = vmul.f32 %v5472, %v352
        %v5729 = vmul.f32 %v5473, %v353
        %v5730 = vmul.f32 %v5474, %v354
        %v5731 = vmul.f32 %v5475, %v355
        %v5732 = vmul.f32 %v5476, %v356
        %v5733 = vmul.f32 %v5477, %v357
        %v5734 = vmul.f32 %v5478, %v358
        %v5735 = vmul.f32 %v5479, %v359
        %v5736 = vmul.f32 %v5480, %v360
        %v5737 = vmul.f32 %v5481, %v361
        %v5738 = vmul.f32 %v5482, %v362
        %v5739 = vmul.f32 %v5483, %v363
        %v5740 = vmul.f32 %v5484, %v364
        %v5741 = vmul.f32 %v5485, %v365
        %v5742 = vmul.f32 %v5486, %v366
        %v5743 = vmul.f32 %v5487, %v367
        %v5744 = vmul.f32 %v5488, %v368
        %v5745 = vmul.f32 %v5489, %v369
        %v5746 = vmul.f32 %v5490, %v370
        %v5747 = vmul.f32 %v5491, %v371
        %v5748 = vmul.f32 %v5492, %v372
        %v5749 = vmul.f32 %v5493, %v373
        %v5750 = vmul.f32 %v5494, %v374
        %v5751 = vmul.f32 %v5495, %v375
        %v5752 = vmul.f32 %v5496, %v376
        %v5753 = vmul.f32 %v5497, %v377
        %v5754 = vmul.f32 %v5498, %v378
        %v5755 = vmul.f32 %v5499, %v379
        %v5756 = vmul.f32 %v5500, %v380
        %v5757 = vmul.f32 %v5501, %v381
        %v5758 = vmul.f32 %v5502, %v382
        %v5759 = vmul.f32 %v5503, %v383
        %v5760 = vmul.f32 %v5504, %v384
        %v5761 = vmul.f32 %v5505, %v385
        %v5762 = vmul.f32 %v5506, %v386
        %v5763 = vmul.f32 %v5507, %v387
        %v5764 = vmul.f32 %v5508, %v388
        %v5765 = vmul.f32 %v5509, %v389
        %v5766 = vmul.f32 %v5510, %v390
        %v5767 = vmul.f32 %v5511, %v391
        %v5768 = vmul.f32 %v5512, %v392
        %v5769 = vmul.f32 %v5513, %v393
        %v5770 = vmul.f32 %v5514, %v394
        %v5771 = vmul.f32 %v5515, %v395
        %v5772 = vadd.f32 %v4492, %v5516
        %v5773 = vadd.f32 %v4493, %v5517
        %v5774 = vadd.f32 %v4494, %v5518
        %v5775 = vadd.f32 %v4495, %v5519
        %v5776 = vadd.f32 %v4496, %v5520
        %v5777 = vadd.f32 %v4497, %v5521
        %v5778 = vadd.f32 %v4498, %v5522
        %v5779 = vadd.f32 %v4499, %v5523
        %v5780 = vadd.f32 %v4500, %v5524
        %v5781 = vadd.f32 %v4501, %v5525
        %v5782 = vadd.f32 %v4502, %v5526
        %v5783 = vadd.f32 %v4503, %v5527
        %v5784 = vadd.f32 %v4504, %v5528
        %v5785 = vadd.f32 %v4505, %v5529
        %v5786 = vadd.f32 %v4506, %v5530
        %v5787 = vadd.f32 %v4507, %v5531
        %v5788 = vadd.f32 %v4508, %v5532
        %v5789 = vadd.f32 %v4509, %v5533
        %v5790 = vadd.f32 %v4510, %v5534
        %v5791 = vadd.f32 %v4511, %v5535
        %v5792 = vadd.f32 %v4512, %v5536
        %v5793 = vadd.f32 %v4513, %v5537
        %v5794 = vadd.f32 %v4514, %v5538
        %v5795 = vadd.f32 %v4515, %v5539
        %v5796 = vadd.f32 %v4516, %v5540
        %v5797 = vadd.f32 %v4517, %v5541
        %v5798 = vadd.f32 %v4518, %v5542
        %v5799 = vadd.f32 %v4519, %v5543
        %v5800 = vadd.f32 %v4520, %v5544
        %v5801 = vadd.f32 %v4521, %v5545
        %v5802 = vadd.f32 %v4522, %v5546
        %v5803 = vadd.f32 %v4523, %v5547
        %v5804 = vadd.f32 %v4524, %v5548
        %v5805 = vadd.f32 %v4525, %v5549
        %v5806 = vadd.f32 %v4526, %v5550
        %v5807 = vadd.f32 %v4527, %v5551
        %v5808 = vadd.f32 %v4528, %v5552
        %v5809 = vadd.f32 %v4529, %v5553
        %v5810 = vadd.f32 %v4530, %v5554
        %v5811 = vadd.f32 %v4531, %v5555
        %v5812 = vadd.f32 %v4532, %v5556
        %v5813 = vadd.f32 %v4533, %v5557
        %v5814 = vadd.f32 %v4534, %v5558
        %v5815 = vadd.f32 %v4535, %v5559
        %v5816 = vadd.f32 %v4536, %v5560
        %v5817 = vadd.f32 %v4537, %v5561
        %v5818 = vadd.f32 %v4538, %v5562
        %v5819 = vadd.f32 %v4539, %v5563
        %v5820 = vadd.f32 %v4540, %v5564
        %v5821 = vadd.f32 %v4541, %v5565
        %v5822 = vadd.f32 %v4542, %v5566
        %v5823 = vadd.f32 %v4543, %v5567
        %v5824 = vadd.f32 %v4544, %v5568
        %v5825 = vadd.f32 %v4545, %v5569
        %v5826 = vadd.f32 %v4546, %v5570
        %v5827 = vadd.f32 %v4547, %v5571
        %v5828 = vadd.f32 %v4548, %v5572
        %v5829 = vadd.f32 %v4549, %v5573
        %v5830 = vadd.f32 %v4550, %v5574
        %v5831 = vadd.f32 %v4551, %v5575
        %v5832 = vadd.f32 %v4552, %v5576
        %v5833 = vadd.f32 %v4553, %v5577
        %v5834 = vadd.f32 %v4554, %v5578
        %v5835 = vadd.f32 %v4555, %v5579
        %v5836 = vadd.f32 %v4556, %v5580
        %v5837 = vadd.f32 %v4557, %v5581
        %v5838 = vadd.f32 %v4558, %v5582
        %v5839 = vadd.f32 %v4559, %v5583
        %v5840 = vadd.f32 %v4560, %v5584
        %v5841 = vadd.f32 %v4561, %v5585
        %v5842 = vadd.f32 %v4562, %v5586
        %v5843 = vadd.f32 %v4563, %v5587
        %v5844 = vadd.f32 %v4564, %v5588
        %v5845 = vadd.f32 %v4565, %v5589
        %v5846 = vadd.f32 %v4566, %v5590
        %v5847 = vadd.f32 %v4567, %v5591
        %v5848 = vadd.f32 %v4568, %v5592
        %v5849 = vadd.f32 %v4569, %v5593
        %v5850 = vadd.f32 %v4570, %v5594
        %v5851 = vadd.f32 %v4571, %v5595
        %v5852 = vadd.f32 %v4572, %v5596
        %v5853 = vadd.f32 %v4573, %v5597
        %v5854 = vadd.f32 %v4574, %v5598
        %v5855 = vadd.f32 %v4575, %v5599
        %v5856 = vadd.f32 %v4576, %v5600
        %v5857 = vadd.f32 %v4577, %v5601
        %v5858 = vadd.f32 %v4578, %v5602
        %v5859 = vadd.f32 %v4579, %v5603
        %v5860 = vadd.f32 %v4580, %v5604
        %v5861 = vadd.f32 %v4581, %v5605
        %v5862 = vadd.f32 %v4582, %v5606
        %v5863 = vadd.f32 %v4583, %v5607
        %v5864 = vadd.f32 %v4584, %v5608
        %v5865 = vadd.f32 %v4585, %v5609
        %v5866 = vadd.f32 %v4586, %v5610
        %v5867 = vadd.f32 %v4587, %v5611
        %v5868 = vadd.f32 %v4588, %v5612
        %v5869 = vadd.f32 %v4589, %v5613
        %v5870 = vadd.f32 %v4590, %v5614
        %v5871 = vadd.f32 %v4591, %v5615
        %v5872 = vadd.f32 %v4592, %v5616
        %v5873 = vadd.f32 %v4593, %v5617
        %v5874 = vadd.f32 %v4594, %v5618
        %v5875 = vadd.f32 %v4595, %v5619
        %v5876 = vadd.f32 %v4596, %v5620
        %v5877 = vadd.f32 %v4597, %v5621
        %v5878 = vadd.f32 %v4598, %v5622
        %v5879 = vadd.f32 %v4599, %v5623
        %v5880 = vadd.f32 %v4600, %v5624
        %v5881 = vadd.f32 %v4601, %v5625
        %v5882 = vadd.f32 %v4602, %v5626
        %v5883 = vadd.f32 %v4603, %v5627
        %v5884 = vadd.f32 %v4604, %v5628
        %v5885 = vadd.f32 %v4605, %v5629
        %v5886 = vadd.f32 %v4606, %v5630
        %v5887 = vadd.f32 %v4607, %v5631
        %v5888 = vadd.f32 %v4608, %v5632
        %v5889 = vadd.f32 %v4609, %v5633
        %v5890 = vadd.f32 %v4610, %v5634
        %v5891 = vadd.f32 %v4611, %v5635
        %v5892 = vadd.f32 %v4612, %v5636
        %v5893 = vadd.f32 %v4613, %v5637
        %v5894 = vadd.f32 %v4614, %v5638
        %v5895 = vadd.f32 %v4615, %v5639
        %v5896 = vadd.f32 %v4616, %v5640
        %v5897 = vadd.f32 %v4617, %v5641
        %v5898 = vadd.f32 %v4618, %v5642
        %v5899 = vadd.f32 %v4619, %v5643
        %v5900 = vadd.f32 %v4620, %v5644
        %v5901 = vadd.f32 %v4621, %v5645
        %v5902 = vadd.f32 %v4622, %v5646
        %v5903 = vadd.f32 %v4623, %v5647
        %v5904 = vadd.f32 %v4624, %v5648
        %v5905 = vadd.f32 %v4625, %v5649
        %v5906 = vadd.f32 %v4626, %v5650
        %v5907 = vadd.f32 %v4627, %v5651
        %v5908 = vadd.f32 %v4628, %v5652
        %v5909 = vadd.f32 %v4629, %v5653
        %v5910 = vadd.f32 %v4630, %v5654
        %v5911 = vadd.f32 %v4631, %v5655
        %v5912 = vadd.f32 %v4632, %v5656
        %v5913 = vadd.f32 %v4633, %v5657
        %v5914 = vadd.f32 %v4634, %v5658
        %v5915 = vadd.f32 %v4635, %v5659
        %v5916 = vadd.f32 %v4636, %v5660
        %v5917 = vadd.f32 %v4637, %v5661
        %v5918 = vadd.f32 %v4638, %v5662
        %v5919 = vadd.f32 %v4639, %v5663
        %v5920 = vadd.f32 %v4640, %v5664
        %v5921 = vadd.f32 %v4641, %v5665
        %v5922 = vadd.f32 %v4642, %v5666
        %v5923 = vadd.f32 %v4643, %v5667
        %v5924 = vadd.f32 %v4644, %v5668
        %v5925 = vadd.f32 %v4645, %v5669
        %v5926 = vadd.f32 %v4646, %v5670
        %v5927 = vadd.f32 %v4647, %v5671
        %v5928 = vadd.f32 %v4648, %v5672
        %v5929 = vadd.f32 %v4649, %v5673
        %v5930 = vadd.f32 %v4650, %v5674
        %v5931 = vadd.f32 %v4651, %v5675
        %v5932 = vadd.f32 %v4652, %v5676
        %v5933 = vadd.f32 %v4653, %v5677
        %v5934 = vadd.f32 %v4654, %v5678
        %v5935 = vadd.f32 %v4655, %v5679
        %v5936 = vadd.f32 %v4656, %v5680
        %v5937 = vadd.f32 %v4657, %v5681
        %v5938 = vadd.f32 %v4658, %v5682
        %v5939 = vadd.f32 %v4659, %v5683
        %v5940 = vadd.f32 %v4660, %v5684
        %v5941 = vadd.f32 %v4661, %v5685
        %v5942 = vadd.f32 %v4662, %v5686
        %v5943 = vadd.f32 %v4663, %v5687
        %v5944 = vadd.f32 %v4664, %v5688
        %v5945 = vadd.f32 %v4665, %v5689
        %v5946 = vadd.f32 %v4666, %v5690
        %v5947 = vadd.f32 %v4667, %v5691
        %v5948 = vadd.f32 %v4668, %v5692
        %v5949 = vadd.f32 %v4669, %v5693
        %v5950 = vadd.f32 %v4670, %v5694
        %v5951 = vadd.f32 %v4671, %v5695
        %v5952 = vadd.f32 %v4672, %v5696
        %v5953 = vadd.f32 %v4673, %v5697
        %v5954 = vadd.f32 %v4674, %v5698
        %v5955 = vadd.f32 %v4675, %v5699
        %v5956 = vadd.f32 %v4676, %v5700
        %v5957 = vadd.f32 %v4677, %v5701
        %v5958 = vadd.f32 %v4678, %v5702
        %v5959 = vadd.f32 %v4679, %v5703
        %v5960 = vadd.f32 %v4680, %v5704
        %v5961 = vadd.f32 %v4681, %v5705
        %v5962 = vadd.f32 %v4682, %v5706
        %v5963 = vadd.f32 %v4683, %v5707
        %v5964 = vadd.f32 %v4684, %v5708
        %v5965 = vadd.f32 %v4685, %v5709
        %v5966 = vadd.f32 %v4686, %v5710
        %v5967 = vadd.f32 %v4687, %v5711
        %v5968 = vadd.f32 %v4688, %v5712
        %v5969 = vadd.f32 %v4689, %v5713
        %v5970 = vadd.f32 %v4690, %v5714
        %v5971 = vadd.f32 %v4691, %v5715
        %v5972 = vadd.f32 %v4692, %v5716
        %v5973 = vadd.f32 %v4693, %v5717
        %v5974 = vadd.f32 %v4694, %v5718
        %v5975 = vadd.f32 %v4695, %v5719
        %v5976 = vadd.f32 %v4696, %v5720
        %v5977 = vadd.f32 %v4697, %v5721
        %v5978 = vadd.f32 %v4698, %v5722
        %v5979 = vadd.f32 %v4699, %v5723
        %v5980 = vadd.f32 %v4700, %v5724
        %v5981 = vadd.f32 %v4701, %v5725
        %v5982 = vadd.f32 %v4702, %v5726
        %v5983 = vadd.f32 %v4703, %v5727
        %v5984 = vadd.f32 %v4704, %v5728
        %v5985 = vadd.f32 %v4705, %v5729
        %v5986 = vadd.f32 %v4706, %v5730
        %v5987 = vadd.f32 %v4707, %v5731
        %v5988 = vadd.f32 %v4708, %v5732
        %v5989 = vadd.f32 %v4709, %v5733
        %v5990 = vadd.f32 %v4710, %v5734
        %v5991 = vadd.f32 %v4711, %v5735
        %v5992 = vadd.f32 %v4712, %v5736
        %v5993 = vadd.f32 %v4713, %v5737
        %v5994 = vadd.f32 %v4714, %v5738
        %v5995 = vadd.f32 %v4715, %v5739
        %v5996 = vadd.f32 %v4716, %v5740
        %v5997 = vadd.f32 %v4717, %v5741
        %v5998 = vadd.f32 %v4718, %v5742
        %v5999 = vadd.f32 %v4719, %v5743
        %v6000 = vadd.f32 %v4720, %v5744
        %v6001 = vadd.f32 %v4721, %v5745
        %v6002 = vadd.f32 %v4722, %v5746
        %v6003 = vadd.f32 %v4723, %v5747
        %v6004 = vadd.f32 %v4724, %v5748
        %v6005 = vadd.f32 %v4725, %v5749
        %v6006 = vadd.f32 %v4726, %v5750
        %v6007 = vadd.f32 %v4727, %v5751
        %v6008 = vadd.f32 %v4728, %v5752
        %v6009 = vadd.f32 %v4729, %v5753
        %v6010 = vadd.f32 %v4730, %v5754
        %v6011 = vadd.f32 %v4731, %v5755
        %v6012 = vadd.f32 %v4732, %v5756
        %v6013 = vadd.f32 %v4733, %v5757
        %v6014 = vadd.f32 %v4734, %v5758
        %v6015 = vadd.f32 %v4735, %v5759
        %v6016 = vadd.f32 %v4736, %v5760
        %v6017 = vadd.f32 %v4737, %v5761
        %v6018 = vadd.f32 %v4738, %v5762
        %v6019 = vadd.f32 %v4739, %v5763
        %v6020 = vadd.f32 %v4740, %v5764
        %v6021 = vadd.f32 %v4741, %v5765
        %v6022 = vadd.f32 %v4742, %v5766
        %v6023 = vadd.f32 %v4743, %v5767
        %v6024 = vadd.f32 %v4744, %v5768
        %v6025 = vadd.f32 %v4745, %v5769
        %v6026 = vadd.f32 %v4746, %v5770
        %v6027 = vadd.f32 %v4747, %v5771
        %vm6028 = vcmp.lt.f32.partialorder %v140, 0.0
        %vm6029 = vcmp.lt.f32.partialorder %v141, 0.0
        %vm6030 = vcmp.lt.f32.partialorder %v142, 0.0
        %vm6031 = vcmp.lt.f32.partialorder %v143, 0.0
        %vm6032 = vcmp.lt.f32.partialorder %v144, 0.0
        %vm6033 = vcmp.lt.f32.partialorder %v145, 0.0
        %vm6034 = vcmp.lt.f32.partialorder %v146, 0.0
        %vm6035 = vcmp.lt.f32.partialorder %v147, 0.0
        %vm6036 = vcmp.lt.f32.partialorder %v148, 0.0
        %vm6037 = vcmp.lt.f32.partialorder %v149, 0.0
        %vm6038 = vcmp.lt.f32.partialorder %v150, 0.0
        %vm6039 = vcmp.lt.f32.partialorder %v151, 0.0
        %vm6040 = vcmp.lt.f32.partialorder %v152, 0.0
        %vm6041 = vcmp.lt.f32.partialorder %v153, 0.0
        %vm6042 = vcmp.lt.f32.partialorder %v154, 0.0
        %vm6043 = vcmp.lt.f32.partialorder %v155, 0.0
        %vm6044 = vcmp.lt.f32.partialorder %v156, 0.0
        %vm6045 = vcmp.lt.f32.partialorder %v157, 0.0
        %vm6046 = vcmp.lt.f32.partialorder %v158, 0.0
        %vm6047 = vcmp.lt.f32.partialorder %v159, 0.0
        %vm6048 = vcmp.lt.f32.partialorder %v160, 0.0
        %vm6049 = vcmp.lt.f32.partialorder %v161, 0.0
        %vm6050 = vcmp.lt.f32.partialorder %v162, 0.0
        %vm6051 = vcmp.lt.f32.partialorder %v163, 0.0
        %vm6052 = vcmp.lt.f32.partialorder %v164, 0.0
        %vm6053 = vcmp.lt.f32.partialorder %v165, 0.0
        %vm6054 = vcmp.lt.f32.partialorder %v166, 0.0
        %vm6055 = vcmp.lt.f32.partialorder %v167, 0.0
        %vm6056 = vcmp.lt.f32.partialorder %v168, 0.0
        %vm6057 = vcmp.lt.f32.partialorder %v169, 0.0
        %vm6058 = vcmp.lt.f32.partialorder %v170, 0.0
        %vm6059 = vcmp.lt.f32.partialorder %v171, 0.0
        %vm6060 = vcmp.lt.f32.partialorder %v172, 0.0
        %vm6061 = vcmp.lt.f32.partialorder %v173, 0.0
        %vm6062 = vcmp.lt.f32.partialorder %v174, 0.0
        %vm6063 = vcmp.lt.f32.partialorder %v175, 0.0
        %vm6064 = vcmp.lt.f32.partialorder %v176, 0.0
        %vm6065 = vcmp.lt.f32.partialorder %v177, 0.0
        %vm6066 = vcmp.lt.f32.partialorder %v178, 0.0
        %vm6067 = vcmp.lt.f32.partialorder %v179, 0.0
        %vm6068 = vcmp.lt.f32.partialorder %v180, 0.0
        %vm6069 = vcmp.lt.f32.partialorder %v181, 0.0
        %vm6070 = vcmp.lt.f32.partialorder %v182, 0.0
        %vm6071 = vcmp.lt.f32.partialorder %v183, 0.0
        %vm6072 = vcmp.lt.f32.partialorder %v184, 0.0
        %vm6073 = vcmp.lt.f32.partialorder %v185, 0.0
        %vm6074 = vcmp.lt.f32.partialorder %v186, 0.0
        %vm6075 = vcmp.lt.f32.partialorder %v187, 0.0
        %vm6076 = vcmp.lt.f32.partialorder %v188, 0.0
        %vm6077 = vcmp.lt.f32.partialorder %v189, 0.0
        %vm6078 = vcmp.lt.f32.partialorder %v190, 0.0
        %vm6079 = vcmp.lt.f32.partialorder %v191, 0.0
        %vm6080 = vcmp.lt.f32.partialorder %v192, 0.0
        %vm6081 = vcmp.lt.f32.partialorder %v193, 0.0
        %vm6082 = vcmp.lt.f32.partialorder %v194, 0.0
        %vm6083 = vcmp.lt.f32.partialorder %v195, 0.0
        %vm6084 = vcmp.lt.f32.partialorder %v196, 0.0
        %vm6085 = vcmp.lt.f32.partialorder %v197, 0.0
        %vm6086 = vcmp.lt.f32.partialorder %v198, 0.0
        %vm6087 = vcmp.lt.f32.partialorder %v199, 0.0
        %vm6088 = vcmp.lt.f32.partialorder %v200, 0.0
        %vm6089 = vcmp.lt.f32.partialorder %v201, 0.0
        %vm6090 = vcmp.lt.f32.partialorder %v202, 0.0
        %vm6091 = vcmp.lt.f32.partialorder %v203, 0.0
        %vm6092 = vcmp.lt.f32.partialorder %v204, 0.0
        %vm6093 = vcmp.lt.f32.partialorder %v205, 0.0
        %vm6094 = vcmp.lt.f32.partialorder %v206, 0.0
        %vm6095 = vcmp.lt.f32.partialorder %v207, 0.0
        %vm6096 = vcmp.lt.f32.partialorder %v208, 0.0
        %vm6097 = vcmp.lt.f32.partialorder %v209, 0.0
        %vm6098 = vcmp.lt.f32.partialorder %v210, 0.0
        %vm6099 = vcmp.lt.f32.partialorder %v211, 0.0
        %vm6100 = vcmp.lt.f32.partialorder %v212, 0.0
        %vm6101 = vcmp.lt.f32.partialorder %v213, 0.0
        %vm6102 = vcmp.lt.f32.partialorder %v214, 0.0
        %vm6103 = vcmp.lt.f32.partialorder %v215, 0.0
        %vm6104 = vcmp.lt.f32.partialorder %v216, 0.0
        %vm6105 = vcmp.lt.f32.partialorder %v217, 0.0
        %vm6106 = vcmp.lt.f32.partialorder %v218, 0.0
        %vm6107 = vcmp.lt.f32.partialorder %v219, 0.0
        %vm6108 = vcmp.lt.f32.partialorder %v220, 0.0
        %vm6109 = vcmp.lt.f32.partialorder %v221, 0.0
        %vm6110 = vcmp.lt.f32.partialorder %v222, 0.0
        %vm6111 = vcmp.lt.f32.partialorder %v223, 0.0
        %vm6112 = vcmp.lt.f32.partialorder %v224, 0.0
        %vm6113 = vcmp.lt.f32.partialorder %v225, 0.0
        %vm6114 = vcmp.lt.f32.partialorder %v226, 0.0
        %vm6115 = vcmp.lt.f32.partialorder %v227, 0.0
        %vm6116 = vcmp.lt.f32.partialorder %v228, 0.0
        %vm6117 = vcmp.lt.f32.partialorder %v229, 0.0
        %vm6118 = vcmp.lt.f32.partialorder %v230, 0.0
        %vm6119 = vcmp.lt.f32.partialorder %v231, 0.0
        %vm6120 = vcmp.lt.f32.partialorder %v232, 0.0
        %vm6121 = vcmp.lt.f32.partialorder %v233, 0.0
        %vm6122 = vcmp.lt.f32.partialorder %v234, 0.0
        %vm6123 = vcmp.lt.f32.partialorder %v235, 0.0
        %vm6124 = vcmp.lt.f32.partialorder %v236, 0.0
        %vm6125 = vcmp.lt.f32.partialorder %v237, 0.0
        %vm6126 = vcmp.lt.f32.partialorder %v238, 0.0
        %vm6127 = vcmp.lt.f32.partialorder %v239, 0.0
        %vm6128 = vcmp.lt.f32.partialorder %v240, 0.0
        %vm6129 = vcmp.lt.f32.partialorder %v241, 0.0
        %vm6130 = vcmp.lt.f32.partialorder %v242, 0.0
        %vm6131 = vcmp.lt.f32.partialorder %v243, 0.0
        %vm6132 = vcmp.lt.f32.partialorder %v244, 0.0
        %vm6133 = vcmp.lt.f32.partialorder %v245, 0.0
        %vm6134 = vcmp.lt.f32.partialorder %v246, 0.0
        %vm6135 = vcmp.lt.f32.partialorder %v247, 0.0
        %vm6136 = vcmp.lt.f32.partialorder %v248, 0.0
        %vm6137 = vcmp.lt.f32.partialorder %v249, 0.0
        %vm6138 = vcmp.lt.f32.partialorder %v250, 0.0
        %vm6139 = vcmp.lt.f32.partialorder %v251, 0.0
        %vm6140 = vcmp.lt.f32.partialorder %v252, 0.0
        %vm6141 = vcmp.lt.f32.partialorder %v253, 0.0
        %vm6142 = vcmp.lt.f32.partialorder %v254, 0.0
        %vm6143 = vcmp.lt.f32.partialorder %v255, 0.0
        %vm6144 = vcmp.lt.f32.partialorder %v256, 0.0
        %vm6145 = vcmp.lt.f32.partialorder %v257, 0.0
        %vm6146 = vcmp.lt.f32.partialorder %v258, 0.0
        %vm6147 = vcmp.lt.f32.partialorder %v259, 0.0
        %vm6148 = vcmp.lt.f32.partialorder %v260, 0.0
        %vm6149 = vcmp.lt.f32.partialorder %v261, 0.0
        %vm6150 = vcmp.lt.f32.partialorder %v262, 0.0
        %vm6151 = vcmp.lt.f32.partialorder %v263, 0.0
        %vm6152 = vcmp.lt.f32.partialorder %v264, 0.0
        %vm6153 = vcmp.lt.f32.partialorder %v265, 0.0
        %vm6154 = vcmp.lt.f32.partialorder %v266, 0.0
        %vm6155 = vcmp.lt.f32.partialorder %v267, 0.0
        %vm6156 = vcmp.lt.f32.partialorder %v268, 0.0
        %vm6157 = vcmp.lt.f32.partialorder %v269, 0.0
        %vm6158 = vcmp.lt.f32.partialorder %v270, 0.0
        %vm6159 = vcmp.lt.f32.partialorder %v271, 0.0
        %vm6160 = vcmp.lt.f32.partialorder %v272, 0.0
        %vm6161 = vcmp.lt.f32.partialorder %v273, 0.0
        %vm6162 = vcmp.lt.f32.partialorder %v274, 0.0
        %vm6163 = vcmp.lt.f32.partialorder %v275, 0.0
        %vm6164 = vcmp.lt.f32.partialorder %v276, 0.0
        %vm6165 = vcmp.lt.f32.partialorder %v277, 0.0
        %vm6166 = vcmp.lt.f32.partialorder %v278, 0.0
        %vm6167 = vcmp.lt.f32.partialorder %v279, 0.0
        %vm6168 = vcmp.lt.f32.partialorder %v280, 0.0
        %vm6169 = vcmp.lt.f32.partialorder %v281, 0.0
        %vm6170 = vcmp.lt.f32.partialorder %v282, 0.0
        %vm6171 = vcmp.lt.f32.partialorder %v283, 0.0
        %vm6172 = vcmp.lt.f32.partialorder %v284, 0.0
        %vm6173 = vcmp.lt.f32.partialorder %v285, 0.0
        %vm6174 = vcmp.lt.f32.partialorder %v286, 0.0
        %vm6175 = vcmp.lt.f32.partialorder %v287, 0.0
        %vm6176 = vcmp.lt.f32.partialorder %v288, 0.0
        %vm6177 = vcmp.lt.f32.partialorder %v289, 0.0
        %vm6178 = vcmp.lt.f32.partialorder %v290, 0.0
        %vm6179 = vcmp.lt.f32.partialorder %v291, 0.0
        %vm6180 = vcmp.lt.f32.partialorder %v292, 0.0
        %vm6181 = vcmp.lt.f32.partialorder %v293, 0.0
        %vm6182 = vcmp.lt.f32.partialorder %v294, 0.0
        %vm6183 = vcmp.lt.f32.partialorder %v295, 0.0
        %vm6184 = vcmp.lt.f32.partialorder %v296, 0.0
        %vm6185 = vcmp.lt.f32.partialorder %v297, 0.0
        %vm6186 = vcmp.lt.f32.partialorder %v298, 0.0
        %vm6187 = vcmp.lt.f32.partialorder %v299, 0.0
        %vm6188 = vcmp.lt.f32.partialorder %v300, 0.0
        %vm6189 = vcmp.lt.f32.partialorder %v301, 0.0
        %vm6190 = vcmp.lt.f32.partialorder %v302, 0.0
        %vm6191 = vcmp.lt.f32.partialorder %v303, 0.0
        %vm6192 = vcmp.lt.f32.partialorder %v304, 0.0
        %vm6193 = vcmp.lt.f32.partialorder %v305, 0.0
        %vm6194 = vcmp.lt.f32.partialorder %v306, 0.0
        %vm6195 = vcmp.lt.f32.partialorder %v307, 0.0
        %vm6196 = vcmp.lt.f32.partialorder %v308, 0.0
        %vm6197 = vcmp.lt.f32.partialorder %v309, 0.0
        %vm6198 = vcmp.lt.f32.partialorder %v310, 0.0
        %vm6199 = vcmp.lt.f32.partialorder %v311, 0.0
        %vm6200 = vcmp.lt.f32.partialorder %v312, 0.0
        %vm6201 = vcmp.lt.f32.partialorder %v313, 0.0
        %vm6202 = vcmp.lt.f32.partialorder %v314, 0.0
        %vm6203 = vcmp.lt.f32.partialorder %v315, 0.0
        %vm6204 = vcmp.lt.f32.partialorder %v316, 0.0
        %vm6205 = vcmp.lt.f32.partialorder %v317, 0.0
        %vm6206 = vcmp.lt.f32.partialorder %v318, 0.0
        %vm6207 = vcmp.lt.f32.partialorder %v319, 0.0
        %vm6208 = vcmp.lt.f32.partialorder %v320, 0.0
        %vm6209 = vcmp.lt.f32.partialorder %v321, 0.0
        %vm6210 = vcmp.lt.f32.partialorder %v322, 0.0
        %vm6211 = vcmp.lt.f32.partialorder %v323, 0.0
        %vm6212 = vcmp.lt.f32.partialorder %v324, 0.0
        %vm6213 = vcmp.lt.f32.partialorder %v325, 0.0
        %vm6214 = vcmp.lt.f32.partialorder %v326, 0.0
        %vm6215 = vcmp.lt.f32.partialorder %v327, 0.0
        %vm6216 = vcmp.lt.f32.partialorder %v328, 0.0
        %vm6217 = vcmp.lt.f32.partialorder %v329, 0.0
        %vm6218 = vcmp.lt.f32.partialorder %v330, 0.0
        %vm6219 = vcmp.lt.f32.partialorder %v331, 0.0
        %vm6220 = vcmp.lt.f32.partialorder %v332, 0.0
        %vm6221 = vcmp.lt.f32.partialorder %v333, 0.0
        %vm6222 = vcmp.lt.f32.partialorder %v334, 0.0
        %vm6223 = vcmp.lt.f32.partialorder %v335, 0.0
        %vm6224 = vcmp.lt.f32.partialorder %v336, 0.0
        %vm6225 = vcmp.lt.f32.partialorder %v337, 0.0
        %vm6226 = vcmp.lt.f32.partialorder %v338, 0.0
        %vm6227 = vcmp.lt.f32.partialorder %v339, 0.0
        %vm6228 = vcmp.lt.f32.partialorder %v340, 0.0
        %vm6229 = vcmp.lt.f32.partialorder %v341, 0.0
        %vm6230 = vcmp.lt.f32.partialorder %v342, 0.0
        %vm6231 = vcmp.lt.f32.partialorder %v343, 0.0
        %vm6232 = vcmp.lt.f32.partialorder %v344, 0.0
        %vm6233 = vcmp.lt.f32.partialorder %v345, 0.0
        %vm6234 = vcmp.lt.f32.partialorder %v346, 0.0
        %vm6235 = vcmp.lt.f32.partialorder %v347, 0.0
        %vm6236 = vcmp.lt.f32.partialorder %v348, 0.0
        %vm6237 = vcmp.lt.f32.partialorder %v349, 0.0
        %vm6238 = vcmp.lt.f32.partialorder %v350, 0.0
        %vm6239 = vcmp.lt.f32.partialorder %v351, 0.0
        %vm6240 = vcmp.lt.f32.partialorder %v352, 0.0
        %vm6241 = vcmp.lt.f32.partialorder %v353, 0.0
        %vm6242 = vcmp.lt.f32.partialorder %v354, 0.0
        %vm6243 = vcmp.lt.f32.partialorder %v355, 0.0
        %vm6244 = vcmp.lt.f32.partialorder %v356, 0.0
        %vm6245 = vcmp.lt.f32.partialorder %v357, 0.0
        %vm6246 = vcmp.lt.f32.partialorder %v358, 0.0
        %vm6247 = vcmp.lt.f32.partialorder %v359, 0.0
        %vm6248 = vcmp.lt.f32.partialorder %v360, 0.0
        %vm6249 = vcmp.lt.f32.partialorder %v361, 0.0
        %vm6250 = vcmp.lt.f32.partialorder %v362, 0.0
        %vm6251 = vcmp.lt.f32.partialorder %v363, 0.0
        %vm6252 = vcmp.lt.f32.partialorder %v364, 0.0
        %vm6253 = vcmp.lt.f32.partialorder %v365, 0.0
        %vm6254 = vcmp.lt.f32.partialorder %v366, 0.0
        %vm6255 = vcmp.lt.f32.partialorder %v367, 0.0
        %vm6256 = vcmp.lt.f32.partialorder %v368, 0.0
        %vm6257 = vcmp.lt.f32.partialorder %v369, 0.0
        %vm6258 = vcmp.lt.f32.partialorder %v370, 0.0
        %vm6259 = vcmp.lt.f32.partialorder %v371, 0.0
        %vm6260 = vcmp.lt.f32.partialorder %v372, 0.0
        %vm6261 = vcmp.lt.f32.partialorder %v373, 0.0
        %vm6262 = vcmp.lt.f32.partialorder %v374, 0.0
        %vm6263 = vcmp.lt.f32.partialorder %v375, 0.0
        %vm6264 = vcmp.lt.f32.partialorder %v376, 0.0
        %vm6265 = vcmp.lt.f32.partialorder %v377, 0.0
        %vm6266 = vcmp.lt.f32.partialorder %v378, 0.0
        %vm6267 = vcmp.lt.f32.partialorder %v379, 0.0
        %vm6268 = vcmp.lt.f32.partialorder %v380, 0.0
        %vm6269 = vcmp.lt.f32.partialorder %v381, 0.0
        %vm6270 = vcmp.lt.f32.partialorder %v382, 0.0
        %vm6271 = vcmp.lt.f32.partialorder %v383, 0.0
        %vm6272 = vcmp.lt.f32.partialorder %v384, 0.0
        %vm6273 = vcmp.lt.f32.partialorder %v385, 0.0
        %vm6274 = vcmp.lt.f32.partialorder %v386, 0.0
        %vm6275 = vcmp.lt.f32.partialorder %v387, 0.0
        %vm6276 = vcmp.lt.f32.partialorder %v388, 0.0
        %vm6277 = vcmp.lt.f32.partialorder %v389, 0.0
        %vm6278 = vcmp.lt.f32.partialorder %v390, 0.0
        %vm6279 = vcmp.lt.f32.partialorder %v391, 0.0
        %vm6280 = vcmp.lt.f32.partialorder %v392, 0.0
        %vm6281 = vcmp.lt.f32.partialorder %v393, 0.0
        %vm6282 = vcmp.lt.f32.partialorder %v394, 0.0
        %vm6283 = vcmp.lt.f32.partialorder %v395, 0.0
        %v6284 = vsel %vm6028, 1, 0
        %v6285 = vsel %vm6029, 1, 0
        %v6286 = vsel %vm6030, 1, 0
        %v6287 = vsel %vm6031, 1, 0
        %v6288 = vsel %vm6032, 1, 0
        %v6289 = vsel %vm6033, 1, 0
        %v6290 = vsel %vm6034, 1, 0
        %v6291 = vsel %vm6035, 1, 0
        %v6292 = vsel %vm6036, 1, 0
        %v6293 = vsel %vm6037, 1, 0
        %v6294 = vsel %vm6038, 1, 0
        %v6295 = vsel %vm6039, 1, 0
        %v6296 = vsel %vm6040, 1, 0
        %v6297 = vsel %vm6041, 1, 0
        %v6298 = vsel %vm6042, 1, 0
        %v6299 = vsel %vm6043, 1, 0
        %v6300 = vsel %vm6044, 1, 0
        %v6301 = vsel %vm6045, 1, 0
        %v6302 = vsel %vm6046, 1, 0
        %v6303 = vsel %vm6047, 1, 0
        %v6304 = vsel %vm6048, 1, 0
        %v6305 = vsel %vm6049, 1, 0
        %v6306 = vsel %vm6050, 1, 0
        %v6307 = vsel %vm6051, 1, 0
        %v6308 = vsel %vm6052, 1, 0
        %v6309 = vsel %vm6053, 1, 0
        %v6310 = vsel %vm6054, 1, 0
        %v6311 = vsel %vm6055, 1, 0
        %v6312 = vsel %vm6056, 1, 0
        %v6313 = vsel %vm6057, 1, 0
        %v6314 = vsel %vm6058, 1, 0
        %v6315 = vsel %vm6059, 1, 0
        %v6316 = vsel %vm6060, 1, 0
        %v6317 = vsel %vm6061, 1, 0
        %v6318 = vsel %vm6062, 1, 0
        %v6319 = vsel %vm6063, 1, 0
        %v6320 = vsel %vm6064, 1, 0
        %v6321 = vsel %vm6065, 1, 0
        %v6322 = vsel %vm6066, 1, 0
        %v6323 = vsel %vm6067, 1, 0
        %v6324 = vsel %vm6068, 1, 0
        %v6325 = vsel %vm6069, 1, 0
        %v6326 = vsel %vm6070, 1, 0
        %v6327 = vsel %vm6071, 1, 0
        %v6328 = vsel %vm6072, 1, 0
        %v6329 = vsel %vm6073, 1, 0
        %v6330 = vsel %vm6074, 1, 0
        %v6331 = vsel %vm6075, 1, 0
        %v6332 = vsel %vm6076, 1, 0
        %v6333 = vsel %vm6077, 1, 0
        %v6334 = vsel %vm6078, 1, 0
        %v6335 = vsel %vm6079, 1, 0
        %v6336 = vsel %vm6080, 1, 0
        %v6337 = vsel %vm6081, 1, 0
        %v6338 = vsel %vm6082, 1, 0
        %v6339 = vsel %vm6083, 1, 0
        %v6340 = vsel %vm6084, 1, 0
        %v6341 = vsel %vm6085, 1, 0
        %v6342 = vsel %vm6086, 1, 0
        %v6343 = vsel %vm6087, 1, 0
        %v6344 = vsel %vm6088, 1, 0
        %v6345 = vsel %vm6089, 1, 0
        %v6346 = vsel %vm6090, 1, 0
        %v6347 = vsel %vm6091, 1, 0
        %v6348 = vsel %vm6092, 1, 0
        %v6349 = vsel %vm6093, 1, 0
        %v6350 = vsel %vm6094, 1, 0
        %v6351 = vsel %vm6095, 1, 0
        %v6352 = vsel %vm6096, 1, 0
        %v6353 = vsel %vm6097, 1, 0
        %v6354 = vsel %vm6098, 1, 0
        %v6355 = vsel %vm6099, 1, 0
        %v6356 = vsel %vm6100, 1, 0
        %v6357 = vsel %vm6101, 1, 0
        %v6358 = vsel %vm6102, 1, 0
        %v6359 = vsel %vm6103, 1, 0
        %v6360 = vsel %vm6104, 1, 0
        %v6361 = vsel %vm6105, 1, 0
        %v6362 = vsel %vm6106, 1, 0
        %v6363 = vsel %vm6107, 1, 0
        %v6364 = vsel %vm6108, 1, 0
        %v6365 = vsel %vm6109, 1, 0
        %v6366 = vsel %vm6110, 1, 0
        %v6367 = vsel %vm6111, 1, 0
        %v6368 = vsel %vm6112, 1, 0
        %v6369 = vsel %vm6113, 1, 0
        %v6370 = vsel %vm6114, 1, 0
        %v6371 = vsel %vm6115, 1, 0
        %v6372 = vsel %vm6116, 1, 0
        %v6373 = vsel %vm6117, 1, 0
        %v6374 = vsel %vm6118, 1, 0
        %v6375 = vsel %vm6119, 1, 0
        %v6376 = vsel %vm6120, 1, 0
        %v6377 = vsel %vm6121, 1, 0
        %v6378 = vsel %vm6122, 1, 0
        %v6379 = vsel %vm6123, 1, 0
        %v6380 = vsel %vm6124, 1, 0
        %v6381 = vsel %vm6125, 1, 0
        %v6382 = vsel %vm6126, 1, 0
        %v6383 = vsel %vm6127, 1, 0
        %v6384 = vsel %vm6128, 1, 0
        %v6385 = vsel %vm6129, 1, 0
        %v6386 = vsel %vm6130, 1, 0
        %v6387 = vsel %vm6131, 1, 0
        %v6388 = vsel %vm6132, 1, 0
        %v6389 = vsel %vm6133, 1, 0
        %v6390 = vsel %vm6134, 1, 0
        %v6391 = vsel %vm6135, 1, 0
        %v6392 = vsel %vm6136, 1, 0
        %v6393 = vsel %vm6137, 1, 0
        %v6394 = vsel %vm6138, 1, 0
        %v6395 = vsel %vm6139, 1, 0
        %v6396 = vsel %vm6140, 1, 0
        %v6397 = vsel %vm6141, 1, 0
        %v6398 = vsel %vm6142, 1, 0
        %v6399 = vsel %vm6143, 1, 0
        %v6400 = vsel %vm6144, 1, 0
        %v6401 = vsel %vm6145, 1, 0
        %v6402 = vsel %vm6146, 1, 0
        %v6403 = vsel %vm6147, 1, 0
        %v6404 = vsel %vm6148, 1, 0
        %v6405 = vsel %vm6149, 1, 0
        %v6406 = vsel %vm6150, 1, 0
        %v6407 = vsel %vm6151, 1, 0
        %v6408 = vsel %vm6152, 1, 0
        %v6409 = vsel %vm6153, 1, 0
        %v6410 = vsel %vm6154, 1, 0
        %v6411 = vsel %vm6155, 1, 0
        %v6412 = vsel %vm6156, 1, 0
        %v6413 = vsel %vm6157, 1, 0
        %v6414 = vsel %vm6158, 1, 0
        %v6415 = vsel %vm6159, 1, 0
        %v6416 = vsel %vm6160, 1, 0
        %v6417 = vsel %vm6161, 1, 0
        %v6418 = vsel %vm6162, 1, 0
        %v6419 = vsel %vm6163, 1, 0
        %v6420 = vsel %vm6164, 1, 0
        %v6421 = vsel %vm6165, 1, 0
        %v6422 = vsel %vm6166, 1, 0
        %v6423 = vsel %vm6167, 1, 0
        %v6424 = vsel %vm6168, 1, 0
        %v6425 = vsel %vm6169, 1, 0
        %v6426 = vsel %vm6170, 1, 0
        %v6427 = vsel %vm6171, 1, 0
        %v6428 = vsel %vm6172, 1, 0
        %v6429 = vsel %vm6173, 1, 0
        %v6430 = vsel %vm6174, 1, 0
        %v6431 = vsel %vm6175, 1, 0
        %v6432 = vsel %vm6176, 1, 0
        %v6433 = vsel %vm6177, 1, 0
        %v6434 = vsel %vm6178, 1, 0
        %v6435 = vsel %vm6179, 1, 0
        %v6436 = vsel %vm6180, 1, 0
        %v6437 = vsel %vm6181, 1, 0
        %v6438 = vsel %vm6182, 1, 0
        %v6439 = vsel %vm6183, 1, 0
        %v6440 = vsel %vm6184, 1, 0
        %v6441 = vsel %vm6185, 1, 0
        %v6442 = vsel %vm6186, 1, 0
        %v6443 = vsel %vm6187, 1, 0
        %v6444 = vsel %vm6188, 1, 0
        %v6445 = vsel %vm6189, 1, 0
        %v6446 = vsel %vm6190, 1, 0
        %v6447 = vsel %vm6191, 1, 0
        %v6448 = vsel %vm6192, 1, 0
        %v6449 = vsel %vm6193, 1, 0
        %v6450 = vsel %vm6194, 1, 0
        %v6451 = vsel %vm6195, 1, 0
        %v6452 = vsel %vm6196, 1, 0
        %v6453 = vsel %vm6197, 1, 0
        %v6454 = vsel %vm6198, 1, 0
        %v6455 = vsel %vm6199, 1, 0
        %v6456 = vsel %vm6200, 1, 0
        %v6457 = vsel %vm6201, 1, 0
        %v6458 = vsel %vm6202, 1, 0
        %v6459 = vsel %vm6203, 1, 0
        %v6460 = vsel %vm6204, 1, 0
        %v6461 = vsel %vm6205, 1, 0
        %v6462 = vsel %vm6206, 1, 0
        %v6463 = vsel %vm6207, 1, 0
        %v6464 = vsel %vm6208, 1, 0
        %v6465 = vsel %vm6209, 1, 0
        %v6466 = vsel %vm6210, 1, 0
        %v6467 = vsel %vm6211, 1, 0
        %v6468 = vsel %vm6212, 1, 0
        %v6469 = vsel %vm6213, 1, 0
        %v6470 = vsel %vm6214, 1, 0
        %v6471 = vsel %vm6215, 1, 0
        %v6472 = vsel %vm6216, 1, 0
        %v6473 = vsel %vm6217, 1, 0
        %v6474 = vsel %vm6218, 1, 0
        %v6475 = vsel %vm6219, 1, 0
        %v6476 = vsel %vm6220, 1, 0
        %v6477 = vsel %vm6221, 1, 0
        %v6478 = vsel %vm6222, 1, 0
        %v6479 = vsel %vm6223, 1, 0
        %v6480 = vsel %vm6224, 1, 0
        %v6481 = vsel %vm6225, 1, 0
        %v6482 = vsel %vm6226, 1, 0
        %v6483 = vsel %vm6227, 1, 0
        %v6484 = vsel %vm6228, 1, 0
        %v6485 = vsel %vm6229, 1, 0
        %v6486 = vsel %vm6230, 1, 0
        %v6487 = vsel %vm6231, 1, 0
        %v6488 = vsel %vm6232, 1, 0
        %v6489 = vsel %vm6233, 1, 0
        %v6490 = vsel %vm6234, 1, 0
        %v6491 = vsel %vm6235, 1, 0
        %v6492 = vsel %vm6236, 1, 0
        %v6493 = vsel %vm6237, 1, 0
        %v6494 = vsel %vm6238, 1, 0
        %v6495 = vsel %vm6239, 1, 0
        %v6496 = vsel %vm6240, 1, 0
        %v6497 = vsel %vm6241, 1, 0
        %v6498 = vsel %vm6242, 1, 0
        %v6499 = vsel %vm6243, 1, 0
        %v6500 = vsel %vm6244, 1, 0
        %v6501 = vsel %vm6245, 1, 0
        %v6502 = vsel %vm6246, 1, 0
        %v6503 = vsel %vm6247, 1, 0
        %v6504 = vsel %vm6248, 1, 0
        %v6505 = vsel %vm6249, 1, 0
        %v6506 = vsel %vm6250, 1, 0
        %v6507 = vsel %vm6251, 1, 0
        %v6508 = vsel %vm6252, 1, 0
        %v6509 = vsel %vm6253, 1, 0
        %v6510 = vsel %vm6254, 1, 0
        %v6511 = vsel %vm6255, 1, 0
        %v6512 = vsel %vm6256, 1, 0
        %v6513 = vsel %vm6257, 1, 0
        %v6514 = vsel %vm6258, 1, 0
        %v6515 = vsel %vm6259, 1, 0
        %v6516 = vsel %vm6260, 1, 0
        %v6517 = vsel %vm6261, 1, 0
        %v6518 = vsel %vm6262, 1, 0
        %v6519 = vsel %vm6263, 1, 0
        %v6520 = vsel %vm6264, 1, 0
        %v6521 = vsel %vm6265, 1, 0
        %v6522 = vsel %vm6266, 1, 0
        %v6523 = vsel %vm6267, 1, 0
        %v6524 = vsel %vm6268, 1, 0
        %v6525 = vsel %vm6269, 1, 0
        %v6526 = vsel %vm6270, 1, 0
        %v6527 = vsel %vm6271, 1, 0
        %v6528 = vsel %vm6272, 1, 0
        %v6529 = vsel %vm6273, 1, 0
        %v6530 = vsel %vm6274, 1, 0
        %v6531 = vsel %vm6275, 1, 0
        %v6532 = vsel %vm6276, 1, 0
        %v6533 = vsel %vm6277, 1, 0
        %v6534 = vsel %vm6278, 1, 0
        %v6535 = vsel %vm6279, 1, 0
        %v6536 = vsel %vm6280, 1, 0
        %v6537 = vsel %vm6281, 1, 0
        %v6538 = vsel %vm6282, 1, 0
        %v6539 = vsel %vm6283, 1, 0
        %v6540 = vcvt.s32.f32 %v6284
        %v6541 = vcvt.s32.f32 %v6285
        %v6542 = vcvt.s32.f32 %v6286
        %v6543 = vcvt.s32.f32 %v6287
        %v6544 = vcvt.s32.f32 %v6288
        %v6545 = vcvt.s32.f32 %v6289
        %v6546 = vcvt.s32.f32 %v6290
        %v6547 = vcvt.s32.f32 %v6291
        %v6548 = vcvt.s32.f32 %v6292
        %v6549 = vcvt.s32.f32 %v6293
        %v6550 = vcvt.s32.f32 %v6294
        %v6551 = vcvt.s32.f32 %v6295
        %v6552 = vcvt.s32.f32 %v6296
        %v6553 = vcvt.s32.f32 %v6297
        %v6554 = vcvt.s32.f32 %v6298
        %v6555 = vcvt.s32.f32 %v6299
        %v6556 = vcvt.s32.f32 %v6300
        %v6557 = vcvt.s32.f32 %v6301
        %v6558 = vcvt.s32.f32 %v6302
        %v6559 = vcvt.s32.f32 %v6303
        %v6560 = vcvt.s32.f32 %v6304
        %v6561 = vcvt.s32.f32 %v6305
        %v6562 = vcvt.s32.f32 %v6306
        %v6563 = vcvt.s32.f32 %v6307
        %v6564 = vcvt.s32.f32 %v6308
        %v6565 = vcvt.s32.f32 %v6309
        %v6566 = vcvt.s32.f32 %v6310
        %v6567 = vcvt.s32.f32 %v6311
        %v6568 = vcvt.s32.f32 %v6312
        %v6569 = vcvt.s32.f32 %v6313
        %v6570 = vcvt.s32.f32 %v6314
        %v6571 = vcvt.s32.f32 %v6315
        %v6572 = vcvt.s32.f32 %v6316
        %v6573 = vcvt.s32.f32 %v6317
        %v6574 = vcvt.s32.f32 %v6318
        %v6575 = vcvt.s32.f32 %v6319
        %v6576 = vcvt.s32.f32 %v6320
        %v6577 = vcvt.s32.f32 %v6321
        %v6578 = vcvt.s32.f32 %v6322
        %v6579 = vcvt.s32.f32 %v6323
        %v6580 = vcvt.s32.f32 %v6324
        %v6581 = vcvt.s32.f32 %v6325
        %v6582 = vcvt.s32.f32 %v6326
        %v6583 = vcvt.s32.f32 %v6327
        %v6584 = vcvt.s32.f32 %v6328
        %v6585 = vcvt.s32.f32 %v6329
        %v6586 = vcvt.s32.f32 %v6330
        %v6587 = vcvt.s32.f32 %v6331
        %v6588 = vcvt.s32.f32 %v6332
        %v6589 = vcvt.s32.f32 %v6333
        %v6590 = vcvt.s32.f32 %v6334
        %v6591 = vcvt.s32.f32 %v6335
        %v6592 = vcvt.s32.f32 %v6336
        %v6593 = vcvt.s32.f32 %v6337
        %v6594 = vcvt.s32.f32 %v6338
        %v6595 = vcvt.s32.f32 %v6339
        %v6596 = vcvt.s32.f32 %v6340
        %v6597 = vcvt.s32.f32 %v6341
        %v6598 = vcvt.s32.f32 %v6342
        %v6599 = vcvt.s32.f32 %v6343
        %v6600 = vcvt.s32.f32 %v6344
        %v6601 = vcvt.s32.f32 %v6345
        %v6602 = vcvt.s32.f32 %v6346
        %v6603 = vcvt.s32.f32 %v6347
        %v6604 = vcvt.s32.f32 %v6348
        %v6605 = vcvt.s32.f32 %v6349
        %v6606 = vcvt.s32.f32 %v6350
        %v6607 = vcvt.s32.f32 %v6351
        %v6608 = vcvt.s32.f32 %v6352
        %v6609 = vcvt.s32.f32 %v6353
        %v6610 = vcvt.s32.f32 %v6354
        %v6611 = vcvt.s32.f32 %v6355
        %v6612 = vcvt.s32.f32 %v6356
        %v6613 = vcvt.s32.f32 %v6357
        %v6614 = vcvt.s32.f32 %v6358
        %v6615 = vcvt.s32.f32 %v6359
        %v6616 = vcvt.s32.f32 %v6360
        %v6617 = vcvt.s32.f32 %v6361
        %v6618 = vcvt.s32.f32 %v6362
        %v6619 = vcvt.s32.f32 %v6363
        %v6620 = vcvt.s32.f32 %v6364
        %v6621 = vcvt.s32.f32 %v6365
        %v6622 = vcvt.s32.f32 %v6366
        %v6623 = vcvt.s32.f32 %v6367
        %v6624 = vcvt.s32.f32 %v6368
        %v6625 = vcvt.s32.f32 %v6369
        %v6626 = vcvt.s32.f32 %v6370
        %v6627 = vcvt.s32.f32 %v6371
        %v6628 = vcvt.s32.f32 %v6372
        %v6629 = vcvt.s32.f32 %v6373
        %v6630 = vcvt.s32.f32 %v6374
        %v6631 = vcvt.s32.f32 %v6375
        %v6632 = vcvt.s32.f32 %v6376
        %v6633 = vcvt.s32.f32 %v6377
        %v6634 = vcvt.s32.f32 %v6378
        %v6635 = vcvt.s32.f32 %v6379
        %v6636 = vcvt.s32.f32 %v6380
        %v6637 = vcvt.s32.f32 %v6381
        %v6638 = vcvt.s32.f32 %v6382
        %v6639 = vcvt.s32.f32 %v6383
        %v6640 = vcvt.s32.f32 %v6384
        %v6641 = vcvt.s32.f32 %v6385
        %v6642 = vcvt.s32.f32 %v6386
        %v6643 = vcvt.s32.f32 %v6387
        %v6644 = vcvt.s32.f32 %v6388
        %v6645 = vcvt.s32.f32 %v6389
        %v6646 = vcvt.s32.f32 %v6390
        %v6647 = vcvt.s32.f32 %v6391
        %v6648 = vcvt.s32.f32 %v6392
        %v6649 = vcvt.s32.f32 %v6393
        %v6650 = vcvt.s32.f32 %v6394
        %v6651 = vcvt.s32.f32 %v6395
        %v6652 = vcvt.s32.f32 %v6396
        %v6653 = vcvt.s32.f32 %v6397
        %v6654 = vcvt.s32.f32 %v6398
        %v6655 = vcvt.s32.f32 %v6399
        %v6656 = vcvt.s32.f32 %v6400
        %v6657 = vcvt.s32.f32 %v6401
        %v6658 = vcvt.s32.f32 %v6402
        %v6659 = vcvt.s32.f32 %v6403
        %v6660 = vcvt.s32.f32 %v6404
        %v6661 = vcvt.s32.f32 %v6405
        %v6662 = vcvt.s32.f32 %v6406
        %v6663 = vcvt.s32.f32 %v6407
        %v6664 = vcvt.s32.f32 %v6408
        %v6665 = vcvt.s32.f32 %v6409
        %v6666 = vcvt.s32.f32 %v6410
        %v6667 = vcvt.s32.f32 %v6411
        %v6668 = vcvt.s32.f32 %v6412
        %v6669 = vcvt.s32.f32 %v6413
        %v6670 = vcvt.s32.f32 %v6414
        %v6671 = vcvt.s32.f32 %v6415
        %v6672 = vcvt.s32.f32 %v6416
        %v6673 = vcvt.s32.f32 %v6417
        %v6674 = vcvt.s32.f32 %v6418
        %v6675 = vcvt.s32.f32 %v6419
        %v6676 = vcvt.s32.f32 %v6420
        %v6677 = vcvt.s32.f32 %v6421
        %v6678 = vcvt.s32.f32 %v6422
        %v6679 = vcvt.s32.f32 %v6423
        %v6680 = vcvt.s32.f32 %v6424
        %v6681 = vcvt.s32.f32 %v6425
        %v6682 = vcvt.s32.f32 %v6426
        %v6683 = vcvt.s32.f32 %v6427
        %v6684 = vcvt.s32.f32 %v6428
        %v6685 = vcvt.s32.f32 %v6429
        %v6686 = vcvt.s32.f32 %v6430
        %v6687 = vcvt.s32.f32 %v6431
        %v6688 = vcvt.s32.f32 %v6432
        %v6689 = vcvt.s32.f32 %v6433
        %v6690 = vcvt.s32.f32 %v6434
        %v6691 = vcvt.s32.f32 %v6435
        %v6692 = vcvt.s32.f32 %v6436
        %v6693 = vcvt.s32.f32 %v6437
        %v6694 = vcvt.s32.f32 %v6438
        %v6695 = vcvt.s32.f32 %v6439
        %v6696 = vcvt.s32.f32 %v6440
        %v6697 = vcvt.s32.f32 %v6441
        %v6698 = vcvt.s32.f32 %v6442
        %v6699 = vcvt.s32.f32 %v6443
        %v6700 = vcvt.s32.f32 %v6444
        %v6701 = vcvt.s32.f32 %v6445
        %v6702 = vcvt.s32.f32 %v6446
        %v6703 = vcvt.s32.f32 %v6447
        %v6704 = vcvt.s32.f32 %v6448
        %v6705 = vcvt.s32.f32 %v6449
        %v6706 = vcvt.s32.f32 %v6450
        %v6707 = vcvt.s32.f32 %v6451
        %v6708 = vcvt.s32.f32 %v6452
        %v6709 = vcvt.s32.f32 %v6453
        %v6710 = vcvt.s32.f32 %v6454
        %v6711 = vcvt.s32.f32 %v6455
        %v6712 = vcvt.s32.f32 %v6456
        %v6713 = vcvt.s32.f32 %v6457
        %v6714 = vcvt.s32.f32 %v6458
        %v6715 = vcvt.s32.f32 %v6459
        %v6716 = vcvt.s32.f32 %v6460
        %v6717 = vcvt.s32.f32 %v6461
        %v6718 = vcvt.s32.f32 %v6462
        %v6719 = vcvt.s32.f32 %v6463
        %v6720 = vcvt.s32.f32 %v6464
        %v6721 = vcvt.s32.f32 %v6465
        %v6722 = vcvt.s32.f32 %v6466
        %v6723 = vcvt.s32.f32 %v6467
        %v6724 = vcvt.s32.f32 %v6468
        %v6725 = vcvt.s32.f32 %v6469
        %v6726 = vcvt.s32.f32 %v6470
        %v6727 = vcvt.s32.f32 %v6471
        %v6728 = vcvt.s32.f32 %v6472
        %v6729 = vcvt.s32.f32 %v6473
        %v6730 = vcvt.s32.f32 %v6474
        %v6731 = vcvt.s32.f32 %v6475
        %v6732 = vcvt.s32.f32 %v6476
        %v6733 = vcvt.s32.f32 %v6477
        %v6734 = vcvt.s32.f32 %v6478
        %v6735 = vcvt.s32.f32 %v6479
        %v6736 = vcvt.s32.f32 %v6480
        %v6737 = vcvt.s32.f32 %v6481
        %v6738 = vcvt.s32.f32 %v6482
        %v6739 = vcvt.s32.f32 %v6483
        %v6740 = vcvt.s32.f32 %v6484
        %v6741 = vcvt.s32.f32 %v6485
        %v6742 = vcvt.s32.f32 %v6486
        %v6743 = vcvt.s32.f32 %v6487
        %v6744 = vcvt.s32.f32 %v6488
        %v6745 = vcvt.s32.f32 %v6489
        %v6746 = vcvt.s32.f32 %v6490
        %v6747 = vcvt.s32.f32 %v6491
        %v6748 = vcvt.s32.f32 %v6492
        %v6749 = vcvt.s32.f32 %v6493
        %v6750 = vcvt.s32.f32 %v6494
        %v6751 = vcvt.s32.f32 %v6495
        %v6752 = vcvt.s32.f32 %v6496
        %v6753 = vcvt.s32.f32 %v6497
        %v6754 = vcvt.s32.f32 %v6498
        %v6755 = vcvt.s32.f32 %v6499
        %v6756 = vcvt.s32.f32 %v6500
        %v6757 = vcvt.s32.f32 %v6501
        %v6758 = vcvt.s32.f32 %v6502
        %v6759 = vcvt.s32.f32 %v6503
        %v6760 = vcvt.s32.f32 %v6504
        %v6761 = vcvt.s32.f32 %v6505
        %v6762 = vcvt.s32.f32 %v6506
        %v6763 = vcvt.s32.f32 %v6507
        %v6764 = vcvt.s32.f32 %v6508
        %v6765 = vcvt.s32.f32 %v6509
        %v6766 = vcvt.s32.f32 %v6510
        %v6767 = vcvt.s32.f32 %v6511
        %v6768 = vcvt.s32.f32 %v6512
        %v6769 = vcvt.s32.f32 %v6513
        %v6770 = vcvt.s32.f32 %v6514
        %v6771 = vcvt.s32.f32 %v6515
        %v6772 = vcvt.s32.f32 %v6516
        %v6773 = vcvt.s32.f32 %v6517
        %v6774 = vcvt.s32.f32 %v6518
        %v6775 = vcvt.s32.f32 %v6519
        %v6776 = vcvt.s32.f32 %v6520
        %v6777 = vcvt.s32.f32 %v6521
        %v6778 = vcvt.s32.f32 %v6522
        %v6779 = vcvt.s32.f32 %v6523
        %v6780 = vcvt.s32.f32 %v6524
        %v6781 = vcvt.s32.f32 %v6525
        %v6782 = vcvt.s32.f32 %v6526
        %v6783 = vcvt.s32.f32 %v6527
        %v6784 = vcvt.s32.f32 %v6528
        %v6785 = vcvt.s32.f32 %v6529
        %v6786 = vcvt.s32.f32 %v6530
        %v6787 = vcvt.s32.f32 %v6531
        %v6788 = vcvt.s32.f32 %v6532
        %v6789 = vcvt.s32.f32 %v6533
        %v6790 = vcvt.s32.f32 %v6534
        %v6791 = vcvt.s32.f32 %v6535
        %v6792 = vcvt.s32.f32 %v6536
        %v6793 = vcvt.s32.f32 %v6537
        %v6794 = vcvt.s32.f32 %v6538
        %v6795 = vcvt.s32.f32 %v6539
        %v6796 = vmul.f32 %v5772, %v6540
        %v6797 = vmul.f32 %v5773, %v6541
        %v6798 = vmul.f32 %v5774, %v6542
        %v6799 = vmul.f32 %v5775, %v6543
        %v6800 = vmul.f32 %v5776, %v6544
        %v6801 = vmul.f32 %v5777, %v6545
        %v6802 = vmul.f32 %v5778, %v6546
        %v6803 = vmul.f32 %v5779, %v6547
        %v6804 = vmul.f32 %v5780, %v6548
        %v6805 = vmul.f32 %v5781, %v6549
        %v6806 = vmul.f32 %v5782, %v6550
        %v6807 = vmul.f32 %v5783, %v6551
        %v6808 = vmul.f32 %v5784, %v6552
        %v6809 = vmul.f32 %v5785, %v6553
        %v6810 = vmul.f32 %v5786, %v6554
        %v6811 = vmul.f32 %v5787, %v6555
        %v6812 = vmul.f32 %v5788, %v6556
        %v6813 = vmul.f32 %v5789, %v6557
        %v6814 = vmul.f32 %v5790, %v6558
        %v6815 = vmul.f32 %v5791, %v6559
        %v6816 = vmul.f32 %v5792, %v6560
        %v6817 = vmul.f32 %v5793, %v6561
        %v6818 = vmul.f32 %v5794, %v6562
        %v6819 = vmul.f32 %v5795, %v6563
        %v6820 = vmul.f32 %v5796, %v6564
        %v6821 = vmul.f32 %v5797, %v6565
        %v6822 = vmul.f32 %v5798, %v6566
        %v6823 = vmul.f32 %v5799, %v6567
        %v6824 = vmul.f32 %v5800, %v6568
        %v6825 = vmul.f32 %v5801, %v6569
        %v6826 = vmul.f32 %v5802, %v6570
        %v6827 = vmul.f32 %v5803, %v6571
        %v6828 = vmul.f32 %v5804, %v6572
        %v6829 = vmul.f32 %v5805, %v6573
        %v6830 = vmul.f32 %v5806, %v6574
        %v6831 = vmul.f32 %v5807, %v6575
        %v6832 = vmul.f32 %v5808, %v6576
        %v6833 = vmul.f32 %v5809, %v6577
        %v6834 = vmul.f32 %v5810, %v6578
        %v6835 = vmul.f32 %v5811, %v6579
        %v6836 = vmul.f32 %v5812, %v6580
        %v6837 = vmul.f32 %v5813, %v6581
        %v6838 = vmul.f32 %v5814, %v6582
        %v6839 = vmul.f32 %v5815, %v6583
        %v6840 = vmul.f32 %v5816, %v6584
        %v6841 = vmul.f32 %v5817, %v6585
        %v6842 = vmul.f32 %v5818, %v6586
        %v6843 = vmul.f32 %v5819, %v6587
        %v6844 = vmul.f32 %v5820, %v6588
        %v6845 = vmul.f32 %v5821, %v6589
        %v6846 = vmul.f32 %v5822, %v6590
        %v6847 = vmul.f32 %v5823, %v6591
        %v6848 = vmul.f32 %v5824, %v6592
        %v6849 = vmul.f32 %v5825, %v6593
        %v6850 = vmul.f32 %v5826, %v6594
        %v6851 = vmul.f32 %v5827, %v6595
        %v6852 = vmul.f32 %v5828, %v6596
        %v6853 = vmul.f32 %v5829, %v6597
        %v6854 = vmul.f32 %v5830, %v6598
        %v6855 = vmul.f32 %v5831, %v6599
        %v6856 = vmul.f32 %v5832, %v6600
        %v6857 = vmul.f32 %v5833, %v6601
        %v6858 = vmul.f32 %v5834, %v6602
        %v6859 = vmul.f32 %v5835, %v6603
        %v6860 = vmul.f32 %v5836, %v6604
        %v6861 = vmul.f32 %v5837, %v6605
        %v6862 = vmul.f32 %v5838, %v6606
        %v6863 = vmul.f32 %v5839, %v6607
        %v6864 = vmul.f32 %v5840, %v6608
        %v6865 = vmul.f32 %v5841, %v6609
        %v6866 = vmul.f32 %v5842, %v6610
        %v6867 = vmul.f32 %v5843, %v6611
        %v6868 = vmul.f32 %v5844, %v6612
        %v6869 = vmul.f32 %v5845, %v6613
        %v6870 = vmul.f32 %v5846, %v6614
        %v6871 = vmul.f32 %v5847, %v6615
        %v6872 = vmul.f32 %v5848, %v6616
        %v6873 = vmul.f32 %v5849, %v6617
        %v6874 = vmul.f32 %v5850, %v6618
        %v6875 = vmul.f32 %v5851, %v6619
        %v6876 = vmul.f32 %v5852, %v6620
        %v6877 = vmul.f32 %v5853, %v6621
        %v6878 = vmul.f32 %v5854, %v6622
        %v6879 = vmul.f32 %v5855, %v6623
        %v6880 = vmul.f32 %v5856, %v6624
        %v6881 = vmul.f32 %v5857, %v6625
        %v6882 = vmul.f32 %v5858, %v6626
        %v6883 = vmul.f32 %v5859, %v6627
        %v6884 = vmul.f32 %v5860, %v6628
        %v6885 = vmul.f32 %v5861, %v6629
        %v6886 = vmul.f32 %v5862, %v6630
        %v6887 = vmul.f32 %v5863, %v6631
        %v6888 = vmul.f32 %v5864, %v6632
        %v6889 = vmul.f32 %v5865, %v6633
        %v6890 = vmul.f32 %v5866, %v6634
        %v6891 = vmul.f32 %v5867, %v6635
        %v6892 = vmul.f32 %v5868, %v6636
        %v6893 = vmul.f32 %v5869, %v6637
        %v6894 = vmul.f32 %v5870, %v6638
        %v6895 = vmul.f32 %v5871, %v6639
        %v6896 = vmul.f32 %v5872, %v6640
        %v6897 = vmul.f32 %v5873, %v6641
        %v6898 = vmul.f32 %v5874, %v6642
        %v6899 = vmul.f32 %v5875, %v6643
        %v6900 = vmul.f32 %v5876, %v6644
        %v6901 = vmul.f32 %v5877, %v6645
        %v6902 = vmul.f32 %v5878, %v6646
        %v6903 = vmul.f32 %v5879, %v6647
        %v6904 = vmul.f32 %v5880, %v6648
        %v6905 = vmul.f32 %v5881, %v6649
        %v6906 = vmul.f32 %v5882, %v6650
        %v6907 = vmul.f32 %v5883, %v6651
        %v6908 = vmul.f32 %v5884, %v6652
        %v6909 = vmul.f32 %v5885, %v6653
        %v6910 = vmul.f32 %v5886, %v6654
        %v6911 = vmul.f32 %v5887, %v6655
        %v6912 = vmul.f32 %v5888, %v6656
        %v6913 = vmul.f32 %v5889, %v6657
        %v6914 = vmul.f32 %v5890, %v6658
        %v6915 = vmul.f32 %v5891, %v6659
        %v6916 = vmul.f32 %v5892, %v6660
        %v6917 = vmul.f32 %v5893, %v6661
        %v6918 = vmul.f32 %v5894, %v6662
        %v6919 = vmul.f32 %v5895, %v6663
        %v6920 = vmul.f32 %v5896, %v6664
        %v6921 = vmul.f32 %v5897, %v6665
        %v6922 = vmul.f32 %v5898, %v6666
        %v6923 = vmul.f32 %v5899, %v6667
        %v6924 = vmul.f32 %v5900, %v6668
        %v6925 = vmul.f32 %v5901, %v6669
        %v6926 = vmul.f32 %v5902, %v6670
        %v6927 = vmul.f32 %v5903, %v6671
        %v6928 = vmul.f32 %v5904, %v6672
        %v6929 = vmul.f32 %v5905, %v6673
        %v6930 = vmul.f32 %v5906, %v6674
        %v6931 = vmul.f32 %v5907, %v6675
        %v6932 = vmul.f32 %v5908, %v6676
        %v6933 = vmul.f32 %v5909, %v6677
        %v6934 = vmul.f32 %v5910, %v6678
        %v6935 = vmul.f32 %v5911, %v6679
        %v6936 = vmul.f32 %v5912, %v6680
        %v6937 = vmul.f32 %v5913, %v6681
        %v6938 = vmul.f32 %v5914, %v6682
        %v6939 = vmul.f32 %v5915, %v6683
        %v6940 = vmul.f32 %v5916, %v6684
        %v6941 = vmul.f32 %v5917, %v6685
        %v6942 = vmul.f32 %v5918, %v6686
        %v6943 = vmul.f32 %v5919, %v6687
        %v6944 = vmul.f32 %v5920, %v6688
        %v6945 = vmul.f32 %v5921, %v6689
        %v6946 = vmul.f32 %v5922, %v6690
        %v6947 = vmul.f32 %v5923, %v6691
        %v6948 = vmul.f32 %v5924, %v6692
        %v6949 = vmul.f32 %v5925, %v6693
        %v6950 = vmul.f32 %v5926, %v6694
        %v6951 = vmul.f32 %v5927, %v6695
        %v6952 = vmul.f32 %v5928, %v6696
        %v6953 = vmul.f32 %v5929, %v6697
        %v6954 = vmul.f32 %v5930, %v6698
        %v6955 = vmul.f32 %v5931, %v6699
        %v6956 = vmul.f32 %v5932, %v6700
        %v6957 = vmul.f32 %v5933, %v6701
        %v6958 = vmul.f32 %v5934, %v6702
        %v6959 = vmul.f32 %v5935, %v6703
        %v6960 = vmul.f32 %v5936, %v6704
        %v6961 = vmul.f32 %v5937, %v6705
        %v6962 = vmul.f32 %v5938, %v6706
        %v6963 = vmul.f32 %v5939, %v6707
        %v6964 = vmul.f32 %v5940, %v6708
        %v6965 = vmul.f32 %v5941, %v6709
        %v6966 = vmul.f32 %v5942, %v6710
        %v6967 = vmul.f32 %v5943, %v6711
        %v6968 = vmul.f32 %v5944, %v6712
        %v6969 = vmul.f32 %v5945, %v6713
        %v6970 = vmul.f32 %v5946, %v6714
        %v6971 = vmul.f32 %v5947, %v6715
        %v6972 = vmul.f32 %v5948, %v6716
        %v6973 = vmul.f32 %v5949, %v6717
        %v6974 = vmul.f32 %v5950, %v6718
        %v6975 = vmul.f32 %v5951, %v6719
        %v6976 = vmul.f32 %v5952, %v6720
        %v6977 = vmul.f32 %v5953, %v6721
        %v6978 = vmul.f32 %v5954, %v6722
        %v6979 = vmul.f32 %v5955, %v6723
        %v6980 = vmul.f32 %v5956, %v6724
        %v6981 = vmul.f32 %v5957, %v6725
        %v6982 = vmul.f32 %v5958, %v6726
        %v6983 = vmul.f32 %v5959, %v6727
        %v6984 = vmul.f32 %v5960, %v6728
        %v6985 = vmul.f32 %v5961, %v6729
        %v6986 = vmul.f32 %v5962, %v6730
        %v6987 = vmul.f32 %v5963, %v6731
        %v6988 = vmul.f32 %v5964, %v6732
        %v6989 = vmul.f32 %v5965, %v6733
        %v6990 = vmul.f32 %v5966, %v6734
        %v6991 = vmul.f32 %v5967, %v6735
        %v6992 = vmul.f32 %v5968, %v6736
        %v6993 = vmul.f32 %v5969, %v6737
        %v6994 = vmul.f32 %v5970, %v6738
        %v6995 = vmul.f32 %v5971, %v6739
        %v6996 = vmul.f32 %v5972, %v6740
        %v6997 = vmul.f32 %v5973, %v6741
        %v6998 = vmul.f32 %v5974, %v6742
        %v6999 = vmul.f32 %v5975, %v6743
        %v7000 = vmul.f32 %v5976, %v6744
        %v7001 = vmul.f32 %v5977, %v6745
        %v7002 = vmul.f32 %v5978, %v6746
        %v7003 = vmul.f32 %v5979, %v6747
        %v7004 = vmul.f32 %v5980, %v6748
        %v7005 = vmul.f32 %v5981, %v6749
        %v7006 = vmul.f32 %v5982, %v6750
        %v7007 = vmul.f32 %v5983, %v6751
        %v7008 = vmul.f32 %v5984, %v6752
        %v7009 = vmul.f32 %v5985, %v6753
        %v7010 = vmul.f32 %v5986, %v6754
        %v7011 = vmul.f32 %v5987, %v6755
        %v7012 = vmul.f32 %v5988, %v6756
        %v7013 = vmul.f32 %v5989, %v6757
        %v7014 = vmul.f32 %v5990, %v6758
        %v7015 = vmul.f32 %v5991, %v6759
        %v7016 = vmul.f32 %v5992, %v6760
        %v7017 = vmul.f32 %v5993, %v6761
        %v7018 = vmul.f32 %v5994, %v6762
        %v7019 = vmul.f32 %v5995, %v6763
        %v7020 = vmul.f32 %v5996, %v6764
        %v7021 = vmul.f32 %v5997, %v6765
        %v7022 = vmul.f32 %v5998, %v6766
        %v7023 = vmul.f32 %v5999, %v6767
        %v7024 = vmul.f32 %v6000, %v6768
        %v7025 = vmul.f32 %v6001, %v6769
        %v7026 = vmul.f32 %v6002, %v6770
        %v7027 = vmul.f32 %v6003, %v6771
        %v7028 = vmul.f32 %v6004, %v6772
        %v7029 = vmul.f32 %v6005, %v6773
        %v7030 = vmul.f32 %v6006, %v6774
        %v7031 = vmul.f32 %v6007, %v6775
        %v7032 = vmul.f32 %v6008, %v6776
        %v7033 = vmul.f32 %v6009, %v6777
        %v7034 = vmul.f32 %v6010, %v6778
        %v7035 = vmul.f32 %v6011, %v6779
        %v7036 = vmul.f32 %v6012, %v6780
        %v7037 = vmul.f32 %v6013, %v6781
        %v7038 = vmul.f32 %v6014, %v6782
        %v7039 = vmul.f32 %v6015, %v6783
        %v7040 = vmul.f32 %v6016, %v6784
        %v7041 = vmul.f32 %v6017, %v6785
        %v7042 = vmul.f32 %v6018, %v6786
        %v7043 = vmul.f32 %v6019, %v6787
        %v7044 = vmul.f32 %v6020, %v6788
        %v7045 = vmul.f32 %v6021, %v6789
        %v7046 = vmul.f32 %v6022, %v6790
        %v7047 = vmul.f32 %v6023, %v6791
        %v7048 = vmul.f32 %v6024, %v6792
        %v7049 = vmul.f32 %v6025, %v6793
        %v7050 = vmul.f32 %v6026, %v6794
        %v7051 = vmul.f32 %v6027, %v6795
        %v7052 = vadd.f32 %v3468, %v6796
        %v7053 = vadd.f32 %v3469, %v6797
        %v7054 = vadd.f32 %v3470, %v6798
        %v7055 = vadd.f32 %v3471, %v6799
        %v7056 = vadd.f32 %v3472, %v6800
        %v7057 = vadd.f32 %v3473, %v6801
        %v7058 = vadd.f32 %v3474, %v6802
        %v7059 = vadd.f32 %v3475, %v6803
        %v7060 = vadd.f32 %v3476, %v6804
        %v7061 = vadd.f32 %v3477, %v6805
        %v7062 = vadd.f32 %v3478, %v6806
        %v7063 = vadd.f32 %v3479, %v6807
        %v7064 = vadd.f32 %v3480, %v6808
        %v7065 = vadd.f32 %v3481, %v6809
        %v7066 = vadd.f32 %v3482, %v6810
        %v7067 = vadd.f32 %v3483, %v6811
        %v7068 = vadd.f32 %v3484, %v6812
        %v7069 = vadd.f32 %v3485, %v6813
        %v7070 = vadd.f32 %v3486, %v6814
        %v7071 = vadd.f32 %v3487, %v6815
        %v7072 = vadd.f32 %v3488, %v6816
        %v7073 = vadd.f32 %v3489, %v6817
        %v7074 = vadd.f32 %v3490, %v6818
        %v7075 = vadd.f32 %v3491, %v6819
        %v7076 = vadd.f32 %v3492, %v6820
        %v7077 = vadd.f32 %v3493, %v6821
        %v7078 = vadd.f32 %v3494, %v6822
        %v7079 = vadd.f32 %v3495, %v6823
        %v7080 = vadd.f32 %v3496, %v6824
        %v7081 = vadd.f32 %v3497, %v6825
        %v7082 = vadd.f32 %v3498, %v6826
        %v7083 = vadd.f32 %v3499, %v6827
        %v7084 = vadd.f32 %v3500, %v6828
        %v7085 = vadd.f32 %v3501, %v6829
        %v7086 = vadd.f32 %v3502, %v6830
        %v7087 = vadd.f32 %v3503, %v6831
        %v7088 = vadd.f32 %v3504, %v6832
        %v7089 = vadd.f32 %v3505, %v6833
        %v7090 = vadd.f32 %v3506, %v6834
        %v7091 = vadd.f32 %v3507, %v6835
        %v7092 = vadd.f32 %v3508, %v6836
        %v7093 = vadd.f32 %v3509, %v6837
        %v7094 = vadd.f32 %v3510, %v6838
        %v7095 = vadd.f32 %v3511, %v6839
        %v7096 = vadd.f32 %v3512, %v6840
        %v7097 = vadd.f32 %v3513, %v6841
        %v7098 = vadd.f32 %v3514, %v6842
        %v7099 = vadd.f32 %v3515, %v6843
        %v7100 = vadd.f32 %v3516, %v6844
        %v7101 = vadd.f32 %v3517, %v6845
        %v7102 = vadd.f32 %v3518, %v6846
        %v7103 = vadd.f32 %v3519, %v6847
        %v7104 = vadd.f32 %v3520, %v6848
        %v7105 = vadd.f32 %v3521, %v6849
        %v7106 = vadd.f32 %v3522, %v6850
        %v7107 = vadd.f32 %v3523, %v6851
        %v7108 = vadd.f32 %v3524, %v6852
        %v7109 = vadd.f32 %v3525, %v6853
        %v7110 = vadd.f32 %v3526, %v6854
        %v7111 = vadd.f32 %v3527, %v6855
        %v7112 = vadd.f32 %v3528, %v6856
        %v7113 = vadd.f32 %v3529, %v6857
        %v7114 = vadd.f32 %v3530, %v6858
        %v7115 = vadd.f32 %v3531, %v6859
        %v7116 = vadd.f32 %v3532, %v6860
        %v7117 = vadd.f32 %v3533, %v6861
        %v7118 = vadd.f32 %v3534, %v6862
        %v7119 = vadd.f32 %v3535, %v6863
        %v7120 = vadd.f32 %v3536, %v6864
        %v7121 = vadd.f32 %v3537, %v6865
        %v7122 = vadd.f32 %v3538, %v6866
        %v7123 = vadd.f32 %v3539, %v6867
        %v7124 = vadd.f32 %v3540, %v6868
        %v7125 = vadd.f32 %v3541, %v6869
        %v7126 = vadd.f32 %v3542, %v6870
        %v7127 = vadd.f32 %v3543, %v6871
        %v7128 = vadd.f32 %v3544, %v6872
        %v7129 = vadd.f32 %v3545, %v6873
        %v7130 = vadd.f32 %v3546, %v6874
        %v7131 = vadd.f32 %v3547, %v6875
        %v7132 = vadd.f32 %v3548, %v6876
        %v7133 = vadd.f32 %v3549, %v6877
        %v7134 = vadd.f32 %v3550, %v6878
        %v7135 = vadd.f32 %v3551, %v6879
        %v7136 = vadd.f32 %v3552, %v6880
        %v7137 = vadd.f32 %v3553, %v6881
        %v7138 = vadd.f32 %v3554, %v6882
        %v7139 = vadd.f32 %v3555, %v6883
        %v7140 = vadd.f32 %v3556, %v6884
        %v7141 = vadd.f32 %v3557, %v6885
        %v7142 = vadd.f32 %v3558, %v6886
        %v7143 = vadd.f32 %v3559, %v6887
        %v7144 = vadd.f32 %v3560, %v6888
        %v7145 = vadd.f32 %v3561, %v6889
        %v7146 = vadd.f32 %v3562, %v6890
        %v7147 = vadd.f32 %v3563, %v6891
        %v7148 = vadd.f32 %v3564, %v6892
        %v7149 = vadd.f32 %v3565, %v6893
        %v7150 = vadd.f32 %v3566, %v6894
        %v7151 = vadd.f32 %v3567, %v6895
        %v7152 = vadd.f32 %v3568, %v6896
        %v7153 = vadd.f32 %v3569, %v6897
        %v7154 = vadd.f32 %v3570, %v6898
        %v7155 = vadd.f32 %v3571, %v6899
        %v7156 = vadd.f32 %v3572, %v6900
        %v7157 = vadd.f32 %v3573, %v6901
        %v7158 = vadd.f32 %v3574, %v6902
        %v7159 = vadd.f32 %v3575, %v6903
        %v7160 = vadd.f32 %v3576, %v6904
        %v7161 = vadd.f32 %v3577, %v6905
        %v7162 = vadd.f32 %v3578, %v6906
        %v7163 = vadd.f32 %v3579, %v6907
        %v7164 = vadd.f32 %v3580, %v6908
        %v7165 = vadd.f32 %v3581, %v6909
        %v7166 = vadd.f32 %v3582, %v6910
        %v7167 = vadd.f32 %v3583, %v6911
        %v7168 = vadd.f32 %v3584, %v6912
        %v7169 = vadd.f32 %v3585, %v6913
        %v7170 = vadd.f32 %v3586, %v6914
        %v7171 = vadd.f32 %v3587, %v6915
        %v7172 = vadd.f32 %v3588, %v6916
        %v7173 = vadd.f32 %v3589, %v6917
        %v7174 = vadd.f32 %v3590, %v6918
        %v7175 = vadd.f32 %v3591, %v6919
        %v7176 = vadd.f32 %v3592, %v6920
        %v7177 = vadd.f32 %v3593, %v6921
        %v7178 = vadd.f32 %v3594, %v6922
        %v7179 = vadd.f32 %v3595, %v6923
        %v7180 = vadd.f32 %v3596, %v6924
        %v7181 = vadd.f32 %v3597, %v6925
        %v7182 = vadd.f32 %v3598, %v6926
        %v7183 = vadd.f32 %v3599, %v6927
        %v7184 = vadd.f32 %v3600, %v6928
        %v7185 = vadd.f32 %v3601, %v6929
        %v7186 = vadd.f32 %v3602, %v6930
        %v7187 = vadd.f32 %v3603, %v6931
        %v7188 = vadd.f32 %v3604, %v6932
        %v7189 = vadd.f32 %v3605, %v6933
        %v7190 = vadd.f32 %v3606, %v6934
        %v7191 = vadd.f32 %v3607, %v6935
        %v7192 = vadd.f32 %v3608, %v6936
        %v7193 = vadd.f32 %v3609, %v6937
        %v7194 = vadd.f32 %v3610, %v6938
        %v7195 = vadd.f32 %v3611, %v6939
        %v7196 = vadd.f32 %v3612, %v6940
        %v7197 = vadd.f32 %v3613, %v6941
        %v7198 = vadd.f32 %v3614, %v6942
        %v7199 = vadd.f32 %v3615, %v6943
        %v7200 = vadd.f32 %v3616, %v6944
        %v7201 = vadd.f32 %v3617, %v6945
        %v7202 = vadd.f32 %v3618, %v6946
        %v7203 = vadd.f32 %v3619, %v6947
        %v7204 = vadd.f32 %v3620, %v6948
        %v7205 = vadd.f32 %v3621, %v6949
        %v7206 = vadd.f32 %v3622, %v6950
        %v7207 = vadd.f32 %v3623, %v6951
        %v7208 = vadd.f32 %v3624, %v6952
        %v7209 = vadd.f32 %v3625, %v6953
        %v7210 = vadd.f32 %v3626, %v6954
        %v7211 = vadd.f32 %v3627, %v6955
        %v7212 = vadd.f32 %v3628, %v6956
        %v7213 = vadd.f32 %v3629, %v6957
        %v7214 = vadd.f32 %v3630, %v6958
        %v7215 = vadd.f32 %v3631, %v6959
        %v7216 = vadd.f32 %v3632, %v6960
        %v7217 = vadd.f32 %v3633, %v6961
        %v7218 = vadd.f32 %v3634, %v6962
        %v7219 = vadd.f32 %v3635, %v6963
        %v7220 = vadd.f32 %v3636, %v6964
        %v7221 = vadd.f32 %v3637, %v6965
        %v7222 = vadd.f32 %v3638, %v6966
        %v7223 = vadd.f32 %v3639, %v6967
        %v7224 = vadd.f32 %v3640, %v6968
        %v7225 = vadd.f32 %v3641, %v6969
        %v7226 = vadd.f32 %v3642, %v6970
        %v7227 = vadd.f32 %v3643, %v6971
        %v7228 = vadd.f32 %v3644, %v6972
        %v7229 = vadd.f32 %v3645, %v6973
        %v7230 = vadd.f32 %v3646, %v6974
        %v7231 = vadd.f32 %v3647, %v6975
        %v7232 = vadd.f32 %v3648, %v6976
        %v7233 = vadd.f32 %v3649, %v6977
        %v7234 = vadd.f32 %v3650, %v6978
        %v7235 = vadd.f32 %v3651, %v6979
        %v7236 = vadd.f32 %v3652, %v6980
        %v7237 = vadd.f32 %v3653, %v6981
        %v7238 = vadd.f32 %v3654, %v6982
        %v7239 = vadd.f32 %v3655, %v6983
        %v7240 = vadd.f32 %v3656, %v6984
        %v7241 = vadd.f32 %v3657, %v6985
        %v7242 = vadd.f32 %v3658, %v6986
        %v7243 = vadd.f32 %v3659, %v6987
        %v7244 = vadd.f32 %v3660, %v6988
        %v7245 = vadd.f32 %v3661, %v6989
        %v7246 = vadd.f32 %v3662, %v6990
        %v7247 = vadd.f32 %v3663, %v6991
        %v7248 = vadd.f32 %v3664, %v6992
        %v7249 = vadd.f32 %v3665, %v6993
        %v7250 = vadd.f32 %v3666, %v6994
        %v7251 = vadd.f32 %v3667, %v6995
        %v7252 = vadd.f32 %v3668, %v6996
        %v7253 = vadd.f32 %v3669, %v6997
        %v7254 = vadd.f32 %v3670, %v6998
        %v7255 = vadd.f32 %v3671, %v6999
        %v7256 = vadd.f32 %v3672, %v7000
        %v7257 = vadd.f32 %v3673, %v7001
        %v7258 = vadd.f32 %v3674, %v7002
        %v7259 = vadd.f32 %v3675, %v7003
        %v7260 = vadd.f32 %v3676, %v7004
        %v7261 = vadd.f32 %v3677, %v7005
        %v7262 = vadd.f32 %v3678, %v7006
        %v7263 = vadd.f32 %v3679, %v7007
        %v7264 = vadd.f32 %v3680, %v7008
        %v7265 = vadd.f32 %v3681, %v7009
        %v7266 = vadd.f32 %v3682, %v7010
        %v7267 = vadd.f32 %v3683, %v7011
        %v7268 = vadd.f32 %v3684, %v7012
        %v7269 = vadd.f32 %v3685, %v7013
        %v7270 = vadd.f32 %v3686, %v7014
        %v7271 = vadd.f32 %v3687, %v7015
        %v7272 = vadd.f32 %v3688, %v7016
        %v7273 = vadd.f32 %v3689, %v7017
        %v7274 = vadd.f32 %v3690, %v7018
        %v7275 = vadd.f32 %v3691, %v7019
        %v7276 = vadd.f32 %v3692, %v7020
        %v7277 = vadd.f32 %v3693, %v7021
        %v7278 = vadd.f32 %v3694, %v7022
        %v7279 = vadd.f32 %v3695, %v7023
        %v7280 = vadd.f32 %v3696, %v7024
        %v7281 = vadd.f32 %v3697, %v7025
        %v7282 = vadd.f32 %v3698, %v7026
        %v7283 = vadd.f32 %v3699, %v7027
        %v7284 = vadd.f32 %v3700, %v7028
        %v7285 = vadd.f32 %v3701, %v7029
        %v7286 = vadd.f32 %v3702, %v7030
        %v7287 = vadd.f32 %v3703, %v7031
        %v7288 = vadd.f32 %v3704, %v7032
        %v7289 = vadd.f32 %v3705, %v7033
        %v7290 = vadd.f32 %v3706, %v7034
        %v7291 = vadd.f32 %v3707, %v7035
        %v7292 = vadd.f32 %v3708, %v7036
        %v7293 = vadd.f32 %v3709, %v7037
        %v7294 = vadd.f32 %v3710, %v7038
        %v7295 = vadd.f32 %v3711, %v7039
        %v7296 = vadd.f32 %v3712, %v7040
        %v7297 = vadd.f32 %v3713, %v7041
        %v7298 = vadd.f32 %v3714, %v7042
        %v7299 = vadd.f32 %v3715, %v7043
        %v7300 = vadd.f32 %v3716, %v7044
        %v7301 = vadd.f32 %v3717, %v7045
        %v7302 = vadd.f32 %v3718, %v7046
        %v7303 = vadd.f32 %v3719, %v7047
        %v7304 = vadd.f32 %v3720, %v7048
        %v7305 = vadd.f32 %v3721, %v7049
        %v7306 = vadd.f32 %v3722, %v7050
        %v7307 = vadd.f32 %v3723, %v7051
        %7308 = vst [vmem:[%s137] sm:$0xff] %v7052
        %7309 = vst [vmem:[%s137 + $0x8] sm:$0xff] %v7053
        %7310 = vst [vmem:[%s137 + $0x10] sm:$0xff] %v7054
        %7311 = vst [vmem:[%s137 + $0x18] sm:$0xff] %v7055
        %7312 = vst [vmem:[%s137 + $0x20] sm:$0xff] %v7056
        %7313 = vst [vmem:[%s137 + $0x28] sm:$0xff] %v7057
        %7314 = vst [vmem:[%s137 + $0x30] sm:$0xff] %v7058
        %7315 = vst [vmem:[%s137 + $0x38] sm:$0xff] %v7059
        %7316 = vst [vmem:[%s137 + $0x40] sm:$0xff] %v7060
        %7317 = vst [vmem:[%s137 + $0x48] sm:$0xff] %v7061
        %7318 = vst [vmem:[%s137 + $0x50] sm:$0xff] %v7062
        %7319 = vst [vmem:[%s137 + $0x58] sm:$0xff] %v7063
        %7320 = vst [vmem:[%s137 + $0x60] sm:$0xff] %v7064
        %7321 = vst [vmem:[%s137 + $0x68] sm:$0xff] %v7065
        %7322 = vst [vmem:[%s137 + $0x70] sm:$0xff] %v7066
        %7323 = vst [vmem:[%s137 + $0x78] sm:$0xff] %v7067
        %7324 = vst [vmem:[%s137 + $0x80] sm:$0xff] %v7068
        %7325 = vst [vmem:[%s137 + $0x88] sm:$0xff] %v7069
        %7326 = vst [vmem:[%s137 + $0x90] sm:$0xff] %v7070
        %7327 = vst [vmem:[%s137 + $0x98] sm:$0xff] %v7071
        %7328 = vst [vmem:[%s137 + $0xa0] sm:$0xff] %v7072
        %7329 = vst [vmem:[%s137 + $0xa8] sm:$0xff] %v7073
        %7330 = vst [vmem:[%s137 + $0xb0] sm:$0xff] %v7074
        %7331 = vst [vmem:[%s137 + $0xb8] sm:$0xff] %v7075
        %7332 = vst [vmem:[%s137 + $0xc0] sm:$0xff] %v7076
        %7333 = vst [vmem:[%s137 + $0xc8] sm:$0xff] %v7077
        %7334 = vst [vmem:[%s137 + $0xd0] sm:$0xff] %v7078
        %7335 = vst [vmem:[%s137 + $0xd8] sm:$0xff] %v7079
        %7336 = vst [vmem:[%s137 + $0xe0] sm:$0xff] %v7080
        %7337 = vst [vmem:[%s137 + $0xe8] sm:$0xff] %v7081
        %7338 = vst [vmem:[%s137 + $0xf0] sm:$0xff] %v7082
        %7339 = vst [vmem:[%s137 + $0xf8] sm:$0xff] %v7083
        %7340 = vst [vmem:[%s137 + $0x100] sm:$0xff] %v7084
        %7341 = vst [vmem:[%s137 + $0x108] sm:$0xff] %v7085
        %7342 = vst [vmem:[%s137 + $0x110] sm:$0xff] %v7086
        %7343 = vst [vmem:[%s137 + $0x118] sm:$0xff] %v7087
        %7344 = vst [vmem:[%s137 + $0x120] sm:$0xff] %v7088
        %7345 = vst [vmem:[%s137 + $0x128] sm:$0xff] %v7089
        %7346 = vst [vmem:[%s137 + $0x130] sm:$0xff] %v7090
        %7347 = vst [vmem:[%s137 + $0x138] sm:$0xff] %v7091
        %7348 = vst [vmem:[%s137 + $0x140] sm:$0xff] %v7092
        %7349 = vst [vmem:[%s137 + $0x148] sm:$0xff] %v7093
        %7350 = vst [vmem:[%s137 + $0x150] sm:$0xff] %v7094
        %7351 = vst [vmem:[%s137 + $0x158] sm:$0xff] %v7095
        %7352 = vst [vmem:[%s137 + $0x160] sm:$0xff] %v7096
        %7353 = vst [vmem:[%s137 + $0x168] sm:$0xff] %v7097
        %7354 = vst [vmem:[%s137 + $0x170] sm:$0xff] %v7098
        %7355 = vst [vmem:[%s137 + $0x178] sm:$0xff] %v7099
        %7356 = vst [vmem:[%s137 + $0x180] sm:$0xff] %v7100
        %7357 = vst [vmem:[%s137 + $0x188] sm:$0xff] %v7101
        %7358 = vst [vmem:[%s137 + $0x190] sm:$0xff] %v7102
        %7359 = vst [vmem:[%s137 + $0x198] sm:$0xff] %v7103
        %7360 = vst [vmem:[%s137 + $0x1a0] sm:$0xff] %v7104
        %7361 = vst [vmem:[%s137 + $0x1a8] sm:$0xff] %v7105
        %7362 = vst [vmem:[%s137 + $0x1b0] sm:$0xff] %v7106
        %7363 = vst [vmem:[%s137 + $0x1b8] sm:$0xff] %v7107
        %7364 = vst [vmem:[%s137 + $0x1c0] sm:$0xff] %v7108
        %7365 = vst [vmem:[%s137 + $0x1c8] sm:$0xff] %v7109
        %7366 = vst [vmem:[%s137 + $0x1d0] sm:$0xff] %v7110
        %7367 = vst [vmem:[%s137 + $0x1d8] sm:$0xff] %v7111
        %7368 = vst [vmem:[%s137 + $0x1e0] sm:$0xff] %v7112
        %7369 = vst [vmem:[%s137 + $0x1e8] sm:$0xff] %v7113
        %7370 = vst [vmem:[%s137 + $0x1f0] sm:$0xff] %v7114
        %7371 = vst [vmem:[%s137 + $0x1f8] sm:$0xff] %v7115
        %7372 = vst [vmem:[%s137 + $0x200] sm:$0xff] %v7116
        %7373 = vst [vmem:[%s137 + $0x208] sm:$0xff] %v7117
        %7374 = vst [vmem:[%s137 + $0x210] sm:$0xff] %v7118
        %7375 = vst [vmem:[%s137 + $0x218] sm:$0xff] %v7119
        %7376 = vst [vmem:[%s137 + $0x220] sm:$0xff] %v7120
        %7377 = vst [vmem:[%s137 + $0x228] sm:$0xff] %v7121
        %7378 = vst [vmem:[%s137 + $0x230] sm:$0xff] %v7122
        %7379 = vst [vmem:[%s137 + $0x238] sm:$0xff] %v7123
        %7380 = vst [vmem:[%s137 + $0x240] sm:$0xff] %v7124
        %7381 = vst [vmem:[%s137 + $0x248] sm:$0xff] %v7125
        %7382 = vst [vmem:[%s137 + $0x250] sm:$0xff] %v7126
        %7383 = vst [vmem:[%s137 + $0x258] sm:$0xff] %v7127
        %7384 = vst [vmem:[%s137 + $0x260] sm:$0xff] %v7128
        %7385 = vst [vmem:[%s137 + $0x268] sm:$0xff] %v7129
        %7386 = vst [vmem:[%s137 + $0x270] sm:$0xff] %v7130
        %7387 = vst [vmem:[%s137 + $0x278] sm:$0xff] %v7131
        %7388 = vst [vmem:[%s137 + $0x280] sm:$0xff] %v7132
        %7389 = vst [vmem:[%s137 + $0x288] sm:$0xff] %v7133
        %7390 = vst [vmem:[%s137 + $0x290] sm:$0xff] %v7134
        %7391 = vst [vmem:[%s137 + $0x298] sm:$0xff] %v7135
        %7392 = vst [vmem:[%s137 + $0x2a0] sm:$0xff] %v7136
        %7393 = vst [vmem:[%s137 + $0x2a8] sm:$0xff] %v7137
        %7394 = vst [vmem:[%s137 + $0x2b0] sm:$0xff] %v7138
        %7395 = vst [vmem:[%s137 + $0x2b8] sm:$0xff] %v7139
        %7396 = vst [vmem:[%s137 + $0x2c0] sm:$0xff] %v7140
        %7397 = vst [vmem:[%s137 + $0x2c8] sm:$0xff] %v7141
        %7398 = vst [vmem:[%s137 + $0x2d0] sm:$0xff] %v7142
        %7399 = vst [vmem:[%s137 + $0x2d8] sm:$0xff] %v7143
        %7400 = vst [vmem:[%s137 + $0x2e0] sm:$0xff] %v7144
        %7401 = vst [vmem:[%s137 + $0x2e8] sm:$0xff] %v7145
        %7402 = vst [vmem:[%s137 + $0x2f0] sm:$0xff] %v7146
        %7403 = vst [vmem:[%s137 + $0x2f8] sm:$0xff] %v7147
        %7404 = vst [vmem:[%s137 + $0x300] sm:$0xff] %v7148
        %7405 = vst [vmem:[%s137 + $0x308] sm:$0xff] %v7149
        %7406 = vst [vmem:[%s137 + $0x310] sm:$0xff] %v7150
        %7407 = vst [vmem:[%s137 + $0x318] sm:$0xff] %v7151
        %7408 = vst [vmem:[%s137 + $0x320] sm:$0xff] %v7152
        %7409 = vst [vmem:[%s137 + $0x328] sm:$0xff] %v7153
        %7410 = vst [vmem:[%s137 + $0x330] sm:$0xff] %v7154
        %7411 = vst [vmem:[%s137 + $0x338] sm:$0xff] %v7155
        %7412 = vst [vmem:[%s137 + $0x340] sm:$0xff] %v7156
        %7413 = vst [vmem:[%s137 + $0x348] sm:$0xff] %v7157
        %7414 = vst [vmem:[%s137 + $0x350] sm:$0xff] %v7158
        %7415 = vst [vmem:[%s137 + $0x358] sm:$0xff] %v7159
        %7416 = vst [vmem:[%s137 + $0x360] sm:$0xff] %v7160
        %7417 = vst [vmem:[%s137 + $0x368] sm:$0xff] %v7161
        %7418 = vst [vmem:[%s137 + $0x370] sm:$0xff] %v7162
        %7419 = vst [vmem:[%s137 + $0x378] sm:$0xff] %v7163
        %7420 = vst [vmem:[%s137 + $0x380] sm:$0xff] %v7164
        %7421 = vst [vmem:[%s137 + $0x388] sm:$0xff] %v7165
        %7422 = vst [vmem:[%s137 + $0x390] sm:$0xff] %v7166
        %7423 = vst [vmem:[%s137 + $0x398] sm:$0xff] %v7167
        %7424 = vst [vmem:[%s137 + $0x3a0] sm:$0xff] %v7168
        %7425 = vst [vmem:[%s137 + $0x3a8] sm:$0xff] %v7169
        %7426 = vst [vmem:[%s137 + $0x3b0] sm:$0xff] %v7170
        %7427 = vst [vmem:[%s137 + $0x3b8] sm:$0xff] %v7171
        %7428 = vst [vmem:[%s137 + $0x3c0] sm:$0xff] %v7172
        %7429 = vst [vmem:[%s137 + $0x3c8] sm:$0xff] %v7173
        %7430 = vst [vmem:[%s137 + $0x3d0] sm:$0xff] %v7174
        %7431 = vst [vmem:[%s137 + $0x3d8] sm:$0xff] %v7175
        %7432 = vst [vmem:[%s137 + $0x3e0] sm:$0xff] %v7176
        %7433 = vst [vmem:[%s137 + $0x3e8] sm:$0xff] %v7177
        %7434 = vst [vmem:[%s137 + $0x3f0] sm:$0xff] %v7178
        %7435 = vst [vmem:[%s137 + $0x3f8] sm:$0xff] %v7179
        %7436 = vst [vmem:[%s137 + $0x400] sm:$0xff] %v7180
        %7437 = vst [vmem:[%s137 + $0x408] sm:$0xff] %v7181
        %7438 = vst [vmem:[%s137 + $0x410] sm:$0xff] %v7182
        %7439 = vst [vmem:[%s137 + $0x418] sm:$0xff] %v7183
        %7440 = vst [vmem:[%s137 + $0x420] sm:$0xff] %v7184
        %7441 = vst [vmem:[%s137 + $0x428] sm:$0xff] %v7185
        %7442 = vst [vmem:[%s137 + $0x430] sm:$0xff] %v7186
        %7443 = vst [vmem:[%s137 + $0x438] sm:$0xff] %v7187
        %7444 = vst [vmem:[%s137 + $0x440] sm:$0xff] %v7188
        %7445 = vst [vmem:[%s137 + $0x448] sm:$0xff] %v7189
        %7446 = vst [vmem:[%s137 + $0x450] sm:$0xff] %v7190
        %7447 = vst [vmem:[%s137 + $0x458] sm:$0xff] %v7191
        %7448 = vst [vmem:[%s137 + $0x460] sm:$0xff] %v7192
        %7449 = vst [vmem:[%s137 + $0x468] sm:$0xff] %v7193
        %7450 = vst [vmem:[%s137 + $0x470] sm:$0xff] %v7194
        %7451 = vst [vmem:[%s137 + $0x478] sm:$0xff] %v7195
        %7452 = vst [vmem:[%s137 + $0x480] sm:$0xff] %v7196
        %7453 = vst [vmem:[%s137 + $0x488] sm:$0xff] %v7197
        %7454 = vst [vmem:[%s137 + $0x490] sm:$0xff] %v7198
        %7455 = vst [vmem:[%s137 + $0x498] sm:$0xff] %v7199
        %7456 = vst [vmem:[%s137 + $0x4a0] sm:$0xff] %v7200
        %7457 = vst [vmem:[%s137 + $0x4a8] sm:$0xff] %v7201
        %7458 = vst [vmem:[%s137 + $0x4b0] sm:$0xff] %v7202
        %7459 = vst [vmem:[%s137 + $0x4b8] sm:$0xff] %v7203
        %7460 = vst [vmem:[%s137 + $0x4c0] sm:$0xff] %v7204
        %7461 = vst [vmem:[%s137 + $0x4c8] sm:$0xff] %v7205
        %7462 = vst [vmem:[%s137 + $0x4d0] sm:$0xff] %v7206
        %7463 = vst [vmem:[%s137 + $0x4d8] sm:$0xff] %v7207
        %7464 = vst [vmem:[%s137 + $0x4e0] sm:$0xff] %v7208
        %7465 = vst [vmem:[%s137 + $0x4e8] sm:$0xff] %v7209
        %7466 = vst [vmem:[%s137 + $0x4f0] sm:$0xff] %v7210
        %7467 = vst [vmem:[%s137 + $0x4f8] sm:$0xff] %v7211
        %7468 = vst [vmem:[%s137 + $0x500] sm:$0xff] %v7212
        %7469 = vst [vmem:[%s137 + $0x508] sm:$0xff] %v7213
        %7470 = vst [vmem:[%s137 + $0x510] sm:$0xff] %v7214
        %7471 = vst [vmem:[%s137 + $0x518] sm:$0xff] %v7215
        %7472 = vst [vmem:[%s137 + $0x520] sm:$0xff] %v7216
        %7473 = vst [vmem:[%s137 + $0x528] sm:$0xff] %v7217
        %7474 = vst [vmem:[%s137 + $0x530] sm:$0xff] %v7218
        %7475 = vst [vmem:[%s137 + $0x538] sm:$0xff] %v7219
        %7476 = vst [vmem:[%s137 + $0x540] sm:$0xff] %v7220
        %7477 = vst [vmem:[%s137 + $0x548] sm:$0xff] %v7221
        %7478 = vst [vmem:[%s137 + $0x550] sm:$0xff] %v7222
        %7479 = vst [vmem:[%s137 + $0x558] sm:$0xff] %v7223
        %7480 = vst [vmem:[%s137 + $0x560] sm:$0xff] %v7224
        %7481 = vst [vmem:[%s137 + $0x568] sm:$0xff] %v7225
        %7482 = vst [vmem:[%s137 + $0x570] sm:$0xff] %v7226
        %7483 = vst [vmem:[%s137 + $0x578] sm:$0xff] %v7227
        %7484 = vst [vmem:[%s137 + $0x580] sm:$0xff] %v7228
        %7485 = vst [vmem:[%s137 + $0x588] sm:$0xff] %v7229
        %7486 = vst [vmem:[%s137 + $0x590] sm:$0xff] %v7230
        %7487 = vst [vmem:[%s137 + $0x598] sm:$0xff] %v7231
        %7488 = vst [vmem:[%s137 + $0x5a0] sm:$0xff] %v7232
        %7489 = vst [vmem:[%s137 + $0x5a8] sm:$0xff] %v7233
        %7490 = vst [vmem:[%s137 + $0x5b0] sm:$0xff] %v7234
        %7491 = vst [vmem:[%s137 + $0x5b8] sm:$0xff] %v7235
        %7492 = vst [vmem:[%s137 + $0x5c0] sm:$0xff] %v7236
        %7493 = vst [vmem:[%s137 + $0x5c8] sm:$0xff] %v7237
        %7494 = vst [vmem:[%s137 + $0x5d0] sm:$0xff] %v7238
        %7495 = vst [vmem:[%s137 + $0x5d8] sm:$0xff] %v7239
        %7496 = vst [vmem:[%s137 + $0x5e0] sm:$0xff] %v7240
        %7497 = vst [vmem:[%s137 + $0x5e8] sm:$0xff] %v7241
        %7498 = vst [vmem:[%s137 + $0x5f0] sm:$0xff] %v7242
        %7499 = vst [vmem:[%s137 + $0x5f8] sm:$0xff] %v7243
        %7500 = vst [vmem:[%s137 + $0x600] sm:$0xff] %v7244
        %7501 = vst [vmem:[%s137 + $0x608] sm:$0xff] %v7245
        %7502 = vst [vmem:[%s137 + $0x610] sm:$0xff] %v7246
        %7503 = vst [vmem:[%s137 + $0x618] sm:$0xff] %v7247
        %7504 = vst [vmem:[%s137 + $0x620] sm:$0xff] %v7248
        %7505 = vst [vmem:[%s137 + $0x628] sm:$0xff] %v7249
        %7506 = vst [vmem:[%s137 + $0x630] sm:$0xff] %v7250
        %7507 = vst [vmem:[%s137 + $0x638] sm:$0xff] %v7251
        %7508 = vst [vmem:[%s137 + $0x640] sm:$0xff] %v7252
        %7509 = vst [vmem:[%s137 + $0x648] sm:$0xff] %v7253
        %7510 = vst [vmem:[%s137 + $0x650] sm:$0xff] %v7254
        %7511 = vst [vmem:[%s137 + $0x658] sm:$0xff] %v7255
        %7512 = vst [vmem:[%s137 + $0x660] sm:$0xff] %v7256
        %7513 = vst [vmem:[%s137 + $0x668] sm:$0xff] %v7257
        %7514 = vst [vmem:[%s137 + $0x670] sm:$0xff] %v7258
        %7515 = vst [vmem:[%s137 + $0x678] sm:$0xff] %v7259
        %7516 = vst [vmem:[%s137 + $0x680] sm:$0xff] %v7260
        %7517 = vst [vmem:[%s137 + $0x688] sm:$0xff] %v7261
        %7518 = vst [vmem:[%s137 + $0x690] sm:$0xff] %v7262
        %7519 = vst [vmem:[%s137 + $0x698] sm:$0xff] %v7263
        %7520 = vst [vmem:[%s137 + $0x6a0] sm:$0xff] %v7264
        %7521 = vst [vmem:[%s137 + $0x6a8] sm:$0xff] %v7265
        %7522 = vst [vmem:[%s137 + $0x6b0] sm:$0xff] %v7266
        %7523 = vst [vmem:[%s137 + $0x6b8] sm:$0xff] %v7267
        %7524 = vst [vmem:[%s137 + $0x6c0] sm:$0xff] %v7268
        %7525 = vst [vmem:[%s137 + $0x6c8] sm:$0xff] %v7269
        %7526 = vst [vmem:[%s137 + $0x6d0] sm:$0xff] %v7270
        %7527 = vst [vmem:[%s137 + $0x6d8] sm:$0xff] %v7271
        %7528 = vst [vmem:[%s137 + $0x6e0] sm:$0xff] %v7272
        %7529 = vst [vmem:[%s137 + $0x6e8] sm:$0xff] %v7273
        %7530 = vst [vmem:[%s137 + $0x6f0] sm:$0xff] %v7274
        %7531 = vst [vmem:[%s137 + $0x6f8] sm:$0xff] %v7275
        %7532 = vst [vmem:[%s137 + $0x700] sm:$0xff] %v7276
        %7533 = vst [vmem:[%s137 + $0x708] sm:$0xff] %v7277
        %7534 = vst [vmem:[%s137 + $0x710] sm:$0xff] %v7278
        %7535 = vst [vmem:[%s137 + $0x718] sm:$0xff] %v7279
        %7536 = vst [vmem:[%s137 + $0x720] sm:$0xff] %v7280
        %7537 = vst [vmem:[%s137 + $0x728] sm:$0xff] %v7281
        %7538 = vst [vmem:[%s137 + $0x730] sm:$0xff] %v7282
        %7539 = vst [vmem:[%s137 + $0x738] sm:$0xff] %v7283
        %7540 = vst [vmem:[%s137 + $0x740] sm:$0xff] %v7284
        %7541 = vst [vmem:[%s137 + $0x748] sm:$0xff] %v7285
        %7542 = vst [vmem:[%s137 + $0x750] sm:$0xff] %v7286
        %7543 = vst [vmem:[%s137 + $0x758] sm:$0xff] %v7287
        %7544 = vst [vmem:[%s137 + $0x760] sm:$0xff] %v7288
        %7545 = vst [vmem:[%s137 + $0x768] sm:$0xff] %v7289
        %7546 = vst [vmem:[%s137 + $0x770] sm:$0xff] %v7290
        %7547 = vst [vmem:[%s137 + $0x778] sm:$0xff] %v7291
        %7548 = vst [vmem:[%s137 + $0x780] sm:$0xff] %v7292
        %7549 = vst [vmem:[%s137 + $0x788] sm:$0xff] %v7293
        %7550 = vst [vmem:[%s137 + $0x790] sm:$0xff] %v7294
        %7551 = vst [vmem:[%s137 + $0x798] sm:$0xff] %v7295
        %7552 = vst [vmem:[%s137 + $0x7a0] sm:$0xff] %v7296
        %7553 = vst [vmem:[%s137 + $0x7a8] sm:$0xff] %v7297
        %7554 = vst [vmem:[%s137 + $0x7b0] sm:$0xff] %v7298
        %7555 = vst [vmem:[%s137 + $0x7b8] sm:$0xff] %v7299
        %7556 = vst [vmem:[%s137 + $0x7c0] sm:$0xff] %v7300
        %7557 = vst [vmem:[%s137 + $0x7c8] sm:$0xff] %v7301
        %7558 = vst [vmem:[%s137 + $0x7d0] sm:$0xff] %v7302
        %7559 = vst [vmem:[%s137 + $0x7d8] sm:$0xff] %v7303
        %7560 = vst [vmem:[%s137 + $0x7e0] sm:$0xff] %v7304
        %7561 = vst [vmem:[%s137 + $0x7e8] sm:$0xff] %v7305
        %7562 = vst [vmem:[%s137 + $0x7f0] sm:$0xff] %v7306
        %7563 = vst [vmem:[%s137 + $0x7f8] sm:$0xff] %v7307
        %s7564 = sand.u32 %s52, 1
        %s7565 = scalar_lea.sflag [#allocation4], %s7564
        %s7566 = sand.u32 %s52, 1
        %s7567 = smul.addr %s7566, 2048
        %s7568 = scalar_lea.vmem [#allocation5], %s7567
        // Predicated region
        $region29: #{tpu_custom_call.1} parent=23 // pred_check
          %p7569 = pneg %p62
        $region30: #{tpu_custom_call.1} parent=23 // pred_check_branch
          %7571 = sbr.rel (%p7569) target = $region32
        $region31: #{tpu_custom_call.1} parent=23 // pred_region
          %s7572 = smul.u32 32, %s18
          %7574 = vsyncadd %s7565, 0
          %s7575 = smul.addr %s7572, 8
          %s7576 = smul.addr %s7575, 8
          %s7577 = scalar_lea.hbm %s1, %s7576
          %s7578 = sshll.u32 %s7568, 4
          %s7579 = int_to_ptr.vmem [resolvable:$true] %s7578
          %s7580 = sshll.u32 %s7577, 4
          %s7581 = int_to_ptr.hbm [resolvable:$true] %s7580
          %7586 = dma.vmem_to_hbm [thread:$0]  %s7579, 32768, %s7581, %s7565, 1024, 1024, 64
        $region32: #{tpu_custom_call.1} parent=23 // pred_fallthru
          _
      $region24: #{tpu_custom_call.1} parent=5 // pred_fallthru
        _
      %p7587 = scmp.le.s32.totalorder 2, %s13
      // Predicated region
      $region33: #{tpu_custom_call.1} parent=5 // pred_check
        %p7588 = pneg %p7587
      $region34: #{tpu_custom_call.1} parent=5 // pred_check_branch
        %7590 = sbr.rel (%p7588) target = $region36
      $region35: #{tpu_custom_call.1} parent=5 // pred_region
        %s7591 = ssub.s32 %s13, 2
        // Predicated region
        $region37: #{tpu_custom_call.1} parent=35 // pred_check
          %p7592 = pneg %p68
        $region38: #{tpu_custom_call.1} parent=35 // pred_check_branch
          %7594 = sbr.rel (%p7592) target = $region40
        $region39: #{tpu_custom_call.1} parent=35 // pred_region
          %s7595 = sand.u32 %s53, 1
          %s7596 = scalar_lea.sflag [#allocation4], %s7595
          %s7597 = sand.u32 %s53, 1
          %s7598 = smul.addr %s7597, 2048
          %s7599 = scalar_lea.vmem [#allocation5], %s7598
          %7601 = dma.done %s7596, 32768
        $region40: #{tpu_custom_call.1} parent=35 // pred_fallthru
          _
      $region36: #{tpu_custom_call.1} parent=5 // pred_fallthru
        _
    $region6: #{tpu_custom_call.1} parent=1 // loop_footer
      %s17 = sadd.s32 1, %s13
    $region7: #{tpu_custom_call.1} parent=1 // loop_footer_branch
      %12 = sbr.rel target = $region3
    $region8: #{tpu_custom_call.1} parent=1 // loop_exit
      _
    %7602 = vsyncpa [#allocation3], 1
    %s7603 = scalar_lea.sflag [#allocation3], 1
    %7604 = vsyncpa %s7603, 1
    %7605 = vsyncpa [#allocation4], 1
    %s7606 = scalar_lea.sflag [#allocation4], 1
    %7607 = vsyncpa %s7606, 1

</llo_original>
